<compile_context>
chip_gen: v7x
topology: tpu7x:2x2x1
jax: 0.10.0
libtpu: 0.0.40
codegen_flags: <defaults>
</compile_context>

<pallas_src>
import functools

import numpy as np

import jax
import jax.numpy as jnp
from jax import lax
from jax.experimental import pallas as pl
from jax.experimental.pallas import tpu as pltpu


# ----------------------------- in-kernel helpers ----------------------------


def _shift_flat(x, d):
    """y[:, p] = x[:, p + d] with zero fill outside [0, n).  d static."""
    if d == 0:
        return x
    n = x.shape[-1]
    z = jnp.zeros((x.shape[0], abs(d)), x.dtype)
    if d > 0:
        return jnp.concatenate([x[:, d:], z], axis=1)
    return jnp.concatenate([z, x[:, : n + d]], axis=1)


def _masked_taps(x, H, W):
    """Yield (k, tap) for the 9 taps of a 3x3 conv with zero padding=1.

    x is (C, H*W) flattened as p = h*W + w.  tap[c, p] = x[c, h+dh, w+dw]
    (0 outside the image); k = (dh+1)*3 + (dw+1) = kh*3 + kw.
    A w-boundary mask is enough: h-out-of-range taps fall off the flat array
    and are zero-filled by _shift_flat.
    """
    HW = H * W
    w_idx = lax.broadcasted_iota(jnp.int32, (1, HW), 1) % W
    left_ok = w_idx >= 1            # valid when dw == -1
    right_ok = w_idx <= W - 2       # valid when dw == +1
    for dh in (-1, 0, 1):
        for dw in (-1, 0, 1):
            tap = _shift_flat(x, dh * W + dw)
            if dw == -1:
                tap = jnp.where(left_ok, tap, 0.0)
            elif dw == 1:
                tap = jnp.where(right_ok, tap, 0.0)
            yield (dh + 1) * 3 + (dw + 1), tap


def _conv3x3(x, w_ref, H, W):
    """(Cout, HW) = sum_k w_ref[k] (Cout,Cin) @ tap_k (Cin, HW)."""
    acc = None
    for k, tap in _masked_taps(x, H, W):
        t = jnp.dot(w_ref[k], tap, preferred_element_type=jnp.float32)
        acc = t if acc is None else acc + t
    return acc


# ------------------------------- mega-kernel --------------------------------


def _projector_kernel(x_ref, word_ref, u1t_ref, u2t_ref, w1_ref, w2_ref,
                      w3_ref, bvec_ref, twa_ref, o_ref, *, C2, V, H0, W0):
    f32 = jnp.float32
    H1, W1 = 2 * H0, 2 * W0
    H2, W2 = 2 * H1, 2 * W1
    KK = 9 * V

    # ---- Upsample x2 (bilinear, align_corners=False): one lane-dense matmul
    #      against kron(Uh, Uw)^T (bf16 constant is exact; upcast to f32).
    x0 = x_ref[0]                                                   # (C2, H0*W0)
    x1 = jnp.dot(x0, u1t_ref[...].astype(f32),
                 preferred_element_type=f32)                        # (C2, H1*W1)

    # ---- conv3x3 (+BN scale folded in w1) + shift + ReLU.
    bvec = bvec_ref[...]                                            # (C2+2V, 1)
    y1 = jnp.maximum(_conv3x3(x1, w1_ref, H1, W1) + bvec[0:C2], 0.0)

    # ---- Upsample x2 again.
    x2 = jnp.dot(y1, u2t_ref[...].astype(f32),
                 preferred_element_type=f32)                        # (C2, H2*W2)

    # ---- conv3x3 (+BN folded) + ReLU, then fused 1x1 conv (+bias).
    y2 = jnp.maximum(_conv3x3(x2, w2_ref, H2, W2) + bvec[C2:C2 + V], 0.0)
    y3 = (jnp.dot(w3_ref[...], y2, preferred_element_type=f32)
          + bvec[C2 + V:C2 + 2 * V])                                # (V, H2*W2)

    # ---- Text Linear (its bias is folded via a ones column in word_ref).
    proj = jnp.dot(word_ref[0], twa_ref[...],
                   preferred_element_type=f32)                      # (Nc, KK+1)

    # ---- Per-image dynamic 3x3 conv: one matmul against the 9-tap stack.
    taps = [t for _, t in _masked_taps(y3, H2, W2)]                 # 9 x (V, HW2)
    patches = jnp.concatenate(taps, axis=0)                         # (9V, HW2)
    o_ref[0] = (jnp.dot(proj[:, :KK], patches, preferred_element_type=f32)
                + proj[:, KK:KK + 1])                               # (Nc, HW2)


# ------------------------------ host-side glue -------------------------------


def _bilinear_matrix(n_in):
    """Row-interp matrix of Upsample(scale=2, bilinear, align_corners=False)."""
    n_out = 2 * n_in
    dst = np.arange(n_out, dtype=np.float64)
    src = np.maximum(dst * 0.5 - 0.25, 0.0)
    i0 = np.floor(src).astype(np.int64)
    lam = src - i0
    i1 = np.minimum(i0 + 1, n_in - 1)
    u = np.zeros((n_out, n_in), np.float64)
    rows = np.arange(n_out)
    np.add.at(u, (rows, i0), 1.0 - lam)
    np.add.at(u, (rows, i1), lam)
    return u


def _upsample_matrix_T(h, w, dtype):
    """kron(Uh, Uw)^T : (h*w, 4*h*w).  Entries are k/16 -> exact in bf16."""
    u = np.kron(_bilinear_matrix(h), _bilinear_matrix(w))           # (4hw, hw)
    return jnp.asarray(u.T, dtype=dtype)


@functools.partial(jax.jit, static_argnames=("vision_dim", "kernel_size"))
def projector_forward(x_nchw, word, params, vision_dim=8, kernel_size=3):
    assert kernel_size == 3, "implemented for kernel_size=3 (default)"
    eps = 1e-5
    V = vision_dim
    B, C2, H0, W0 = x_nchw.shape
    Nc, _, D = word.shape
    KK = V * kernel_size * kernel_size
    out_dim = KK + 1
    f32 = jnp.float32

    x = x_nchw.astype(f32).reshape(B, C2, H0 * W0)

    # Fold BN (inference mode, running stats) into conv weights / shifts.
    s1 = params["bn1_gamma"] / jnp.sqrt(params["bn1_var"] + eps)
    t1 = params["bn1_beta"] - params["bn1_mean"] * s1
    s2 = params["bn2_gamma"] / jnp.sqrt(params["bn2_var"] + eps)
    t2 = params["bn2_beta"] - params["bn2_mean"] * s2

    # Conv weights -> per-tap stacks (9, Cout, Cin), BN scale folded in.
    w1 = params["conv1_w"].astype(f32) * s1[:, None, None, None]
    w1 = jnp.transpose(w1, (2, 3, 0, 1)).reshape(9, C2, C2)
    w2 = params["conv2_w"].astype(f32) * s2[:, None, None, None]
    w2 = jnp.transpose(w2, (2, 3, 0, 1)).reshape(9, V, C2)
    w3 = params["conv3_w"].astype(f32).reshape(V, V)

    # Per-channel adds packed into one tiny operand: [bn1 shift | bn2 shift | b3].
    bvec = jnp.concatenate(
        [t1, t2, params["conv3_b"].astype(f32)]).reshape(C2 + 2 * V, 1)

    # Text Linear: permute output features to (kh, kw, c)-major so they match
    # the in-kernel tap-stack row order; fold the bias via a ones column.
    perm = np.empty((out_dim,), np.int32)
    for j in range(KK):
        k, c = divmod(j, V)
        perm[j] = c * 9 + k          # original feature index for (c, kh, kw)
    perm[KK] = KK                    # dynamic-conv bias column stays last
    tw = params["txt_w"].astype(f32)[perm, :].T                     # (D, out_dim)
    tb = params["txt_b"].astype(f32)[perm][None, :]                 # (1, out_dim)
    twa = jnp.concatenate([tw, tb], axis=0)                         # (D+1, out_dim)

    word_b = jnp.transpose(word.astype(f32), (1, 0, 2))             # (B, Nc, D)
    word_aug = jnp.concatenate(
        [word_b, jnp.ones((B, Nc, 1), f32)], axis=-1)               # (B, Nc, D+1)

    # Bilinear-x2 matrices (exact in bf16 -> half the constant DMA).
    u1t = _upsample_matrix_T(H0, W0, jnp.bfloat16)                  # (HW0, 4HW0)
    u2t = _upsample_matrix_T(2 * H0, 2 * W0, jnp.bfloat16)          # (4HW0, 16HW0)

    HW0, HW1, HW2 = H0 * W0, 4 * H0 * W0, 16 * H0 * W0
    H2, W2 = 4 * H0, 4 * W0

    kernel = functools.partial(_projector_kernel, C2=C2, V=V, H0=H0, W0=W0)
    out = pl.pallas_call(
        kernel,
        out_shape=jax.ShapeDtypeStruct((B, Nc, HW2), f32),
        grid_spec=pltpu.PrefetchScalarGridSpec(
            num_scalar_prefetch=0,
            grid=(B,),
            in_specs=[
                pl.BlockSpec((1, C2, HW0), lambda b: (b, 0, 0)),        # x
                pl.BlockSpec((1, Nc, D + 1), lambda b: (b, 0, 0)),      # word
                pl.BlockSpec((HW0, HW1), lambda b: (0, 0)),             # u1t
                pl.BlockSpec((HW1, HW2), lambda b: (0, 0)),             # u2t
                pl.BlockSpec((9, C2, C2), lambda b: (0, 0, 0)),         # w1
                pl.BlockSpec((9, V, C2), lambda b: (0, 0, 0)),          # w2
                pl.BlockSpec((V, V), lambda b: (0, 0)),                 # w3
                pl.BlockSpec((C2 + 2 * V, 1), lambda b: (0, 0)),        # bvec
                pl.BlockSpec((D + 1, out_dim), lambda b: (0, 0)),       # twa
            ],
            out_specs=pl.BlockSpec((1, Nc, HW2), lambda b: (b, 0, 0)),
        ),
        compiler_params=pltpu.CompilerParams(
            dimension_semantics=("parallel",),   # v7x: one image per TensorCore
        ),
    )(x, word_aug, u1t, u2t, w1, w2, w3, bvec, twa)
    return out.reshape(B, Nc, H2, W2)


# --------------------------------- params ------------------------------------


def init_params(key, word_dim=32, vision_dim=8, kernel_size=3):
    V = vision_dim
    C2 = 2 * V
    out_dim = V * kernel_size * kernel_size + 1
    ks = jax.random.split(key, 16)

    def uni(k, shape, scale):
        return jax.random.uniform(k, shape, jnp.float32, -scale, scale)

    p = {}
    p["conv1_w"] = uni(ks[0], (C2, C2, 3, 3), (C2 * 9) ** -0.5)
    p["bn1_gamma"] = 1.0 + 0.1 * jax.random.normal(ks[1], (C2,), jnp.float32)
    p["bn1_beta"] = 0.1 * jax.random.normal(ks[2], (C2,), jnp.float32)
    p["bn1_mean"] = 0.1 * jax.random.normal(ks[3], (C2,), jnp.float32)
    p["bn1_var"] = 1.0 + 0.1 * jax.random.uniform(ks[4], (C2,), jnp.float32)

    p["conv2_w"] = uni(ks[5], (V, C2, 3, 3), (C2 * 9) ** -0.5)
    p["bn2_gamma"] = 1.0 + 0.1 * jax.random.normal(ks[6], (V,), jnp.float32)
    p["bn2_beta"] = 0.1 * jax.random.normal(ks[7], (V,), jnp.float32)
    p["bn2_mean"] = 0.1 * jax.random.normal(ks[8], (V,), jnp.float32)
    p["bn2_var"] = 1.0 + 0.1 * jax.random.uniform(ks[9], (V,), jnp.float32)

    p["conv3_w"] = uni(ks[10], (V, V, 1, 1), V ** -0.5)
    p["conv3_b"] = uni(ks[11], (V,), V ** -0.5)

    p["txt_w"] = uni(ks[12], (out_dim, word_dim), word_dim ** -0.5)
    p["txt_b"] = uni(ks[13], (out_dim,), word_dim ** -0.5)
    return p


if __name__ == "__main__":
    key = jax.random.PRNGKey(0)
    V, word_dim, ksz = 8, 32, 3
    B, Nc = 2, 4
    H0 = W0 = 8                                   # module upsamples 4x -> 32x32

    k_p, k_x, k_w = jax.random.split(key, 3)
    params = init_params(k_p, word_dim=word_dim, vision_dim=V, kernel_size=ksz)
    x = jax.random.normal(k_x, (B, 2 * V, H0, W0), jnp.float32)    # NCHW
    word = jax.random.normal(k_w, (Nc, B, word_dim), jnp.float32)  # (Nc, B, D)

    out = projector_forward(x, word, params, vision_dim=V, kernel_size=ksz)
    out = jax.block_until_ready(out)

    assert out.shape == (B, Nc, 4 * H0, 4 * W0), out.shape
    assert bool(jnp.all(jnp.isfinite(out)))
    print("KERNEL_OK")
</pallas_src>

<mosaic_0001>
module attributes {stable_mosaic.version = 11 : i64} {
  func.func @_projector_kernel(%arg0: i32, %arg1: memref<1x16x64xf32, #tpu.memory_space<vmem>>, %arg2: memref<1x4x33xf32, #tpu.memory_space<vmem>>, %arg3: memref<64x256xbf16, #tpu.memory_space<vmem>>, %arg4: memref<256x1024xbf16, #tpu.memory_space<vmem>>, %arg5: memref<9x16x16xf32, #tpu.memory_space<vmem>>, %arg6: memref<9x8x16xf32, #tpu.memory_space<vmem>>, %arg7: memref<8x8xf32, #tpu.memory_space<vmem>>, %arg8: memref<32x1xf32, #tpu.memory_space<vmem>>, %arg9: memref<33x73xf32, #tpu.memory_space<vmem>>, %arg10: memref<1x4x1024xf32, #tpu.memory_space<vmem>>) attributes {dimension_semantics = [#tpu.dimension_semantics<parallel>], iteration_bounds = array<i64: 2>, scalar_prefetch = 0 : i64, scratch_operands = 0 : i64, tpu.core_type = #tpu.core_type<tc>, window_params = [{transform_indices = @transform_0, window_bounds = array<i64: 1, 16, 64>}, {transform_indices = @transform_1, window_bounds = array<i64: 1, 4, 33>}, {pipeline_mode = #tpu.pipeline_mode<synchronous>, transform_indices = @transform_2, window_bounds = array<i64: 64, 256>}, {pipeline_mode = #tpu.pipeline_mode<synchronous>, transform_indices = @transform_3, window_bounds = array<i64: 256, 1024>}, {pipeline_mode = #tpu.pipeline_mode<synchronous>, transform_indices = @transform_4, window_bounds = array<i64: 9, 16, 16>}, {pipeline_mode = #tpu.pipeline_mode<synchronous>, transform_indices = @transform_5, window_bounds = array<i64: 9, 8, 16>}, {pipeline_mode = #tpu.pipeline_mode<synchronous>, transform_indices = @transform_6, window_bounds = array<i64: 8, 8>}, {pipeline_mode = #tpu.pipeline_mode<synchronous>, transform_indices = @transform_7, window_bounds = array<i64: 32, 1>}, {pipeline_mode = #tpu.pipeline_mode<synchronous>, transform_indices = @transform_8, window_bounds = array<i64: 33, 73>}, {transform_indices = @transform_9, window_bounds = array<i64: 1, 4, 1024>}]} {
    %c0 = arith.constant 0 : index
    %c0_0 = arith.constant 0 : index
    %c0_1 = arith.constant 0 : index
    %0 = vector.load %arg1[%c0, %c0_0, %c0_1] : memref<1x16x64xf32, #tpu.memory_space<vmem>>, vector<1x16x64xf32>
    %1 = vector.shape_cast %0 : vector<1x16x64xf32> to vector<16x64xf32>
    %c0_2 = arith.constant 0 : index
    %c0_3 = arith.constant 0 : index
    %2 = vector.load %arg3[%c0_2, %c0_3] : memref<64x256xbf16, #tpu.memory_space<vmem>>, vector<64x256xbf16>
    %3 = arith.extf %2 : vector<64x256xbf16> to vector<64x256xf32>
    %cst = arith.constant dense<0.000000e+00> : vector<16x256xf32>
    %4 = tpu.matmul %1, %3, %cst {dimension_numbers = #tpu.dot_dimension_numbers<[1], [0], [0], [1], [0, 0, 1, 1], [], []>} : vector<16x64xf32>, vector<64x256xf32>, vector<16x256xf32> -> vector<16x256xf32>
    %c0_4 = arith.constant 0 : index
    %c0_5 = arith.constant 0 : index
    %5 = vector.load %arg8[%c0_4, %c0_5] : memref<32x1xf32, #tpu.memory_space<vmem>>, vector<32x1xf32>
    %6 = tpu.iota {dimensions = array<i32: 1>} : vector<1x256xi32>
    %c16_i32 = arith.constant 16 : i32
    %c0_i32 = arith.constant 0 : i32
    %7 = arith.cmpi eq, %c16_i32, %c0_i32 : i32
    %c1_i32 = arith.constant 1 : i32
    %8 = arith.select %7, %c1_i32, %c16_i32 : i32
    %9 = vector.broadcast %8 : i32 to vector<1x256xi32>
    %10 = arith.remsi %6, %9 : vector<1x256xi32>
    %c0_i32_6 = arith.constant 0 : i32
    %11 = vector.broadcast %c0_i32_6 : i32 to vector<1x256xi32>
    %12 = arith.cmpi ne, %10, %11 : vector<1x256xi32>
    %c0_i32_7 = arith.constant 0 : i32
    %13 = vector.broadcast %c0_i32_7 : i32 to vector<1x256xi32>
    %14 = arith.cmpi slt, %10, %13 : vector<1x256xi32>
    %c0_i32_8 = arith.constant 0 : i32
    %15 = arith.cmpi slt, %8, %c0_i32_8 : i32
    %16 = vector.broadcast %15 : i1 to vector<1x256xi1>
    %17 = vector.broadcast %16 : vector<1x256xi1> to vector<1x256xi1>
    %18 = arith.xori %14, %17 : vector<1x256xi1>
    %19 = arith.andi %18, %12 : vector<1x256xi1>
    %20 = vector.broadcast %8 : i32 to vector<1x256xi32>
    %21 = arith.addi %10, %20 : vector<1x256xi32>
    %22 = arith.select %19, %21, %10 : vector<1x256xi1>, vector<1x256xi32>
    %c1_i32_9 = arith.constant 1 : i32
    %23 = vector.broadcast %c1_i32_9 : i32 to vector<1x256xi32>
    %24 = arith.cmpi sge, %22, %23 : vector<1x256xi32>
    %c14_i32 = arith.constant 14 : i32
    %25 = vector.broadcast %c14_i32 : i32 to vector<1x256xi32>
    %26 = arith.cmpi sle, %22, %25 : vector<1x256xi32>
    %cst_10 = arith.constant 0.000000e+00 : f32
    %27 = vector.broadcast %cst_10 : f32 to vector<16x17xf32>
    %28 = vector.extract_strided_slice %4 {offsets = [0, 0], sizes = [16, 239], strides = [1, 1]} : vector<16x256xf32> to vector<16x239xf32>
    %29 = tpu.concatenate %27, %28 in 1 : vector<16x17xf32>, vector<16x239xf32> -> vector<16x256xf32>
    %cst_11 = arith.constant 0.000000e+00 : f32
    %30 = vector.shape_cast %24 : vector<1x256xi1> to vector<1x256xi1>
    %31 = vector.broadcast %30 : vector<1x256xi1> to vector<16x256xi1>
    %32 = vector.broadcast %cst_11 : f32 to vector<16x256xf32>
    %33 = arith.select %31, %29, %32 : vector<16x256xi1>, vector<16x256xf32>
    %c0_12 = arith.constant 0 : index
    %c0_13 = arith.constant 0 : index
    %c0_14 = arith.constant 0 : index
    %34 = vector.load %arg5[%c0_12, %c0_13, %c0_14] : memref<9x16x16xf32, #tpu.memory_space<vmem>>, vector<1x16x16xf32>
    %35 = vector.shape_cast %34 : vector<1x16x16xf32> to vector<16x16xf32>
    %cst_15 = arith.constant dense<0.000000e+00> : vector<16x256xf32>
    %36 = tpu.matmul %35, %33, %cst_15 {dimension_numbers = #tpu.dot_dimension_numbers<[1], [0], [0], [1], [0, 0, 1, 1], [], []>} : vector<16x16xf32>, vector<16x256xf32>, vector<16x256xf32> -> vector<16x256xf32>
    %cst_16 = arith.constant 0.000000e+00 : f32
    %37 = vector.broadcast %cst_16 : f32 to vector<16x16xf32>
    %38 = vector.extract_strided_slice %4 {offsets = [0, 0], sizes = [16, 240], strides = [1, 1]} : vector<16x256xf32> to vector<16x240xf32>
    %39 = tpu.concatenate %37, %38 in 1 : vector<16x16xf32>, vector<16x240xf32> -> vector<16x256xf32>
    %c1 = arith.constant 1 : index
    %c0_17 = arith.constant 0 : index
    %c0_18 = arith.constant 0 : index
    %40 = vector.load %arg5[%c1, %c0_17, %c0_18] : memref<9x16x16xf32, #tpu.memory_space<vmem>>, vector<1x16x16xf32>
    %41 = vector.shape_cast %40 : vector<1x16x16xf32> to vector<16x16xf32>
    %cst_19 = arith.constant dense<0.000000e+00> : vector<16x256xf32>
    %42 = tpu.matmul %41, %39, %cst_19 {dimension_numbers = #tpu.dot_dimension_numbers<[1], [0], [0], [1], [0, 0, 1, 1], [], []>} : vector<16x16xf32>, vector<16x256xf32>, vector<16x256xf32> -> vector<16x256xf32>
    %43 = arith.addf %36, %42 : vector<16x256xf32>
    %cst_20 = arith.constant 0.000000e+00 : f32
    %44 = vector.broadcast %cst_20 : f32 to vector<16x15xf32>
    %45 = vector.extract_strided_slice %4 {offsets = [0, 0], sizes = [16, 241], strides = [1, 1]} : vector<16x256xf32> to vector<16x241xf32>
    %46 = tpu.concatenate %44, %45 in 1 : vector<16x15xf32>, vector<16x241xf32> -> vector<16x256xf32>
    %cst_21 = arith.constant 0.000000e+00 : f32
    %47 = vector.shape_cast %26 : vector<1x256xi1> to vector<1x256xi1>
    %48 = vector.broadcast %47 : vector<1x256xi1> to vector<16x256xi1>
    %49 = vector.broadcast %cst_21 : f32 to vector<16x256xf32>
    %50 = arith.select %48, %46, %49 : vector<16x256xi1>, vector<16x256xf32>
    %c2 = arith.constant 2 : index
    %c0_22 = arith.constant 0 : index
    %c0_23 = arith.constant 0 : index
    %51 = vector.load %arg5[%c2, %c0_22, %c0_23] : memref<9x16x16xf32, #tpu.memory_space<vmem>>, vector<1x16x16xf32>
    %52 = vector.shape_cast %51 : vector<1x16x16xf32> to vector<16x16xf32>
    %cst_24 = arith.constant dense<0.000000e+00> : vector<16x256xf32>
    %53 = tpu.matmul %52, %50, %cst_24 {dimension_numbers = #tpu.dot_dimension_numbers<[1], [0], [0], [1], [0, 0, 1, 1], [], []>} : vector<16x16xf32>, vector<16x256xf32>, vector<16x256xf32> -> vector<16x256xf32>
    %54 = arith.addf %43, %53 : vector<16x256xf32>
    %cst_25 = arith.constant 0.000000e+00 : f32
    %55 = vector.broadcast %cst_25 : f32 to vector<16x1xf32>
    %56 = vector.extract_strided_slice %4 {offsets = [0, 0], sizes = [16, 255], strides = [1, 1]} : vector<16x256xf32> to vector<16x255xf32>
    %57 = tpu.concatenate %55, %56 in 1 : vector<16x1xf32>, vector<16x255xf32> -> vector<16x256xf32>
    %cst_26 = arith.constant 0.000000e+00 : f32
    %58 = vector.shape_cast %24 : vector<1x256xi1> to vector<1x256xi1>
    %59 = vector.broadcast %58 : vector<1x256xi1> to vector<16x256xi1>
    %60 = vector.broadcast %cst_26 : f32 to vector<16x256xf32>
    %61 = arith.select %59, %57, %60 : vector<16x256xi1>, vector<16x256xf32>
    %c3 = arith.constant 3 : index
    %c0_27 = arith.constant 0 : index
    %c0_28 = arith.constant 0 : index
    %62 = vector.load %arg5[%c3, %c0_27, %c0_28] : memref<9x16x16xf32, #tpu.memory_space<vmem>>, vector<1x16x16xf32>
    %63 = vector.shape_cast %62 : vector<1x16x16xf32> to vector<16x16xf32>
    %cst_29 = arith.constant dense<0.000000e+00> : vector<16x256xf32>
    %64 = tpu.matmul %63, %61, %cst_29 {dimension_numbers = #tpu.dot_dimension_numbers<[1], [0], [0], [1], [0, 0, 1, 1], [], []>} : vector<16x16xf32>, vector<16x256xf32>, vector<16x256xf32> -> vector<16x256xf32>
    %65 = arith.addf %54, %64 : vector<16x256xf32>
    %c4 = arith.constant 4 : index
    %c0_30 = arith.constant 0 : index
    %c0_31 = arith.constant 0 : index
    %66 = vector.load %arg5[%c4, %c0_30, %c0_31] : memref<9x16x16xf32, #tpu.memory_space<vmem>>, vector<1x16x16xf32>
    %67 = vector.shape_cast %66 : vector<1x16x16xf32> to vector<16x16xf32>
    %cst_32 = arith.constant dense<0.000000e+00> : vector<16x256xf32>
    %68 = tpu.matmul %67, %4, %cst_32 {dimension_numbers = #tpu.dot_dimension_numbers<[1], [0], [0], [1], [0, 0, 1, 1], [], []>} : vector<16x16xf32>, vector<16x256xf32>, vector<16x256xf32> -> vector<16x256xf32>
    %69 = arith.addf %65, %68 : vector<16x256xf32>
    %cst_33 = arith.constant 0.000000e+00 : f32
    %70 = vector.broadcast %cst_33 : f32 to vector<16x1xf32>
    %71 = vector.extract_strided_slice %4 {offsets = [0, 1], sizes = [16, 255], strides = [1, 1]} : vector<16x256xf32> to vector<16x255xf32>
    %72 = tpu.concatenate %71, %70 in 1 : vector<16x255xf32>, vector<16x1xf32> -> vector<16x256xf32>
    %cst_34 = arith.constant 0.000000e+00 : f32
    %73 = vector.shape_cast %26 : vector<1x256xi1> to vector<1x256xi1>
    %74 = vector.broadcast %73 : vector<1x256xi1> to vector<16x256xi1>
    %75 = vector.broadcast %cst_34 : f32 to vector<16x256xf32>
    %76 = arith.select %74, %72, %75 : vector<16x256xi1>, vector<16x256xf32>
    %c5 = arith.constant 5 : index
    %c0_35 = arith.constant 0 : index
    %c0_36 = arith.constant 0 : index
    %77 = vector.load %arg5[%c5, %c0_35, %c0_36] : memref<9x16x16xf32, #tpu.memory_space<vmem>>, vector<1x16x16xf32>
    %78 = vector.shape_cast %77 : vector<1x16x16xf32> to vector<16x16xf32>
    %cst_37 = arith.constant dense<0.000000e+00> : vector<16x256xf32>
    %79 = tpu.matmul %78, %76, %cst_37 {dimension_numbers = #tpu.dot_dimension_numbers<[1], [0], [0], [1], [0, 0, 1, 1], [], []>} : vector<16x16xf32>, vector<16x256xf32>, vector<16x256xf32> -> vector<16x256xf32>
    %80 = arith.addf %69, %79 : vector<16x256xf32>
    %cst_38 = arith.constant 0.000000e+00 : f32
    %81 = vector.broadcast %cst_38 : f32 to vector<16x15xf32>
    %82 = vector.extract_strided_slice %4 {offsets = [0, 15], sizes = [16, 241], strides = [1, 1]} : vector<16x256xf32> to vector<16x241xf32>
    %83 = tpu.concatenate %82, %81 in 1 : vector<16x241xf32>, vector<16x15xf32> -> vector<16x256xf32>
    %cst_39 = arith.constant 0.000000e+00 : f32
    %84 = vector.shape_cast %24 : vector<1x256xi1> to vector<1x256xi1>
    %85 = vector.broadcast %84 : vector<1x256xi1> to vector<16x256xi1>
    %86 = vector.broadcast %cst_39 : f32 to vector<16x256xf32>
    %87 = arith.select %85, %83, %86 : vector<16x256xi1>, vector<16x256xf32>
    %c6 = arith.constant 6 : index
    %c0_40 = arith.constant 0 : index
    %c0_41 = arith.constant 0 : index
    %88 = vector.load %arg5[%c6, %c0_40, %c0_41] : memref<9x16x16xf32, #tpu.memory_space<vmem>>, vector<1x16x16xf32>
    %89 = vector.shape_cast %88 : vector<1x16x16xf32> to vector<16x16xf32>
    %cst_42 = arith.constant dense<0.000000e+00> : vector<16x256xf32>
    %90 = tpu.matmul %89, %87, %cst_42 {dimension_numbers = #tpu.dot_dimension_numbers<[1], [0], [0], [1], [0, 0, 1, 1], [], []>} : vector<16x16xf32>, vector<16x256xf32>, vector<16x256xf32> -> vector<16x256xf32>
    %91 = arith.addf %80, %90 : vector<16x256xf32>
    %cst_43 = arith.constant 0.000000e+00 : f32
    %92 = vector.broadcast %cst_43 : f32 to vector<16x16xf32>
    %93 = vector.extract_strided_slice %4 {offsets = [0, 16], sizes = [16, 240], strides = [1, 1]} : vector<16x256xf32> to vector<16x240xf32>
    %94 = tpu.concatenate %93, %92 in 1 : vector<16x240xf32>, vector<16x16xf32> -> vector<16x256xf32>
    %c7 = arith.constant 7 : index
    %c0_44 = arith.constant 0 : index
    %c0_45 = arith.constant 0 : index
    %95 = vector.load %arg5[%c7, %c0_44, %c0_45] : memref<9x16x16xf32, #tpu.memory_space<vmem>>, vector<1x16x16xf32>
    %96 = vector.shape_cast %95 : vector<1x16x16xf32> to vector<16x16xf32>
    %cst_46 = arith.constant dense<0.000000e+00> : vector<16x256xf32>
    %97 = tpu.matmul %96, %94, %cst_46 {dimension_numbers = #tpu.dot_dimension_numbers<[1], [0], [0], [1], [0, 0, 1, 1], [], []>} : vector<16x16xf32>, vector<16x256xf32>, vector<16x256xf32> -> vector<16x256xf32>
    %98 = arith.addf %91, %97 : vector<16x256xf32>
    %cst_47 = arith.constant 0.000000e+00 : f32
    %99 = vector.broadcast %cst_47 : f32 to vector<16x17xf32>
    %100 = vector.extract_strided_slice %4 {offsets = [0, 17], sizes = [16, 239], strides = [1, 1]} : vector<16x256xf32> to vector<16x239xf32>
    %101 = tpu.concatenate %100, %99 in 1 : vector<16x239xf32>, vector<16x17xf32> -> vector<16x256xf32>
    %cst_48 = arith.constant 0.000000e+00 : f32
    %102 = vector.shape_cast %26 : vector<1x256xi1> to vector<1x256xi1>
    %103 = vector.broadcast %102 : vector<1x256xi1> to vector<16x256xi1>
    %104 = vector.broadcast %cst_48 : f32 to vector<16x256xf32>
    %105 = arith.select %103, %101, %104 : vector<16x256xi1>, vector<16x256xf32>
    %c8 = arith.constant 8 : index
    %c0_49 = arith.constant 0 : index
    %c0_50 = arith.constant 0 : index
    %106 = vector.load %arg5[%c8, %c0_49, %c0_50] : memref<9x16x16xf32, #tpu.memory_space<vmem>>, vector<1x16x16xf32>
    %107 = vector.shape_cast %106 : vector<1x16x16xf32> to vector<16x16xf32>
    %cst_51 = arith.constant dense<0.000000e+00> : vector<16x256xf32>
    %108 = tpu.matmul %107, %105, %cst_51 {dimension_numbers = #tpu.dot_dimension_numbers<[1], [0], [0], [1], [0, 0, 1, 1], [], []>} : vector<16x16xf32>, vector<16x256xf32>, vector<16x256xf32> -> vector<16x256xf32>
    %109 = arith.addf %98, %108 : vector<16x256xf32>
    %110 = vector.extract_strided_slice %5 {offsets = [0, 0], sizes = [16, 1], strides = [1, 1]} : vector<32x1xf32> to vector<16x1xf32>
    %111 = vector.broadcast %110 : vector<16x1xf32> to vector<16x256xf32>
    %112 = arith.addf %109, %111 : vector<16x256xf32>
    %cst_52 = arith.constant 0.000000e+00 : f32
    %113 = vector.broadcast %cst_52 : f32 to vector<16x256xf32>
    %114 = arith.maximumf %112, %113 : vector<16x256xf32>
    %c0_53 = arith.constant 0 : index
    %c0_54 = arith.constant 0 : index
    %115 = vector.load %arg4[%c0_53, %c0_54] : memref<256x1024xbf16, #tpu.memory_space<vmem>>, vector<256x1024xbf16>
    %116 = arith.extf %115 : vector<256x1024xbf16> to vector<256x1024xf32>
    %cst_55 = arith.constant dense<0.000000e+00> : vector<16x1024xf32>
    %117 = tpu.matmul %114, %116, %cst_55 {dimension_numbers = #tpu.dot_dimension_numbers<[1], [0], [0], [1], [0, 0, 1, 1], [], []>} : vector<16x256xf32>, vector<256x1024xf32>, vector<16x1024xf32> -> vector<16x1024xf32>
    %118 = tpu.iota {dimensions = array<i32: 1>} : vector<1x1024xi32>
    %c32_i32 = arith.constant 32 : i32
    %c0_i32_56 = arith.constant 0 : i32
    %119 = arith.cmpi eq, %c32_i32, %c0_i32_56 : i32
    %c1_i32_57 = arith.constant 1 : i32
    %120 = arith.select %119, %c1_i32_57, %c32_i32 : i32
    %121 = vector.broadcast %120 : i32 to vector<1x1024xi32>
    %122 = arith.remsi %118, %121 : vector<1x1024xi32>
    %c0_i32_58 = arith.constant 0 : i32
    %123 = vector.broadcast %c0_i32_58 : i32 to vector<1x1024xi32>
    %124 = arith.cmpi ne, %122, %123 : vector<1x1024xi32>
    %c0_i32_59 = arith.constant 0 : i32
    %125 = vector.broadcast %c0_i32_59 : i32 to vector<1x1024xi32>
    %126 = arith.cmpi slt, %122, %125 : vector<1x1024xi32>
    %c0_i32_60 = arith.constant 0 : i32
    %127 = arith.cmpi slt, %120, %c0_i32_60 : i32
    %128 = vector.broadcast %127 : i1 to vector<1x1024xi1>
    %129 = vector.broadcast %128 : vector<1x1024xi1> to vector<1x1024xi1>
    %130 = arith.xori %126, %129 : vector<1x1024xi1>
    %131 = arith.andi %130, %124 : vector<1x1024xi1>
    %132 = vector.broadcast %120 : i32 to vector<1x1024xi32>
    %133 = arith.addi %122, %132 : vector<1x1024xi32>
    %134 = arith.select %131, %133, %122 : vector<1x1024xi1>, vector<1x1024xi32>
    %c1_i32_61 = arith.constant 1 : i32
    %135 = vector.broadcast %c1_i32_61 : i32 to vector<1x1024xi32>
    %136 = arith.cmpi sge, %134, %135 : vector<1x1024xi32>
    %c30_i32 = arith.constant 30 : i32
    %137 = vector.broadcast %c30_i32 : i32 to vector<1x1024xi32>
    %138 = arith.cmpi sle, %134, %137 : vector<1x1024xi32>
    %cst_62 = arith.constant 0.000000e+00 : f32
    %139 = vector.broadcast %cst_62 : f32 to vector<16x33xf32>
    %140 = vector.extract_strided_slice %117 {offsets = [0, 0], sizes = [16, 991], strides = [1, 1]} : vector<16x1024xf32> to vector<16x991xf32>
    %141 = tpu.concatenate %139, %140 in 1 : vector<16x33xf32>, vector<16x991xf32> -> vector<16x1024xf32>
    %cst_63 = arith.constant 0.000000e+00 : f32
    %142 = vector.shape_cast %136 : vector<1x1024xi1> to vector<1x1024xi1>
    %143 = vector.broadcast %142 : vector<1x1024xi1> to vector<16x1024xi1>
    %144 = vector.broadcast %cst_63 : f32 to vector<16x1024xf32>
    %145 = arith.select %143, %141, %144 : vector<16x1024xi1>, vector<16x1024xf32>
    %c0_64 = arith.constant 0 : index
    %c0_65 = arith.constant 0 : index
    %c0_66 = arith.constant 0 : index
    %146 = vector.load %arg6[%c0_64, %c0_65, %c0_66] : memref<9x8x16xf32, #tpu.memory_space<vmem>>, vector<1x8x16xf32>
    %147 = vector.shape_cast %146 : vector<1x8x16xf32> to vector<8x16xf32>
    %cst_67 = arith.constant dense<0.000000e+00> : vector<8x1024xf32>
    %148 = tpu.matmul %147, %145, %cst_67 {dimension_numbers = #tpu.dot_dimension_numbers<[1], [0], [0], [1], [0, 0, 1, 1], [], []>} : vector<8x16xf32>, vector<16x1024xf32>, vector<8x1024xf32> -> vector<8x1024xf32>
    %cst_68 = arith.constant 0.000000e+00 : f32
    %149 = vector.broadcast %cst_68 : f32 to vector<16x32xf32>
    %150 = vector.extract_strided_slice %117 {offsets = [0, 0], sizes = [16, 992], strides = [1, 1]} : vector<16x1024xf32> to vector<16x992xf32>
    %151 = tpu.concatenate %149, %150 in 1 : vector<16x32xf32>, vector<16x992xf32> -> vector<16x1024xf32>
    %c1_69 = arith.constant 1 : index
    %c0_70 = arith.constant 0 : index
    %c0_71 = arith.constant 0 : index
    %152 = vector.load %arg6[%c1_69, %c0_70, %c0_71] : memref<9x8x16xf32, #tpu.memory_space<vmem>>, vector<1x8x16xf32>
    %153 = vector.shape_cast %152 : vector<1x8x16xf32> to vector<8x16xf32>
    %cst_72 = arith.constant dense<0.000000e+00> : vector<8x1024xf32>
    %154 = tpu.matmul %153, %151, %cst_72 {dimension_numbers = #tpu.dot_dimension_numbers<[1], [0], [0], [1], [0, 0, 1, 1], [], []>} : vector<8x16xf32>, vector<16x1024xf32>, vector<8x1024xf32> -> vector<8x1024xf32>
    %155 = arith.addf %148, %154 : vector<8x1024xf32>
    %cst_73 = arith.constant 0.000000e+00 : f32
    %156 = vector.broadcast %cst_73 : f32 to vector<16x31xf32>
    %157 = vector.extract_strided_slice %117 {offsets = [0, 0], sizes = [16, 993], strides = [1, 1]} : vector<16x1024xf32> to vector<16x993xf32>
    %158 = tpu.concatenate %156, %157 in 1 : vector<16x31xf32>, vector<16x993xf32> -> vector<16x1024xf32>
    %cst_74 = arith.constant 0.000000e+00 : f32
    %159 = vector.shape_cast %138 : vector<1x1024xi1> to vector<1x1024xi1>
    %160 = vector.broadcast %159 : vector<1x1024xi1> to vector<16x1024xi1>
    %161 = vector.broadcast %cst_74 : f32 to vector<16x1024xf32>
    %162 = arith.select %160, %158, %161 : vector<16x1024xi1>, vector<16x1024xf32>
    %c2_75 = arith.constant 2 : index
    %c0_76 = arith.constant 0 : index
    %c0_77 = arith.constant 0 : index
    %163 = vector.load %arg6[%c2_75, %c0_76, %c0_77] : memref<9x8x16xf32, #tpu.memory_space<vmem>>, vector<1x8x16xf32>
    %164 = vector.shape_cast %163 : vector<1x8x16xf32> to vector<8x16xf32>
    %cst_78 = arith.constant dense<0.000000e+00> : vector<8x1024xf32>
    %165 = tpu.matmul %164, %162, %cst_78 {dimension_numbers = #tpu.dot_dimension_numbers<[1], [0], [0], [1], [0, 0, 1, 1], [], []>} : vector<8x16xf32>, vector<16x1024xf32>, vector<8x1024xf32> -> vector<8x1024xf32>
    %166 = arith.addf %155, %165 : vector<8x1024xf32>
    %cst_79 = arith.constant 0.000000e+00 : f32
    %167 = vector.broadcast %cst_79 : f32 to vector<16x1xf32>
    %168 = vector.extract_strided_slice %117 {offsets = [0, 0], sizes = [16, 1023], strides = [1, 1]} : vector<16x1024xf32> to vector<16x1023xf32>
    %169 = tpu.concatenate %167, %168 in 1 : vector<16x1xf32>, vector<16x1023xf32> -> vector<16x1024xf32>
    %cst_80 = arith.constant 0.000000e+00 : f32
    %170 = vector.shape_cast %136 : vector<1x1024xi1> to vector<1x1024xi1>
    %171 = vector.broadcast %170 : vector<1x1024xi1> to vector<16x1024xi1>
    %172 = vector.broadcast %cst_80 : f32 to vector<16x1024xf32>
    %173 = arith.select %171, %169, %172 : vector<16x1024xi1>, vector<16x1024xf32>
    %c3_81 = arith.constant 3 : index
    %c0_82 = arith.constant 0 : index
    %c0_83 = arith.constant 0 : index
    %174 = vector.load %arg6[%c3_81, %c0_82, %c0_83] : memref<9x8x16xf32, #tpu.memory_space<vmem>>, vector<1x8x16xf32>
    %175 = vector.shape_cast %174 : vector<1x8x16xf32> to vector<8x16xf32>
    %cst_84 = arith.constant dense<0.000000e+00> : vector<8x1024xf32>
    %176 = tpu.matmul %175, %173, %cst_84 {dimension_numbers = #tpu.dot_dimension_numbers<[1], [0], [0], [1], [0, 0, 1, 1], [], []>} : vector<8x16xf32>, vector<16x1024xf32>, vector<8x1024xf32> -> vector<8x1024xf32>
    %177 = arith.addf %166, %176 : vector<8x1024xf32>
    %c4_85 = arith.constant 4 : index
    %c0_86 = arith.constant 0 : index
    %c0_87 = arith.constant 0 : index
    %178 = vector.load %arg6[%c4_85, %c0_86, %c0_87] : memref<9x8x16xf32, #tpu.memory_space<vmem>>, vector<1x8x16xf32>
    %179 = vector.shape_cast %178 : vector<1x8x16xf32> to vector<8x16xf32>
    %cst_88 = arith.constant dense<0.000000e+00> : vector<8x1024xf32>
    %180 = tpu.matmul %179, %117, %cst_88 {dimension_numbers = #tpu.dot_dimension_numbers<[1], [0], [0], [1], [0, 0, 1, 1], [], []>} : vector<8x16xf32>, vector<16x1024xf32>, vector<8x1024xf32> -> vector<8x1024xf32>
    %181 = arith.addf %177, %180 : vector<8x1024xf32>
    %cst_89 = arith.constant 0.000000e+00 : f32
    %182 = vector.broadcast %cst_89 : f32 to vector<16x1xf32>
    %183 = vector.extract_strided_slice %117 {offsets = [0, 1], sizes = [16, 1023], strides = [1, 1]} : vector<16x1024xf32> to vector<16x1023xf32>
    %184 = tpu.concatenate %183, %182 in 1 : vector<16x1023xf32>, vector<16x1xf32> -> vector<16x1024xf32>
    %cst_90 = arith.constant 0.000000e+00 : f32
    %185 = vector.shape_cast %138 : vector<1x1024xi1> to vector<1x1024xi1>
    %186 = vector.broadcast %185 : vector<1x1024xi1> to vector<16x1024xi1>
    %187 = vector.broadcast %cst_90 : f32 to vector<16x1024xf32>
    %188 = arith.select %186, %184, %187 : vector<16x1024xi1>, vector<16x1024xf32>
    %c5_91 = arith.constant 5 : index
    %c0_92 = arith.constant 0 : index
    %c0_93 = arith.constant 0 : index
    %189 = vector.load %arg6[%c5_91, %c0_92, %c0_93] : memref<9x8x16xf32, #tpu.memory_space<vmem>>, vector<1x8x16xf32>
    %190 = vector.shape_cast %189 : vector<1x8x16xf32> to vector<8x16xf32>
    %cst_94 = arith.constant dense<0.000000e+00> : vector<8x1024xf32>
    %191 = tpu.matmul %190, %188, %cst_94 {dimension_numbers = #tpu.dot_dimension_numbers<[1], [0], [0], [1], [0, 0, 1, 1], [], []>} : vector<8x16xf32>, vector<16x1024xf32>, vector<8x1024xf32> -> vector<8x1024xf32>
    %192 = arith.addf %181, %191 : vector<8x1024xf32>
    %cst_95 = arith.constant 0.000000e+00 : f32
    %193 = vector.broadcast %cst_95 : f32 to vector<16x31xf32>
    %194 = vector.extract_strided_slice %117 {offsets = [0, 31], sizes = [16, 993], strides = [1, 1]} : vector<16x1024xf32> to vector<16x993xf32>
    %195 = tpu.concatenate %194, %193 in 1 : vector<16x993xf32>, vector<16x31xf32> -> vector<16x1024xf32>
    %cst_96 = arith.constant 0.000000e+00 : f32
    %196 = vector.shape_cast %136 : vector<1x1024xi1> to vector<1x1024xi1>
    %197 = vector.broadcast %196 : vector<1x1024xi1> to vector<16x1024xi1>
    %198 = vector.broadcast %cst_96 : f32 to vector<16x1024xf32>
    %199 = arith.select %197, %195, %198 : vector<16x1024xi1>, vector<16x1024xf32>
    %c6_97 = arith.constant 6 : index
    %c0_98 = arith.constant 0 : index
    %c0_99 = arith.constant 0 : index
    %200 = vector.load %arg6[%c6_97, %c0_98, %c0_99] : memref<9x8x16xf32, #tpu.memory_space<vmem>>, vector<1x8x16xf32>
    %201 = vector.shape_cast %200 : vector<1x8x16xf32> to vector<8x16xf32>
    %cst_100 = arith.constant dense<0.000000e+00> : vector<8x1024xf32>
    %202 = tpu.matmul %201, %199, %cst_100 {dimension_numbers = #tpu.dot_dimension_numbers<[1], [0], [0], [1], [0, 0, 1, 1], [], []>} : vector<8x16xf32>, vector<16x1024xf32>, vector<8x1024xf32> -> vector<8x1024xf32>
    %203 = arith.addf %192, %202 : vector<8x1024xf32>
    %cst_101 = arith.constant 0.000000e+00 : f32
    %204 = vector.broadcast %cst_101 : f32 to vector<16x32xf32>
    %205 = vector.extract_strided_slice %117 {offsets = [0, 32], sizes = [16, 992], strides = [1, 1]} : vector<16x1024xf32> to vector<16x992xf32>
    %206 = tpu.concatenate %205, %204 in 1 : vector<16x992xf32>, vector<16x32xf32> -> vector<16x1024xf32>
    %c7_102 = arith.constant 7 : index
    %c0_103 = arith.constant 0 : index
    %c0_104 = arith.constant 0 : index
    %207 = vector.load %arg6[%c7_102, %c0_103, %c0_104] : memref<9x8x16xf32, #tpu.memory_space<vmem>>, vector<1x8x16xf32>
    %208 = vector.shape_cast %207 : vector<1x8x16xf32> to vector<8x16xf32>
    %cst_105 = arith.constant dense<0.000000e+00> : vector<8x1024xf32>
    %209 = tpu.matmul %208, %206, %cst_105 {dimension_numbers = #tpu.dot_dimension_numbers<[1], [0], [0], [1], [0, 0, 1, 1], [], []>} : vector<8x16xf32>, vector<16x1024xf32>, vector<8x1024xf32> -> vector<8x1024xf32>
    %210 = arith.addf %203, %209 : vector<8x1024xf32>
    %cst_106 = arith.constant 0.000000e+00 : f32
    %211 = vector.broadcast %cst_106 : f32 to vector<16x33xf32>
    %212 = vector.extract_strided_slice %117 {offsets = [0, 33], sizes = [16, 991], strides = [1, 1]} : vector<16x1024xf32> to vector<16x991xf32>
    %213 = tpu.concatenate %212, %211 in 1 : vector<16x991xf32>, vector<16x33xf32> -> vector<16x1024xf32>
    %cst_107 = arith.constant 0.000000e+00 : f32
    %214 = vector.shape_cast %138 : vector<1x1024xi1> to vector<1x1024xi1>
    %215 = vector.broadcast %214 : vector<1x1024xi1> to vector<16x1024xi1>
    %216 = vector.broadcast %cst_107 : f32 to vector<16x1024xf32>
    %217 = arith.select %215, %213, %216 : vector<16x1024xi1>, vector<16x1024xf32>
    %c8_108 = arith.constant 8 : index
    %c0_109 = arith.constant 0 : index
    %c0_110 = arith.constant 0 : index
    %218 = vector.load %arg6[%c8_108, %c0_109, %c0_110] : memref<9x8x16xf32, #tpu.memory_space<vmem>>, vector<1x8x16xf32>
    %219 = vector.shape_cast %218 : vector<1x8x16xf32> to vector<8x16xf32>
    %cst_111 = arith.constant dense<0.000000e+00> : vector<8x1024xf32>
    %220 = tpu.matmul %219, %217, %cst_111 {dimension_numbers = #tpu.dot_dimension_numbers<[1], [0], [0], [1], [0, 0, 1, 1], [], []>} : vector<8x16xf32>, vector<16x1024xf32>, vector<8x1024xf32> -> vector<8x1024xf32>
    %221 = arith.addf %210, %220 : vector<8x1024xf32>
    %222 = vector.extract_strided_slice %5 {offsets = [16, 0], sizes = [8, 1], strides = [1, 1]} : vector<32x1xf32> to vector<8x1xf32>
    %223 = vector.broadcast %222 : vector<8x1xf32> to vector<8x1024xf32>
    %224 = arith.addf %221, %223 : vector<8x1024xf32>
    %cst_112 = arith.constant 0.000000e+00 : f32
    %225 = vector.broadcast %cst_112 : f32 to vector<8x1024xf32>
    %226 = arith.maximumf %224, %225 : vector<8x1024xf32>
    %c0_113 = arith.constant 0 : index
    %c0_114 = arith.constant 0 : index
    %227 = vector.load %arg7[%c0_113, %c0_114] : memref<8x8xf32, #tpu.memory_space<vmem>>, vector<8x8xf32>
    %cst_115 = arith.constant dense<0.000000e+00> : vector<8x1024xf32>
    %228 = tpu.matmul %227, %226, %cst_115 {dimension_numbers = #tpu.dot_dimension_numbers<[1], [0], [0], [1], [0, 0, 1, 1], [], []>} : vector<8x8xf32>, vector<8x1024xf32>, vector<8x1024xf32> -> vector<8x1024xf32>
    %229 = vector.extract_strided_slice %5 {offsets = [24, 0], sizes = [8, 1], strides = [1, 1]} : vector<32x1xf32> to vector<8x1xf32>
    %230 = vector.broadcast %229 : vector<8x1xf32> to vector<8x1024xf32>
    %231 = arith.addf %228, %230 : vector<8x1024xf32>
    %c0_116 = arith.constant 0 : index
    %c0_117 = arith.constant 0 : index
    %c0_118 = arith.constant 0 : index
    %232 = vector.load %arg2[%c0_116, %c0_117, %c0_118] : memref<1x4x33xf32, #tpu.memory_space<vmem>>, vector<1x4x33xf32>
    %233 = vector.shape_cast %232 : vector<1x4x33xf32> to vector<4x33xf32>
    %c0_119 = arith.constant 0 : index
    %c0_120 = arith.constant 0 : index
    %234 = vector.load %arg9[%c0_119, %c0_120] : memref<33x73xf32, #tpu.memory_space<vmem>>, vector<33x73xf32>
    %cst_121 = arith.constant dense<0.000000e+00> : vector<4x73xf32>
    %235 = tpu.matmul %233, %234, %cst_121 {dimension_numbers = #tpu.dot_dimension_numbers<[1], [0], [0], [1], [0, 0, 1, 1], [], []>} : vector<4x33xf32>, vector<33x73xf32>, vector<4x73xf32> -> vector<4x73xf32>
    %236 = tpu.iota {dimensions = array<i32: 1>} : vector<1x1024xi32>
    %c32_i32_122 = arith.constant 32 : i32
    %c0_i32_123 = arith.constant 0 : i32
    %237 = arith.cmpi eq, %c32_i32_122, %c0_i32_123 : i32
    %c1_i32_124 = arith.constant 1 : i32
    %238 = arith.select %237, %c1_i32_124, %c32_i32_122 : i32
    %239 = vector.broadcast %238 : i32 to vector<1x1024xi32>
    %240 = arith.remsi %236, %239 : vector<1x1024xi32>
    %c0_i32_125 = arith.constant 0 : i32
    %241 = vector.broadcast %c0_i32_125 : i32 to vector<1x1024xi32>
    %242 = arith.cmpi ne, %240, %241 : vector<1x1024xi32>
    %c0_i32_126 = arith.constant 0 : i32
    %243 = vector.broadcast %c0_i32_126 : i32 to vector<1x1024xi32>
    %244 = arith.cmpi slt, %240, %243 : vector<1x1024xi32>
    %c0_i32_127 = arith.constant 0 : i32
    %245 = arith.cmpi slt, %238, %c0_i32_127 : i32
    %246 = vector.broadcast %245 : i1 to vector<1x1024xi1>
    %247 = vector.broadcast %246 : vector<1x1024xi1> to vector<1x1024xi1>
    %248 = arith.xori %244, %247 : vector<1x1024xi1>
    %249 = arith.andi %248, %242 : vector<1x1024xi1>
    %250 = vector.broadcast %238 : i32 to vector<1x1024xi32>
    %251 = arith.addi %240, %250 : vector<1x1024xi32>
    %252 = arith.select %249, %251, %240 : vector<1x1024xi1>, vector<1x1024xi32>
    %c1_i32_128 = arith.constant 1 : i32
    %253 = vector.broadcast %c1_i32_128 : i32 to vector<1x1024xi32>
    %254 = arith.cmpi sge, %252, %253 : vector<1x1024xi32>
    %c30_i32_129 = arith.constant 30 : i32
    %255 = vector.broadcast %c30_i32_129 : i32 to vector<1x1024xi32>
    %256 = arith.cmpi sle, %252, %255 : vector<1x1024xi32>
    %cst_130 = arith.constant 0.000000e+00 : f32
    %257 = vector.broadcast %cst_130 : f32 to vector<8x33xf32>
    %258 = vector.extract_strided_slice %231 {offsets = [0, 0], sizes = [8, 991], strides = [1, 1]} : vector<8x1024xf32> to vector<8x991xf32>
    %259 = tpu.concatenate %257, %258 in 1 : vector<8x33xf32>, vector<8x991xf32> -> vector<8x1024xf32>
    %cst_131 = arith.constant 0.000000e+00 : f32
    %260 = vector.shape_cast %254 : vector<1x1024xi1> to vector<1x1024xi1>
    %261 = vector.broadcast %260 : vector<1x1024xi1> to vector<8x1024xi1>
    %262 = vector.broadcast %cst_131 : f32 to vector<8x1024xf32>
    %263 = arith.select %261, %259, %262 : vector<8x1024xi1>, vector<8x1024xf32>
    %cst_132 = arith.constant 0.000000e+00 : f32
    %264 = vector.broadcast %cst_132 : f32 to vector<8x32xf32>
    %265 = vector.extract_strided_slice %231 {offsets = [0, 0], sizes = [8, 992], strides = [1, 1]} : vector<8x1024xf32> to vector<8x992xf32>
    %266 = tpu.concatenate %264, %265 in 1 : vector<8x32xf32>, vector<8x992xf32> -> vector<8x1024xf32>
    %cst_133 = arith.constant 0.000000e+00 : f32
    %267 = vector.broadcast %cst_133 : f32 to vector<8x31xf32>
    %268 = vector.extract_strided_slice %231 {offsets = [0, 0], sizes = [8, 993], strides = [1, 1]} : vector<8x1024xf32> to vector<8x993xf32>
    %269 = tpu.concatenate %267, %268 in 1 : vector<8x31xf32>, vector<8x993xf32> -> vector<8x1024xf32>
    %cst_134 = arith.constant 0.000000e+00 : f32
    %270 = vector.shape_cast %256 : vector<1x1024xi1> to vector<1x1024xi1>
    %271 = vector.broadcast %270 : vector<1x1024xi1> to vector<8x1024xi1>
    %272 = vector.broadcast %cst_134 : f32 to vector<8x1024xf32>
    %273 = arith.select %271, %269, %272 : vector<8x1024xi1>, vector<8x1024xf32>
    %cst_135 = arith.constant 0.000000e+00 : f32
    %274 = vector.broadcast %cst_135 : f32 to vector<8x1xf32>
    %275 = vector.extract_strided_slice %231 {offsets = [0, 0], sizes = [8, 1023], strides = [1, 1]} : vector<8x1024xf32> to vector<8x1023xf32>
    %276 = tpu.concatenate %274, %275 in 1 : vector<8x1xf32>, vector<8x1023xf32> -> vector<8x1024xf32>
    %cst_136 = arith.constant 0.000000e+00 : f32
    %277 = vector.shape_cast %254 : vector<1x1024xi1> to vector<1x1024xi1>
    %278 = vector.broadcast %277 : vector<1x1024xi1> to vector<8x1024xi1>
    %279 = vector.broadcast %cst_136 : f32 to vector<8x1024xf32>
    %280 = arith.select %278, %276, %279 : vector<8x1024xi1>, vector<8x1024xf32>
    %cst_137 = arith.constant 0.000000e+00 : f32
    %281 = vector.broadcast %cst_137 : f32 to vector<8x1xf32>
    %282 = vector.extract_strided_slice %231 {offsets = [0, 1], sizes = [8, 1023], strides = [1, 1]} : vector<8x1024xf32> to vector<8x1023xf32>
    %283 = tpu.concatenate %282, %281 in 1 : vector<8x1023xf32>, vector<8x1xf32> -> vector<8x1024xf32>
    %cst_138 = arith.constant 0.000000e+00 : f32
    %284 = vector.shape_cast %256 : vector<1x1024xi1> to vector<1x1024xi1>
    %285 = vector.broadcast %284 : vector<1x1024xi1> to vector<8x1024xi1>
    %286 = vector.broadcast %cst_138 : f32 to vector<8x1024xf32>
    %287 = arith.select %285, %283, %286 : vector<8x1024xi1>, vector<8x1024xf32>
    %cst_139 = arith.constant 0.000000e+00 : f32
    %288 = vector.broadcast %cst_139 : f32 to vector<8x31xf32>
    %289 = vector.extract_strided_slice %231 {offsets = [0, 31], sizes = [8, 993], strides = [1, 1]} : vector<8x1024xf32> to vector<8x993xf32>
    %290 = tpu.concatenate %289, %288 in 1 : vector<8x993xf32>, vector<8x31xf32> -> vector<8x1024xf32>
    %cst_140 = arith.constant 0.000000e+00 : f32
    %291 = vector.shape_cast %254 : vector<1x1024xi1> to vector<1x1024xi1>
    %292 = vector.broadcast %291 : vector<1x1024xi1> to vector<8x1024xi1>
    %293 = vector.broadcast %cst_140 : f32 to vector<8x1024xf32>
    %294 = arith.select %292, %290, %293 : vector<8x1024xi1>, vector<8x1024xf32>
    %cst_141 = arith.constant 0.000000e+00 : f32
    %295 = vector.broadcast %cst_141 : f32 to vector<8x32xf32>
    %296 = vector.extract_strided_slice %231 {offsets = [0, 32], sizes = [8, 992], strides = [1, 1]} : vector<8x1024xf32> to vector<8x992xf32>
    %297 = tpu.concatenate %296, %295 in 1 : vector<8x992xf32>, vector<8x32xf32> -> vector<8x1024xf32>
    %cst_142 = arith.constant 0.000000e+00 : f32
    %298 = vector.broadcast %cst_142 : f32 to vector<8x33xf32>
    %299 = vector.extract_strided_slice %231 {offsets = [0, 33], sizes = [8, 991], strides = [1, 1]} : vector<8x1024xf32> to vector<8x991xf32>
    %300 = tpu.concatenate %299, %298 in 1 : vector<8x991xf32>, vector<8x33xf32> -> vector<8x1024xf32>
    %cst_143 = arith.constant 0.000000e+00 : f32
    %301 = vector.shape_cast %256 : vector<1x1024xi1> to vector<1x1024xi1>
    %302 = vector.broadcast %301 : vector<1x1024xi1> to vector<8x1024xi1>
    %303 = vector.broadcast %cst_143 : f32 to vector<8x1024xf32>
    %304 = arith.select %302, %300, %303 : vector<8x1024xi1>, vector<8x1024xf32>
    %305 = tpu.concatenate %263, %266, %273, %280, %231, %287, %294, %297, %304 in 0 : vector<8x1024xf32>, vector<8x1024xf32>, vector<8x1024xf32>, vector<8x1024xf32>, vector<8x1024xf32>, vector<8x1024xf32>, vector<8x1024xf32>, vector<8x1024xf32>, vector<8x1024xf32> -> vector<72x1024xf32>
    %306 = vector.extract_strided_slice %235 {offsets = [0, 0], sizes = [4, 72], strides = [1, 1]} : vector<4x73xf32> to vector<4x72xf32>
    %cst_144 = arith.constant dense<0.000000e+00> : vector<4x1024xf32>
    %307 = tpu.matmul %306, %305, %cst_144 {dimension_numbers = #tpu.dot_dimension_numbers<[1], [0], [0], [1], [0, 0, 1, 1], [], []>} : vector<4x72xf32>, vector<72x1024xf32>, vector<4x1024xf32> -> vector<4x1024xf32>
    %308 = vector.extract_strided_slice %235 {offsets = [0, 72], sizes = [4, 1], strides = [1, 1]} : vector<4x73xf32> to vector<4x1xf32>
    %309 = vector.broadcast %308 : vector<4x1xf32> to vector<4x1024xf32>
    %310 = arith.addf %307, %309 : vector<4x1024xf32>
    %c0_145 = arith.constant 0 : index
    %c0_146 = arith.constant 0 : index
    %c0_147 = arith.constant 0 : index
    %311 = vector.load %arg10[%c0_145, %c0_146, %c0_147] : memref<1x4x1024xf32, #tpu.memory_space<vmem>>, vector<1x4x1024xf32>
    %312 = vector.shape_cast %311 : vector<1x4x1024xf32> to vector<4x1024xf32>
    %313 = vector.shape_cast %310 : vector<4x1024xf32> to vector<1x4x1024xf32>
    tpu.vector_store %arg10[%c0_145, %c0_146, %c0_147], %313 {strides = array<i32>} : memref<1x4x1024xf32, #tpu.memory_space<vmem>>, vector<1x4x1024xf32>,
    return
  }
  func.func @transform_0(%arg0: i32) -> (i32, i32, i32) {
    %c0_i32 = arith.constant 0 : i32
    %c0_i32_0 = arith.constant 0 : i32
    %c0_i32_1 = arith.constant 0 : i32
    return %arg0, %c0_i32, %c0_i32_0 : i32, i32, i32
  }
  func.func @transform_1(%arg0: i32) -> (i32, i32, i32) {
    %c0_i32 = arith.constant 0 : i32
    %c0_i32_0 = arith.constant 0 : i32
    %c0_i32_1 = arith.constant 0 : i32
    return %arg0, %c0_i32, %c0_i32_0 : i32, i32, i32
  }
  func.func @transform_2(%arg0: i32) -> (i32, i32) {
    %c0_i32 = arith.constant 0 : i32
    %c0_i32_0 = arith.constant 0 : i32
    %c0_i32_1 = arith.constant 0 : i32
    return %c0_i32, %c0_i32_0 : i32, i32
  }
  func.func @transform_3(%arg0: i32) -> (i32, i32) {
    %c0_i32 = arith.constant 0 : i32
    %c0_i32_0 = arith.constant 0 : i32
    %c0_i32_1 = arith.constant 0 : i32
    return %c0_i32, %c0_i32_0 : i32, i32
  }
  func.func @transform_4(%arg0: i32) -> (i32, i32, i32) {
    %c0_i32 = arith.constant 0 : i32
    %c0_i32_0 = arith.constant 0 : i32
    %c0_i32_1 = arith.constant 0 : i32
    %c0_i32_2 = arith.constant 0 : i32
    return %c0_i32, %c0_i32_0, %c0_i32_1 : i32, i32, i32
  }
  func.func @transform_5(%arg0: i32) -> (i32, i32, i32) {
    %c0_i32 = arith.constant 0 : i32
    %c0_i32_0 = arith.constant 0 : i32
    %c0_i32_1 = arith.constant 0 : i32
    %c0_i32_2 = arith.constant 0 : i32
    return %c0_i32, %c0_i32_0, %c0_i32_1 : i32, i32, i32
  }
  func.func @transform_6(%arg0: i32) -> (i32, i32) {
    %c0_i32 = arith.constant 0 : i32
    %c0_i32_0 = arith.constant 0 : i32
    %c0_i32_1 = arith.constant 0 : i32
    return %c0_i32, %c0_i32_0 : i32, i32
  }
  func.func @transform_7(%arg0: i32) -> (i32, i32) {
    %c0_i32 = arith.constant 0 : i32
    %c0_i32_0 = arith.constant 0 : i32
    %c0_i32_1 = arith.constant 0 : i32
    return %c0_i32, %c0_i32_0 : i32, i32
  }
  func.func @transform_8(%arg0: i32) -> (i32, i32) {
    %c0_i32 = arith.constant 0 : i32
    %c0_i32_0 = arith.constant 0 : i32
    %c0_i32_1 = arith.constant 0 : i32
    return %c0_i32, %c0_i32_0 : i32, i32
  }
  func.func @transform_9(%arg0: i32) -> (i32, i32, i32) {
    %c0_i32 = arith.constant 0 : i32
    %c0_i32_0 = arith.constant 0 : i32
    %c0_i32_1 = arith.constant 0 : i32
    return %arg0, %c0_i32, %c0_i32_0 : i32, i32, i32
  }
}

</mosaic_0001>

<llo_original>
// kernel: projector_forward.1
$region0: #{projector_forward.1}
  #allocation0 [shape = 'u32[]', space=smem, size = 0x4, offset = 0x4, fixed_abs, tag = 'smem constant byte address 0x4 - core index']
  #allocation1 [shape = 'u32[144,128]{1,0:T(1,128)}', space=vmem, size = 0x12000, scoped, tag = 'internal scratch']
  %s0 = inlined_call_operand.vmem [shape: f32[2,16,64], index: 0, kind: input, shape index: {}]
  %s1 = inlined_call_operand.vmem [shape: f32[2,4,33], index: 1, kind: input, shape index: {}]
  %s2 = inlined_call_operand.vmem [shape: bf16[64,256], index: 2, kind: input, shape index: {}]
  %s3 = inlined_call_operand.vmem [shape: bf16[256,1024], index: 3, kind: input, shape index: {}]
  %s4 = inlined_call_operand.vmem [shape: f32[9,16,16], index: 4, kind: input, shape index: {}]
  %s5 = inlined_call_operand.vmem [shape: f32[9,8,16], index: 5, kind: input, shape index: {}]
  %s6 = inlined_call_operand.vmem [shape: f32[8,8], index: 6, kind: input, shape index: {}]
  %s7 = inlined_call_operand.vmem [shape: f32[32,1], index: 7, kind: input, shape index: {}]
  %s8 = inlined_call_operand.vmem [shape: f32[33,73], index: 8, kind: input, shape index: {}]
  %s9 = inlined_call_operand.vmem [shape: f32[2,4,1024], index: 9, kind: output, shape index: {}]
  %s10 = sld [smem:[#allocation0]]
  $region69: #{projector_forward.1} parent=0
    _
  %s12 = ssub.s32 1, %s10
  %s13 = scalar_select 0, %s12, %s10
  loop: start=0, step=1, limit=4
  $region2: #{projector_forward.1} parent=0 // loop_pre_header
    _
  $region3: #{projector_forward.1} parent=0 // loop_header
    %s15 = sphi 0, %s19
    %p16 = scmp.ge.s32.totalorder %s15, 4
    %s25 = sphi 0, %s27
    %s28 = sphi 0, %s25
    %s29 = sphi 0, %s28
    %s45 = sphi 0, %s29
    %s51 = sphi 0, %s53
    %s54 = sphi 0, %s51
    %s55 = sphi 0, %s54
    %s71 = sphi 0, %s55
    %s75 = sphi 0, %s75
    %s77 = sphi 0, %s75
    %s78 = sphi 0, %s77
    %s92 = sphi 0, %s78
    %s96 = sphi 0, %s96
    %s98 = sphi 0, %s96
    %s99 = sphi 0, %s98
    %s113 = sphi 0, %s99
    %s117 = sphi 0, %s117
    %s119 = sphi 0, %s117
    %s120 = sphi 0, %s119
    %s134 = sphi 0, %s120
    %s138 = sphi 0, %s138
    %s140 = sphi 0, %s138
    %s141 = sphi 0, %s140
    %s155 = sphi 0, %s141
    %s159 = sphi 0, %s159
    %s161 = sphi 0, %s159
    %s162 = sphi 0, %s161
    %s176 = sphi 0, %s162
    %s180 = sphi 0, %s180
    %s182 = sphi 0, %s180
    %s183 = sphi 0, %s182
    %s197 = sphi 0, %s183
    %s201 = sphi 0, %s201
    %s203 = sphi 0, %s201
    %s204 = sphi 0, %s203
    %s218 = sphi 0, %s204
    %s224 = sphi 0, %s226
    %s227 = sphi 0, %s224
    %s228 = sphi 0, %s227
    %s244 = sphi 0, %s228
  $region4: #{projector_forward.1} parent=0 // loop_header_branch
    %18 = sbr.rel (%p16) target = $region8
  $region5: #{projector_forward.1} parent=0 // loop_body
    %s20 = ssub.s32 %s15, 1
    %s21 = ssub.s32 %s15, 2
    %s22 = sadd.s32 %s15, 1
    %s23 = ssub.s32 %s15, %s22
    %p24 = scmp.eq.s32.totalorder %s23, 0
    %s26 = sadd.s32 %s25, 1
    %s27 = scalar_select %p24, %s25, %s26
    %p30 = pneg %p24
    %p31 = scmp.eq.s32.totalorder %s15, 1
    %p32 = por %p30, %p31
    %p33 = scmp.ne.s32.totalorder %s25, %s28
    %p34 = scmp.eq.s32.totalorder %s15, 0
    %p35 = por %p33, %p34
    %p36 = scmp.ne.s32.totalorder %s25, %s28
    %p37 = scmp.eq.s32.totalorder %s20, 1
    %p38 = por %p36, %p37
    %p39 = scmp.ne.s32.totalorder %s28, %s29
    %p40 = scmp.eq.s32.totalorder %s20, 0
    %p41 = por %p39, %p40
    %p42 = scmp.ne.s32.totalorder %s28, %s29
    %p43 = scmp.eq.s32.totalorder %s21, 1
    %p44 = por %p42, %p43
    %p46 = scmp.ne.s32.totalorder %s29, %s45
    %p47 = scmp.eq.s32.totalorder %s21, 0
    %p48 = por %p46, %p47
    %s49 = ssub.s32 %s15, %s22
    %p50 = scmp.eq.s32.totalorder %s49, 0
    %s52 = sadd.s32 %s51, 1
    %s53 = scalar_select %p50, %s51, %s52
    %p56 = pneg %p50
    %p57 = scmp.eq.s32.totalorder %s15, 1
    %p58 = por %p56, %p57
    %p59 = scmp.ne.s32.totalorder %s51, %s54
    %p60 = scmp.eq.s32.totalorder %s15, 0
    %p61 = por %p59, %p60
    %p62 = scmp.ne.s32.totalorder %s51, %s54
    %p63 = scmp.eq.s32.totalorder %s20, 1
    %p64 = por %p62, %p63
    %p65 = scmp.ne.s32.totalorder %s54, %s55
    %p66 = scmp.eq.s32.totalorder %s20, 0
    %p67 = por %p65, %p66
    %p68 = scmp.ne.s32.totalorder %s54, %s55
    %p69 = scmp.eq.s32.totalorder %s21, 1
    %p70 = por %p68, %p69
    %p72 = scmp.ne.s32.totalorder %s55, %s71
    %p73 = scmp.eq.s32.totalorder %s21, 0
    %p74 = por %p72, %p73
    %s76 = sadd.s32 %s75, 1
    %p79 = scmp.eq.s32.totalorder %s15, 1
    %p80 = scmp.ne.s32.totalorder %s75, %s77
    %p81 = scmp.eq.s32.totalorder %s15, 0
    %p82 = por %p80, %p81
    %p83 = scmp.ne.s32.totalorder %s75, %s77
    %p84 = scmp.eq.s32.totalorder %s20, 1
    %p85 = por %p83, %p84
    %p86 = scmp.ne.s32.totalorder %s77, %s78
    %p87 = scmp.eq.s32.totalorder %s20, 0
    %p88 = por %p86, %p87
    %p89 = scmp.ne.s32.totalorder %s77, %s78
    %p90 = scmp.eq.s32.totalorder %s21, 1
    %p91 = por %p89, %p90
    %p93 = scmp.ne.s32.totalorder %s78, %s92
    %p94 = scmp.eq.s32.totalorder %s21, 0
    %p95 = por %p93, %p94
    %s97 = sadd.s32 %s96, 1
    %p100 = scmp.eq.s32.totalorder %s15, 1
    %p101 = scmp.ne.s32.totalorder %s96, %s98
    %p102 = scmp.eq.s32.totalorder %s15, 0
    %p103 = por %p101, %p102
    %p104 = scmp.ne.s32.totalorder %s96, %s98
    %p105 = scmp.eq.s32.totalorder %s20, 1
    %p106 = por %p104, %p105
    %p107 = scmp.ne.s32.totalorder %s98, %s99
    %p108 = scmp.eq.s32.totalorder %s20, 0
    %p109 = por %p107, %p108
    %p110 = scmp.ne.s32.totalorder %s98, %s99
    %p111 = scmp.eq.s32.totalorder %s21, 1
    %p112 = por %p110, %p111
    %p114 = scmp.ne.s32.totalorder %s99, %s113
    %p115 = scmp.eq.s32.totalorder %s21, 0
    %p116 = por %p114, %p115
    %s118 = sadd.s32 %s117, 1
    %p121 = scmp.eq.s32.totalorder %s15, 1
    %p122 = scmp.ne.s32.totalorder %s117, %s119
    %p123 = scmp.eq.s32.totalorder %s15, 0
    %p124 = por %p122, %p123
    %p125 = scmp.ne.s32.totalorder %s117, %s119
    %p126 = scmp.eq.s32.totalorder %s20, 1
    %p127 = por %p125, %p126
    %p128 = scmp.ne.s32.totalorder %s119, %s120
    %p129 = scmp.eq.s32.totalorder %s20, 0
    %p130 = por %p128, %p129
    %p131 = scmp.ne.s32.totalorder %s119, %s120
    %p132 = scmp.eq.s32.totalorder %s21, 1
    %p133 = por %p131, %p132
    %p135 = scmp.ne.s32.totalorder %s120, %s134
    %p136 = scmp.eq.s32.totalorder %s21, 0
    %p137 = por %p135, %p136
    %s139 = sadd.s32 %s138, 1
    %p142 = scmp.eq.s32.totalorder %s15, 1
    %p143 = scmp.ne.s32.totalorder %s138, %s140
    %p144 = scmp.eq.s32.totalorder %s15, 0
    %p145 = por %p143, %p144
    %p146 = scmp.ne.s32.totalorder %s138, %s140
    %p147 = scmp.eq.s32.totalorder %s20, 1
    %p148 = por %p146, %p147
    %p149 = scmp.ne.s32.totalorder %s140, %s141
    %p150 = scmp.eq.s32.totalorder %s20, 0
    %p151 = por %p149, %p150
    %p152 = scmp.ne.s32.totalorder %s140, %s141
    %p153 = scmp.eq.s32.totalorder %s21, 1
    %p154 = por %p152, %p153
    %p156 = scmp.ne.s32.totalorder %s141, %s155
    %p157 = scmp.eq.s32.totalorder %s21, 0
    %p158 = por %p156, %p157
    %s160 = sadd.s32 %s159, 1
    %p163 = scmp.eq.s32.totalorder %s15, 1
    %p164 = scmp.ne.s32.totalorder %s159, %s161
    %p165 = scmp.eq.s32.totalorder %s15, 0
    %p166 = por %p164, %p165
    %p167 = scmp.ne.s32.totalorder %s159, %s161
    %p168 = scmp.eq.s32.totalorder %s20, 1
    %p169 = por %p167, %p168
    %p170 = scmp.ne.s32.totalorder %s161, %s162
    %p171 = scmp.eq.s32.totalorder %s20, 0
    %p172 = por %p170, %p171
    %p173 = scmp.ne.s32.totalorder %s161, %s162
    %p174 = scmp.eq.s32.totalorder %s21, 1
    %p175 = por %p173, %p174
    %p177 = scmp.ne.s32.totalorder %s162, %s176
    %p178 = scmp.eq.s32.totalorder %s21, 0
    %p179 = por %p177, %p178
    %s181 = sadd.s32 %s180, 1
    %p184 = scmp.eq.s32.totalorder %s15, 1
    %p185 = scmp.ne.s32.totalorder %s180, %s182
    %p186 = scmp.eq.s32.totalorder %s15, 0
    %p187 = por %p185, %p186
    %p188 = scmp.ne.s32.totalorder %s180, %s182
    %p189 = scmp.eq.s32.totalorder %s20, 1
    %p190 = por %p188, %p189
    %p191 = scmp.ne.s32.totalorder %s182, %s183
    %p192 = scmp.eq.s32.totalorder %s20, 0
    %p193 = por %p191, %p192
    %p194 = scmp.ne.s32.totalorder %s182, %s183
    %p195 = scmp.eq.s32.totalorder %s21, 1
    %p196 = por %p194, %p195
    %p198 = scmp.ne.s32.totalorder %s183, %s197
    %p199 = scmp.eq.s32.totalorder %s21, 0
    %p200 = por %p198, %p199
    %s202 = sadd.s32 %s201, 1
    %p205 = scmp.eq.s32.totalorder %s15, 1
    %p206 = scmp.ne.s32.totalorder %s201, %s203
    %p207 = scmp.eq.s32.totalorder %s15, 0
    %p208 = por %p206, %p207
    %p209 = scmp.ne.s32.totalorder %s201, %s203
    %p210 = scmp.eq.s32.totalorder %s20, 1
    %p211 = por %p209, %p210
    %p212 = scmp.ne.s32.totalorder %s203, %s204
    %p213 = scmp.eq.s32.totalorder %s20, 0
    %p214 = por %p212, %p213
    %p215 = scmp.ne.s32.totalorder %s203, %s204
    %p216 = scmp.eq.s32.totalorder %s21, 1
    %p217 = por %p215, %p216
    %p219 = scmp.ne.s32.totalorder %s204, %s218
    %p220 = scmp.eq.s32.totalorder %s21, 0
    %p221 = por %p219, %p220
    %s222 = ssub.s32 %s15, %s22
    %p223 = scmp.eq.s32.totalorder %s222, 0
    %s225 = sadd.s32 %s224, 1
    %s226 = scalar_select %p223, %s224, %s225
    %p229 = pneg %p223
    %p230 = scmp.eq.s32.totalorder %s15, 1
    %p231 = por %p229, %p230
    %p232 = scmp.ne.s32.totalorder %s224, %s227
    %p233 = scmp.eq.s32.totalorder %s15, 0
    %p234 = por %p232, %p233
    %p235 = scmp.ne.s32.totalorder %s224, %s227
    %p236 = scmp.eq.s32.totalorder %s20, 1
    %p237 = por %p235, %p236
    %p238 = scmp.ne.s32.totalorder %s227, %s228
    %p239 = scmp.eq.s32.totalorder %s20, 0
    %p240 = por %p238, %p239
    %p241 = scmp.ne.s32.totalorder %s227, %s228
    %p242 = scmp.eq.s32.totalorder %s21, 1
    %p243 = por %p241, %p242
    %p245 = scmp.ne.s32.totalorder %s228, %s244
    %p246 = scmp.eq.s32.totalorder %s21, 0
    %p247 = por %p245, %p246
    %p248 = scmp.le.s32.totalorder 1, %s15
    %p249 = scmp.lt.s32.totalorder %s15, 3
    %p250 = pnand %p248, %p249
    %p251 = pneg %p250
    // Predicated region
    $region9: #{projector_forward.1} parent=5 // pred_check
      _
    $region10: #{projector_forward.1} parent=5 // pred_check_branch
      %253 = sbr.rel (%p250) target = $region12
    $region11: #{projector_forward.1} parent=5 // pred_region
      %s254 = ssub.s32 %s15, 1
      // Predicated region
      $region13: #{projector_forward.1} parent=11 // pred_check
        %p255 = pneg %p88
      $region14: #{projector_forward.1} parent=11 // pred_check_branch
        %257 = sbr.rel (%p255) target = $region16
      $region15: #{projector_forward.1} parent=11 // pred_region
        _
      $region16: #{projector_forward.1} parent=11 // pred_fallthru
        _
      // Predicated region
      $region17: #{projector_forward.1} parent=11 // pred_check
        %p258 = pneg %p109
      $region18: #{projector_forward.1} parent=11 // pred_check_branch
        %260 = sbr.rel (%p258) target = $region20
      $region19: #{projector_forward.1} parent=11 // pred_region
        _
      $region20: #{projector_forward.1} parent=11 // pred_fallthru
        _
      // Predicated region
      $region21: #{projector_forward.1} parent=11 // pred_check
        %p261 = pneg %p130
      $region22: #{projector_forward.1} parent=11 // pred_check_branch
        %263 = sbr.rel (%p261) target = $region24
      $region23: #{projector_forward.1} parent=11 // pred_region
        _
      $region24: #{projector_forward.1} parent=11 // pred_fallthru
        _
      // Predicated region
      $region25: #{projector_forward.1} parent=11 // pred_check
        %p264 = pneg %p151
      $region26: #{projector_forward.1} parent=11 // pred_check_branch
        %266 = sbr.rel (%p264) target = $region28
      $region27: #{projector_forward.1} parent=11 // pred_region
        _
      $region28: #{projector_forward.1} parent=11 // pred_fallthru
        _
      // Predicated region
      $region29: #{projector_forward.1} parent=11 // pred_check
        %p267 = pneg %p172
      $region30: #{projector_forward.1} parent=11 // pred_check_branch
        %269 = sbr.rel (%p267) target = $region32
      $region31: #{projector_forward.1} parent=11 // pred_region
        _
      $region32: #{projector_forward.1} parent=11 // pred_fallthru
        _
      // Predicated region
      $region33: #{projector_forward.1} parent=11 // pred_check
        %p270 = pneg %p193
      $region34: #{projector_forward.1} parent=11 // pred_check_branch
        %272 = sbr.rel (%p270) target = $region36
      $region35: #{projector_forward.1} parent=11 // pred_region
        _
      $region36: #{projector_forward.1} parent=11 // pred_fallthru
        _
      // Predicated region
      $region37: #{projector_forward.1} parent=11 // pred_check
        %p273 = pneg %p214
      $region38: #{projector_forward.1} parent=11 // pred_check_branch
        %275 = sbr.rel (%p273) target = $region40
      $region39: #{projector_forward.1} parent=11 // pred_region
        _
      $region40: #{projector_forward.1} parent=11 // pred_fallthru
        _
    $region12: #{projector_forward.1} parent=5 // pred_fallthru
      _
    %p276 = scmp.lt.s32.totalorder %s15, 2
    // Predicated region
    $region41: #{projector_forward.1} parent=5 // pred_check
      %p277 = pneg %p276
    $region42: #{projector_forward.1} parent=5 // pred_check_branch
      %279 = sbr.rel (%p277) target = $region44
    $region43: #{projector_forward.1} parent=5 // pred_region
      // Predicated region
      $region45: #{projector_forward.1} parent=43 // pred_check
        %p280 = pneg %p35
      $region46: #{projector_forward.1} parent=43 // pred_check_branch
        %282 = sbr.rel (%p280) target = $region48
      $region47: #{projector_forward.1} parent=43 // pred_region
        %p283 = scmp.lt.s32.totalorder %s15, 1
        %s284 = scalar_select %p283, %s15, 1
        %s285 = smul.addr %s284, 2
        %s286 = smul.addr %s285, 8
        %s287 = scalar_lea.vmem %s0, %s286
      $region48: #{projector_forward.1} parent=43 // pred_fallthru
        _
      // Predicated region
      $region49: #{projector_forward.1} parent=43 // pred_check
        %p288 = pneg %p61
      $region50: #{projector_forward.1} parent=43 // pred_check_branch
        %290 = sbr.rel (%p288) target = $region52
      $region51: #{projector_forward.1} parent=43 // pred_region
        %p291 = scmp.lt.s32.totalorder %s15, 1
        %s292 = scalar_select %p291, %s15, 1
        %s293 = smul.addr %s292, 4
        %s294 = scalar_lea.vmem %s1, %s293
      $region52: #{projector_forward.1} parent=43 // pred_fallthru
        _
    $region44: #{projector_forward.1} parent=5 // pred_fallthru
      _
    %p295 = scmp.le.s32.totalorder 1, %s15
    %p296 = scmp.lt.s32.totalorder %s15, 3
    %p297 = pnand %p295, %p296
    %p298 = pneg %p297
    // Predicated region
    $region53: #{projector_forward.1} parent=5 // pred_check
      _
    $region54: #{projector_forward.1} parent=5 // pred_check_branch
      %300 = sbr.rel (%p297) target = $region56
    $region55: #{projector_forward.1} parent=5 // pred_region
      %s301 = ssub.s32 %s15, 1
      %p302 = scmp.lt.s32.totalorder %s20, 1
      %s303 = scalar_select %p302, %s20, 1
      %s304 = smul.addr %s303, 2
      %s305 = smul.addr %s304, 8
      %s306 = scalar_lea.vmem %s0, %s305
      %p307 = pneg %p41
      %p308 = pneg %p38
      %p309 = scmp.lt.s32.totalorder %s20, 1
      %s310 = scalar_select %p309, %s20, 1
      %s311 = smul.addr %s310, 4
      %s312 = scalar_lea.vmem %s1, %s311
      %p313 = pneg %p67
      %p314 = pneg %p64
      %p315 = pneg %p88
      %p316 = pneg %p85
      %p317 = pneg %p109
      %p318 = pneg %p106
      %p319 = pneg %p130
      %p320 = pneg %p127
      %p321 = pneg %p151
      %p322 = pneg %p148
      %p323 = pneg %p172
      %p324 = pneg %p169
      %p325 = pneg %p193
      %p326 = pneg %p190
      %p327 = pneg %p214
      %p328 = pneg %p211
      %p329 = pneg %p240
      %p330 = pneg %p237
      %p331 = scmp.lt.s32.totalorder %s20, 1
      %s332 = scalar_select %p331, %s20, 1
      %s333 = smul.addr %s332, 8
      %s334 = smul.addr %s333, 4
      %s335 = scalar_lea.vmem %s9, %s334
      %p336 = scmp.lt.s32.totalorder %s20, 1
      %s337 = scalar_select %p336, %s20, 1
      %s338 = smul.addr %s337, 2
      %s339 = smul.addr %s338, 8
      %s340 = scalar_lea.vmem %s0, %s339
      %p341 = scmp.lt.s32.totalorder %s20, 1
      %s342 = scalar_select %p341, %s20, 1
      %s343 = smul.addr %s342, 4
      %s344 = scalar_lea.vmem %s1, %s343
      %p345 = scmp.lt.s32.totalorder %s20, 1
      %s346 = scalar_select %p345, %s20, 1
      %s347 = smul.addr %s346, 8
      %s348 = smul.addr %s347, 4
      %s349 = scalar_lea.vmem %s9, %s348
      %v350 = vld [vmem:[%s340] sm:$0xff]
      %v351 = vld [vmem:[%s340 + $0x8] sm:$0xff]
      %v352 = vld [vmem:[%s2] sm:$0xff]
      %v353 = vld [vmem:[%s2 + $0x8] sm:$0xff]
      %v354 = vld [vmem:[%s2 + $0x10] sm:$0xff]
      %v355 = vld [vmem:[%s2 + $0x18] sm:$0xff]
      %v356 = vld [vmem:[%s2 + $0x20] sm:$0xff]
      %v357 = vld [vmem:[%s2 + $0x28] sm:$0xff]
      %v358 = vld [vmem:[%s2 + $0x30] sm:$0xff]
      %v359 = vld [vmem:[%s2 + $0x38] sm:$0xff]
      %v360 = vunpack.c.l.bf16 %v352
      %v361 = vunpack.c.h.bf16 %v352
      %v362 = vunpack.c.l.bf16 %v353
      %v363 = vunpack.c.h.bf16 %v353
      %v364 = vunpack.c.l.bf16 %v354
      %v365 = vunpack.c.h.bf16 %v354
      %v366 = vunpack.c.l.bf16 %v355
      %v367 = vunpack.c.h.bf16 %v355
      %v368 = vunpack.c.l.bf16 %v356
      %v369 = vunpack.c.h.bf16 %v356
      %v370 = vunpack.c.l.bf16 %v357
      %v371 = vunpack.c.h.bf16 %v357
      %v372 = vunpack.c.l.bf16 %v358
      %v373 = vunpack.c.h.bf16 %v358
      %v374 = vunpack.c.l.bf16 %v359
      %v375 = vunpack.c.h.bf16 %v359
      %vm376 = vcmask 523264
      %v378 = vsel %vm376, %v350, 0
      %v381 = vsel %vm376, %v351, 0
      %383 = vmatprep.subr.mxu0 %v361
      %384 = vmatpush1.msra.mxu0 %v360
      %385 = vmatprep.subr.mxu0 %v363
      %386 = vmatpush1.msra.mxu0 %v362
      %387 = vmatprep.subr.mxu0 %v365
      %388 = vmatpush1.msra.mxu0 %v364
      %389 = vmatprep.subr.mxu0 %v367
      %390 = vmatpush1.msra.mxu0 %v366
      %391 = vmatprep.subr.mxu0 %v369
      %392 = vmatpush1.msra.mxu0 %v368
      %393 = vmatprep.subr.mxu0 %v371
      %394 = vmatpush1.msra.mxu0 %v370
      %395 = vmatprep.subr.mxu0 %v373
      %396 = vmatpush1.msra.mxu0 %v372
      %397 = vmatprep.subr.mxu0 %v375
      %398 = vmatpush1.msra.mxu0 %v374
      %399 = vmatprep.subr.mxu0 0.0
      %400 = vmatpush1.msra.mxu0 0.0
      %401 = vmatprep.subr.mxu0 0.0
      %402 = vmatpush1.msra.mxu0 0.0
      %403 = vmatprep.subr.mxu0 0.0
      %404 = vmatpush1.msra.mxu0 0.0
      %405 = vmatprep.subr.mxu0 0.0
      %406 = vmatpush1.msra.mxu0 0.0
      %407 = vmatprep.subr.mxu0 0.0
      %408 = vmatpush1.msra.mxu0 0.0
      %409 = vmatprep.subr.mxu0 0.0
      %410 = vmatpush1.msra.mxu0 0.0
      %411 = vmatprep.subr.mxu0 0.0
      %412 = vmatpush1.msra.mxu0 0.0
      %413 = vmatprep.subr.mxu0 0.0
      %414 = vmatpush1.msra.mxu0 0.0
      %415 = vmatprep.subr.mxu0 0.0
      %416 = vmatpush1.msra.mxu0 0.0
      %417 = vmatprep.subr.mxu0 0.0
      %418 = vmatpush1.msra.mxu0 0.0
      %419 = vmatprep.subr.mxu0 0.0
      %420 = vmatpush1.msra.mxu0 0.0
      %421 = vmatprep.subr.mxu0 0.0
      %422 = vmatpush1.msra.mxu0 0.0
      %423 = vmatprep.subr.mxu0 0.0
      %424 = vmatpush1.msra.mxu0 0.0
      %425 = vmatprep.subr.mxu0 0.0
      %426 = vmatpush1.msra.mxu0 0.0
      %427 = vmatprep.subr.mxu0 0.0
      %428 = vmatpush1.msra.mxu0 0.0
      %429 = vmatprep.subr.mxu0 0.0
      %430 = vmatpush1.msra.mxu0 0.0
      %431 = vmatprep.subr.mxu0 0.0
      %432 = vmatpush1.msra.mxu0 0.0
      %433 = vmatprep.subr.mxu0 0.0
      %434 = vmatpush1.msra.mxu0 0.0
      %435 = vmatprep.subr.mxu0 0.0
      %436 = vmatpush1.msra.mxu0 0.0
      %437 = vmatprep.subr.mxu0 0.0
      %438 = vmatpush1.msra.mxu0 0.0
      %439 = vmatprep.subr.mxu0 0.0
      %440 = vmatpush1.msra.mxu0 0.0
      %441 = vmatprep.subr.mxu0 0.0
      %442 = vmatpush1.msra.mxu0 0.0
      %443 = vmatprep.subr.mxu0 0.0
      %444 = vmatpush1.msra.mxu0 0.0
      %445 = vmatprep.subr.mxu0 0.0
      %446 = vmatpush1.msra.mxu0 0.0
      %447 = vmatprep.mubr.f32.mxu0 0.0
      %448 = vmatmul.mubr.f32.gmra.mrb[0].mxu0 %v378
      %v449 = vpop.f32.mrb[0].mxu0
      %v450 = vadd.f32 0.0, %v449
      %v451 = vpop.f32.mrb[0].mxu0
      %v452 = vadd.f32 0.0, %v451
      %453 = vmatprep.mubr.f32.mxu0 0.0
      %454 = vmatmul.mubr.f32.gmra.mrb[0].mxu0 %v381
      %v455 = vpop.f32.mrb[0].mxu0
      %v456 = vadd.f32 0.0, %v455
      %v457 = vpop.f32.mrb[0].mxu0
      %v458 = vadd.f32 0.0, %v457
      %459 = vdwg.mxu0
      %v460 = vld [vmem:[%s7] sm:$0xff]
      %v461 = vld [vmem:[%s7 + $0x8] sm:$0xff]
      %v462 = vld [vmem:[%s7 + $0x10] sm:$0xff]
      %v463 = vld [vmem:[%s7 + $0x18] sm:$0xff]
      %v464 = vlaneseq
      %v465 = vand.u32 %v464, 127
      %v466 = vadd.s32 %v465, 128
      %vm467 = vcmp.lt.s32.totalorder %v465, 0
      %v468 = vsub.s32 0, %v465
      %v469 = vsel %vm467, %v468, %v465
      %v470 = vshrl.u32 %v469, 4
      %v471 = vand.u32 %v469, 15
      %v472 = vsub.s32 0, %v471
      %v473 = vsel %vm467, %v472, %v471
      %vm474 = vcmp.lt.s32.totalorder %v466, 0
      %v475 = vsub.s32 0, %v466
      %v476 = vsel %vm474, %v475, %v466
      %v477 = vshrl.u32 %v476, 4
      %v478 = vand.u32 %v476, 15
      %v479 = vsub.s32 0, %v478
      %v480 = vsel %vm474, %v479, %v478
      %vm481 = vcmp.ne.s32.totalorder %v473, 0
      %vm482 = vcmp.ne.s32.totalorder %v480, 0
      %vm483 = vcmp.lt.s32.totalorder %v473, 0
      %vm484 = vcmp.lt.s32.totalorder %v480, 0
      %vm485 = vmand %vm483, %vm481
      %vm486 = vmand %vm484, %vm482
      %v487 = vadd.s32 %v473, 16
      %v488 = vadd.s32 %v480, 16
      %v489 = vsel %vm485, %v487, %v473
      %v490 = vsel %vm486, %v488, %v480
      %vm491 = vcmp.ge.s32.totalorder %v489, 1
      %vm492 = vcmp.ge.s32.totalorder %v490, 1
      %vm493 = vcmp.le.s32.totalorder %v489, 14
      %vm494 = vcmp.le.s32.totalorder %v490, 14
      %499 = vrot.lane.b32.xlu0 %v450, 17
      %v500 = vpop.permute.xlu0 %499
      %501 = vrot.lane.b32.xlu0 %v452, 17
      %v502 = vpop.permute.xlu0 %501
      %503 = vrot.lane.b32.xlu0 %v456, 17
      %v504 = vpop.permute.xlu0 %503
      %505 = vrot.lane.b32.xlu0 %v458, 17
      %v506 = vpop.permute.xlu0 %505
      %vm507 = vcmask 138240
      %v508 = vsel %vm507, %v500, %v502
      %v509 = vsel %vm507, %v504, %v506
      %v514 = vsel %vm507, 0.0, %v500
      %v515 = vsel %vm507, 0.0, %v504
      %v516 = vsel %vm491, 1, 0
      %v517 = vsel %vm492, 1, 0
      %vm518 = vcmp.eq.s32.totalorder %v516, 1
      %vm519 = vcmp.eq.s32.totalorder %v517, 1
      %v520 = vsel %vm518, %v514, 0.0
      %v521 = vsel %vm519, %v508, 0.0
      %v522 = vsel %vm518, %v515, 0.0
      %v523 = vsel %vm519, %v509, 0.0
      %v524 = vld [vmem:[%s4] sm:$0xff]
      %v525 = vld [vmem:[%s4 + $0x8] sm:$0xff]
      %526 = vrot.lane.b32.xlu0 %v450, 16
      %v527 = vpop.permute.xlu0 %526
      %528 = vrot.lane.b32.xlu0 %v452, 16
      %v529 = vpop.permute.xlu0 %528
      %530 = vrot.lane.b32.xlu0 %v456, 16
      %v531 = vpop.permute.xlu0 %530
      %532 = vrot.lane.b32.xlu0 %v458, 16
      %v533 = vpop.permute.xlu0 %532
      %vm534 = vcmask 130048
      %v535 = vsel %vm534, %v527, %v529
      %v536 = vsel %vm534, %v531, %v533
      %v541 = vsel %vm534, 0.0, %v527
      %v542 = vsel %vm534, 0.0, %v531
      %s543 = scalar_lea.vmem %s4, 16
      %v544 = vld [vmem:[%s543] sm:$0xff]
      %v545 = vld [vmem:[%s543 + $0x8] sm:$0xff]
      %v547 = vsel %vm534, %v544, 0
      %v550 = vsel %vm534, %v545, 0
      %552 = vmatprep.subr.mxu0 %v535
      %553 = vmatpush1.msra.mxu0 %v541
      %554 = vmatprep.subr.mxu0 %v536
      %555 = vmatpush1.msra.mxu0 %v542
      %556 = vmatprep.subr.mxu0 0.0
      %557 = vmatpush1.msra.mxu0 0.0
      %558 = vmatprep.subr.mxu0 0.0
      %559 = vmatpush1.msra.mxu0 0.0
      %560 = vmatprep.subr.mxu0 0.0
      %561 = vmatpush1.msra.mxu0 0.0
      %562 = vmatprep.subr.mxu0 0.0
      %563 = vmatpush1.msra.mxu0 0.0
      %564 = vmatprep.subr.mxu0 0.0
      %565 = vmatpush1.msra.mxu0 0.0
      %566 = vmatprep.subr.mxu0 0.0
      %567 = vmatpush1.msra.mxu0 0.0
      %568 = vmatprep.subr.mxu0 0.0
      %569 = vmatpush1.msra.mxu0 0.0
      %570 = vmatprep.subr.mxu0 0.0
      %571 = vmatpush1.msra.mxu0 0.0
      %572 = vmatprep.subr.mxu0 0.0
      %573 = vmatpush1.msra.mxu0 0.0
      %574 = vmatprep.subr.mxu0 0.0
      %575 = vmatpush1.msra.mxu0 0.0
      %576 = vmatprep.subr.mxu0 0.0
      %577 = vmatpush1.msra.mxu0 0.0
      %578 = vmatprep.subr.mxu0 0.0
      %579 = vmatpush1.msra.mxu0 0.0
      %580 = vmatprep.subr.mxu0 0.0
      %581 = vmatpush1.msra.mxu0 0.0
      %582 = vmatprep.subr.mxu0 0.0
      %583 = vmatpush1.msra.mxu0 0.0
      %584 = vmatprep.subr.mxu0 0.0
      %585 = vmatpush1.msra.mxu0 0.0
      %586 = vmatprep.subr.mxu0 0.0
      %587 = vmatpush1.msra.mxu0 0.0
      %588 = vmatprep.subr.mxu0 0.0
      %589 = vmatpush1.msra.mxu0 0.0
      %590 = vmatprep.subr.mxu0 0.0
      %591 = vmatpush1.msra.mxu0 0.0
      %592 = vmatprep.subr.mxu0 0.0
      %593 = vmatpush1.msra.mxu0 0.0
      %594 = vmatprep.subr.mxu0 0.0
      %595 = vmatpush1.msra.mxu0 0.0
      %596 = vmatprep.subr.mxu0 0.0
      %597 = vmatpush1.msra.mxu0 0.0
      %598 = vmatprep.subr.mxu0 0.0
      %599 = vmatpush1.msra.mxu0 0.0
      %600 = vmatprep.subr.mxu0 0.0
      %601 = vmatpush1.msra.mxu0 0.0
      %602 = vmatprep.subr.mxu0 0.0
      %603 = vmatpush1.msra.mxu0 0.0
      %604 = vmatprep.subr.mxu0 0.0
      %605 = vmatpush1.msra.mxu0 0.0
      %606 = vmatprep.subr.mxu0 0.0
      %607 = vmatpush1.msra.mxu0 0.0
      %608 = vmatprep.subr.mxu0 0.0
      %609 = vmatpush1.msra.mxu0 0.0
      %610 = vmatprep.subr.mxu0 0.0
      %611 = vmatpush1.msra.mxu0 0.0
      %612 = vmatprep.subr.mxu0 0.0
      %613 = vmatpush1.msra.mxu0 0.0
      %614 = vmatprep.subr.mxu0 0.0
      %615 = vmatpush1.msra.mxu0 0.0
      %616 = vmatprep.mubr.f32.mxu0 0.0
      %617 = vmatmul.mubr.f32.gmra.mrb[0].mxu0 %v547
      %v618 = vpop.f32.mrb[0].mxu0
      %v619 = vadd.f32 0.0, %v618
      %v620 = vpop.f32.mrb[0].mxu0
      %v621 = vadd.f32 0.0, %v620
      %622 = vmatprep.mubr.f32.mxu0 0.0
      %623 = vmatmul.mubr.f32.gmra.mrb[0].mxu0 %v550
      %v624 = vpop.f32.mrb[0].mxu0
      %v625 = vadd.f32 0.0, %v624
      %v626 = vpop.f32.mrb[0].mxu0
      %v627 = vadd.f32 0.0, %v626
      %628 = vdwg.mxu0
      %v630 = vsel %vm534, %v524, 0
      %v633 = vsel %vm534, %v525, 0
      %635 = vmatprep.subr.mxu0 %v521
      %636 = vmatpush1.msra.mxu0 %v520
      %637 = vmatprep.subr.mxu0 %v523
      %638 = vmatpush1.msra.mxu0 %v522
      %639 = vmatprep.subr.mxu0 0.0
      %640 = vmatpush1.msra.mxu0 0.0
      %641 = vmatprep.subr.mxu0 0.0
      %642 = vmatpush1.msra.mxu0 0.0
      %643 = vmatprep.subr.mxu0 0.0
      %644 = vmatpush1.msra.mxu0 0.0
      %645 = vmatprep.subr.mxu0 0.0
      %646 = vmatpush1.msra.mxu0 0.0
      %647 = vmatprep.subr.mxu0 0.0
      %648 = vmatpush1.msra.mxu0 0.0
      %649 = vmatprep.subr.mxu0 0.0
      %650 = vmatpush1.msra.mxu0 0.0
      %651 = vmatprep.subr.mxu0 0.0
      %652 = vmatpush1.msra.mxu0 0.0
      %653 = vmatprep.subr.mxu0 0.0
      %654 = vmatpush1.msra.mxu0 0.0
      %655 = vmatprep.subr.mxu0 0.0
      %656 = vmatpush1.msra.mxu0 0.0
      %657 = vmatprep.subr.mxu0 0.0
      %658 = vmatpush1.msra.mxu0 0.0
      %659 = vmatprep.subr.mxu0 0.0
      %660 = vmatpush1.msra.mxu0 0.0
      %661 = vmatprep.subr.mxu0 0.0
      %662 = vmatpush1.msra.mxu0 0.0
      %663 = vmatprep.subr.mxu0 0.0
      %664 = vmatpush1.msra.mxu0 0.0
      %665 = vmatprep.subr.mxu0 0.0
      %666 = vmatpush1.msra.mxu0 0.0
      %667 = vmatprep.subr.mxu0 0.0
      %668 = vmatpush1.msra.mxu0 0.0
      %669 = vmatprep.subr.mxu0 0.0
      %670 = vmatpush1.msra.mxu0 0.0
      %671 = vmatprep.subr.mxu0 0.0
      %672 = vmatpush1.msra.mxu0 0.0
      %673 = vmatprep.subr.mxu0 0.0
      %674 = vmatpush1.msra.mxu0 0.0
      %675 = vmatprep.subr.mxu0 0.0
      %676 = vmatpush1.msra.mxu0 0.0
      %677 = vmatprep.subr.mxu0 0.0
      %678 = vmatpush1.msra.mxu0 0.0
      %679 = vmatprep.subr.mxu0 0.0
      %680 = vmatpush1.msra.mxu0 0.0
      %681 = vmatprep.subr.mxu0 0.0
      %682 = vmatpush1.msra.mxu0 0.0
      %683 = vmatprep.subr.mxu0 0.0
      %684 = vmatpush1.msra.mxu0 0.0
      %685 = vmatprep.subr.mxu0 0.0
      %686 = vmatpush1.msra.mxu0 0.0
      %687 = vmatprep.subr.mxu0 0.0
      %688 = vmatpush1.msra.mxu0 0.0
      %689 = vmatprep.subr.mxu0 0.0
      %690 = vmatpush1.msra.mxu0 0.0
      %691 = vmatprep.subr.mxu0 0.0
      %692 = vmatpush1.msra.mxu0 0.0
      %693 = vmatprep.subr.mxu0 0.0
      %694 = vmatpush1.msra.mxu0 0.0
      %695 = vmatprep.subr.mxu0 0.0
      %696 = vmatpush1.msra.mxu0 0.0
      %697 = vmatprep.subr.mxu0 0.0
      %698 = vmatpush1.msra.mxu0 0.0
      %699 = vmatprep.mubr.f32.mxu0 0.0
      %700 = vmatmul.mubr.f32.gmra.mrb[0].mxu0 %v630
      %v701 = vpop.f32.mrb[0].mxu0
      %v702 = vadd.f32 %v619, %v701
      %v703 = vpop.f32.mrb[0].mxu0
      %v704 = vadd.f32 %v621, %v703
      %705 = vmatprep.mubr.f32.mxu0 0.0
      %706 = vmatmul.mubr.f32.gmra.mrb[0].mxu0 %v633
      %v707 = vpop.f32.mrb[0].mxu0
      %v708 = vadd.f32 %v625, %v707
      %v709 = vpop.f32.mrb[0].mxu0
      %v710 = vadd.f32 %v627, %v709
      %711 = vdwg.mxu0
      %712 = vrot.lane.b32.xlu0 %v450, 15
      %v713 = vpop.permute.xlu0 %712
      %714 = vrot.lane.b32.xlu0 %v452, 15
      %v715 = vpop.permute.xlu0 %714
      %716 = vrot.lane.b32.xlu0 %v456, 15
      %v717 = vpop.permute.xlu0 %716
      %718 = vrot.lane.b32.xlu0 %v458, 15
      %v719 = vpop.permute.xlu0 %718
      %vm720 = vcmask 121856
      %v721 = vsel %vm720, %v713, %v715
      %v722 = vsel %vm720, %v717, %v719
      %v727 = vsel %vm720, 0.0, %v713
      %v728 = vsel %vm720, 0.0, %v717
      %v729 = vsel %vm493, 1, 0
      %v730 = vsel %vm494, 1, 0
      %vm731 = vcmp.eq.s32.totalorder %v729, 1
      %vm732 = vcmp.eq.s32.totalorder %v730, 1
      %v733 = vsel %vm731, %v727, 0.0
      %v734 = vsel %vm732, %v721, 0.0
      %v735 = vsel %vm731, %v728, 0.0
      %v736 = vsel %vm732, %v722, 0.0
      %s737 = scalar_lea.vmem %s4, 32
      %v738 = vld [vmem:[%s737] sm:$0xff]
      %v739 = vld [vmem:[%s737 + $0x8] sm:$0xff]
      %v741 = vsel %vm534, %v738, 0
      %v744 = vsel %vm534, %v739, 0
      %746 = vmatprep.subr.mxu0 %v734
      %747 = vmatpush1.msra.mxu0 %v733
      %748 = vmatprep.subr.mxu0 %v736
      %749 = vmatpush1.msra.mxu0 %v735
      %750 = vmatprep.subr.mxu0 0.0
      %751 = vmatpush1.msra.mxu0 0.0
      %752 = vmatprep.subr.mxu0 0.0
      %753 = vmatpush1.msra.mxu0 0.0
      %754 = vmatprep.subr.mxu0 0.0
      %755 = vmatpush1.msra.mxu0 0.0
      %756 = vmatprep.subr.mxu0 0.0
      %757 = vmatpush1.msra.mxu0 0.0
      %758 = vmatprep.subr.mxu0 0.0
      %759 = vmatpush1.msra.mxu0 0.0
      %760 = vmatprep.subr.mxu0 0.0
      %761 = vmatpush1.msra.mxu0 0.0
      %762 = vmatprep.subr.mxu0 0.0
      %763 = vmatpush1.msra.mxu0 0.0
      %764 = vmatprep.subr.mxu0 0.0
      %765 = vmatpush1.msra.mxu0 0.0
      %766 = vmatprep.subr.mxu0 0.0
      %767 = vmatpush1.msra.mxu0 0.0
      %768 = vmatprep.subr.mxu0 0.0
      %769 = vmatpush1.msra.mxu0 0.0
      %770 = vmatprep.subr.mxu0 0.0
      %771 = vmatpush1.msra.mxu0 0.0
      %772 = vmatprep.subr.mxu0 0.0
      %773 = vmatpush1.msra.mxu0 0.0
      %774 = vmatprep.subr.mxu0 0.0
      %775 = vmatpush1.msra.mxu0 0.0
      %776 = vmatprep.subr.mxu0 0.0
      %777 = vmatpush1.msra.mxu0 0.0
      %778 = vmatprep.subr.mxu0 0.0
      %779 = vmatpush1.msra.mxu0 0.0
      %780 = vmatprep.subr.mxu0 0.0
      %781 = vmatpush1.msra.mxu0 0.0
      %782 = vmatprep.subr.mxu0 0.0
      %783 = vmatpush1.msra.mxu0 0.0
      %784 = vmatprep.subr.mxu0 0.0
      %785 = vmatpush1.msra.mxu0 0.0
      %786 = vmatprep.subr.mxu0 0.0
      %787 = vmatpush1.msra.mxu0 0.0
      %788 = vmatprep.subr.mxu0 0.0
      %789 = vmatpush1.msra.mxu0 0.0
      %790 = vmatprep.subr.mxu0 0.0
      %791 = vmatpush1.msra.mxu0 0.0
      %792 = vmatprep.subr.mxu0 0.0
      %793 = vmatpush1.msra.mxu0 0.0
      %794 = vmatprep.subr.mxu0 0.0
      %795 = vmatpush1.msra.mxu0 0.0
      %796 = vmatprep.subr.mxu0 0.0
      %797 = vmatpush1.msra.mxu0 0.0
      %798 = vmatprep.subr.mxu0 0.0
      %799 = vmatpush1.msra.mxu0 0.0
      %800 = vmatprep.subr.mxu0 0.0
      %801 = vmatpush1.msra.mxu0 0.0
      %802 = vmatprep.subr.mxu0 0.0
      %803 = vmatpush1.msra.mxu0 0.0
      %804 = vmatprep.subr.mxu0 0.0
      %805 = vmatpush1.msra.mxu0 0.0
      %806 = vmatprep.subr.mxu0 0.0
      %807 = vmatpush1.msra.mxu0 0.0
      %808 = vmatprep.subr.mxu0 0.0
      %809 = vmatpush1.msra.mxu0 0.0
      %810 = vmatprep.mubr.f32.mxu0 0.0
      %811 = vmatmul.mubr.f32.gmra.mrb[0].mxu0 %v741
      %v812 = vpop.f32.mrb[0].mxu0
      %v813 = vadd.f32 0.0, %v812
      %v814 = vpop.f32.mrb[0].mxu0
      %v815 = vadd.f32 0.0, %v814
      %816 = vmatprep.mubr.f32.mxu0 0.0
      %817 = vmatmul.mubr.f32.gmra.mrb[0].mxu0 %v744
      %v818 = vpop.f32.mrb[0].mxu0
      %v819 = vadd.f32 0.0, %v818
      %v820 = vpop.f32.mrb[0].mxu0
      %v821 = vadd.f32 0.0, %v820
      %822 = vdwg.mxu0
      %v823 = vadd.f32 %v702, %v813
      %v824 = vadd.f32 %v704, %v815
      %v825 = vadd.f32 %v708, %v819
      %v826 = vadd.f32 %v710, %v821
      %827 = vrot.lane.b32.xlu0 %v450, 1
      %v828 = vpop.permute.xlu0 %827
      %829 = vrot.lane.b32.xlu0 %v452, 1
      %v830 = vpop.permute.xlu0 %829
      %831 = vrot.lane.b32.xlu0 %v456, 1
      %v832 = vpop.permute.xlu0 %831
      %833 = vrot.lane.b32.xlu0 %v458, 1
      %v834 = vpop.permute.xlu0 %833
      %vm835 = vcmask 7168
      %v836 = vsel %vm835, %v828, %v830
      %v837 = vsel %vm835, %v832, %v834
      %v842 = vsel %vm835, 0.0, %v828
      %v843 = vsel %vm835, 0.0, %v832
      %v844 = vsel %vm518, %v842, 0.0
      %v845 = vsel %vm519, %v836, 0.0
      %v846 = vsel %vm518, %v843, 0.0
      %v847 = vsel %vm519, %v837, 0.0
      %s848 = scalar_lea.vmem %s4, 48
      %v849 = vld [vmem:[%s848] sm:$0xff]
      %v850 = vld [vmem:[%s848 + $0x8] sm:$0xff]
      %v852 = vsel %vm534, %v849, 0
      %v855 = vsel %vm534, %v850, 0
      %857 = vmatprep.subr.mxu0 %v845
      %858 = vmatpush1.msra.mxu0 %v844
      %859 = vmatprep.subr.mxu0 %v847
      %860 = vmatpush1.msra.mxu0 %v846
      %861 = vmatprep.subr.mxu0 0.0
      %862 = vmatpush1.msra.mxu0 0.0
      %863 = vmatprep.subr.mxu0 0.0
      %864 = vmatpush1.msra.mxu0 0.0
      %865 = vmatprep.subr.mxu0 0.0
      %866 = vmatpush1.msra.mxu0 0.0
      %867 = vmatprep.subr.mxu0 0.0
      %868 = vmatpush1.msra.mxu0 0.0
      %869 = vmatprep.subr.mxu0 0.0
      %870 = vmatpush1.msra.mxu0 0.0
      %871 = vmatprep.subr.mxu0 0.0
      %872 = vmatpush1.msra.mxu0 0.0
      %873 = vmatprep.subr.mxu0 0.0
      %874 = vmatpush1.msra.mxu0 0.0
      %875 = vmatprep.subr.mxu0 0.0
      %876 = vmatpush1.msra.mxu0 0.0
      %877 = vmatprep.subr.mxu0 0.0
      %878 = vmatpush1.msra.mxu0 0.0
      %879 = vmatprep.subr.mxu0 0.0
      %880 = vmatpush1.msra.mxu0 0.0
      %881 = vmatprep.subr.mxu0 0.0
      %882 = vmatpush1.msra.mxu0 0.0
      %883 = vmatprep.subr.mxu0 0.0
      %884 = vmatpush1.msra.mxu0 0.0
      %885 = vmatprep.subr.mxu0 0.0
      %886 = vmatpush1.msra.mxu0 0.0
      %887 = vmatprep.subr.mxu0 0.0
      %888 = vmatpush1.msra.mxu0 0.0
      %889 = vmatprep.subr.mxu0 0.0
      %890 = vmatpush1.msra.mxu0 0.0
      %891 = vmatprep.subr.mxu0 0.0
      %892 = vmatpush1.msra.mxu0 0.0
      %893 = vmatprep.subr.mxu0 0.0
      %894 = vmatpush1.msra.mxu0 0.0
      %895 = vmatprep.subr.mxu0 0.0
      %896 = vmatpush1.msra.mxu0 0.0
      %897 = vmatprep.subr.mxu0 0.0
      %898 = vmatpush1.msra.mxu0 0.0
      %899 = vmatprep.subr.mxu0 0.0
      %900 = vmatpush1.msra.mxu0 0.0
      %901 = vmatprep.subr.mxu0 0.0
      %902 = vmatpush1.msra.mxu0 0.0
      %903 = vmatprep.subr.mxu0 0.0
      %904 = vmatpush1.msra.mxu0 0.0
      %905 = vmatprep.subr.mxu0 0.0
      %906 = vmatpush1.msra.mxu0 0.0
      %907 = vmatprep.subr.mxu0 0.0
      %908 = vmatpush1.msra.mxu0 0.0
      %909 = vmatprep.subr.mxu0 0.0
      %910 = vmatpush1.msra.mxu0 0.0
      %911 = vmatprep.subr.mxu0 0.0
      %912 = vmatpush1.msra.mxu0 0.0
      %913 = vmatprep.subr.mxu0 0.0
      %914 = vmatpush1.msra.mxu0 0.0
      %915 = vmatprep.subr.mxu0 0.0
      %916 = vmatpush1.msra.mxu0 0.0
      %917 = vmatprep.subr.mxu0 0.0
      %918 = vmatpush1.msra.mxu0 0.0
      %919 = vmatprep.subr.mxu0 0.0
      %920 = vmatpush1.msra.mxu0 0.0
      %921 = vmatprep.mubr.f32.mxu0 0.0
      %922 = vmatmul.mubr.f32.gmra.mrb[0].mxu0 %v852
      %v923 = vpop.f32.mrb[0].mxu0
      %v924 = vadd.f32 0.0, %v923
      %v925 = vpop.f32.mrb[0].mxu0
      %v926 = vadd.f32 0.0, %v925
      %927 = vmatprep.mubr.f32.mxu0 0.0
      %928 = vmatmul.mubr.f32.gmra.mrb[0].mxu0 %v855
      %v929 = vpop.f32.mrb[0].mxu0
      %v930 = vadd.f32 0.0, %v929
      %v931 = vpop.f32.mrb[0].mxu0
      %v932 = vadd.f32 0.0, %v931
      %933 = vdwg.mxu0
      %v934 = vadd.f32 %v823, %v924
      %v935 = vadd.f32 %v824, %v926
      %v936 = vadd.f32 %v825, %v930
      %v937 = vadd.f32 %v826, %v932
      %s938 = scalar_lea.vmem %s4, 64
      %v939 = vld [vmem:[%s938] sm:$0xff]
      %v940 = vld [vmem:[%s938 + $0x8] sm:$0xff]
      %v942 = vsel %vm534, %v939, 0
      %v945 = vsel %vm534, %v940, 0
      %947 = vmatprep.subr.mxu0 %v452
      %948 = vmatpush1.msra.mxu0 %v450
      %949 = vmatprep.subr.mxu0 %v458
      %950 = vmatpush1.msra.mxu0 %v456
      %951 = vmatprep.subr.mxu0 0.0
      %952 = vmatpush1.msra.mxu0 0.0
      %953 = vmatprep.subr.mxu0 0.0
      %954 = vmatpush1.msra.mxu0 0.0
      %955 = vmatprep.subr.mxu0 0.0
      %956 = vmatpush1.msra.mxu0 0.0
      %957 = vmatprep.subr.mxu0 0.0
      %958 = vmatpush1.msra.mxu0 0.0
      %959 = vmatprep.subr.mxu0 0.0
      %960 = vmatpush1.msra.mxu0 0.0
      %961 = vmatprep.subr.mxu0 0.0
      %962 = vmatpush1.msra.mxu0 0.0
      %963 = vmatprep.subr.mxu0 0.0
      %964 = vmatpush1.msra.mxu0 0.0
      %965 = vmatprep.subr.mxu0 0.0
      %966 = vmatpush1.msra.mxu0 0.0
      %967 = vmatprep.subr.mxu0 0.0
      %968 = vmatpush1.msra.mxu0 0.0
      %969 = vmatprep.subr.mxu0 0.0
      %970 = vmatpush1.msra.mxu0 0.0
      %971 = vmatprep.subr.mxu0 0.0
      %972 = vmatpush1.msra.mxu0 0.0
      %973 = vmatprep.subr.mxu0 0.0
      %974 = vmatpush1.msra.mxu0 0.0
      %975 = vmatprep.subr.mxu0 0.0
      %976 = vmatpush1.msra.mxu0 0.0
      %977 = vmatprep.subr.mxu0 0.0
      %978 = vmatpush1.msra.mxu0 0.0
      %979 = vmatprep.subr.mxu0 0.0
      %980 = vmatpush1.msra.mxu0 0.0
      %981 = vmatprep.subr.mxu0 0.0
      %982 = vmatpush1.msra.mxu0 0.0
      %983 = vmatprep.subr.mxu0 0.0
      %984 = vmatpush1.msra.mxu0 0.0
      %985 = vmatprep.subr.mxu0 0.0
      %986 = vmatpush1.msra.mxu0 0.0
      %987 = vmatprep.subr.mxu0 0.0
      %988 = vmatpush1.msra.mxu0 0.0
      %989 = vmatprep.subr.mxu0 0.0
      %990 = vmatpush1.msra.mxu0 0.0
      %991 = vmatprep.subr.mxu0 0.0
      %992 = vmatpush1.msra.mxu0 0.0
      %993 = vmatprep.subr.mxu0 0.0
      %994 = vmatpush1.msra.mxu0 0.0
      %995 = vmatprep.subr.mxu0 0.0
      %996 = vmatpush1.msra.mxu0 0.0
      %997 = vmatprep.subr.mxu0 0.0
      %998 = vmatpush1.msra.mxu0 0.0
      %999 = vmatprep.subr.mxu0 0.0
      %1000 = vmatpush1.msra.mxu0 0.0
      %1001 = vmatprep.subr.mxu0 0.0
      %1002 = vmatpush1.msra.mxu0 0.0
      %1003 = vmatprep.subr.mxu0 0.0
      %1004 = vmatpush1.msra.mxu0 0.0
      %1005 = vmatprep.subr.mxu0 0.0
      %1006 = vmatpush1.msra.mxu0 0.0
      %1007 = vmatprep.subr.mxu0 0.0
      %1008 = vmatpush1.msra.mxu0 0.0
      %1009 = vmatprep.subr.mxu0 0.0
      %1010 = vmatpush1.msra.mxu0 0.0
      %1011 = vmatprep.mubr.f32.mxu0 0.0
      %1012 = vmatmul.mubr.f32.gmra.mrb[0].mxu0 %v942
      %v1013 = vpop.f32.mrb[0].mxu0
      %v1014 = vadd.f32 0.0, %v1013
      %v1015 = vpop.f32.mrb[0].mxu0
      %v1016 = vadd.f32 0.0, %v1015
      %1017 = vmatprep.mubr.f32.mxu0 0.0
      %1018 = vmatmul.mubr.f32.gmra.mrb[0].mxu0 %v945
      %v1019 = vpop.f32.mrb[0].mxu0
      %v1020 = vadd.f32 0.0, %v1019
      %v1021 = vpop.f32.mrb[0].mxu0
      %v1022 = vadd.f32 0.0, %v1021
      %1023 = vdwg.mxu0
      %v1024 = vadd.f32 %v934, %v1014
      %v1025 = vadd.f32 %v935, %v1016
      %v1026 = vadd.f32 %v936, %v1020
      %v1027 = vadd.f32 %v937, %v1022
      %1028 = vrot.lane.b32.xlu0 %v450, 127
      %v1029 = vpop.permute.xlu0 %1028
      %1030 = vrot.lane.b32.xlu0 %v452, 127
      %v1031 = vpop.permute.xlu0 %1030
      %1032 = vrot.lane.b32.xlu0 %v456, 127
      %v1033 = vpop.permute.xlu0 %1032
      %1034 = vrot.lane.b32.xlu0 %v458, 127
      %v1035 = vpop.permute.xlu0 %1034
      %vm1036 = vcmask 1039360
      %v1037 = vsel %vm1036, %v1029, %v1031
      %v1038 = vsel %vm1036, %v1033, %v1035
      %v1043 = vsel %vm1036, %v1031, 0.0
      %v1044 = vsel %vm1036, %v1035, 0.0
      %v1045 = vsel %vm731, %v1037, 0.0
      %v1046 = vsel %vm732, %v1043, 0.0
      %v1047 = vsel %vm731, %v1038, 0.0
      %v1048 = vsel %vm732, %v1044, 0.0
      %s1049 = scalar_lea.vmem %s4, 80
      %v1050 = vld [vmem:[%s1049] sm:$0xff]
      %v1051 = vld [vmem:[%s1049 + $0x8] sm:$0xff]
      %v1053 = vsel %vm534, %v1050, 0
      %v1056 = vsel %vm534, %v1051, 0
      %1058 = vmatprep.subr.mxu0 %v1046
      %1059 = vmatpush1.msra.mxu0 %v1045
      %1060 = vmatprep.subr.mxu0 %v1048
      %1061 = vmatpush1.msra.mxu0 %v1047
      %1062 = vmatprep.subr.mxu0 0.0
      %1063 = vmatpush1.msra.mxu0 0.0
      %1064 = vmatprep.subr.mxu0 0.0
      %1065 = vmatpush1.msra.mxu0 0.0
      %1066 = vmatprep.subr.mxu0 0.0
      %1067 = vmatpush1.msra.mxu0 0.0
      %1068 = vmatprep.subr.mxu0 0.0
      %1069 = vmatpush1.msra.mxu0 0.0
      %1070 = vmatprep.subr.mxu0 0.0
      %1071 = vmatpush1.msra.mxu0 0.0
      %1072 = vmatprep.subr.mxu0 0.0
      %1073 = vmatpush1.msra.mxu0 0.0
      %1074 = vmatprep.subr.mxu0 0.0
      %1075 = vmatpush1.msra.mxu0 0.0
      %1076 = vmatprep.subr.mxu0 0.0
      %1077 = vmatpush1.msra.mxu0 0.0
      %1078 = vmatprep.subr.mxu0 0.0
      %1079 = vmatpush1.msra.mxu0 0.0
      %1080 = vmatprep.subr.mxu0 0.0
      %1081 = vmatpush1.msra.mxu0 0.0
      %1082 = vmatprep.subr.mxu0 0.0
      %1083 = vmatpush1.msra.mxu0 0.0
      %1084 = vmatprep.subr.mxu0 0.0
      %1085 = vmatpush1.msra.mxu0 0.0
      %1086 = vmatprep.subr.mxu0 0.0
      %1087 = vmatpush1.msra.mxu0 0.0
      %1088 = vmatprep.subr.mxu0 0.0
      %1089 = vmatpush1.msra.mxu0 0.0
      %1090 = vmatprep.subr.mxu0 0.0
      %1091 = vmatpush1.msra.mxu0 0.0
      %1092 = vmatprep.subr.mxu0 0.0
      %1093 = vmatpush1.msra.mxu0 0.0
      %1094 = vmatprep.subr.mxu0 0.0
      %1095 = vmatpush1.msra.mxu0 0.0
      %1096 = vmatprep.subr.mxu0 0.0
      %1097 = vmatpush1.msra.mxu0 0.0
      %1098 = vmatprep.subr.mxu0 0.0
      %1099 = vmatpush1.msra.mxu0 0.0
      %1100 = vmatprep.subr.mxu0 0.0
      %1101 = vmatpush1.msra.mxu0 0.0
      %1102 = vmatprep.subr.mxu0 0.0
      %1103 = vmatpush1.msra.mxu0 0.0
      %1104 = vmatprep.subr.mxu0 0.0
      %1105 = vmatpush1.msra.mxu0 0.0
      %1106 = vmatprep.subr.mxu0 0.0
      %1107 = vmatpush1.msra.mxu0 0.0
      %1108 = vmatprep.subr.mxu0 0.0
      %1109 = vmatpush1.msra.mxu0 0.0
      %1110 = vmatprep.subr.mxu0 0.0
      %1111 = vmatpush1.msra.mxu0 0.0
      %1112 = vmatprep.subr.mxu0 0.0
      %1113 = vmatpush1.msra.mxu0 0.0
      %1114 = vmatprep.subr.mxu0 0.0
      %1115 = vmatpush1.msra.mxu0 0.0
      %1116 = vmatprep.subr.mxu0 0.0
      %1117 = vmatpush1.msra.mxu0 0.0
      %1118 = vmatprep.subr.mxu0 0.0
      %1119 = vmatpush1.msra.mxu0 0.0
      %1120 = vmatprep.subr.mxu0 0.0
      %1121 = vmatpush1.msra.mxu0 0.0
      %1122 = vmatprep.mubr.f32.mxu0 0.0
      %1123 = vmatmul.mubr.f32.gmra.mrb[0].mxu0 %v1053
      %v1124 = vpop.f32.mrb[0].mxu0
      %v1125 = vadd.f32 0.0, %v1124
      %v1126 = vpop.f32.mrb[0].mxu0
      %v1127 = vadd.f32 0.0, %v1126
      %1128 = vmatprep.mubr.f32.mxu0 0.0
      %1129 = vmatmul.mubr.f32.gmra.mrb[0].mxu0 %v1056
      %v1130 = vpop.f32.mrb[0].mxu0
      %v1131 = vadd.f32 0.0, %v1130
      %v1132 = vpop.f32.mrb[0].mxu0
      %v1133 = vadd.f32 0.0, %v1132
      %1134 = vdwg.mxu0
      %v1135 = vadd.f32 %v1024, %v1125
      %v1136 = vadd.f32 %v1025, %v1127
      %v1137 = vadd.f32 %v1026, %v1131
      %v1138 = vadd.f32 %v1027, %v1133
      %1139 = vrot.lane.b32.xlu0 %v450, 113
      %v1140 = vpop.permute.xlu0 %1139
      %1141 = vrot.lane.b32.xlu0 %v452, 113
      %v1142 = vpop.permute.xlu0 %1141
      %1143 = vrot.lane.b32.xlu0 %v456, 113
      %v1144 = vpop.permute.xlu0 %1143
      %1145 = vrot.lane.b32.xlu0 %v458, 113
      %v1146 = vpop.permute.xlu0 %1145
      %vm1147 = vcmask 924672
      %v1148 = vsel %vm1147, %v1140, %v1142
      %v1149 = vsel %vm1147, %v1144, %v1146
      %v1154 = vsel %vm1147, %v1142, 0.0
      %v1155 = vsel %vm1147, %v1146, 0.0
      %v1156 = vsel %vm518, %v1148, 0.0
      %v1157 = vsel %vm519, %v1154, 0.0
      %v1158 = vsel %vm518, %v1149, 0.0
      %v1159 = vsel %vm519, %v1155, 0.0
      %s1160 = scalar_lea.vmem %s4, 96
      %v1161 = vld [vmem:[%s1160] sm:$0xff]
      %v1162 = vld [vmem:[%s1160 + $0x8] sm:$0xff]
      %v1164 = vsel %vm534, %v1161, 0
      %v1167 = vsel %vm534, %v1162, 0
      %1169 = vmatprep.subr.mxu0 %v1157
      %1170 = vmatpush1.msra.mxu0 %v1156
      %1171 = vmatprep.subr.mxu0 %v1159
      %1172 = vmatpush1.msra.mxu0 %v1158
      %1173 = vmatprep.subr.mxu0 0.0
      %1174 = vmatpush1.msra.mxu0 0.0
      %1175 = vmatprep.subr.mxu0 0.0
      %1176 = vmatpush1.msra.mxu0 0.0
      %1177 = vmatprep.subr.mxu0 0.0
      %1178 = vmatpush1.msra.mxu0 0.0
      %1179 = vmatprep.subr.mxu0 0.0
      %1180 = vmatpush1.msra.mxu0 0.0
      %1181 = vmatprep.subr.mxu0 0.0
      %1182 = vmatpush1.msra.mxu0 0.0
      %1183 = vmatprep.subr.mxu0 0.0
      %1184 = vmatpush1.msra.mxu0 0.0
      %1185 = vmatprep.subr.mxu0 0.0
      %1186 = vmatpush1.msra.mxu0 0.0
      %1187 = vmatprep.subr.mxu0 0.0
      %1188 = vmatpush1.msra.mxu0 0.0
      %1189 = vmatprep.subr.mxu0 0.0
      %1190 = vmatpush1.msra.mxu0 0.0
      %1191 = vmatprep.subr.mxu0 0.0
      %1192 = vmatpush1.msra.mxu0 0.0
      %1193 = vmatprep.subr.mxu0 0.0
      %1194 = vmatpush1.msra.mxu0 0.0
      %1195 = vmatprep.subr.mxu0 0.0
      %1196 = vmatpush1.msra.mxu0 0.0
      %1197 = vmatprep.subr.mxu0 0.0
      %1198 = vmatpush1.msra.mxu0 0.0
      %1199 = vmatprep.subr.mxu0 0.0
      %1200 = vmatpush1.msra.mxu0 0.0
      %1201 = vmatprep.subr.mxu0 0.0
      %1202 = vmatpush1.msra.mxu0 0.0
      %1203 = vmatprep.subr.mxu0 0.0
      %1204 = vmatpush1.msra.mxu0 0.0
      %1205 = vmatprep.subr.mxu0 0.0
      %1206 = vmatpush1.msra.mxu0 0.0
      %1207 = vmatprep.subr.mxu0 0.0
      %1208 = vmatpush1.msra.mxu0 0.0
      %1209 = vmatprep.subr.mxu0 0.0
      %1210 = vmatpush1.msra.mxu0 0.0
      %1211 = vmatprep.subr.mxu0 0.0
      %1212 = vmatpush1.msra.mxu0 0.0
      %1213 = vmatprep.subr.mxu0 0.0
      %1214 = vmatpush1.msra.mxu0 0.0
      %1215 = vmatprep.subr.mxu0 0.0
      %1216 = vmatpush1.msra.mxu0 0.0
      %1217 = vmatprep.subr.mxu0 0.0
      %1218 = vmatpush1.msra.mxu0 0.0
      %1219 = vmatprep.subr.mxu0 0.0
      %1220 = vmatpush1.msra.mxu0 0.0
      %1221 = vmatprep.subr.mxu0 0.0
      %1222 = vmatpush1.msra.mxu0 0.0
      %1223 = vmatprep.subr.mxu0 0.0
      %1224 = vmatpush1.msra.mxu0 0.0
      %1225 = vmatprep.subr.mxu0 0.0
      %1226 = vmatpush1.msra.mxu0 0.0
      %1227 = vmatprep.subr.mxu0 0.0
      %1228 = vmatpush1.msra.mxu0 0.0
      %1229 = vmatprep.subr.mxu0 0.0
      %1230 = vmatpush1.msra.mxu0 0.0
      %1231 = vmatprep.subr.mxu0 0.0
      %1232 = vmatpush1.msra.mxu0 0.0
      %1233 = vmatprep.mubr.f32.mxu0 0.0
      %1234 = vmatmul.mubr.f32.gmra.mrb[0].mxu0 %v1164
      %v1235 = vpop.f32.mrb[0].mxu0
      %v1236 = vadd.f32 0.0, %v1235
      %v1237 = vpop.f32.mrb[0].mxu0
      %v1238 = vadd.f32 0.0, %v1237
      %1239 = vmatprep.mubr.f32.mxu0 0.0
      %1240 = vmatmul.mubr.f32.gmra.mrb[0].mxu0 %v1167
      %v1241 = vpop.f32.mrb[0].mxu0
      %v1242 = vadd.f32 0.0, %v1241
      %v1243 = vpop.f32.mrb[0].mxu0
      %v1244 = vadd.f32 0.0, %v1243
      %1245 = vdwg.mxu0
      %v1246 = vadd.f32 %v1135, %v1236
      %v1247 = vadd.f32 %v1136, %v1238
      %v1248 = vadd.f32 %v1137, %v1242
      %v1249 = vadd.f32 %v1138, %v1244
      %1250 = vrot.lane.b32.xlu0 %v450, 112
      %v1251 = vpop.permute.xlu0 %1250
      %1252 = vrot.lane.b32.xlu0 %v452, 112
      %v1253 = vpop.permute.xlu0 %1252
      %1254 = vrot.lane.b32.xlu0 %v456, 112
      %v1255 = vpop.permute.xlu0 %1254
      %1256 = vrot.lane.b32.xlu0 %v458, 112
      %v1257 = vpop.permute.xlu0 %1256
      %vm1258 = vcmask 916480
      %v1259 = vsel %vm1258, %v1251, %v1253
      %v1260 = vsel %vm1258, %v1255, %v1257
      %v1265 = vsel %vm1258, %v1253, 0.0
      %v1266 = vsel %vm1258, %v1257, 0.0
      %s1267 = scalar_lea.vmem %s4, 112
      %v1268 = vld [vmem:[%s1267] sm:$0xff]
      %v1269 = vld [vmem:[%s1267 + $0x8] sm:$0xff]
      %v1271 = vsel %vm534, %v1268, 0
      %v1274 = vsel %vm534, %v1269, 0
      %1276 = vmatprep.subr.mxu0 %v1265
      %1277 = vmatpush1.msra.mxu0 %v1259
      %1278 = vmatprep.subr.mxu0 %v1266
      %1279 = vmatpush1.msra.mxu0 %v1260
      %1280 = vmatprep.subr.mxu0 0.0
      %1281 = vmatpush1.msra.mxu0 0.0
      %1282 = vmatprep.subr.mxu0 0.0
      %1283 = vmatpush1.msra.mxu0 0.0
      %1284 = vmatprep.subr.mxu0 0.0
      %1285 = vmatpush1.msra.mxu0 0.0
      %1286 = vmatprep.subr.mxu0 0.0
      %1287 = vmatpush1.msra.mxu0 0.0
      %1288 = vmatprep.subr.mxu0 0.0
      %1289 = vmatpush1.msra.mxu0 0.0
      %1290 = vmatprep.subr.mxu0 0.0
      %1291 = vmatpush1.msra.mxu0 0.0
      %1292 = vmatprep.subr.mxu0 0.0
      %1293 = vmatpush1.msra.mxu0 0.0
      %1294 = vmatprep.subr.mxu0 0.0
      %1295 = vmatpush1.msra.mxu0 0.0
      %1296 = vmatprep.subr.mxu0 0.0
      %1297 = vmatpush1.msra.mxu0 0.0
      %1298 = vmatprep.subr.mxu0 0.0
      %1299 = vmatpush1.msra.mxu0 0.0
      %1300 = vmatprep.subr.mxu0 0.0
      %1301 = vmatpush1.msra.mxu0 0.0
      %1302 = vmatprep.subr.mxu0 0.0
      %1303 = vmatpush1.msra.mxu0 0.0
      %1304 = vmatprep.subr.mxu0 0.0
      %1305 = vmatpush1.msra.mxu0 0.0
      %1306 = vmatprep.subr.mxu0 0.0
      %1307 = vmatpush1.msra.mxu0 0.0
      %1308 = vmatprep.subr.mxu0 0.0
      %1309 = vmatpush1.msra.mxu0 0.0
      %1310 = vmatprep.subr.mxu0 0.0
      %1311 = vmatpush1.msra.mxu0 0.0
      %1312 = vmatprep.subr.mxu0 0.0
      %1313 = vmatpush1.msra.mxu0 0.0
      %1314 = vmatprep.subr.mxu0 0.0
      %1315 = vmatpush1.msra.mxu0 0.0
      %1316 = vmatprep.subr.mxu0 0.0
      %1317 = vmatpush1.msra.mxu0 0.0
      %1318 = vmatprep.subr.mxu0 0.0
      %1319 = vmatpush1.msra.mxu0 0.0
      %1320 = vmatprep.subr.mxu0 0.0
      %1321 = vmatpush1.msra.mxu0 0.0
      %1322 = vmatprep.subr.mxu0 0.0
      %1323 = vmatpush1.msra.mxu0 0.0
      %1324 = vmatprep.subr.mxu0 0.0
      %1325 = vmatpush1.msra.mxu0 0.0
      %1326 = vmatprep.subr.mxu0 0.0
      %1327 = vmatpush1.msra.mxu0 0.0
      %1328 = vmatprep.subr.mxu0 0.0
      %1329 = vmatpush1.msra.mxu0 0.0
      %1330 = vmatprep.subr.mxu0 0.0
      %1331 = vmatpush1.msra.mxu0 0.0
      %1332 = vmatprep.subr.mxu0 0.0
      %1333 = vmatpush1.msra.mxu0 0.0
      %1334 = vmatprep.subr.mxu0 0.0
      %1335 = vmatpush1.msra.mxu0 0.0
      %1336 = vmatprep.subr.mxu0 0.0
      %1337 = vmatpush1.msra.mxu0 0.0
      %1338 = vmatprep.subr.mxu0 0.0
      %1339 = vmatpush1.msra.mxu0 0.0
      %1340 = vmatprep.mubr.f32.mxu0 0.0
      %1341 = vmatmul.mubr.f32.gmra.mrb[0].mxu0 %v1271
      %v1342 = vpop.f32.mrb[0].mxu0
      %v1343 = vadd.f32 0.0, %v1342
      %v1344 = vpop.f32.mrb[0].mxu0
      %v1345 = vadd.f32 0.0, %v1344
      %1346 = vmatprep.mubr.f32.mxu0 0.0
      %1347 = vmatmul.mubr.f32.gmra.mrb[0].mxu0 %v1274
      %v1348 = vpop.f32.mrb[0].mxu0
      %v1349 = vadd.f32 0.0, %v1348
      %v1350 = vpop.f32.mrb[0].mxu0
      %v1351 = vadd.f32 0.0, %v1350
      %1352 = vdwg.mxu0
      %v1353 = vadd.f32 %v1246, %v1343
      %v1354 = vadd.f32 %v1247, %v1345
      %v1355 = vadd.f32 %v1248, %v1349
      %v1356 = vadd.f32 %v1249, %v1351
      %1357 = vrot.lane.b32.xlu0 %v450, 111
      %v1358 = vpop.permute.xlu0 %1357
      %1359 = vrot.lane.b32.xlu0 %v452, 111
      %v1360 = vpop.permute.xlu0 %1359
      %1361 = vrot.lane.b32.xlu0 %v456, 111
      %v1362 = vpop.permute.xlu0 %1361
      %1363 = vrot.lane.b32.xlu0 %v458, 111
      %v1364 = vpop.permute.xlu0 %1363
      %vm1365 = vcmask 908288
      %v1366 = vsel %vm1365, %v1358, %v1360
      %v1367 = vsel %vm1365, %v1362, %v1364
      %v1372 = vsel %vm1365, %v1360, 0.0
      %v1373 = vsel %vm1365, %v1364, 0.0
      %v1374 = vsel %vm731, %v1366, 0.0
      %v1375 = vsel %vm732, %v1372, 0.0
      %v1376 = vsel %vm731, %v1367, 0.0
      %v1377 = vsel %vm732, %v1373, 0.0
      %s1378 = scalar_lea.vmem %s4, 128
      %v1379 = vld [vmem:[%s1378] sm:$0xff]
      %v1380 = vld [vmem:[%s1378 + $0x8] sm:$0xff]
      %v1382 = vsel %vm534, %v1379, 0
      %v1385 = vsel %vm534, %v1380, 0
      %1387 = vmatprep.subr.mxu0 %v1375
      %1388 = vmatpush1.msra.mxu0 %v1374
      %1389 = vmatprep.subr.mxu0 %v1377
      %1390 = vmatpush1.msra.mxu0 %v1376
      %1391 = vmatprep.subr.mxu0 0.0
      %1392 = vmatpush1.msra.mxu0 0.0
      %1393 = vmatprep.subr.mxu0 0.0
      %1394 = vmatpush1.msra.mxu0 0.0
      %1395 = vmatprep.subr.mxu0 0.0
      %1396 = vmatpush1.msra.mxu0 0.0
      %1397 = vmatprep.subr.mxu0 0.0
      %1398 = vmatpush1.msra.mxu0 0.0
      %1399 = vmatprep.subr.mxu0 0.0
      %1400 = vmatpush1.msra.mxu0 0.0
      %1401 = vmatprep.subr.mxu0 0.0
      %1402 = vmatpush1.msra.mxu0 0.0
      %1403 = vmatprep.subr.mxu0 0.0
      %1404 = vmatpush1.msra.mxu0 0.0
      %1405 = vmatprep.subr.mxu0 0.0
      %1406 = vmatpush1.msra.mxu0 0.0
      %1407 = vmatprep.subr.mxu0 0.0
      %1408 = vmatpush1.msra.mxu0 0.0
      %1409 = vmatprep.subr.mxu0 0.0
      %1410 = vmatpush1.msra.mxu0 0.0
      %1411 = vmatprep.subr.mxu0 0.0
      %1412 = vmatpush1.msra.mxu0 0.0
      %1413 = vmatprep.subr.mxu0 0.0
      %1414 = vmatpush1.msra.mxu0 0.0
      %1415 = vmatprep.subr.mxu0 0.0
      %1416 = vmatpush1.msra.mxu0 0.0
      %1417 = vmatprep.subr.mxu0 0.0
      %1418 = vmatpush1.msra.mxu0 0.0
      %1419 = vmatprep.subr.mxu0 0.0
      %1420 = vmatpush1.msra.mxu0 0.0
      %1421 = vmatprep.subr.mxu0 0.0
      %1422 = vmatpush1.msra.mxu0 0.0
      %1423 = vmatprep.subr.mxu0 0.0
      %1424 = vmatpush1.msra.mxu0 0.0
      %1425 = vmatprep.subr.mxu0 0.0
      %1426 = vmatpush1.msra.mxu0 0.0
      %1427 = vmatprep.subr.mxu0 0.0
      %1428 = vmatpush1.msra.mxu0 0.0
      %1429 = vmatprep.subr.mxu0 0.0
      %1430 = vmatpush1.msra.mxu0 0.0
      %1431 = vmatprep.subr.mxu0 0.0
      %1432 = vmatpush1.msra.mxu0 0.0
      %1433 = vmatprep.subr.mxu0 0.0
      %1434 = vmatpush1.msra.mxu0 0.0
      %1435 = vmatprep.subr.mxu0 0.0
      %1436 = vmatpush1.msra.mxu0 0.0
      %1437 = vmatprep.subr.mxu0 0.0
      %1438 = vmatpush1.msra.mxu0 0.0
      %1439 = vmatprep.subr.mxu0 0.0
      %1440 = vmatpush1.msra.mxu0 0.0
      %1441 = vmatprep.subr.mxu0 0.0
      %1442 = vmatpush1.msra.mxu0 0.0
      %1443 = vmatprep.subr.mxu0 0.0
      %1444 = vmatpush1.msra.mxu0 0.0
      %1445 = vmatprep.subr.mxu0 0.0
      %1446 = vmatpush1.msra.mxu0 0.0
      %1447 = vmatprep.subr.mxu0 0.0
      %1448 = vmatpush1.msra.mxu0 0.0
      %1449 = vmatprep.subr.mxu0 0.0
      %1450 = vmatpush1.msra.mxu0 0.0
      %1451 = vmatprep.mubr.f32.mxu0 0.0
      %1452 = vmatmul.mubr.f32.gmra.mrb[0].mxu0 %v1382
      %v1453 = vpop.f32.mrb[0].mxu0
      %v1454 = vadd.f32 0.0, %v1453
      %v1455 = vpop.f32.mrb[0].mxu0
      %v1456 = vadd.f32 0.0, %v1455
      %1457 = vmatprep.mubr.f32.mxu0 0.0
      %1458 = vmatmul.mubr.f32.gmra.mrb[0].mxu0 %v1385
      %v1459 = vpop.f32.mrb[0].mxu0
      %v1460 = vadd.f32 0.0, %v1459
      %v1461 = vpop.f32.mrb[0].mxu0
      %v1462 = vadd.f32 0.0, %v1461
      %1463 = vdwg.mxu0
      %v1464 = vadd.f32 %v1353, %v1454
      %v1465 = vadd.f32 %v1354, %v1456
      %v1466 = vadd.f32 %v1355, %v1460
      %v1467 = vadd.f32 %v1356, %v1462
      %1469 = vset.pattern.permute.xlu0 0
      %1470 = vperm.xlu0 %1469, %v460
      %v1471 = vpop.permute.xlu0 %1470
      %1474 = vset.pattern.permute.xlu0 0
      %1475 = vperm.xlu0 %1474, %v461
      %v1476 = vpop.permute.xlu0 %1475
      %v1478 = vadd.f32 %v1464, %v1471
      %v1479 = vadd.f32 %v1465, %v1471
      %v1480 = vadd.f32 %v1466, %v1476
      %v1481 = vadd.f32 %v1467, %v1476
      %v1482 = vmax.f32 %v1478, 0.0
      %v1483 = vmax.f32 %v1479, 0.0
      %v1484 = vmax.f32 %v1480, 0.0
      %v1485 = vmax.f32 %v1481, 0.0
      %v1486 = vld [vmem:[%s3] sm:$0xff]
      %v1487 = vld [vmem:[%s3 + $0x8] sm:$0xff]
      %v1488 = vld [vmem:[%s3 + $0x10] sm:$0xff]
      %v1489 = vld [vmem:[%s3 + $0x18] sm:$0xff]
      %v1490 = vld [vmem:[%s3 + $0x20] sm:$0xff]
      %v1491 = vld [vmem:[%s3 + $0x28] sm:$0xff]
      %v1492 = vld [vmem:[%s3 + $0x30] sm:$0xff]
      %v1493 = vld [vmem:[%s3 + $0x38] sm:$0xff]
      %v1494 = vld [vmem:[%s3 + $0x40] sm:$0xff]
      %v1495 = vld [vmem:[%s3 + $0x48] sm:$0xff]
      %v1496 = vld [vmem:[%s3 + $0x50] sm:$0xff]
      %v1497 = vld [vmem:[%s3 + $0x58] sm:$0xff]
      %v1498 = vld [vmem:[%s3 + $0x60] sm:$0xff]
      %v1499 = vld [vmem:[%s3 + $0x68] sm:$0xff]
      %v1500 = vld [vmem:[%s3 + $0x70] sm:$0xff]
      %v1501 = vld [vmem:[%s3 + $0x78] sm:$0xff]
      %v1502 = vld [vmem:[%s3 + $0x80] sm:$0xff]
      %v1503 = vld [vmem:[%s3 + $0x88] sm:$0xff]
      %v1504 = vld [vmem:[%s3 + $0x90] sm:$0xff]
      %v1505 = vld [vmem:[%s3 + $0x98] sm:$0xff]
      %v1506 = vld [vmem:[%s3 + $0xa0] sm:$0xff]
      %v1507 = vld [vmem:[%s3 + $0xa8] sm:$0xff]
      %v1508 = vld [vmem:[%s3 + $0xb0] sm:$0xff]
      %v1509 = vld [vmem:[%s3 + $0xb8] sm:$0xff]
      %v1510 = vld [vmem:[%s3 + $0xc0] sm:$0xff]
      %v1511 = vld [vmem:[%s3 + $0xc8] sm:$0xff]
      %v1512 = vld [vmem:[%s3 + $0xd0] sm:$0xff]
      %v1513 = vld [vmem:[%s3 + $0xd8] sm:$0xff]
      %v1514 = vld [vmem:[%s3 + $0xe0] sm:$0xff]
      %v1515 = vld [vmem:[%s3 + $0xe8] sm:$0xff]
      %v1516 = vld [vmem:[%s3 + $0xf0] sm:$0xff]
      %v1517 = vld [vmem:[%s3 + $0xf8] sm:$0xff]
      %v1518 = vld [vmem:[%s3 + $0x100] sm:$0xff]
      %v1519 = vld [vmem:[%s3 + $0x108] sm:$0xff]
      %v1520 = vld [vmem:[%s3 + $0x110] sm:$0xff]
      %v1521 = vld [vmem:[%s3 + $0x118] sm:$0xff]
      %v1522 = vld [vmem:[%s3 + $0x120] sm:$0xff]
      %v1523 = vld [vmem:[%s3 + $0x128] sm:$0xff]
      %v1524 = vld [vmem:[%s3 + $0x130] sm:$0xff]
      %v1525 = vld [vmem:[%s3 + $0x138] sm:$0xff]
      %v1526 = vld [vmem:[%s3 + $0x140] sm:$0xff]
      %v1527 = vld [vmem:[%s3 + $0x148] sm:$0xff]
      %v1528 = vld [vmem:[%s3 + $0x150] sm:$0xff]
      %v1529 = vld [vmem:[%s3 + $0x158] sm:$0xff]
      %v1530 = vld [vmem:[%s3 + $0x160] sm:$0xff]
      %v1531 = vld [vmem:[%s3 + $0x168] sm:$0xff]
      %v1532 = vld [vmem:[%s3 + $0x170] sm:$0xff]
      %v1533 = vld [vmem:[%s3 + $0x178] sm:$0xff]
      %v1534 = vld [vmem:[%s3 + $0x180] sm:$0xff]
      %v1535 = vld [vmem:[%s3 + $0x188] sm:$0xff]
      %v1536 = vld [vmem:[%s3 + $0x190] sm:$0xff]
      %v1537 = vld [vmem:[%s3 + $0x198] sm:$0xff]
      %v1538 = vld [vmem:[%s3 + $0x1a0] sm:$0xff]
      %v1539 = vld [vmem:[%s3 + $0x1a8] sm:$0xff]
      %v1540 = vld [vmem:[%s3 + $0x1b0] sm:$0xff]
      %v1541 = vld [vmem:[%s3 + $0x1b8] sm:$0xff]
      %v1542 = vld [vmem:[%s3 + $0x1c0] sm:$0xff]
      %v1543 = vld [vmem:[%s3 + $0x1c8] sm:$0xff]
      %v1544 = vld [vmem:[%s3 + $0x1d0] sm:$0xff]
      %v1545 = vld [vmem:[%s3 + $0x1d8] sm:$0xff]
      %v1546 = vld [vmem:[%s3 + $0x1e0] sm:$0xff]
      %v1547 = vld [vmem:[%s3 + $0x1e8] sm:$0xff]
      %v1548 = vld [vmem:[%s3 + $0x1f0] sm:$0xff]
      %v1549 = vld [vmem:[%s3 + $0x1f8] sm:$0xff]
      %v1550 = vld [vmem:[%s3 + $0x200] sm:$0xff]
      %v1551 = vld [vmem:[%s3 + $0x208] sm:$0xff]
      %v1552 = vld [vmem:[%s3 + $0x210] sm:$0xff]
      %v1553 = vld [vmem:[%s3 + $0x218] sm:$0xff]
      %v1554 = vld [vmem:[%s3 + $0x220] sm:$0xff]
      %v1555 = vld [vmem:[%s3 + $0x228] sm:$0xff]
      %v1556 = vld [vmem:[%s3 + $0x230] sm:$0xff]
      %v1557 = vld [vmem:[%s3 + $0x238] sm:$0xff]
      %v1558 = vld [vmem:[%s3 + $0x240] sm:$0xff]
      %v1559 = vld [vmem:[%s3 + $0x248] sm:$0xff]
      %v1560 = vld [vmem:[%s3 + $0x250] sm:$0xff]
      %v1561 = vld [vmem:[%s3 + $0x258] sm:$0xff]
      %v1562 = vld [vmem:[%s3 + $0x260] sm:$0xff]
      %v1563 = vld [vmem:[%s3 + $0x268] sm:$0xff]
      %v1564 = vld [vmem:[%s3 + $0x270] sm:$0xff]
      %v1565 = vld [vmem:[%s3 + $0x278] sm:$0xff]
      %v1566 = vld [vmem:[%s3 + $0x280] sm:$0xff]
      %v1567 = vld [vmem:[%s3 + $0x288] sm:$0xff]
      %v1568 = vld [vmem:[%s3 + $0x290] sm:$0xff]
      %v1569 = vld [vmem:[%s3 + $0x298] sm:$0xff]
      %v1570 = vld [vmem:[%s3 + $0x2a0] sm:$0xff]
      %v1571 = vld [vmem:[%s3 + $0x2a8] sm:$0xff]
      %v1572 = vld [vmem:[%s3 + $0x2b0] sm:$0xff]
      %v1573 = vld [vmem:[%s3 + $0x2b8] sm:$0xff]
      %v1574 = vld [vmem:[%s3 + $0x2c0] sm:$0xff]
      %v1575 = vld [vmem:[%s3 + $0x2c8] sm:$0xff]
      %v1576 = vld [vmem:[%s3 + $0x2d0] sm:$0xff]
      %v1577 = vld [vmem:[%s3 + $0x2d8] sm:$0xff]
      %v1578 = vld [vmem:[%s3 + $0x2e0] sm:$0xff]
      %v1579 = vld [vmem:[%s3 + $0x2e8] sm:$0xff]
      %v1580 = vld [vmem:[%s3 + $0x2f0] sm:$0xff]
      %v1581 = vld [vmem:[%s3 + $0x2f8] sm:$0xff]
      %v1582 = vld [vmem:[%s3 + $0x300] sm:$0xff]
      %v1583 = vld [vmem:[%s3 + $0x308] sm:$0xff]
      %v1584 = vld [vmem:[%s3 + $0x310] sm:$0xff]
      %v1585 = vld [vmem:[%s3 + $0x318] sm:$0xff]
      %v1586 = vld [vmem:[%s3 + $0x320] sm:$0xff]
      %v1587 = vld [vmem:[%s3 + $0x328] sm:$0xff]
      %v1588 = vld [vmem:[%s3 + $0x330] sm:$0xff]
      %v1589 = vld [vmem:[%s3 + $0x338] sm:$0xff]
      %v1590 = vld [vmem:[%s3 + $0x340] sm:$0xff]
      %v1591 = vld [vmem:[%s3 + $0x348] sm:$0xff]
      %v1592 = vld [vmem:[%s3 + $0x350] sm:$0xff]
      %v1593 = vld [vmem:[%s3 + $0x358] sm:$0xff]
      %v1594 = vld [vmem:[%s3 + $0x360] sm:$0xff]
      %v1595 = vld [vmem:[%s3 + $0x368] sm:$0xff]
      %v1596 = vld [vmem:[%s3 + $0x370] sm:$0xff]
      %v1597 = vld [vmem:[%s3 + $0x378] sm:$0xff]
      %v1598 = vld [vmem:[%s3 + $0x380] sm:$0xff]
      %v1599 = vld [vmem:[%s3 + $0x388] sm:$0xff]
      %v1600 = vld [vmem:[%s3 + $0x390] sm:$0xff]
      %v1601 = vld [vmem:[%s3 + $0x398] sm:$0xff]
      %v1602 = vld [vmem:[%s3 + $0x3a0] sm:$0xff]
      %v1603 = vld [vmem:[%s3 + $0x3a8] sm:$0xff]
      %v1604 = vld [vmem:[%s3 + $0x3b0] sm:$0xff]
      %v1605 = vld [vmem:[%s3 + $0x3b8] sm:$0xff]
      %v1606 = vld [vmem:[%s3 + $0x3c0] sm:$0xff]
      %v1607 = vld [vmem:[%s3 + $0x3c8] sm:$0xff]
      %v1608 = vld [vmem:[%s3 + $0x3d0] sm:$0xff]
      %v1609 = vld [vmem:[%s3 + $0x3d8] sm:$0xff]
      %v1610 = vld [vmem:[%s3 + $0x3e0] sm:$0xff]
      %v1611 = vld [vmem:[%s3 + $0x3e8] sm:$0xff]
      %v1612 = vld [vmem:[%s3 + $0x3f0] sm:$0xff]
      %v1613 = vld [vmem:[%s3 + $0x3f8] sm:$0xff]
      %v1614 = vunpack.c.l.bf16 %v1486
      %v1615 = vunpack.c.h.bf16 %v1486
      %v1616 = vunpack.c.l.bf16 %v1487
      %v1617 = vunpack.c.h.bf16 %v1487
      %v1618 = vunpack.c.l.bf16 %v1488
      %v1619 = vunpack.c.h.bf16 %v1488
      %v1620 = vunpack.c.l.bf16 %v1489
      %v1621 = vunpack.c.h.bf16 %v1489
      %v1622 = vunpack.c.l.bf16 %v1490
      %v1623 = vunpack.c.h.bf16 %v1490
      %v1624 = vunpack.c.l.bf16 %v1491
      %v1625 = vunpack.c.h.bf16 %v1491
      %v1626 = vunpack.c.l.bf16 %v1492
      %v1627 = vunpack.c.h.bf16 %v1492
      %v1628 = vunpack.c.l.bf16 %v1493
      %v1629 = vunpack.c.h.bf16 %v1493
      %v1630 = vunpack.c.l.bf16 %v1494
      %v1631 = vunpack.c.h.bf16 %v1494
      %v1632 = vunpack.c.l.bf16 %v1495
      %v1633 = vunpack.c.h.bf16 %v1495
      %v1634 = vunpack.c.l.bf16 %v1496
      %v1635 = vunpack.c.h.bf16 %v1496
      %v1636 = vunpack.c.l.bf16 %v1497
      %v1637 = vunpack.c.h.bf16 %v1497
      %v1638 = vunpack.c.l.bf16 %v1498
      %v1639 = vunpack.c.h.bf16 %v1498
      %v1640 = vunpack.c.l.bf16 %v1499
      %v1641 = vunpack.c.h.bf16 %v1499
      %v1642 = vunpack.c.l.bf16 %v1500
      %v1643 = vunpack.c.h.bf16 %v1500
      %v1644 = vunpack.c.l.bf16 %v1501
      %v1645 = vunpack.c.h.bf16 %v1501
      %v1646 = vunpack.c.l.bf16 %v1502
      %v1647 = vunpack.c.h.bf16 %v1502
      %v1648 = vunpack.c.l.bf16 %v1503
      %v1649 = vunpack.c.h.bf16 %v1503
      %v1650 = vunpack.c.l.bf16 %v1504
      %v1651 = vunpack.c.h.bf16 %v1504
      %v1652 = vunpack.c.l.bf16 %v1505
      %v1653 = vunpack.c.h.bf16 %v1505
      %v1654 = vunpack.c.l.bf16 %v1506
      %v1655 = vunpack.c.h.bf16 %v1506
      %v1656 = vunpack.c.l.bf16 %v1507
      %v1657 = vunpack.c.h.bf16 %v1507
      %v1658 = vunpack.c.l.bf16 %v1508
      %v1659 = vunpack.c.h.bf16 %v1508
      %v1660 = vunpack.c.l.bf16 %v1509
      %v1661 = vunpack.c.h.bf16 %v1509
      %v1662 = vunpack.c.l.bf16 %v1510
      %v1663 = vunpack.c.h.bf16 %v1510
      %v1664 = vunpack.c.l.bf16 %v1511
      %v1665 = vunpack.c.h.bf16 %v1511
      %v1666 = vunpack.c.l.bf16 %v1512
      %v1667 = vunpack.c.h.bf16 %v1512
      %v1668 = vunpack.c.l.bf16 %v1513
      %v1669 = vunpack.c.h.bf16 %v1513
      %v1670 = vunpack.c.l.bf16 %v1514
      %v1671 = vunpack.c.h.bf16 %v1514
      %v1672 = vunpack.c.l.bf16 %v1515
      %v1673 = vunpack.c.h.bf16 %v1515
      %v1674 = vunpack.c.l.bf16 %v1516
      %v1675 = vunpack.c.h.bf16 %v1516
      %v1676 = vunpack.c.l.bf16 %v1517
      %v1677 = vunpack.c.h.bf16 %v1517
      %v1678 = vunpack.c.l.bf16 %v1518
      %v1679 = vunpack.c.h.bf16 %v1518
      %v1680 = vunpack.c.l.bf16 %v1519
      %v1681 = vunpack.c.h.bf16 %v1519
      %v1682 = vunpack.c.l.bf16 %v1520
      %v1683 = vunpack.c.h.bf16 %v1520
      %v1684 = vunpack.c.l.bf16 %v1521
      %v1685 = vunpack.c.h.bf16 %v1521
      %v1686 = vunpack.c.l.bf16 %v1522
      %v1687 = vunpack.c.h.bf16 %v1522
      %v1688 = vunpack.c.l.bf16 %v1523
      %v1689 = vunpack.c.h.bf16 %v1523
      %v1690 = vunpack.c.l.bf16 %v1524
      %v1691 = vunpack.c.h.bf16 %v1524
      %v1692 = vunpack.c.l.bf16 %v1525
      %v1693 = vunpack.c.h.bf16 %v1525
      %v1694 = vunpack.c.l.bf16 %v1526
      %v1695 = vunpack.c.h.bf16 %v1526
      %v1696 = vunpack.c.l.bf16 %v1527
      %v1697 = vunpack.c.h.bf16 %v1527
      %v1698 = vunpack.c.l.bf16 %v1528
      %v1699 = vunpack.c.h.bf16 %v1528
      %v1700 = vunpack.c.l.bf16 %v1529
      %v1701 = vunpack.c.h.bf16 %v1529
      %v1702 = vunpack.c.l.bf16 %v1530
      %v1703 = vunpack.c.h.bf16 %v1530
      %v1704 = vunpack.c.l.bf16 %v1531
      %v1705 = vunpack.c.h.bf16 %v1531
      %v1706 = vunpack.c.l.bf16 %v1532
      %v1707 = vunpack.c.h.bf16 %v1532
      %v1708 = vunpack.c.l.bf16 %v1533
      %v1709 = vunpack.c.h.bf16 %v1533
      %v1710 = vunpack.c.l.bf16 %v1534
      %v1711 = vunpack.c.h.bf16 %v1534
      %v1712 = vunpack.c.l.bf16 %v1535
      %v1713 = vunpack.c.h.bf16 %v1535
      %v1714 = vunpack.c.l.bf16 %v1536
      %v1715 = vunpack.c.h.bf16 %v1536
      %v1716 = vunpack.c.l.bf16 %v1537
      %v1717 = vunpack.c.h.bf16 %v1537
      %v1718 = vunpack.c.l.bf16 %v1538
      %v1719 = vunpack.c.h.bf16 %v1538
      %v1720 = vunpack.c.l.bf16 %v1539
      %v1721 = vunpack.c.h.bf16 %v1539
      %v1722 = vunpack.c.l.bf16 %v1540
      %v1723 = vunpack.c.h.bf16 %v1540
      %v1724 = vunpack.c.l.bf16 %v1541
      %v1725 = vunpack.c.h.bf16 %v1541
      %v1726 = vunpack.c.l.bf16 %v1542
      %v1727 = vunpack.c.h.bf16 %v1542
      %v1728 = vunpack.c.l.bf16 %v1543
      %v1729 = vunpack.c.h.bf16 %v1543
      %v1730 = vunpack.c.l.bf16 %v1544
      %v1731 = vunpack.c.h.bf16 %v1544
      %v1732 = vunpack.c.l.bf16 %v1545
      %v1733 = vunpack.c.h.bf16 %v1545
      %v1734 = vunpack.c.l.bf16 %v1546
      %v1735 = vunpack.c.h.bf16 %v1546
      %v1736 = vunpack.c.l.bf16 %v1547
      %v1737 = vunpack.c.h.bf16 %v1547
      %v1738 = vunpack.c.l.bf16 %v1548
      %v1739 = vunpack.c.h.bf16 %v1548
      %v1740 = vunpack.c.l.bf16 %v1549
      %v1741 = vunpack.c.h.bf16 %v1549
      %v1742 = vunpack.c.l.bf16 %v1550
      %v1743 = vunpack.c.h.bf16 %v1550
      %v1744 = vunpack.c.l.bf16 %v1551
      %v1745 = vunpack.c.h.bf16 %v1551
      %v1746 = vunpack.c.l.bf16 %v1552
      %v1747 = vunpack.c.h.bf16 %v1552
      %v1748 = vunpack.c.l.bf16 %v1553
      %v1749 = vunpack.c.h.bf16 %v1553
      %v1750 = vunpack.c.l.bf16 %v1554
      %v1751 = vunpack.c.h.bf16 %v1554
      %v1752 = vunpack.c.l.bf16 %v1555
      %v1753 = vunpack.c.h.bf16 %v1555
      %v1754 = vunpack.c.l.bf16 %v1556
      %v1755 = vunpack.c.h.bf16 %v1556
      %v1756 = vunpack.c.l.bf16 %v1557
      %v1757 = vunpack.c.h.bf16 %v1557
      %v1758 = vunpack.c.l.bf16 %v1558
      %v1759 = vunpack.c.h.bf16 %v1558
      %v1760 = vunpack.c.l.bf16 %v1559
      %v1761 = vunpack.c.h.bf16 %v1559
      %v1762 = vunpack.c.l.bf16 %v1560
      %v1763 = vunpack.c.h.bf16 %v1560
      %v1764 = vunpack.c.l.bf16 %v1561
      %v1765 = vunpack.c.h.bf16 %v1561
      %v1766 = vunpack.c.l.bf16 %v1562
      %v1767 = vunpack.c.h.bf16 %v1562
      %v1768 = vunpack.c.l.bf16 %v1563
      %v1769 = vunpack.c.h.bf16 %v1563
      %v1770 = vunpack.c.l.bf16 %v1564
      %v1771 = vunpack.c.h.bf16 %v1564
      %v1772 = vunpack.c.l.bf16 %v1565
      %v1773 = vunpack.c.h.bf16 %v1565
      %v1774 = vunpack.c.l.bf16 %v1566
      %v1775 = vunpack.c.h.bf16 %v1566
      %v1776 = vunpack.c.l.bf16 %v1567
      %v1777 = vunpack.c.h.bf16 %v1567
      %v1778 = vunpack.c.l.bf16 %v1568
      %v1779 = vunpack.c.h.bf16 %v1568
      %v1780 = vunpack.c.l.bf16 %v1569
      %v1781 = vunpack.c.h.bf16 %v1569
      %v1782 = vunpack.c.l.bf16 %v1570
      %v1783 = vunpack.c.h.bf16 %v1570
      %v1784 = vunpack.c.l.bf16 %v1571
      %v1785 = vunpack.c.h.bf16 %v1571
      %v1786 = vunpack.c.l.bf16 %v1572
      %v1787 = vunpack.c.h.bf16 %v1572
      %v1788 = vunpack.c.l.bf16 %v1573
      %v1789 = vunpack.c.h.bf16 %v1573
      %v1790 = vunpack.c.l.bf16 %v1574
      %v1791 = vunpack.c.h.bf16 %v1574
      %v1792 = vunpack.c.l.bf16 %v1575
      %v1793 = vunpack.c.h.bf16 %v1575
      %v1794 = vunpack.c.l.bf16 %v1576
      %v1795 = vunpack.c.h.bf16 %v1576
      %v1796 = vunpack.c.l.bf16 %v1577
      %v1797 = vunpack.c.h.bf16 %v1577
      %v1798 = vunpack.c.l.bf16 %v1578
      %v1799 = vunpack.c.h.bf16 %v1578
      %v1800 = vunpack.c.l.bf16 %v1579
      %v1801 = vunpack.c.h.bf16 %v1579
      %v1802 = vunpack.c.l.bf16 %v1580
      %v1803 = vunpack.c.h.bf16 %v1580
      %v1804 = vunpack.c.l.bf16 %v1581
      %v1805 = vunpack.c.h.bf16 %v1581
      %v1806 = vunpack.c.l.bf16 %v1582
      %v1807 = vunpack.c.h.bf16 %v1582
      %v1808 = vunpack.c.l.bf16 %v1583
      %v1809 = vunpack.c.h.bf16 %v1583
      %v1810 = vunpack.c.l.bf16 %v1584
      %v1811 = vunpack.c.h.bf16 %v1584
      %v1812 = vunpack.c.l.bf16 %v1585
      %v1813 = vunpack.c.h.bf16 %v1585
      %v1814 = vunpack.c.l.bf16 %v1586
      %v1815 = vunpack.c.h.bf16 %v1586
      %v1816 = vunpack.c.l.bf16 %v1587
      %v1817 = vunpack.c.h.bf16 %v1587
      %v1818 = vunpack.c.l.bf16 %v1588
      %v1819 = vunpack.c.h.bf16 %v1588
      %v1820 = vunpack.c.l.bf16 %v1589
      %v1821 = vunpack.c.h.bf16 %v1589
      %v1822 = vunpack.c.l.bf16 %v1590
      %v1823 = vunpack.c.h.bf16 %v1590
      %v1824 = vunpack.c.l.bf16 %v1591
      %v1825 = vunpack.c.h.bf16 %v1591
      %v1826 = vunpack.c.l.bf16 %v1592
      %v1827 = vunpack.c.h.bf16 %v1592
      %v1828 = vunpack.c.l.bf16 %v1593
      %v1829 = vunpack.c.h.bf16 %v1593
      %v1830 = vunpack.c.l.bf16 %v1594
      %v1831 = vunpack.c.h.bf16 %v1594
      %v1832 = vunpack.c.l.bf16 %v1595
      %v1833 = vunpack.c.h.bf16 %v1595
      %v1834 = vunpack.c.l.bf16 %v1596
      %v1835 = vunpack.c.h.bf16 %v1596
      %v1836 = vunpack.c.l.bf16 %v1597
      %v1837 = vunpack.c.h.bf16 %v1597
      %v1838 = vunpack.c.l.bf16 %v1598
      %v1839 = vunpack.c.h.bf16 %v1598
      %v1840 = vunpack.c.l.bf16 %v1599
      %v1841 = vunpack.c.h.bf16 %v1599
      %v1842 = vunpack.c.l.bf16 %v1600
      %v1843 = vunpack.c.h.bf16 %v1600
      %v1844 = vunpack.c.l.bf16 %v1601
      %v1845 = vunpack.c.h.bf16 %v1601
      %v1846 = vunpack.c.l.bf16 %v1602
      %v1847 = vunpack.c.h.bf16 %v1602
      %v1848 = vunpack.c.l.bf16 %v1603
      %v1849 = vunpack.c.h.bf16 %v1603
      %v1850 = vunpack.c.l.bf16 %v1604
      %v1851 = vunpack.c.h.bf16 %v1604
      %v1852 = vunpack.c.l.bf16 %v1605
      %v1853 = vunpack.c.h.bf16 %v1605
      %v1854 = vunpack.c.l.bf16 %v1606
      %v1855 = vunpack.c.h.bf16 %v1606
      %v1856 = vunpack.c.l.bf16 %v1607
      %v1857 = vunpack.c.h.bf16 %v1607
      %v1858 = vunpack.c.l.bf16 %v1608
      %v1859 = vunpack.c.h.bf16 %v1608
      %v1860 = vunpack.c.l.bf16 %v1609
      %v1861 = vunpack.c.h.bf16 %v1609
      %v1862 = vunpack.c.l.bf16 %v1610
      %v1863 = vunpack.c.h.bf16 %v1610
      %v1864 = vunpack.c.l.bf16 %v1611
      %v1865 = vunpack.c.h.bf16 %v1611
      %v1866 = vunpack.c.l.bf16 %v1612
      %v1867 = vunpack.c.h.bf16 %v1612
      %v1868 = vunpack.c.l.bf16 %v1613
      %v1869 = vunpack.c.h.bf16 %v1613
      %1870 = vmatprep.subr.mxu0 %v1615
      %1871 = vmatpush1.msra.mxu0 %v1614
      %1872 = vmatprep.subr.mxu0 %v1623
      %1873 = vmatpush1.msra.mxu0 %v1622
      %1874 = vmatprep.subr.mxu0 %v1631
      %1875 = vmatpush1.msra.mxu0 %v1630
      %1876 = vmatprep.subr.mxu0 %v1639
      %1877 = vmatpush1.msra.mxu0 %v1638
      %1878 = vmatprep.subr.mxu0 %v1647
      %1879 = vmatpush1.msra.mxu0 %v1646
      %1880 = vmatprep.subr.mxu0 %v1655
      %1881 = vmatpush1.msra.mxu0 %v1654
      %1882 = vmatprep.subr.mxu0 %v1663
      %1883 = vmatpush1.msra.mxu0 %v1662
      %1884 = vmatprep.subr.mxu0 %v1671
      %1885 = vmatpush1.msra.mxu0 %v1670
      %1886 = vmatprep.subr.mxu0 %v1679
      %1887 = vmatpush1.msra.mxu0 %v1678
      %1888 = vmatprep.subr.mxu0 %v1687
      %1889 = vmatpush1.msra.mxu0 %v1686
      %1890 = vmatprep.subr.mxu0 %v1695
      %1891 = vmatpush1.msra.mxu0 %v1694
      %1892 = vmatprep.subr.mxu0 %v1703
      %1893 = vmatpush1.msra.mxu0 %v1702
      %1894 = vmatprep.subr.mxu0 %v1711
      %1895 = vmatpush1.msra.mxu0 %v1710
      %1896 = vmatprep.subr.mxu0 %v1719
      %1897 = vmatpush1.msra.mxu0 %v1718
      %1898 = vmatprep.subr.mxu0 %v1727
      %1899 = vmatpush1.msra.mxu0 %v1726
      %1900 = vmatprep.subr.mxu0 %v1735
      %1901 = vmatpush1.msra.mxu0 %v1734
      %1902 = vmatprep.subr.mxu0 %v1743
      %1903 = vmatpush1.msra.mxu0 %v1742
      %1904 = vmatprep.subr.mxu0 %v1751
      %1905 = vmatpush1.msra.mxu0 %v1750
      %1906 = vmatprep.subr.mxu0 %v1759
      %1907 = vmatpush1.msra.mxu0 %v1758
      %1908 = vmatprep.subr.mxu0 %v1767
      %1909 = vmatpush1.msra.mxu0 %v1766
      %1910 = vmatprep.subr.mxu0 %v1775
      %1911 = vmatpush1.msra.mxu0 %v1774
      %1912 = vmatprep.subr.mxu0 %v1783
      %1913 = vmatpush1.msra.mxu0 %v1782
      %1914 = vmatprep.subr.mxu0 %v1791
      %1915 = vmatpush1.msra.mxu0 %v1790
      %1916 = vmatprep.subr.mxu0 %v1799
      %1917 = vmatpush1.msra.mxu0 %v1798
      %1918 = vmatprep.subr.mxu0 %v1807
      %1919 = vmatpush1.msra.mxu0 %v1806
      %1920 = vmatprep.subr.mxu0 %v1815
      %1921 = vmatpush1.msra.mxu0 %v1814
      %1922 = vmatprep.subr.mxu0 %v1823
      %1923 = vmatpush1.msra.mxu0 %v1822
      %1924 = vmatprep.subr.mxu0 %v1831
      %1925 = vmatpush1.msra.mxu0 %v1830
      %1926 = vmatprep.subr.mxu0 %v1839
      %1927 = vmatpush1.msra.mxu0 %v1838
      %1928 = vmatprep.subr.mxu0 %v1847
      %1929 = vmatpush1.msra.mxu0 %v1846
      %1930 = vmatprep.subr.mxu0 %v1855
      %1931 = vmatpush1.msra.mxu0 %v1854
      %1932 = vmatprep.subr.mxu0 %v1863
      %1933 = vmatpush1.msra.mxu0 %v1862
      %1934 = vmatprep.mubr.f32.mxu0 %v1483
      %1935 = vmatmul.mubr.f32.gmra.mrb[0].mxu0 %v1482
      %v1936 = vpop.f32.mrb[0].mxu0
      %v1937 = vadd.f32 0.0, %v1936
      %v1938 = vpop.f32.mrb[0].mxu0
      %v1939 = vadd.f32 0.0, %v1938
      %1940 = vmatprep.mubr.f32.mxu0 %v1485
      %1941 = vmatmul.mubr.f32.gmra.mrb[0].mxu0 %v1484
      %v1942 = vpop.f32.mrb[0].mxu0
      %v1943 = vadd.f32 0.0, %v1942
      %v1944 = vpop.f32.mrb[0].mxu0
      %v1945 = vadd.f32 0.0, %v1944
      %1946 = vdwg.mxu0
      %1947 = vmatprep.subr.mxu0 %v1617
      %1948 = vmatpush1.msra.mxu0 %v1616
      %1949 = vmatprep.subr.mxu0 %v1625
      %1950 = vmatpush1.msra.mxu0 %v1624
      %1951 = vmatprep.subr.mxu0 %v1633
      %1952 = vmatpush1.msra.mxu0 %v1632
      %1953 = vmatprep.subr.mxu0 %v1641
      %1954 = vmatpush1.msra.mxu0 %v1640
      %1955 = vmatprep.subr.mxu0 %v1649
      %1956 = vmatpush1.msra.mxu0 %v1648
      %1957 = vmatprep.subr.mxu0 %v1657
      %1958 = vmatpush1.msra.mxu0 %v1656
      %1959 = vmatprep.subr.mxu0 %v1665
      %1960 = vmatpush1.msra.mxu0 %v1664
      %1961 = vmatprep.subr.mxu0 %v1673
      %1962 = vmatpush1.msra.mxu0 %v1672
      %1963 = vmatprep.subr.mxu0 %v1681
      %1964 = vmatpush1.msra.mxu0 %v1680
      %1965 = vmatprep.subr.mxu0 %v1689
      %1966 = vmatpush1.msra.mxu0 %v1688
      %1967 = vmatprep.subr.mxu0 %v1697
      %1968 = vmatpush1.msra.mxu0 %v1696
      %1969 = vmatprep.subr.mxu0 %v1705
      %1970 = vmatpush1.msra.mxu0 %v1704
      %1971 = vmatprep.subr.mxu0 %v1713
      %1972 = vmatpush1.msra.mxu0 %v1712
      %1973 = vmatprep.subr.mxu0 %v1721
      %1974 = vmatpush1.msra.mxu0 %v1720
      %1975 = vmatprep.subr.mxu0 %v1729
      %1976 = vmatpush1.msra.mxu0 %v1728
      %1977 = vmatprep.subr.mxu0 %v1737
      %1978 = vmatpush1.msra.mxu0 %v1736
      %1979 = vmatprep.subr.mxu0 %v1745
      %1980 = vmatpush1.msra.mxu0 %v1744
      %1981 = vmatprep.subr.mxu0 %v1753
      %1982 = vmatpush1.msra.mxu0 %v1752
      %1983 = vmatprep.subr.mxu0 %v1761
      %1984 = vmatpush1.msra.mxu0 %v1760
      %1985 = vmatprep.subr.mxu0 %v1769
      %1986 = vmatpush1.msra.mxu0 %v1768
      %1987 = vmatprep.subr.mxu0 %v1777
      %1988 = vmatpush1.msra.mxu0 %v1776
      %1989 = vmatprep.subr.mxu0 %v1785
      %1990 = vmatpush1.msra.mxu0 %v1784
      %1991 = vmatprep.subr.mxu0 %v1793
      %1992 = vmatpush1.msra.mxu0 %v1792
      %1993 = vmatprep.subr.mxu0 %v1801
      %1994 = vmatpush1.msra.mxu0 %v1800
      %1995 = vmatprep.subr.mxu0 %v1809
      %1996 = vmatpush1.msra.mxu0 %v1808
      %1997 = vmatprep.subr.mxu0 %v1817
      %1998 = vmatpush1.msra.mxu0 %v1816
      %1999 = vmatprep.subr.mxu0 %v1825
      %2000 = vmatpush1.msra.mxu0 %v1824
      %2001 = vmatprep.subr.mxu0 %v1833
      %2002 = vmatpush1.msra.mxu0 %v1832
      %2003 = vmatprep.subr.mxu0 %v1841
      %2004 = vmatpush1.msra.mxu0 %v1840
      %2005 = vmatprep.subr.mxu0 %v1849
      %2006 = vmatpush1.msra.mxu0 %v1848
      %2007 = vmatprep.subr.mxu0 %v1857
      %2008 = vmatpush1.msra.mxu0 %v1856
      %2009 = vmatprep.subr.mxu0 %v1865
      %2010 = vmatpush1.msra.mxu0 %v1864
      %2011 = vmatprep.mubr.f32.mxu0 %v1483
      %2012 = vmatmul.mubr.f32.gmra.mrb[0].mxu0 %v1482
      %v2013 = vpop.f32.mrb[0].mxu0
      %v2014 = vadd.f32 0.0, %v2013
      %v2015 = vpop.f32.mrb[0].mxu0
      %v2016 = vadd.f32 0.0, %v2015
      %2017 = vmatprep.mubr.f32.mxu0 %v1485
      %2018 = vmatmul.mubr.f32.gmra.mrb[0].mxu0 %v1484
      %v2019 = vpop.f32.mrb[0].mxu0
      %v2020 = vadd.f32 0.0, %v2019
      %v2021 = vpop.f32.mrb[0].mxu0
      %v2022 = vadd.f32 0.0, %v2021
      %2023 = vdwg.mxu0
      %2024 = vmatprep.subr.mxu0 %v1619
      %2025 = vmatpush1.msra.mxu0 %v1618
      %2026 = vmatprep.subr.mxu0 %v1627
      %2027 = vmatpush1.msra.mxu0 %v1626
      %2028 = vmatprep.subr.mxu0 %v1635
      %2029 = vmatpush1.msra.mxu0 %v1634
      %2030 = vmatprep.subr.mxu0 %v1643
      %2031 = vmatpush1.msra.mxu0 %v1642
      %2032 = vmatprep.subr.mxu0 %v1651
      %2033 = vmatpush1.msra.mxu0 %v1650
      %2034 = vmatprep.subr.mxu0 %v1659
      %2035 = vmatpush1.msra.mxu0 %v1658
      %2036 = vmatprep.subr.mxu0 %v1667
      %2037 = vmatpush1.msra.mxu0 %v1666
      %2038 = vmatprep.subr.mxu0 %v1675
      %2039 = vmatpush1.msra.mxu0 %v1674
      %2040 = vmatprep.subr.mxu0 %v1683
      %2041 = vmatpush1.msra.mxu0 %v1682
      %2042 = vmatprep.subr.mxu0 %v1691
      %2043 = vmatpush1.msra.mxu0 %v1690
      %2044 = vmatprep.subr.mxu0 %v1699
      %2045 = vmatpush1.msra.mxu0 %v1698
      %2046 = vmatprep.subr.mxu0 %v1707
      %2047 = vmatpush1.msra.mxu0 %v1706
      %2048 = vmatprep.subr.mxu0 %v1715
      %2049 = vmatpush1.msra.mxu0 %v1714
      %2050 = vmatprep.subr.mxu0 %v1723
      %2051 = vmatpush1.msra.mxu0 %v1722
      %2052 = vmatprep.subr.mxu0 %v1731
      %2053 = vmatpush1.msra.mxu0 %v1730
      %2054 = vmatprep.subr.mxu0 %v1739
      %2055 = vmatpush1.msra.mxu0 %v1738
      %2056 = vmatprep.subr.mxu0 %v1747
      %2057 = vmatpush1.msra.mxu0 %v1746
      %2058 = vmatprep.subr.mxu0 %v1755
      %2059 = vmatpush1.msra.mxu0 %v1754
      %2060 = vmatprep.subr.mxu0 %v1763
      %2061 = vmatpush1.msra.mxu0 %v1762
      %2062 = vmatprep.subr.mxu0 %v1771
      %2063 = vmatpush1.msra.mxu0 %v1770
      %2064 = vmatprep.subr.mxu0 %v1779
      %2065 = vmatpush1.msra.mxu0 %v1778
      %2066 = vmatprep.subr.mxu0 %v1787
      %2067 = vmatpush1.msra.mxu0 %v1786
      %2068 = vmatprep.subr.mxu0 %v1795
      %2069 = vmatpush1.msra.mxu0 %v1794
      %2070 = vmatprep.subr.mxu0 %v1803
      %2071 = vmatpush1.msra.mxu0 %v1802
      %2072 = vmatprep.subr.mxu0 %v1811
      %2073 = vmatpush1.msra.mxu0 %v1810
      %2074 = vmatprep.subr.mxu0 %v1819
      %2075 = vmatpush1.msra.mxu0 %v1818
      %2076 = vmatprep.subr.mxu0 %v1827
      %2077 = vmatpush1.msra.mxu0 %v1826
      %2078 = vmatprep.subr.mxu0 %v1835
      %2079 = vmatpush1.msra.mxu0 %v1834
      %2080 = vmatprep.subr.mxu0 %v1843
      %2081 = vmatpush1.msra.mxu0 %v1842
      %2082 = vmatprep.subr.mxu0 %v1851
      %2083 = vmatpush1.msra.mxu0 %v1850
      %2084 = vmatprep.subr.mxu0 %v1859
      %2085 = vmatpush1.msra.mxu0 %v1858
      %2086 = vmatprep.subr.mxu0 %v1867
      %2087 = vmatpush1.msra.mxu0 %v1866
      %2088 = vmatprep.mubr.f32.mxu0 %v1483
      %2089 = vmatmul.mubr.f32.gmra.mrb[0].mxu0 %v1482
      %v2090 = vpop.f32.mrb[0].mxu0
      %v2091 = vadd.f32 0.0, %v2090
      %v2092 = vpop.f32.mrb[0].mxu0
      %v2093 = vadd.f32 0.0, %v2092
      %2094 = vmatprep.mubr.f32.mxu0 %v1485
      %2095 = vmatmul.mubr.f32.gmra.mrb[0].mxu0 %v1484
      %v2096 = vpop.f32.mrb[0].mxu0
      %v2097 = vadd.f32 0.0, %v2096
      %v2098 = vpop.f32.mrb[0].mxu0
      %v2099 = vadd.f32 0.0, %v2098
      %2100 = vdwg.mxu0
      %2101 = vmatprep.subr.mxu0 %v1621
      %2102 = vmatpush1.msra.mxu0 %v1620
      %2103 = vmatprep.subr.mxu0 %v1629
      %2104 = vmatpush1.msra.mxu0 %v1628
      %2105 = vmatprep.subr.mxu0 %v1637
      %2106 = vmatpush1.msra.mxu0 %v1636
      %2107 = vmatprep.subr.mxu0 %v1645
      %2108 = vmatpush1.msra.mxu0 %v1644
      %2109 = vmatprep.subr.mxu0 %v1653
      %2110 = vmatpush1.msra.mxu0 %v1652
      %2111 = vmatprep.subr.mxu0 %v1661
      %2112 = vmatpush1.msra.mxu0 %v1660
      %2113 = vmatprep.subr.mxu0 %v1669
      %2114 = vmatpush1.msra.mxu0 %v1668
      %2115 = vmatprep.subr.mxu0 %v1677
      %2116 = vmatpush1.msra.mxu0 %v1676
      %2117 = vmatprep.subr.mxu0 %v1685
      %2118 = vmatpush1.msra.mxu0 %v1684
      %2119 = vmatprep.subr.mxu0 %v1693
      %2120 = vmatpush1.msra.mxu0 %v1692
      %2121 = vmatprep.subr.mxu0 %v1701
      %2122 = vmatpush1.msra.mxu0 %v1700
      %2123 = vmatprep.subr.mxu0 %v1709
      %2124 = vmatpush1.msra.mxu0 %v1708
      %2125 = vmatprep.subr.mxu0 %v1717
      %2126 = vmatpush1.msra.mxu0 %v1716
      %2127 = vmatprep.subr.mxu0 %v1725
      %2128 = vmatpush1.msra.mxu0 %v1724
      %2129 = vmatprep.subr.mxu0 %v1733
      %2130 = vmatpush1.msra.mxu0 %v1732
      %2131 = vmatprep.subr.mxu0 %v1741
      %2132 = vmatpush1.msra.mxu0 %v1740
      %2133 = vmatprep.subr.mxu0 %v1749
      %2134 = vmatpush1.msra.mxu0 %v1748
      %2135 = vmatprep.subr.mxu0 %v1757
      %2136 = vmatpush1.msra.mxu0 %v1756
      %2137 = vmatprep.subr.mxu0 %v1765
      %2138 = vmatpush1.msra.mxu0 %v1764
      %2139 = vmatprep.subr.mxu0 %v1773
      %2140 = vmatpush1.msra.mxu0 %v1772
      %2141 = vmatprep.subr.mxu0 %v1781
      %2142 = vmatpush1.msra.mxu0 %v1780
      %2143 = vmatprep.subr.mxu0 %v1789
      %2144 = vmatpush1.msra.mxu0 %v1788
      %2145 = vmatprep.subr.mxu0 %v1797
      %2146 = vmatpush1.msra.mxu0 %v1796
      %2147 = vmatprep.subr.mxu0 %v1805
      %2148 = vmatpush1.msra.mxu0 %v1804
      %2149 = vmatprep.subr.mxu0 %v1813
      %2150 = vmatpush1.msra.mxu0 %v1812
      %2151 = vmatprep.subr.mxu0 %v1821
      %2152 = vmatpush1.msra.mxu0 %v1820
      %2153 = vmatprep.subr.mxu0 %v1829
      %2154 = vmatpush1.msra.mxu0 %v1828
      %2155 = vmatprep.subr.mxu0 %v1837
      %2156 = vmatpush1.msra.mxu0 %v1836
      %2157 = vmatprep.subr.mxu0 %v1845
      %2158 = vmatpush1.msra.mxu0 %v1844
      %2159 = vmatprep.subr.mxu0 %v1853
      %2160 = vmatpush1.msra.mxu0 %v1852
      %2161 = vmatprep.subr.mxu0 %v1861
      %2162 = vmatpush1.msra.mxu0 %v1860
      %2163 = vmatprep.subr.mxu0 %v1869
      %2164 = vmatpush1.msra.mxu0 %v1868
      %2165 = vmatprep.mubr.f32.mxu0 %v1483
      %2166 = vmatmul.mubr.f32.gmra.mrb[0].mxu0 %v1482
      %v2167 = vpop.f32.mrb[0].mxu0
      %v2168 = vadd.f32 0.0, %v2167
      %v2169 = vpop.f32.mrb[0].mxu0
      %v2170 = vadd.f32 0.0, %v2169
      %2171 = vmatprep.mubr.f32.mxu0 %v1485
      %2172 = vmatmul.mubr.f32.gmra.mrb[0].mxu0 %v1484
      %v2173 = vpop.f32.mrb[0].mxu0
      %v2174 = vadd.f32 0.0, %v2173
      %v2175 = vpop.f32.mrb[0].mxu0
      %v2176 = vadd.f32 0.0, %v2175
      %2177 = vdwg.mxu0
      %v2178 = vadd.s32 %v465, 256
      %v2179 = vadd.s32 %v465, 384
      %v2180 = vadd.s32 %v465, 512
      %v2181 = vadd.s32 %v465, 640
      %v2182 = vadd.s32 %v465, 768
      %v2183 = vadd.s32 %v465, 896
      %vm2184 = vcmp.lt.s32.totalorder %v465, 0
      %v2185 = vsub.s32 0, %v465
      %v2186 = vsel %vm2184, %v2185, %v465
      %v2187 = vshrl.u32 %v2186, 5
      %v2188 = vand.u32 %v2186, 31
      %v2189 = vsub.s32 0, %v2188
      %v2190 = vsel %vm2184, %v2189, %v2188
      %vm2191 = vcmp.lt.s32.totalorder %v466, 0
      %v2192 = vsub.s32 0, %v466
      %v2193 = vsel %vm2191, %v2192, %v466
      %v2194 = vshrl.u32 %v2193, 5
      %v2195 = vand.u32 %v2193, 31
      %v2196 = vsub.s32 0, %v2195
      %v2197 = vsel %vm2191, %v2196, %v2195
      %vm2198 = vcmp.lt.s32.totalorder %v2178, 0
      %v2199 = vsub.s32 0, %v2178
      %v2200 = vsel %vm2198, %v2199, %v2178
      %v2201 = vshrl.u32 %v2200, 5
      %v2202 = vand.u32 %v2200, 31
      %v2203 = vsub.s32 0, %v2202
      %v2204 = vsel %vm2198, %v2203, %v2202
      %vm2205 = vcmp.lt.s32.totalorder %v2179, 0
      %v2206 = vsub.s32 0, %v2179
      %v2207 = vsel %vm2205, %v2206, %v2179
      %v2208 = vshrl.u32 %v2207, 5
      %v2209 = vand.u32 %v2207, 31
      %v2210 = vsub.s32 0, %v2209
      %v2211 = vsel %vm2205, %v2210, %v2209
      %vm2212 = vcmp.lt.s32.totalorder %v2180, 0
      %v2213 = vsub.s32 0, %v2180
      %v2214 = vsel %vm2212, %v2213, %v2180
      %v2215 = vshrl.u32 %v2214, 5
      %v2216 = vand.u32 %v2214, 31
      %v2217 = vsub.s32 0, %v2216
      %v2218 = vsel %vm2212, %v2217, %v2216
      %vm2219 = vcmp.lt.s32.totalorder %v2181, 0
      %v2220 = vsub.s32 0, %v2181
      %v2221 = vsel %vm2219, %v2220, %v2181
      %v2222 = vshrl.u32 %v2221, 5
      %v2223 = vand.u32 %v2221, 31
      %v2224 = vsub.s32 0, %v2223
      %v2225 = vsel %vm2219, %v2224, %v2223
      %vm2226 = vcmp.lt.s32.totalorder %v2182, 0
      %v2227 = vsub.s32 0, %v2182
      %v2228 = vsel %vm2226, %v2227, %v2182
      %v2229 = vshrl.u32 %v2228, 5
      %v2230 = vand.u32 %v2228, 31
      %v2231 = vsub.s32 0, %v2230
      %v2232 = vsel %vm2226, %v2231, %v2230
      %vm2233 = vcmp.lt.s32.totalorder %v2183, 0
      %v2234 = vsub.s32 0, %v2183
      %v2235 = vsel %vm2233, %v2234, %v2183
      %v2236 = vshrl.u32 %v2235, 5
      %v2237 = vand.u32 %v2235, 31
      %v2238 = vsub.s32 0, %v2237
      %v2239 = vsel %vm2233, %v2238, %v2237
      %vm2240 = vcmp.ne.s32.totalorder %v2190, 0
      %vm2241 = vcmp.ne.s32.totalorder %v2197, 0
      %vm2242 = vcmp.ne.s32.totalorder %v2204, 0
      %vm2243 = vcmp.ne.s32.totalorder %v2211, 0
      %vm2244 = vcmp.ne.s32.totalorder %v2218, 0
      %vm2245 = vcmp.ne.s32.totalorder %v2225, 0
      %vm2246 = vcmp.ne.s32.totalorder %v2232, 0
      %vm2247 = vcmp.ne.s32.totalorder %v2239, 0
      %vm2248 = vcmp.lt.s32.totalorder %v2190, 0
      %vm2249 = vcmp.lt.s32.totalorder %v2197, 0
      %vm2250 = vcmp.lt.s32.totalorder %v2204, 0
      %vm2251 = vcmp.lt.s32.totalorder %v2211, 0
      %vm2252 = vcmp.lt.s32.totalorder %v2218, 0
      %vm2253 = vcmp.lt.s32.totalorder %v2225, 0
      %vm2254 = vcmp.lt.s32.totalorder %v2232, 0
      %vm2255 = vcmp.lt.s32.totalorder %v2239, 0
      %vm2256 = vmand %vm2248, %vm2240
      %vm2257 = vmand %vm2249, %vm2241
      %vm2258 = vmand %vm2250, %vm2242
      %vm2259 = vmand %vm2251, %vm2243
      %vm2260 = vmand %vm2252, %vm2244
      %vm2261 = vmand %vm2253, %vm2245
      %vm2262 = vmand %vm2254, %vm2246
      %vm2263 = vmand %vm2255, %vm2247
      %v2264 = vadd.s32 %v2190, 32
      %v2265 = vadd.s32 %v2197, 32
      %v2266 = vadd.s32 %v2204, 32
      %v2267 = vadd.s32 %v2211, 32
      %v2268 = vadd.s32 %v2218, 32
      %v2269 = vadd.s32 %v2225, 32
      %v2270 = vadd.s32 %v2232, 32
      %v2271 = vadd.s32 %v2239, 32
      %v2272 = vsel %vm2256, %v2264, %v2190
      %v2273 = vsel %vm2257, %v2265, %v2197
      %v2274 = vsel %vm2258, %v2266, %v2204
      %v2275 = vsel %vm2259, %v2267, %v2211
      %v2276 = vsel %vm2260, %v2268, %v2218
      %v2277 = vsel %vm2261, %v2269, %v2225
      %v2278 = vsel %vm2262, %v2270, %v2232
      %v2279 = vsel %vm2263, %v2271, %v2239
      %vm2280 = vcmp.ge.s32.totalorder %v2272, 1
      %vm2281 = vcmp.ge.s32.totalorder %v2273, 1
      %vm2282 = vcmp.ge.s32.totalorder %v2274, 1
      %vm2283 = vcmp.ge.s32.totalorder %v2275, 1
      %vm2284 = vcmp.ge.s32.totalorder %v2276, 1
      %vm2285 = vcmp.ge.s32.totalorder %v2277, 1
      %vm2286 = vcmp.ge.s32.totalorder %v2278, 1
      %vm2287 = vcmp.ge.s32.totalorder %v2279, 1
      %vm2288 = vcmp.le.s32.totalorder %v2272, 30
      %vm2289 = vcmp.le.s32.totalorder %v2273, 30
      %vm2290 = vcmp.le.s32.totalorder %v2274, 30
      %vm2291 = vcmp.le.s32.totalorder %v2275, 30
      %vm2292 = vcmp.le.s32.totalorder %v2276, 30
      %vm2293 = vcmp.le.s32.totalorder %v2277, 30
      %vm2294 = vcmp.le.s32.totalorder %v2278, 30
      %vm2295 = vcmp.le.s32.totalorder %v2279, 30
      %2312 = vrot.lane.b32.xlu0 %v1937, 33
      %v2313 = vpop.permute.xlu0 %2312
      %2314 = vrot.lane.b32.xlu0 %v1939, 33
      %v2315 = vpop.permute.xlu0 %2314
      %2316 = vrot.lane.b32.xlu0 %v2014, 33
      %v2317 = vpop.permute.xlu0 %2316
      %2318 = vrot.lane.b32.xlu0 %v2016, 33
      %v2319 = vpop.permute.xlu0 %2318
      %2320 = vrot.lane.b32.xlu0 %v2091, 33
      %v2321 = vpop.permute.xlu0 %2320
      %2322 = vrot.lane.b32.xlu0 %v2093, 33
      %v2323 = vpop.permute.xlu0 %2322
      %2324 = vrot.lane.b32.xlu0 %v2168, 33
      %v2325 = vpop.permute.xlu0 %2324
      %2326 = vrot.lane.b32.xlu0 %v2170, 33
      %v2327 = vpop.permute.xlu0 %2326
      %2328 = vrot.lane.b32.xlu0 %v1943, 33
      %v2329 = vpop.permute.xlu0 %2328
      %2330 = vrot.lane.b32.xlu0 %v1945, 33
      %v2331 = vpop.permute.xlu0 %2330
      %2332 = vrot.lane.b32.xlu0 %v2020, 33
      %v2333 = vpop.permute.xlu0 %2332
      %2334 = vrot.lane.b32.xlu0 %v2022, 33
      %v2335 = vpop.permute.xlu0 %2334
      %2336 = vrot.lane.b32.xlu0 %v2097, 33
      %v2337 = vpop.permute.xlu0 %2336
      %2338 = vrot.lane.b32.xlu0 %v2099, 33
      %v2339 = vpop.permute.xlu0 %2338
      %2340 = vrot.lane.b32.xlu0 %v2174, 33
      %v2341 = vpop.permute.xlu0 %2340
      %2342 = vrot.lane.b32.xlu0 %v2176, 33
      %v2343 = vpop.permute.xlu0 %2342
      %vm2344 = vcmask 269312
      %v2345 = vsel %vm2344, %v2313, %v2315
      %v2346 = vsel %vm2344, %v2315, %v2317
      %v2347 = vsel %vm2344, %v2317, %v2319
      %v2348 = vsel %vm2344, %v2319, %v2321
      %v2349 = vsel %vm2344, %v2321, %v2323
      %v2350 = vsel %vm2344, %v2323, %v2325
      %v2351 = vsel %vm2344, %v2325, %v2327
      %v2352 = vsel %vm2344, %v2329, %v2331
      %v2353 = vsel %vm2344, %v2331, %v2333
      %v2354 = vsel %vm2344, %v2333, %v2335
      %v2355 = vsel %vm2344, %v2335, %v2337
      %v2356 = vsel %vm2344, %v2337, %v2339
      %v2357 = vsel %vm2344, %v2339, %v2341
      %v2358 = vsel %vm2344, %v2341, %v2343
      %v2375 = vsel %vm2344, 0.0, %v2313
      %v2376 = vsel %vm2344, 0.0, %v2329
      %v2377 = vsel %vm2280, 1, 0
      %v2378 = vsel %vm2281, 1, 0
      %v2379 = vsel %vm2282, 1, 0
      %v2380 = vsel %vm2283, 1, 0
      %v2381 = vsel %vm2284, 1, 0
      %v2382 = vsel %vm2285, 1, 0
      %v2383 = vsel %vm2286, 1, 0
      %v2384 = vsel %vm2287, 1, 0
      %vm2385 = vcmp.eq.s32.totalorder %v2377, 1
      %vm2386 = vcmp.eq.s32.totalorder %v2378, 1
      %vm2387 = vcmp.eq.s32.totalorder %v2379, 1
      %vm2388 = vcmp.eq.s32.totalorder %v2380, 1
      %vm2389 = vcmp.eq.s32.totalorder %v2381, 1
      %vm2390 = vcmp.eq.s32.totalorder %v2382, 1
      %vm2391 = vcmp.eq.s32.totalorder %v2383, 1
      %vm2392 = vcmp.eq.s32.totalorder %v2384, 1
      %v2393 = vsel %vm2385, %v2375, 0.0
      %v2394 = vsel %vm2386, %v2345, 0.0
      %v2395 = vsel %vm2387, %v2346, 0.0
      %v2396 = vsel %vm2388, %v2347, 0.0
      %v2397 = vsel %vm2389, %v2348, 0.0
      %v2398 = vsel %vm2390, %v2349, 0.0
      %v2399 = vsel %vm2391, %v2350, 0.0
      %v2400 = vsel %vm2392, %v2351, 0.0
      %v2401 = vsel %vm2385, %v2376, 0.0
      %v2402 = vsel %vm2386, %v2352, 0.0
      %v2403 = vsel %vm2387, %v2353, 0.0
      %v2404 = vsel %vm2388, %v2354, 0.0
      %v2405 = vsel %vm2389, %v2355, 0.0
      %v2406 = vsel %vm2390, %v2356, 0.0
      %v2407 = vsel %vm2391, %v2357, 0.0
      %v2408 = vsel %vm2392, %v2358, 0.0
      %v2409 = vld [vmem:[%s5] sm:$0xff]
      %2410 = vrot.lane.b32.xlu0 %v1937, 32
      %v2411 = vpop.permute.xlu0 %2410
      %2412 = vrot.lane.b32.xlu0 %v1939, 32
      %v2413 = vpop.permute.xlu0 %2412
      %2414 = vrot.lane.b32.xlu0 %v2014, 32
      %v2415 = vpop.permute.xlu0 %2414
      %2416 = vrot.lane.b32.xlu0 %v2016, 32
      %v2417 = vpop.permute.xlu0 %2416
      %2418 = vrot.lane.b32.xlu0 %v2091, 32
      %v2419 = vpop.permute.xlu0 %2418
      %2420 = vrot.lane.b32.xlu0 %v2093, 32
      %v2421 = vpop.permute.xlu0 %2420
      %2422 = vrot.lane.b32.xlu0 %v2168, 32
      %v2423 = vpop.permute.xlu0 %2422
      %2424 = vrot.lane.b32.xlu0 %v2170, 32
      %v2425 = vpop.permute.xlu0 %2424
      %2426 = vrot.lane.b32.xlu0 %v1943, 32
      %v2427 = vpop.permute.xlu0 %2426
      %2428 = vrot.lane.b32.xlu0 %v1945, 32
      %v2429 = vpop.permute.xlu0 %2428
      %2430 = vrot.lane.b32.xlu0 %v2020, 32
      %v2431 = vpop.permute.xlu0 %2430
      %2432 = vrot.lane.b32.xlu0 %v2022, 32
      %v2433 = vpop.permute.xlu0 %2432
      %2434 = vrot.lane.b32.xlu0 %v2097, 32
      %v2435 = vpop.permute.xlu0 %2434
      %2436 = vrot.lane.b32.xlu0 %v2099, 32
      %v2437 = vpop.permute.xlu0 %2436
      %2438 = vrot.lane.b32.xlu0 %v2174, 32
      %v2439 = vpop.permute.xlu0 %2438
      %2440 = vrot.lane.b32.xlu0 %v2176, 32
      %v2441 = vpop.permute.xlu0 %2440
      %vm2442 = vcmask 261120
      %v2443 = vsel %vm2442, %v2411, %v2413
      %v2444 = vsel %vm2442, %v2413, %v2415
      %v2445 = vsel %vm2442, %v2415, %v2417
      %v2446 = vsel %vm2442, %v2417, %v2419
      %v2447 = vsel %vm2442, %v2419, %v2421
      %v2448 = vsel %vm2442, %v2421, %v2423
      %v2449 = vsel %vm2442, %v2423, %v2425
      %v2450 = vsel %vm2442, %v2427, %v2429
      %v2451 = vsel %vm2442, %v2429, %v2431
      %v2452 = vsel %vm2442, %v2431, %v2433
      %v2453 = vsel %vm2442, %v2433, %v2435
      %v2454 = vsel %vm2442, %v2435, %v2437
      %v2455 = vsel %vm2442, %v2437, %v2439
      %v2456 = vsel %vm2442, %v2439, %v2441
      %v2473 = vsel %vm2442, 0.0, %v2411
      %v2474 = vsel %vm2442, 0.0, %v2427
      %s2475 = scalar_lea.vmem %s5, 8
      %v2476 = vld [vmem:[%s2475] sm:$0xff]
      %v2478 = vsel %vm534, %v2476, 0
      %2480 = vmatprep.subr.mxu0 %v2443
      %2481 = vmatpush1.msra.mxu0 %v2473
      %2482 = vmatprep.subr.mxu0 %v2450
      %2483 = vmatpush1.msra.mxu0 %v2474
      %2484 = vmatprep.subr.mxu0 0.0
      %2485 = vmatpush1.msra.mxu0 0.0
      %2486 = vmatprep.subr.mxu0 0.0
      %2487 = vmatpush1.msra.mxu0 0.0
      %2488 = vmatprep.subr.mxu0 0.0
      %2489 = vmatpush1.msra.mxu0 0.0
      %2490 = vmatprep.subr.mxu0 0.0
      %2491 = vmatpush1.msra.mxu0 0.0
      %2492 = vmatprep.subr.mxu0 0.0
      %2493 = vmatpush1.msra.mxu0 0.0
      %2494 = vmatprep.subr.mxu0 0.0
      %2495 = vmatpush1.msra.mxu0 0.0
      %2496 = vmatprep.subr.mxu0 0.0
      %2497 = vmatpush1.msra.mxu0 0.0
      %2498 = vmatprep.subr.mxu0 0.0
      %2499 = vmatpush1.msra.mxu0 0.0
      %2500 = vmatprep.subr.mxu0 0.0
      %2501 = vmatpush1.msra.mxu0 0.0
      %2502 = vmatprep.subr.mxu0 0.0
      %2503 = vmatpush1.msra.mxu0 0.0
      %2504 = vmatprep.subr.mxu0 0.0
      %2505 = vmatpush1.msra.mxu0 0.0
      %2506 = vmatprep.subr.mxu0 0.0
      %2507 = vmatpush1.msra.mxu0 0.0
      %2508 = vmatprep.subr.mxu0 0.0
      %2509 = vmatpush1.msra.mxu0 0.0
      %2510 = vmatprep.subr.mxu0 0.0
      %2511 = vmatpush1.msra.mxu0 0.0
      %2512 = vmatprep.subr.mxu0 0.0
      %2513 = vmatpush1.msra.mxu0 0.0
      %2514 = vmatprep.subr.mxu0 0.0
      %2515 = vmatpush1.msra.mxu0 0.0
      %2516 = vmatprep.subr.mxu0 0.0
      %2517 = vmatpush1.msra.mxu0 0.0
      %2518 = vmatprep.subr.mxu0 0.0
      %2519 = vmatpush1.msra.mxu0 0.0
      %2520 = vmatprep.subr.mxu0 0.0
      %2521 = vmatpush1.msra.mxu0 0.0
      %2522 = vmatprep.subr.mxu0 0.0
      %2523 = vmatpush1.msra.mxu0 0.0
      %2524 = vmatprep.subr.mxu0 0.0
      %2525 = vmatpush1.msra.mxu0 0.0
      %2526 = vmatprep.subr.mxu0 0.0
      %2527 = vmatpush1.msra.mxu0 0.0
      %2528 = vmatprep.subr.mxu0 0.0
      %2529 = vmatpush1.msra.mxu0 0.0
      %2530 = vmatprep.subr.mxu0 0.0
      %2531 = vmatpush1.msra.mxu0 0.0
      %2532 = vmatprep.subr.mxu0 0.0
      %2533 = vmatpush1.msra.mxu0 0.0
      %2534 = vmatprep.subr.mxu0 0.0
      %2535 = vmatpush1.msra.mxu0 0.0
      %2536 = vmatprep.subr.mxu0 0.0
      %2537 = vmatpush1.msra.mxu0 0.0
      %2538 = vmatprep.subr.mxu0 0.0
      %2539 = vmatpush1.msra.mxu0 0.0
      %2540 = vmatprep.subr.mxu0 0.0
      %2541 = vmatpush1.msra.mxu0 0.0
      %2542 = vmatprep.subr.mxu0 0.0
      %2543 = vmatpush1.msra.mxu0 0.0
      %2544 = vmatprep.mubr.f32.mxu0 0.0
      %2545 = vmatmul.mubr.f32.gmra.mrb[0].mxu0 %v2478
      %v2546 = vpop.f32.mrb[0].mxu0
      %v2547 = vadd.f32 0.0, %v2546
      %v2548 = vpop.f32.mrb[0].mxu0
      %v2549 = vadd.f32 0.0, %v2548
      %2550 = vdwg.mxu0
      %2551 = vmatprep.subr.mxu0 %v2445
      %2552 = vmatpush1.msra.mxu0 %v2444
      %2553 = vmatprep.subr.mxu0 %v2452
      %2554 = vmatpush1.msra.mxu0 %v2451
      %2555 = vmatprep.subr.mxu0 0.0
      %2556 = vmatpush1.msra.mxu0 0.0
      %2557 = vmatprep.subr.mxu0 0.0
      %2558 = vmatpush1.msra.mxu0 0.0
      %2559 = vmatprep.subr.mxu0 0.0
      %2560 = vmatpush1.msra.mxu0 0.0
      %2561 = vmatprep.subr.mxu0 0.0
      %2562 = vmatpush1.msra.mxu0 0.0
      %2563 = vmatprep.subr.mxu0 0.0
      %2564 = vmatpush1.msra.mxu0 0.0
      %2565 = vmatprep.subr.mxu0 0.0
      %2566 = vmatpush1.msra.mxu0 0.0
      %2567 = vmatprep.subr.mxu0 0.0
      %2568 = vmatpush1.msra.mxu0 0.0
      %2569 = vmatprep.subr.mxu0 0.0
      %2570 = vmatpush1.msra.mxu0 0.0
      %2571 = vmatprep.subr.mxu0 0.0
      %2572 = vmatpush1.msra.mxu0 0.0
      %2573 = vmatprep.subr.mxu0 0.0
      %2574 = vmatpush1.msra.mxu0 0.0
      %2575 = vmatprep.subr.mxu0 0.0
      %2576 = vmatpush1.msra.mxu0 0.0
      %2577 = vmatprep.subr.mxu0 0.0
      %2578 = vmatpush1.msra.mxu0 0.0
      %2579 = vmatprep.subr.mxu0 0.0
      %2580 = vmatpush1.msra.mxu0 0.0
      %2581 = vmatprep.subr.mxu0 0.0
      %2582 = vmatpush1.msra.mxu0 0.0
      %2583 = vmatprep.subr.mxu0 0.0
      %2584 = vmatpush1.msra.mxu0 0.0
      %2585 = vmatprep.subr.mxu0 0.0
      %2586 = vmatpush1.msra.mxu0 0.0
      %2587 = vmatprep.subr.mxu0 0.0
      %2588 = vmatpush1.msra.mxu0 0.0
      %2589 = vmatprep.subr.mxu0 0.0
      %2590 = vmatpush1.msra.mxu0 0.0
      %2591 = vmatprep.subr.mxu0 0.0
      %2592 = vmatpush1.msra.mxu0 0.0
      %2593 = vmatprep.subr.mxu0 0.0
      %2594 = vmatpush1.msra.mxu0 0.0
      %2595 = vmatprep.subr.mxu0 0.0
      %2596 = vmatpush1.msra.mxu0 0.0
      %2597 = vmatprep.subr.mxu0 0.0
      %2598 = vmatpush1.msra.mxu0 0.0
      %2599 = vmatprep.subr.mxu0 0.0
      %2600 = vmatpush1.msra.mxu0 0.0
      %2601 = vmatprep.subr.mxu0 0.0
      %2602 = vmatpush1.msra.mxu0 0.0
      %2603 = vmatprep.subr.mxu0 0.0
      %2604 = vmatpush1.msra.mxu0 0.0
      %2605 = vmatprep.subr.mxu0 0.0
      %2606 = vmatpush1.msra.mxu0 0.0
      %2607 = vmatprep.subr.mxu0 0.0
      %2608 = vmatpush1.msra.mxu0 0.0
      %2609 = vmatprep.subr.mxu0 0.0
      %2610 = vmatpush1.msra.mxu0 0.0
      %2611 = vmatprep.subr.mxu0 0.0
      %2612 = vmatpush1.msra.mxu0 0.0
      %2613 = vmatprep.subr.mxu0 0.0
      %2614 = vmatpush1.msra.mxu0 0.0
      %2615 = vmatprep.mubr.f32.mxu0 0.0
      %2616 = vmatmul.mubr.f32.gmra.mrb[0].mxu0 %v2478
      %v2617 = vpop.f32.mrb[0].mxu0
      %v2618 = vadd.f32 0.0, %v2617
      %v2619 = vpop.f32.mrb[0].mxu0
      %v2620 = vadd.f32 0.0, %v2619
      %2621 = vdwg.mxu0
      %2622 = vmatprep.subr.mxu0 %v2447
      %2623 = vmatpush1.msra.mxu0 %v2446
      %2624 = vmatprep.subr.mxu0 %v2454
      %2625 = vmatpush1.msra.mxu0 %v2453
      %2626 = vmatprep.subr.mxu0 0.0
      %2627 = vmatpush1.msra.mxu0 0.0
      %2628 = vmatprep.subr.mxu0 0.0
      %2629 = vmatpush1.msra.mxu0 0.0
      %2630 = vmatprep.subr.mxu0 0.0
      %2631 = vmatpush1.msra.mxu0 0.0
      %2632 = vmatprep.subr.mxu0 0.0
      %2633 = vmatpush1.msra.mxu0 0.0
      %2634 = vmatprep.subr.mxu0 0.0
      %2635 = vmatpush1.msra.mxu0 0.0
      %2636 = vmatprep.subr.mxu0 0.0
      %2637 = vmatpush1.msra.mxu0 0.0
      %2638 = vmatprep.subr.mxu0 0.0
      %2639 = vmatpush1.msra.mxu0 0.0
      %2640 = vmatprep.subr.mxu0 0.0
      %2641 = vmatpush1.msra.mxu0 0.0
      %2642 = vmatprep.subr.mxu0 0.0
      %2643 = vmatpush1.msra.mxu0 0.0
      %2644 = vmatprep.subr.mxu0 0.0
      %2645 = vmatpush1.msra.mxu0 0.0
      %2646 = vmatprep.subr.mxu0 0.0
      %2647 = vmatpush1.msra.mxu0 0.0
      %2648 = vmatprep.subr.mxu0 0.0
      %2649 = vmatpush1.msra.mxu0 0.0
      %2650 = vmatprep.subr.mxu0 0.0
      %2651 = vmatpush1.msra.mxu0 0.0
      %2652 = vmatprep.subr.mxu0 0.0
      %2653 = vmatpush1.msra.mxu0 0.0
      %2654 = vmatprep.subr.mxu0 0.0
      %2655 = vmatpush1.msra.mxu0 0.0
      %2656 = vmatprep.subr.mxu0 0.0
      %2657 = vmatpush1.msra.mxu0 0.0
      %2658 = vmatprep.subr.mxu0 0.0
      %2659 = vmatpush1.msra.mxu0 0.0
      %2660 = vmatprep.subr.mxu0 0.0
      %2661 = vmatpush1.msra.mxu0 0.0
      %2662 = vmatprep.subr.mxu0 0.0
      %2663 = vmatpush1.msra.mxu0 0.0
      %2664 = vmatprep.subr.mxu0 0.0
      %2665 = vmatpush1.msra.mxu0 0.0
      %2666 = vmatprep.subr.mxu0 0.0
      %2667 = vmatpush1.msra.mxu0 0.0
      %2668 = vmatprep.subr.mxu0 0.0
      %2669 = vmatpush1.msra.mxu0 0.0
      %2670 = vmatprep.subr.mxu0 0.0
      %2671 = vmatpush1.msra.mxu0 0.0
      %2672 = vmatprep.subr.mxu0 0.0
      %2673 = vmatpush1.msra.mxu0 0.0
      %2674 = vmatprep.subr.mxu0 0.0
      %2675 = vmatpush1.msra.mxu0 0.0
      %2676 = vmatprep.subr.mxu0 0.0
      %2677 = vmatpush1.msra.mxu0 0.0
      %2678 = vmatprep.subr.mxu0 0.0
      %2679 = vmatpush1.msra.mxu0 0.0
      %2680 = vmatprep.subr.mxu0 0.0
      %2681 = vmatpush1.msra.mxu0 0.0
      %2682 = vmatprep.subr.mxu0 0.0
      %2683 = vmatpush1.msra.mxu0 0.0
      %2684 = vmatprep.subr.mxu0 0.0
      %2685 = vmatpush1.msra.mxu0 0.0
      %2686 = vmatprep.mubr.f32.mxu0 0.0
      %2687 = vmatmul.mubr.f32.gmra.mrb[0].mxu0 %v2478
      %v2688 = vpop.f32.mrb[0].mxu0
      %v2689 = vadd.f32 0.0, %v2688
      %v2690 = vpop.f32.mrb[0].mxu0
      %v2691 = vadd.f32 0.0, %v2690
      %2692 = vdwg.mxu0
      %2693 = vmatprep.subr.mxu0 %v2449
      %2694 = vmatpush1.msra.mxu0 %v2448
      %2695 = vmatprep.subr.mxu0 %v2456
      %2696 = vmatpush1.msra.mxu0 %v2455
      %2697 = vmatprep.subr.mxu0 0.0
      %2698 = vmatpush1.msra.mxu0 0.0
      %2699 = vmatprep.subr.mxu0 0.0
      %2700 = vmatpush1.msra.mxu0 0.0
      %2701 = vmatprep.subr.mxu0 0.0
      %2702 = vmatpush1.msra.mxu0 0.0
      %2703 = vmatprep.subr.mxu0 0.0
      %2704 = vmatpush1.msra.mxu0 0.0
      %2705 = vmatprep.subr.mxu0 0.0
      %2706 = vmatpush1.msra.mxu0 0.0
      %2707 = vmatprep.subr.mxu0 0.0
      %2708 = vmatpush1.msra.mxu0 0.0
      %2709 = vmatprep.subr.mxu0 0.0
      %2710 = vmatpush1.msra.mxu0 0.0
      %2711 = vmatprep.subr.mxu0 0.0
      %2712 = vmatpush1.msra.mxu0 0.0
      %2713 = vmatprep.subr.mxu0 0.0
      %2714 = vmatpush1.msra.mxu0 0.0
      %2715 = vmatprep.subr.mxu0 0.0
      %2716 = vmatpush1.msra.mxu0 0.0
      %2717 = vmatprep.subr.mxu0 0.0
      %2718 = vmatpush1.msra.mxu0 0.0
      %2719 = vmatprep.subr.mxu0 0.0
      %2720 = vmatpush1.msra.mxu0 0.0
      %2721 = vmatprep.subr.mxu0 0.0
      %2722 = vmatpush1.msra.mxu0 0.0
      %2723 = vmatprep.subr.mxu0 0.0
      %2724 = vmatpush1.msra.mxu0 0.0
      %2725 = vmatprep.subr.mxu0 0.0
      %2726 = vmatpush1.msra.mxu0 0.0
      %2727 = vmatprep.subr.mxu0 0.0
      %2728 = vmatpush1.msra.mxu0 0.0
      %2729 = vmatprep.subr.mxu0 0.0
      %2730 = vmatpush1.msra.mxu0 0.0
      %2731 = vmatprep.subr.mxu0 0.0
      %2732 = vmatpush1.msra.mxu0 0.0
      %2733 = vmatprep.subr.mxu0 0.0
      %2734 = vmatpush1.msra.mxu0 0.0
      %2735 = vmatprep.subr.mxu0 0.0
      %2736 = vmatpush1.msra.mxu0 0.0
      %2737 = vmatprep.subr.mxu0 0.0
      %2738 = vmatpush1.msra.mxu0 0.0
      %2739 = vmatprep.subr.mxu0 0.0
      %2740 = vmatpush1.msra.mxu0 0.0
      %2741 = vmatprep.subr.mxu0 0.0
      %2742 = vmatpush1.msra.mxu0 0.0
      %2743 = vmatprep.subr.mxu0 0.0
      %2744 = vmatpush1.msra.mxu0 0.0
      %2745 = vmatprep.subr.mxu0 0.0
      %2746 = vmatpush1.msra.mxu0 0.0
      %2747 = vmatprep.subr.mxu0 0.0
      %2748 = vmatpush1.msra.mxu0 0.0
      %2749 = vmatprep.subr.mxu0 0.0
      %2750 = vmatpush1.msra.mxu0 0.0
      %2751 = vmatprep.subr.mxu0 0.0
      %2752 = vmatpush1.msra.mxu0 0.0
      %2753 = vmatprep.subr.mxu0 0.0
      %2754 = vmatpush1.msra.mxu0 0.0
      %2755 = vmatprep.subr.mxu0 0.0
      %2756 = vmatpush1.msra.mxu0 0.0
      %2757 = vmatprep.mubr.f32.mxu0 0.0
      %2758 = vmatmul.mubr.f32.gmra.mrb[0].mxu0 %v2478
      %v2759 = vpop.f32.mrb[0].mxu0
      %v2760 = vadd.f32 0.0, %v2759
      %v2761 = vpop.f32.mrb[0].mxu0
      %v2762 = vadd.f32 0.0, %v2761
      %2763 = vdwg.mxu0
      %v2765 = vsel %vm534, %v2409, 0
      %2767 = vmatprep.subr.mxu0 %v2394
      %2768 = vmatpush1.msra.mxu0 %v2393
      %2769 = vmatprep.subr.mxu0 %v2402
      %2770 = vmatpush1.msra.mxu0 %v2401
      %2771 = vmatprep.subr.mxu0 0.0
      %2772 = vmatpush1.msra.mxu0 0.0
      %2773 = vmatprep.subr.mxu0 0.0
      %2774 = vmatpush1.msra.mxu0 0.0
      %2775 = vmatprep.subr.mxu0 0.0
      %2776 = vmatpush1.msra.mxu0 0.0
      %2777 = vmatprep.subr.mxu0 0.0
      %2778 = vmatpush1.msra.mxu0 0.0
      %2779 = vmatprep.subr.mxu0 0.0
      %2780 = vmatpush1.msra.mxu0 0.0
      %2781 = vmatprep.subr.mxu0 0.0
      %2782 = vmatpush1.msra.mxu0 0.0
      %2783 = vmatprep.subr.mxu0 0.0
      %2784 = vmatpush1.msra.mxu0 0.0
      %2785 = vmatprep.subr.mxu0 0.0
      %2786 = vmatpush1.msra.mxu0 0.0
      %2787 = vmatprep.subr.mxu0 0.0
      %2788 = vmatpush1.msra.mxu0 0.0
      %2789 = vmatprep.subr.mxu0 0.0
      %2790 = vmatpush1.msra.mxu0 0.0
      %2791 = vmatprep.subr.mxu0 0.0
      %2792 = vmatpush1.msra.mxu0 0.0
      %2793 = vmatprep.subr.mxu0 0.0
      %2794 = vmatpush1.msra.mxu0 0.0
      %2795 = vmatprep.subr.mxu0 0.0
      %2796 = vmatpush1.msra.mxu0 0.0
      %2797 = vmatprep.subr.mxu0 0.0
      %2798 = vmatpush1.msra.mxu0 0.0
      %2799 = vmatprep.subr.mxu0 0.0
      %2800 = vmatpush1.msra.mxu0 0.0
      %2801 = vmatprep.subr.mxu0 0.0
      %2802 = vmatpush1.msra.mxu0 0.0
      %2803 = vmatprep.subr.mxu0 0.0
      %2804 = vmatpush1.msra.mxu0 0.0
      %2805 = vmatprep.subr.mxu0 0.0
      %2806 = vmatpush1.msra.mxu0 0.0
      %2807 = vmatprep.subr.mxu0 0.0
      %2808 = vmatpush1.msra.mxu0 0.0
      %2809 = vmatprep.subr.mxu0 0.0
      %2810 = vmatpush1.msra.mxu0 0.0
      %2811 = vmatprep.subr.mxu0 0.0
      %2812 = vmatpush1.msra.mxu0 0.0
      %2813 = vmatprep.subr.mxu0 0.0
      %2814 = vmatpush1.msra.mxu0 0.0
      %2815 = vmatprep.subr.mxu0 0.0
      %2816 = vmatpush1.msra.mxu0 0.0
      %2817 = vmatprep.subr.mxu0 0.0
      %2818 = vmatpush1.msra.mxu0 0.0
      %2819 = vmatprep.subr.mxu0 0.0
      %2820 = vmatpush1.msra.mxu0 0.0
      %2821 = vmatprep.subr.mxu0 0.0
      %2822 = vmatpush1.msra.mxu0 0.0
      %2823 = vmatprep.subr.mxu0 0.0
      %2824 = vmatpush1.msra.mxu0 0.0
      %2825 = vmatprep.subr.mxu0 0.0
      %2826 = vmatpush1.msra.mxu0 0.0
      %2827 = vmatprep.subr.mxu0 0.0
      %2828 = vmatpush1.msra.mxu0 0.0
      %2829 = vmatprep.subr.mxu0 0.0
      %2830 = vmatpush1.msra.mxu0 0.0
      %2831 = vmatprep.mubr.f32.mxu0 0.0
      %2832 = vmatmul.mubr.f32.gmra.mrb[0].mxu0 %v2765
      %v2833 = vpop.f32.mrb[0].mxu0
      %v2834 = vadd.f32 %v2547, %v2833
      %v2835 = vpop.f32.mrb[0].mxu0
      %v2836 = vadd.f32 %v2549, %v2835
      %2837 = vdwg.mxu0
      %2838 = vmatprep.subr.mxu0 %v2396
      %2839 = vmatpush1.msra.mxu0 %v2395
      %2840 = vmatprep.subr.mxu0 %v2404
      %2841 = vmatpush1.msra.mxu0 %v2403
      %2842 = vmatprep.subr.mxu0 0.0
      %2843 = vmatpush1.msra.mxu0 0.0
      %2844 = vmatprep.subr.mxu0 0.0
      %2845 = vmatpush1.msra.mxu0 0.0
      %2846 = vmatprep.subr.mxu0 0.0
      %2847 = vmatpush1.msra.mxu0 0.0
      %2848 = vmatprep.subr.mxu0 0.0
      %2849 = vmatpush1.msra.mxu0 0.0
      %2850 = vmatprep.subr.mxu0 0.0
      %2851 = vmatpush1.msra.mxu0 0.0
      %2852 = vmatprep.subr.mxu0 0.0
      %2853 = vmatpush1.msra.mxu0 0.0
      %2854 = vmatprep.subr.mxu0 0.0
      %2855 = vmatpush1.msra.mxu0 0.0
      %2856 = vmatprep.subr.mxu0 0.0
      %2857 = vmatpush1.msra.mxu0 0.0
      %2858 = vmatprep.subr.mxu0 0.0
      %2859 = vmatpush1.msra.mxu0 0.0
      %2860 = vmatprep.subr.mxu0 0.0
      %2861 = vmatpush1.msra.mxu0 0.0
      %2862 = vmatprep.subr.mxu0 0.0
      %2863 = vmatpush1.msra.mxu0 0.0
      %2864 = vmatprep.subr.mxu0 0.0
      %2865 = vmatpush1.msra.mxu0 0.0
      %2866 = vmatprep.subr.mxu0 0.0
      %2867 = vmatpush1.msra.mxu0 0.0
      %2868 = vmatprep.subr.mxu0 0.0
      %2869 = vmatpush1.msra.mxu0 0.0
      %2870 = vmatprep.subr.mxu0 0.0
      %2871 = vmatpush1.msra.mxu0 0.0
      %2872 = vmatprep.subr.mxu0 0.0
      %2873 = vmatpush1.msra.mxu0 0.0
      %2874 = vmatprep.subr.mxu0 0.0
      %2875 = vmatpush1.msra.mxu0 0.0
      %2876 = vmatprep.subr.mxu0 0.0
      %2877 = vmatpush1.msra.mxu0 0.0
      %2878 = vmatprep.subr.mxu0 0.0
      %2879 = vmatpush1.msra.mxu0 0.0
      %2880 = vmatprep.subr.mxu0 0.0
      %2881 = vmatpush1.msra.mxu0 0.0
      %2882 = vmatprep.subr.mxu0 0.0
      %2883 = vmatpush1.msra.mxu0 0.0
      %2884 = vmatprep.subr.mxu0 0.0
      %2885 = vmatpush1.msra.mxu0 0.0
      %2886 = vmatprep.subr.mxu0 0.0
      %2887 = vmatpush1.msra.mxu0 0.0
      %2888 = vmatprep.subr.mxu0 0.0
      %2889 = vmatpush1.msra.mxu0 0.0
      %2890 = vmatprep.subr.mxu0 0.0
      %2891 = vmatpush1.msra.mxu0 0.0
      %2892 = vmatprep.subr.mxu0 0.0
      %2893 = vmatpush1.msra.mxu0 0.0
      %2894 = vmatprep.subr.mxu0 0.0
      %2895 = vmatpush1.msra.mxu0 0.0
      %2896 = vmatprep.subr.mxu0 0.0
      %2897 = vmatpush1.msra.mxu0 0.0
      %2898 = vmatprep.subr.mxu0 0.0
      %2899 = vmatpush1.msra.mxu0 0.0
      %2900 = vmatprep.subr.mxu0 0.0
      %2901 = vmatpush1.msra.mxu0 0.0
      %2902 = vmatprep.mubr.f32.mxu0 0.0
      %2903 = vmatmul.mubr.f32.gmra.mrb[0].mxu0 %v2765
      %v2904 = vpop.f32.mrb[0].mxu0
      %v2905 = vadd.f32 %v2618, %v2904
      %v2906 = vpop.f32.mrb[0].mxu0
      %v2907 = vadd.f32 %v2620, %v2906
      %2908 = vdwg.mxu0
      %2909 = vmatprep.subr.mxu0 %v2398
      %2910 = vmatpush1.msra.mxu0 %v2397
      %2911 = vmatprep.subr.mxu0 %v2406
      %2912 = vmatpush1.msra.mxu0 %v2405
      %2913 = vmatprep.subr.mxu0 0.0
      %2914 = vmatpush1.msra.mxu0 0.0
      %2915 = vmatprep.subr.mxu0 0.0
      %2916 = vmatpush1.msra.mxu0 0.0
      %2917 = vmatprep.subr.mxu0 0.0
      %2918 = vmatpush1.msra.mxu0 0.0
      %2919 = vmatprep.subr.mxu0 0.0
      %2920 = vmatpush1.msra.mxu0 0.0
      %2921 = vmatprep.subr.mxu0 0.0
      %2922 = vmatpush1.msra.mxu0 0.0
      %2923 = vmatprep.subr.mxu0 0.0
      %2924 = vmatpush1.msra.mxu0 0.0
      %2925 = vmatprep.subr.mxu0 0.0
      %2926 = vmatpush1.msra.mxu0 0.0
      %2927 = vmatprep.subr.mxu0 0.0
      %2928 = vmatpush1.msra.mxu0 0.0
      %2929 = vmatprep.subr.mxu0 0.0
      %2930 = vmatpush1.msra.mxu0 0.0
      %2931 = vmatprep.subr.mxu0 0.0
      %2932 = vmatpush1.msra.mxu0 0.0
      %2933 = vmatprep.subr.mxu0 0.0
      %2934 = vmatpush1.msra.mxu0 0.0
      %2935 = vmatprep.subr.mxu0 0.0
      %2936 = vmatpush1.msra.mxu0 0.0
      %2937 = vmatprep.subr.mxu0 0.0
      %2938 = vmatpush1.msra.mxu0 0.0
      %2939 = vmatprep.subr.mxu0 0.0
      %2940 = vmatpush1.msra.mxu0 0.0
      %2941 = vmatprep.subr.mxu0 0.0
      %2942 = vmatpush1.msra.mxu0 0.0
      %2943 = vmatprep.subr.mxu0 0.0
      %2944 = vmatpush1.msra.mxu0 0.0
      %2945 = vmatprep.subr.mxu0 0.0
      %2946 = vmatpush1.msra.mxu0 0.0
      %2947 = vmatprep.subr.mxu0 0.0
      %2948 = vmatpush1.msra.mxu0 0.0
      %2949 = vmatprep.subr.mxu0 0.0
      %2950 = vmatpush1.msra.mxu0 0.0
      %2951 = vmatprep.subr.mxu0 0.0
      %2952 = vmatpush1.msra.mxu0 0.0
      %2953 = vmatprep.subr.mxu0 0.0
      %2954 = vmatpush1.msra.mxu0 0.0
      %2955 = vmatprep.subr.mxu0 0.0
      %2956 = vmatpush1.msra.mxu0 0.0
      %2957 = vmatprep.subr.mxu0 0.0
      %2958 = vmatpush1.msra.mxu0 0.0
      %2959 = vmatprep.subr.mxu0 0.0
      %2960 = vmatpush1.msra.mxu0 0.0
      %2961 = vmatprep.subr.mxu0 0.0
      %2962 = vmatpush1.msra.mxu0 0.0
      %2963 = vmatprep.subr.mxu0 0.0
      %2964 = vmatpush1.msra.mxu0 0.0
      %2965 = vmatprep.subr.mxu0 0.0
      %2966 = vmatpush1.msra.mxu0 0.0
      %2967 = vmatprep.subr.mxu0 0.0
      %2968 = vmatpush1.msra.mxu0 0.0
      %2969 = vmatprep.subr.mxu0 0.0
      %2970 = vmatpush1.msra.mxu0 0.0
      %2971 = vmatprep.subr.mxu0 0.0
      %2972 = vmatpush1.msra.mxu0 0.0
      %2973 = vmatprep.mubr.f32.mxu0 0.0
      %2974 = vmatmul.mubr.f32.gmra.mrb[0].mxu0 %v2765
      %v2975 = vpop.f32.mrb[0].mxu0
      %v2976 = vadd.f32 %v2689, %v2975
      %v2977 = vpop.f32.mrb[0].mxu0
      %v2978 = vadd.f32 %v2691, %v2977
      %2979 = vdwg.mxu0
      %2980 = vmatprep.subr.mxu0 %v2400
      %2981 = vmatpush1.msra.mxu0 %v2399
      %2982 = vmatprep.subr.mxu0 %v2408
      %2983 = vmatpush1.msra.mxu0 %v2407
      %2984 = vmatprep.subr.mxu0 0.0
      %2985 = vmatpush1.msra.mxu0 0.0
      %2986 = vmatprep.subr.mxu0 0.0
      %2987 = vmatpush1.msra.mxu0 0.0
      %2988 = vmatprep.subr.mxu0 0.0
      %2989 = vmatpush1.msra.mxu0 0.0
      %2990 = vmatprep.subr.mxu0 0.0
      %2991 = vmatpush1.msra.mxu0 0.0
      %2992 = vmatprep.subr.mxu0 0.0
      %2993 = vmatpush1.msra.mxu0 0.0
      %2994 = vmatprep.subr.mxu0 0.0
      %2995 = vmatpush1.msra.mxu0 0.0
      %2996 = vmatprep.subr.mxu0 0.0
      %2997 = vmatpush1.msra.mxu0 0.0
      %2998 = vmatprep.subr.mxu0 0.0
      %2999 = vmatpush1.msra.mxu0 0.0
      %3000 = vmatprep.subr.mxu0 0.0
      %3001 = vmatpush1.msra.mxu0 0.0
      %3002 = vmatprep.subr.mxu0 0.0
      %3003 = vmatpush1.msra.mxu0 0.0
      %3004 = vmatprep.subr.mxu0 0.0
      %3005 = vmatpush1.msra.mxu0 0.0
      %3006 = vmatprep.subr.mxu0 0.0
      %3007 = vmatpush1.msra.mxu0 0.0
      %3008 = vmatprep.subr.mxu0 0.0
      %3009 = vmatpush1.msra.mxu0 0.0
      %3010 = vmatprep.subr.mxu0 0.0
      %3011 = vmatpush1.msra.mxu0 0.0
      %3012 = vmatprep.subr.mxu0 0.0
      %3013 = vmatpush1.msra.mxu0 0.0
      %3014 = vmatprep.subr.mxu0 0.0
      %3015 = vmatpush1.msra.mxu0 0.0
      %3016 = vmatprep.subr.mxu0 0.0
      %3017 = vmatpush1.msra.mxu0 0.0
      %3018 = vmatprep.subr.mxu0 0.0
      %3019 = vmatpush1.msra.mxu0 0.0
      %3020 = vmatprep.subr.mxu0 0.0
      %3021 = vmatpush1.msra.mxu0 0.0
      %3022 = vmatprep.subr.mxu0 0.0
      %3023 = vmatpush1.msra.mxu0 0.0
      %3024 = vmatprep.subr.mxu0 0.0
      %3025 = vmatpush1.msra.mxu0 0.0
      %3026 = vmatprep.subr.mxu0 0.0
      %3027 = vmatpush1.msra.mxu0 0.0
      %3028 = vmatprep.subr.mxu0 0.0
      %3029 = vmatpush1.msra.mxu0 0.0
      %3030 = vmatprep.subr.mxu0 0.0
      %3031 = vmatpush1.msra.mxu0 0.0
      %3032 = vmatprep.subr.mxu0 0.0
      %3033 = vmatpush1.msra.mxu0 0.0
      %3034 = vmatprep.subr.mxu0 0.0
      %3035 = vmatpush1.msra.mxu0 0.0
      %3036 = vmatprep.subr.mxu0 0.0
      %3037 = vmatpush1.msra.mxu0 0.0
      %3038 = vmatprep.subr.mxu0 0.0
      %3039 = vmatpush1.msra.mxu0 0.0
      %3040 = vmatprep.subr.mxu0 0.0
      %3041 = vmatpush1.msra.mxu0 0.0
      %3042 = vmatprep.subr.mxu0 0.0
      %3043 = vmatpush1.msra.mxu0 0.0
      %3044 = vmatprep.mubr.f32.mxu0 0.0
      %3045 = vmatmul.mubr.f32.gmra.mrb[0].mxu0 %v2765
      %v3046 = vpop.f32.mrb[0].mxu0
      %v3047 = vadd.f32 %v2760, %v3046
      %v3048 = vpop.f32.mrb[0].mxu0
      %v3049 = vadd.f32 %v2762, %v3048
      %3050 = vdwg.mxu0
      %3051 = vrot.lane.b32.xlu0 %v1937, 31
      %v3052 = vpop.permute.xlu0 %3051
      %3053 = vrot.lane.b32.xlu0 %v1939, 31
      %v3054 = vpop.permute.xlu0 %3053
      %3055 = vrot.lane.b32.xlu0 %v2014, 31
      %v3056 = vpop.permute.xlu0 %3055
      %3057 = vrot.lane.b32.xlu0 %v2016, 31
      %v3058 = vpop.permute.xlu0 %3057
      %3059 = vrot.lane.b32.xlu0 %v2091, 31
      %v3060 = vpop.permute.xlu0 %3059
      %3061 = vrot.lane.b32.xlu0 %v2093, 31
      %v3062 = vpop.permute.xlu0 %3061
      %3063 = vrot.lane.b32.xlu0 %v2168, 31
      %v3064 = vpop.permute.xlu0 %3063
      %3065 = vrot.lane.b32.xlu0 %v2170, 31
      %v3066 = vpop.permute.xlu0 %3065
      %3067 = vrot.lane.b32.xlu0 %v1943, 31
      %v3068 = vpop.permute.xlu0 %3067
      %3069 = vrot.lane.b32.xlu0 %v1945, 31
      %v3070 = vpop.permute.xlu0 %3069
      %3071 = vrot.lane.b32.xlu0 %v2020, 31
      %v3072 = vpop.permute.xlu0 %3071
      %3073 = vrot.lane.b32.xlu0 %v2022, 31
      %v3074 = vpop.permute.xlu0 %3073
      %3075 = vrot.lane.b32.xlu0 %v2097, 31
      %v3076 = vpop.permute.xlu0 %3075
      %3077 = vrot.lane.b32.xlu0 %v2099, 31
      %v3078 = vpop.permute.xlu0 %3077
      %3079 = vrot.lane.b32.xlu0 %v2174, 31
      %v3080 = vpop.permute.xlu0 %3079
      %3081 = vrot.lane.b32.xlu0 %v2176, 31
      %v3082 = vpop.permute.xlu0 %3081
      %vm3083 = vcmask 252928
      %v3084 = vsel %vm3083, %v3052, %v3054
      %v3085 = vsel %vm3083, %v3054, %v3056
      %v3086 = vsel %vm3083, %v3056, %v3058
      %v3087 = vsel %vm3083, %v3058, %v3060
      %v3088 = vsel %vm3083, %v3060, %v3062
      %v3089 = vsel %vm3083, %v3062, %v3064
      %v3090 = vsel %vm3083, %v3064, %v3066
      %v3091 = vsel %vm3083, %v3068, %v3070
      %v3092 = vsel %vm3083, %v3070, %v3072
      %v3093 = vsel %vm3083, %v3072, %v3074
      %v3094 = vsel %vm3083, %v3074, %v3076
      %v3095 = vsel %vm3083, %v3076, %v3078
      %v3096 = vsel %vm3083, %v3078, %v3080
      %v3097 = vsel %vm3083, %v3080, %v3082
      %v3114 = vsel %vm3083, 0.0, %v3052
      %v3115 = vsel %vm3083, 0.0, %v3068
      %v3116 = vsel %vm2288, 1, 0
      %v3117 = vsel %vm2289, 1, 0
      %v3118 = vsel %vm2290, 1, 0
      %v3119 = vsel %vm2291, 1, 0
      %v3120 = vsel %vm2292, 1, 0
      %v3121 = vsel %vm2293, 1, 0
      %v3122 = vsel %vm2294, 1, 0
      %v3123 = vsel %vm2295, 1, 0
      %vm3124 = vcmp.eq.s32.totalorder %v3116, 1
      %vm3125 = vcmp.eq.s32.totalorder %v3117, 1
      %vm3126 = vcmp.eq.s32.totalorder %v3118, 1
      %vm3127 = vcmp.eq.s32.totalorder %v3119, 1
      %vm3128 = vcmp.eq.s32.totalorder %v3120, 1
      %vm3129 = vcmp.eq.s32.totalorder %v3121, 1
      %vm3130 = vcmp.eq.s32.totalorder %v3122, 1
      %vm3131 = vcmp.eq.s32.totalorder %v3123, 1
      %v3132 = vsel %vm3124, %v3114, 0.0
      %v3133 = vsel %vm3125, %v3084, 0.0
      %v3134 = vsel %vm3126, %v3085, 0.0
      %v3135 = vsel %vm3127, %v3086, 0.0
      %v3136 = vsel %vm3128, %v3087, 0.0
      %v3137 = vsel %vm3129, %v3088, 0.0
      %v3138 = vsel %vm3130, %v3089, 0.0
      %v3139 = vsel %vm3131, %v3090, 0.0
      %v3140 = vsel %vm3124, %v3115, 0.0
      %v3141 = vsel %vm3125, %v3091, 0.0
      %v3142 = vsel %vm3126, %v3092, 0.0
      %v3143 = vsel %vm3127, %v3093, 0.0
      %v3144 = vsel %vm3128, %v3094, 0.0
      %v3145 = vsel %vm3129, %v3095, 0.0
      %v3146 = vsel %vm3130, %v3096, 0.0
      %v3147 = vsel %vm3131, %v3097, 0.0
      %s3148 = scalar_lea.vmem %s5, 16
      %v3149 = vld [vmem:[%s3148] sm:$0xff]
      %v3151 = vsel %vm534, %v3149, 0
      %3153 = vmatprep.subr.mxu0 %v3133
      %3154 = vmatpush1.msra.mxu0 %v3132
      %3155 = vmatprep.subr.mxu0 %v3141
      %3156 = vmatpush1.msra.mxu0 %v3140
      %3157 = vmatprep.subr.mxu0 0.0
      %3158 = vmatpush1.msra.mxu0 0.0
      %3159 = vmatprep.subr.mxu0 0.0
      %3160 = vmatpush1.msra.mxu0 0.0
      %3161 = vmatprep.subr.mxu0 0.0
      %3162 = vmatpush1.msra.mxu0 0.0
      %3163 = vmatprep.subr.mxu0 0.0
      %3164 = vmatpush1.msra.mxu0 0.0
      %3165 = vmatprep.subr.mxu0 0.0
      %3166 = vmatpush1.msra.mxu0 0.0
      %3167 = vmatprep.subr.mxu0 0.0
      %3168 = vmatpush1.msra.mxu0 0.0
      %3169 = vmatprep.subr.mxu0 0.0
      %3170 = vmatpush1.msra.mxu0 0.0
      %3171 = vmatprep.subr.mxu0 0.0
      %3172 = vmatpush1.msra.mxu0 0.0
      %3173 = vmatprep.subr.mxu0 0.0
      %3174 = vmatpush1.msra.mxu0 0.0
      %3175 = vmatprep.subr.mxu0 0.0
      %3176 = vmatpush1.msra.mxu0 0.0
      %3177 = vmatprep.subr.mxu0 0.0
      %3178 = vmatpush1.msra.mxu0 0.0
      %3179 = vmatprep.subr.mxu0 0.0
      %3180 = vmatpush1.msra.mxu0 0.0
      %3181 = vmatprep.subr.mxu0 0.0
      %3182 = vmatpush1.msra.mxu0 0.0
      %3183 = vmatprep.subr.mxu0 0.0
      %3184 = vmatpush1.msra.mxu0 0.0
      %3185 = vmatprep.subr.mxu0 0.0
      %3186 = vmatpush1.msra.mxu0 0.0
      %3187 = vmatprep.subr.mxu0 0.0
      %3188 = vmatpush1.msra.mxu0 0.0
      %3189 = vmatprep.subr.mxu0 0.0
      %3190 = vmatpush1.msra.mxu0 0.0
      %3191 = vmatprep.subr.mxu0 0.0
      %3192 = vmatpush1.msra.mxu0 0.0
      %3193 = vmatprep.subr.mxu0 0.0
      %3194 = vmatpush1.msra.mxu0 0.0
      %3195 = vmatprep.subr.mxu0 0.0
      %3196 = vmatpush1.msra.mxu0 0.0
      %3197 = vmatprep.subr.mxu0 0.0
      %3198 = vmatpush1.msra.mxu0 0.0
      %3199 = vmatprep.subr.mxu0 0.0
      %3200 = vmatpush1.msra.mxu0 0.0
      %3201 = vmatprep.subr.mxu0 0.0
      %3202 = vmatpush1.msra.mxu0 0.0
      %3203 = vmatprep.subr.mxu0 0.0
      %3204 = vmatpush1.msra.mxu0 0.0
      %3205 = vmatprep.subr.mxu0 0.0
      %3206 = vmatpush1.msra.mxu0 0.0
      %3207 = vmatprep.subr.mxu0 0.0
      %3208 = vmatpush1.msra.mxu0 0.0
      %3209 = vmatprep.subr.mxu0 0.0
      %3210 = vmatpush1.msra.mxu0 0.0
      %3211 = vmatprep.subr.mxu0 0.0
      %3212 = vmatpush1.msra.mxu0 0.0
      %3213 = vmatprep.subr.mxu0 0.0
      %3214 = vmatpush1.msra.mxu0 0.0
      %3215 = vmatprep.subr.mxu0 0.0
      %3216 = vmatpush1.msra.mxu0 0.0
      %3217 = vmatprep.mubr.f32.mxu0 0.0
      %3218 = vmatmul.mubr.f32.gmra.mrb[0].mxu0 %v3151
      %v3219 = vpop.f32.mrb[0].mxu0
      %v3220 = vadd.f32 0.0, %v3219
      %v3221 = vpop.f32.mrb[0].mxu0
      %v3222 = vadd.f32 0.0, %v3221
      %3223 = vdwg.mxu0
      %3224 = vmatprep.subr.mxu0 %v3135
      %3225 = vmatpush1.msra.mxu0 %v3134
      %3226 = vmatprep.subr.mxu0 %v3143
      %3227 = vmatpush1.msra.mxu0 %v3142
      %3228 = vmatprep.subr.mxu0 0.0
      %3229 = vmatpush1.msra.mxu0 0.0
      %3230 = vmatprep.subr.mxu0 0.0
      %3231 = vmatpush1.msra.mxu0 0.0
      %3232 = vmatprep.subr.mxu0 0.0
      %3233 = vmatpush1.msra.mxu0 0.0
      %3234 = vmatprep.subr.mxu0 0.0
      %3235 = vmatpush1.msra.mxu0 0.0
      %3236 = vmatprep.subr.mxu0 0.0
      %3237 = vmatpush1.msra.mxu0 0.0
      %3238 = vmatprep.subr.mxu0 0.0
      %3239 = vmatpush1.msra.mxu0 0.0
      %3240 = vmatprep.subr.mxu0 0.0
      %3241 = vmatpush1.msra.mxu0 0.0
      %3242 = vmatprep.subr.mxu0 0.0
      %3243 = vmatpush1.msra.mxu0 0.0
      %3244 = vmatprep.subr.mxu0 0.0
      %3245 = vmatpush1.msra.mxu0 0.0
      %3246 = vmatprep.subr.mxu0 0.0
      %3247 = vmatpush1.msra.mxu0 0.0
      %3248 = vmatprep.subr.mxu0 0.0
      %3249 = vmatpush1.msra.mxu0 0.0
      %3250 = vmatprep.subr.mxu0 0.0
      %3251 = vmatpush1.msra.mxu0 0.0
      %3252 = vmatprep.subr.mxu0 0.0
      %3253 = vmatpush1.msra.mxu0 0.0
      %3254 = vmatprep.subr.mxu0 0.0
      %3255 = vmatpush1.msra.mxu0 0.0
      %3256 = vmatprep.subr.mxu0 0.0
      %3257 = vmatpush1.msra.mxu0 0.0
      %3258 = vmatprep.subr.mxu0 0.0
      %3259 = vmatpush1.msra.mxu0 0.0
      %3260 = vmatprep.subr.mxu0 0.0
      %3261 = vmatpush1.msra.mxu0 0.0
      %3262 = vmatprep.subr.mxu0 0.0
      %3263 = vmatpush1.msra.mxu0 0.0
      %3264 = vmatprep.subr.mxu0 0.0
      %3265 = vmatpush1.msra.mxu0 0.0
      %3266 = vmatprep.subr.mxu0 0.0
      %3267 = vmatpush1.msra.mxu0 0.0
      %3268 = vmatprep.subr.mxu0 0.0
      %3269 = vmatpush1.msra.mxu0 0.0
      %3270 = vmatprep.subr.mxu0 0.0
      %3271 = vmatpush1.msra.mxu0 0.0
      %3272 = vmatprep.subr.mxu0 0.0
      %3273 = vmatpush1.msra.mxu0 0.0
      %3274 = vmatprep.subr.mxu0 0.0
      %3275 = vmatpush1.msra.mxu0 0.0
      %3276 = vmatprep.subr.mxu0 0.0
      %3277 = vmatpush1.msra.mxu0 0.0
      %3278 = vmatprep.subr.mxu0 0.0
      %3279 = vmatpush1.msra.mxu0 0.0
      %3280 = vmatprep.subr.mxu0 0.0
      %3281 = vmatpush1.msra.mxu0 0.0
      %3282 = vmatprep.subr.mxu0 0.0
      %3283 = vmatpush1.msra.mxu0 0.0
      %3284 = vmatprep.subr.mxu0 0.0
      %3285 = vmatpush1.msra.mxu0 0.0
      %3286 = vmatprep.subr.mxu0 0.0
      %3287 = vmatpush1.msra.mxu0 0.0
      %3288 = vmatprep.mubr.f32.mxu0 0.0
      %3289 = vmatmul.mubr.f32.gmra.mrb[0].mxu0 %v3151
      %v3290 = vpop.f32.mrb[0].mxu0
      %v3291 = vadd.f32 0.0, %v3290
      %v3292 = vpop.f32.mrb[0].mxu0
      %v3293 = vadd.f32 0.0, %v3292
      %3294 = vdwg.mxu0
      %3295 = vmatprep.subr.mxu0 %v3137
      %3296 = vmatpush1.msra.mxu0 %v3136
      %3297 = vmatprep.subr.mxu0 %v3145
      %3298 = vmatpush1.msra.mxu0 %v3144
      %3299 = vmatprep.subr.mxu0 0.0
      %3300 = vmatpush1.msra.mxu0 0.0
      %3301 = vmatprep.subr.mxu0 0.0
      %3302 = vmatpush1.msra.mxu0 0.0
      %3303 = vmatprep.subr.mxu0 0.0
      %3304 = vmatpush1.msra.mxu0 0.0
      %3305 = vmatprep.subr.mxu0 0.0
      %3306 = vmatpush1.msra.mxu0 0.0
      %3307 = vmatprep.subr.mxu0 0.0
      %3308 = vmatpush1.msra.mxu0 0.0
      %3309 = vmatprep.subr.mxu0 0.0
      %3310 = vmatpush1.msra.mxu0 0.0
      %3311 = vmatprep.subr.mxu0 0.0
      %3312 = vmatpush1.msra.mxu0 0.0
      %3313 = vmatprep.subr.mxu0 0.0
      %3314 = vmatpush1.msra.mxu0 0.0
      %3315 = vmatprep.subr.mxu0 0.0
      %3316 = vmatpush1.msra.mxu0 0.0
      %3317 = vmatprep.subr.mxu0 0.0
      %3318 = vmatpush1.msra.mxu0 0.0
      %3319 = vmatprep.subr.mxu0 0.0
      %3320 = vmatpush1.msra.mxu0 0.0
      %3321 = vmatprep.subr.mxu0 0.0
      %3322 = vmatpush1.msra.mxu0 0.0
      %3323 = vmatprep.subr.mxu0 0.0
      %3324 = vmatpush1.msra.mxu0 0.0
      %3325 = vmatprep.subr.mxu0 0.0
      %3326 = vmatpush1.msra.mxu0 0.0
      %3327 = vmatprep.subr.mxu0 0.0
      %3328 = vmatpush1.msra.mxu0 0.0
      %3329 = vmatprep.subr.mxu0 0.0
      %3330 = vmatpush1.msra.mxu0 0.0
      %3331 = vmatprep.subr.mxu0 0.0
      %3332 = vmatpush1.msra.mxu0 0.0
      %3333 = vmatprep.subr.mxu0 0.0
      %3334 = vmatpush1.msra.mxu0 0.0
      %3335 = vmatprep.subr.mxu0 0.0
      %3336 = vmatpush1.msra.mxu0 0.0
      %3337 = vmatprep.subr.mxu0 0.0
      %3338 = vmatpush1.msra.mxu0 0.0
      %3339 = vmatprep.subr.mxu0 0.0
      %3340 = vmatpush1.msra.mxu0 0.0
      %3341 = vmatprep.subr.mxu0 0.0
      %3342 = vmatpush1.msra.mxu0 0.0
      %3343 = vmatprep.subr.mxu0 0.0
      %3344 = vmatpush1.msra.mxu0 0.0
      %3345 = vmatprep.subr.mxu0 0.0
      %3346 = vmatpush1.msra.mxu0 0.0
      %3347 = vmatprep.subr.mxu0 0.0
      %3348 = vmatpush1.msra.mxu0 0.0
      %3349 = vmatprep.subr.mxu0 0.0
      %3350 = vmatpush1.msra.mxu0 0.0
      %3351 = vmatprep.subr.mxu0 0.0
      %3352 = vmatpush1.msra.mxu0 0.0
      %3353 = vmatprep.subr.mxu0 0.0
      %3354 = vmatpush1.msra.mxu0 0.0
      %3355 = vmatprep.subr.mxu0 0.0
      %3356 = vmatpush1.msra.mxu0 0.0
      %3357 = vmatprep.subr.mxu0 0.0
      %3358 = vmatpush1.msra.mxu0 0.0
      %3359 = vmatprep.mubr.f32.mxu0 0.0
      %3360 = vmatmul.mubr.f32.gmra.mrb[0].mxu0 %v3151
      %v3361 = vpop.f32.mrb[0].mxu0
      %v3362 = vadd.f32 0.0, %v3361
      %v3363 = vpop.f32.mrb[0].mxu0
      %v3364 = vadd.f32 0.0, %v3363
      %3365 = vdwg.mxu0
      %3366 = vmatprep.subr.mxu0 %v3139
      %3367 = vmatpush1.msra.mxu0 %v3138
      %3368 = vmatprep.subr.mxu0 %v3147
      %3369 = vmatpush1.msra.mxu0 %v3146
      %3370 = vmatprep.subr.mxu0 0.0
      %3371 = vmatpush1.msra.mxu0 0.0
      %3372 = vmatprep.subr.mxu0 0.0
      %3373 = vmatpush1.msra.mxu0 0.0
      %3374 = vmatprep.subr.mxu0 0.0
      %3375 = vmatpush1.msra.mxu0 0.0
      %3376 = vmatprep.subr.mxu0 0.0
      %3377 = vmatpush1.msra.mxu0 0.0
      %3378 = vmatprep.subr.mxu0 0.0
      %3379 = vmatpush1.msra.mxu0 0.0
      %3380 = vmatprep.subr.mxu0 0.0
      %3381 = vmatpush1.msra.mxu0 0.0
      %3382 = vmatprep.subr.mxu0 0.0
      %3383 = vmatpush1.msra.mxu0 0.0
      %3384 = vmatprep.subr.mxu0 0.0
      %3385 = vmatpush1.msra.mxu0 0.0
      %3386 = vmatprep.subr.mxu0 0.0
      %3387 = vmatpush1.msra.mxu0 0.0
      %3388 = vmatprep.subr.mxu0 0.0
      %3389 = vmatpush1.msra.mxu0 0.0
      %3390 = vmatprep.subr.mxu0 0.0
      %3391 = vmatpush1.msra.mxu0 0.0
      %3392 = vmatprep.subr.mxu0 0.0
      %3393 = vmatpush1.msra.mxu0 0.0
      %3394 = vmatprep.subr.mxu0 0.0
      %3395 = vmatpush1.msra.mxu0 0.0
      %3396 = vmatprep.subr.mxu0 0.0
      %3397 = vmatpush1.msra.mxu0 0.0
      %3398 = vmatprep.subr.mxu0 0.0
      %3399 = vmatpush1.msra.mxu0 0.0
      %3400 = vmatprep.subr.mxu0 0.0
      %3401 = vmatpush1.msra.mxu0 0.0
      %3402 = vmatprep.subr.mxu0 0.0
      %3403 = vmatpush1.msra.mxu0 0.0
      %3404 = vmatprep.subr.mxu0 0.0
      %3405 = vmatpush1.msra.mxu0 0.0
      %3406 = vmatprep.subr.mxu0 0.0
      %3407 = vmatpush1.msra.mxu0 0.0
      %3408 = vmatprep.subr.mxu0 0.0
      %3409 = vmatpush1.msra.mxu0 0.0
      %3410 = vmatprep.subr.mxu0 0.0
      %3411 = vmatpush1.msra.mxu0 0.0
      %3412 = vmatprep.subr.mxu0 0.0
      %3413 = vmatpush1.msra.mxu0 0.0
      %3414 = vmatprep.subr.mxu0 0.0
      %3415 = vmatpush1.msra.mxu0 0.0
      %3416 = vmatprep.subr.mxu0 0.0
      %3417 = vmatpush1.msra.mxu0 0.0
      %3418 = vmatprep.subr.mxu0 0.0
      %3419 = vmatpush1.msra.mxu0 0.0
      %3420 = vmatprep.subr.mxu0 0.0
      %3421 = vmatpush1.msra.mxu0 0.0
      %3422 = vmatprep.subr.mxu0 0.0
      %3423 = vmatpush1.msra.mxu0 0.0
      %3424 = vmatprep.subr.mxu0 0.0
      %3425 = vmatpush1.msra.mxu0 0.0
      %3426 = vmatprep.subr.mxu0 0.0
      %3427 = vmatpush1.msra.mxu0 0.0
      %3428 = vmatprep.subr.mxu0 0.0
      %3429 = vmatpush1.msra.mxu0 0.0
      %3430 = vmatprep.mubr.f32.mxu0 0.0
      %3431 = vmatmul.mubr.f32.gmra.mrb[0].mxu0 %v3151
      %v3432 = vpop.f32.mrb[0].mxu0
      %v3433 = vadd.f32 0.0, %v3432
      %v3434 = vpop.f32.mrb[0].mxu0
      %v3435 = vadd.f32 0.0, %v3434
      %3436 = vdwg.mxu0
      %v3437 = vadd.f32 %v2834, %v3220
      %v3438 = vadd.f32 %v2836, %v3222
      %v3439 = vadd.f32 %v2905, %v3291
      %v3440 = vadd.f32 %v2907, %v3293
      %v3441 = vadd.f32 %v2976, %v3362
      %v3442 = vadd.f32 %v2978, %v3364
      %v3443 = vadd.f32 %v3047, %v3433
      %v3444 = vadd.f32 %v3049, %v3435
      %3445 = vrot.lane.b32.xlu0 %v1937, 1
      %v3446 = vpop.permute.xlu0 %3445
      %3447 = vrot.lane.b32.xlu0 %v1939, 1
      %v3448 = vpop.permute.xlu0 %3447
      %3449 = vrot.lane.b32.xlu0 %v2014, 1
      %v3450 = vpop.permute.xlu0 %3449
      %3451 = vrot.lane.b32.xlu0 %v2016, 1
      %v3452 = vpop.permute.xlu0 %3451
      %3453 = vrot.lane.b32.xlu0 %v2091, 1
      %v3454 = vpop.permute.xlu0 %3453
      %3455 = vrot.lane.b32.xlu0 %v2093, 1
      %v3456 = vpop.permute.xlu0 %3455
      %3457 = vrot.lane.b32.xlu0 %v2168, 1
      %v3458 = vpop.permute.xlu0 %3457
      %3459 = vrot.lane.b32.xlu0 %v2170, 1
      %v3460 = vpop.permute.xlu0 %3459
      %3461 = vrot.lane.b32.xlu0 %v1943, 1
      %v3462 = vpop.permute.xlu0 %3461
      %3463 = vrot.lane.b32.xlu0 %v1945, 1
      %v3464 = vpop.permute.xlu0 %3463
      %3465 = vrot.lane.b32.xlu0 %v2020, 1
      %v3466 = vpop.permute.xlu0 %3465
      %3467 = vrot.lane.b32.xlu0 %v2022, 1
      %v3468 = vpop.permute.xlu0 %3467
      %3469 = vrot.lane.b32.xlu0 %v2097, 1
      %v3470 = vpop.permute.xlu0 %3469
      %3471 = vrot.lane.b32.xlu0 %v2099, 1
      %v3472 = vpop.permute.xlu0 %3471
      %3473 = vrot.lane.b32.xlu0 %v2174, 1
      %v3474 = vpop.permute.xlu0 %3473
      %3475 = vrot.lane.b32.xlu0 %v2176, 1
      %v3476 = vpop.permute.xlu0 %3475
      %v3477 = vsel %vm835, %v3446, %v3448
      %v3478 = vsel %vm835, %v3448, %v3450
      %v3479 = vsel %vm835, %v3450, %v3452
      %v3480 = vsel %vm835, %v3452, %v3454
      %v3481 = vsel %vm835, %v3454, %v3456
      %v3482 = vsel %vm835, %v3456, %v3458
      %v3483 = vsel %vm835, %v3458, %v3460
      %v3484 = vsel %vm835, %v3462, %v3464
      %v3485 = vsel %vm835, %v3464, %v3466
      %v3486 = vsel %vm835, %v3466, %v3468
      %v3487 = vsel %vm835, %v3468, %v3470
      %v3488 = vsel %vm835, %v3470, %v3472
      %v3489 = vsel %vm835, %v3472, %v3474
      %v3490 = vsel %vm835, %v3474, %v3476
      %v3507 = vsel %vm835, 0.0, %v3446
      %v3508 = vsel %vm835, 0.0, %v3462
      %v3509 = vsel %vm2385, %v3507, 0.0
      %v3510 = vsel %vm2386, %v3477, 0.0
      %v3511 = vsel %vm2387, %v3478, 0.0
      %v3512 = vsel %vm2388, %v3479, 0.0
      %v3513 = vsel %vm2389, %v3480, 0.0
      %v3514 = vsel %vm2390, %v3481, 0.0
      %v3515 = vsel %vm2391, %v3482, 0.0
      %v3516 = vsel %vm2392, %v3483, 0.0
      %v3517 = vsel %vm2385, %v3508, 0.0
      %v3518 = vsel %vm2386, %v3484, 0.0
      %v3519 = vsel %vm2387, %v3485, 0.0
      %v3520 = vsel %vm2388, %v3486, 0.0
      %v3521 = vsel %vm2389, %v3487, 0.0
      %v3522 = vsel %vm2390, %v3488, 0.0
      %v3523 = vsel %vm2391, %v3489, 0.0
      %v3524 = vsel %vm2392, %v3490, 0.0
      %s3525 = scalar_lea.vmem %s5, 24
      %v3526 = vld [vmem:[%s3525] sm:$0xff]
      %v3528 = vsel %vm534, %v3526, 0
      %3530 = vmatprep.subr.mxu0 %v3510
      %3531 = vmatpush1.msra.mxu0 %v3509
      %3532 = vmatprep.subr.mxu0 %v3518
      %3533 = vmatpush1.msra.mxu0 %v3517
      %3534 = vmatprep.subr.mxu0 0.0
      %3535 = vmatpush1.msra.mxu0 0.0
      %3536 = vmatprep.subr.mxu0 0.0
      %3537 = vmatpush1.msra.mxu0 0.0
      %3538 = vmatprep.subr.mxu0 0.0
      %3539 = vmatpush1.msra.mxu0 0.0
      %3540 = vmatprep.subr.mxu0 0.0
      %3541 = vmatpush1.msra.mxu0 0.0
      %3542 = vmatprep.subr.mxu0 0.0
      %3543 = vmatpush1.msra.mxu0 0.0
      %3544 = vmatprep.subr.mxu0 0.0
      %3545 = vmatpush1.msra.mxu0 0.0
      %3546 = vmatprep.subr.mxu0 0.0
      %3547 = vmatpush1.msra.mxu0 0.0
      %3548 = vmatprep.subr.mxu0 0.0
      %3549 = vmatpush1.msra.mxu0 0.0
      %3550 = vmatprep.subr.mxu0 0.0
      %3551 = vmatpush1.msra.mxu0 0.0
      %3552 = vmatprep.subr.mxu0 0.0
      %3553 = vmatpush1.msra.mxu0 0.0
      %3554 = vmatprep.subr.mxu0 0.0
      %3555 = vmatpush1.msra.mxu0 0.0
      %3556 = vmatprep.subr.mxu0 0.0
      %3557 = vmatpush1.msra.mxu0 0.0
      %3558 = vmatprep.subr.mxu0 0.0
      %3559 = vmatpush1.msra.mxu0 0.0
      %3560 = vmatprep.subr.mxu0 0.0
      %3561 = vmatpush1.msra.mxu0 0.0
      %3562 = vmatprep.subr.mxu0 0.0
      %3563 = vmatpush1.msra.mxu0 0.0
      %3564 = vmatprep.subr.mxu0 0.0
      %3565 = vmatpush1.msra.mxu0 0.0
      %3566 = vmatprep.subr.mxu0 0.0
      %3567 = vmatpush1.msra.mxu0 0.0
      %3568 = vmatprep.subr.mxu0 0.0
      %3569 = vmatpush1.msra.mxu0 0.0
      %3570 = vmatprep.subr.mxu0 0.0
      %3571 = vmatpush1.msra.mxu0 0.0
      %3572 = vmatprep.subr.mxu0 0.0
      %3573 = vmatpush1.msra.mxu0 0.0
      %3574 = vmatprep.subr.mxu0 0.0
      %3575 = vmatpush1.msra.mxu0 0.0
      %3576 = vmatprep.subr.mxu0 0.0
      %3577 = vmatpush1.msra.mxu0 0.0
      %3578 = vmatprep.subr.mxu0 0.0
      %3579 = vmatpush1.msra.mxu0 0.0
      %3580 = vmatprep.subr.mxu0 0.0
      %3581 = vmatpush1.msra.mxu0 0.0
      %3582 = vmatprep.subr.mxu0 0.0
      %3583 = vmatpush1.msra.mxu0 0.0
      %3584 = vmatprep.subr.mxu0 0.0
      %3585 = vmatpush1.msra.mxu0 0.0
      %3586 = vmatprep.subr.mxu0 0.0
      %3587 = vmatpush1.msra.mxu0 0.0
      %3588 = vmatprep.subr.mxu0 0.0
      %3589 = vmatpush1.msra.mxu0 0.0
      %3590 = vmatprep.subr.mxu0 0.0
      %3591 = vmatpush1.msra.mxu0 0.0
      %3592 = vmatprep.subr.mxu0 0.0
      %3593 = vmatpush1.msra.mxu0 0.0
      %3594 = vmatprep.mubr.f32.mxu0 0.0
      %3595 = vmatmul.mubr.f32.gmra.mrb[0].mxu0 %v3528
      %v3596 = vpop.f32.mrb[0].mxu0
      %v3597 = vadd.f32 0.0, %v3596
      %v3598 = vpop.f32.mrb[0].mxu0
      %v3599 = vadd.f32 0.0, %v3598
      %3600 = vdwg.mxu0
      %3601 = vmatprep.subr.mxu0 %v3512
      %3602 = vmatpush1.msra.mxu0 %v3511
      %3603 = vmatprep.subr.mxu0 %v3520
      %3604 = vmatpush1.msra.mxu0 %v3519
      %3605 = vmatprep.subr.mxu0 0.0
      %3606 = vmatpush1.msra.mxu0 0.0
      %3607 = vmatprep.subr.mxu0 0.0
      %3608 = vmatpush1.msra.mxu0 0.0
      %3609 = vmatprep.subr.mxu0 0.0
      %3610 = vmatpush1.msra.mxu0 0.0
      %3611 = vmatprep.subr.mxu0 0.0
      %3612 = vmatpush1.msra.mxu0 0.0
      %3613 = vmatprep.subr.mxu0 0.0
      %3614 = vmatpush1.msra.mxu0 0.0
      %3615 = vmatprep.subr.mxu0 0.0
      %3616 = vmatpush1.msra.mxu0 0.0
      %3617 = vmatprep.subr.mxu0 0.0
      %3618 = vmatpush1.msra.mxu0 0.0
      %3619 = vmatprep.subr.mxu0 0.0
      %3620 = vmatpush1.msra.mxu0 0.0
      %3621 = vmatprep.subr.mxu0 0.0
      %3622 = vmatpush1.msra.mxu0 0.0
      %3623 = vmatprep.subr.mxu0 0.0
      %3624 = vmatpush1.msra.mxu0 0.0
      %3625 = vmatprep.subr.mxu0 0.0
      %3626 = vmatpush1.msra.mxu0 0.0
      %3627 = vmatprep.subr.mxu0 0.0
      %3628 = vmatpush1.msra.mxu0 0.0
      %3629 = vmatprep.subr.mxu0 0.0
      %3630 = vmatpush1.msra.mxu0 0.0
      %3631 = vmatprep.subr.mxu0 0.0
      %3632 = vmatpush1.msra.mxu0 0.0
      %3633 = vmatprep.subr.mxu0 0.0
      %3634 = vmatpush1.msra.mxu0 0.0
      %3635 = vmatprep.subr.mxu0 0.0
      %3636 = vmatpush1.msra.mxu0 0.0
      %3637 = vmatprep.subr.mxu0 0.0
      %3638 = vmatpush1.msra.mxu0 0.0
      %3639 = vmatprep.subr.mxu0 0.0
      %3640 = vmatpush1.msra.mxu0 0.0
      %3641 = vmatprep.subr.mxu0 0.0
      %3642 = vmatpush1.msra.mxu0 0.0
      %3643 = vmatprep.subr.mxu0 0.0
      %3644 = vmatpush1.msra.mxu0 0.0
      %3645 = vmatprep.subr.mxu0 0.0
      %3646 = vmatpush1.msra.mxu0 0.0
      %3647 = vmatprep.subr.mxu0 0.0
      %3648 = vmatpush1.msra.mxu0 0.0
      %3649 = vmatprep.subr.mxu0 0.0
      %3650 = vmatpush1.msra.mxu0 0.0
      %3651 = vmatprep.subr.mxu0 0.0
      %3652 = vmatpush1.msra.mxu0 0.0
      %3653 = vmatprep.subr.mxu0 0.0
      %3654 = vmatpush1.msra.mxu0 0.0
      %3655 = vmatprep.subr.mxu0 0.0
      %3656 = vmatpush1.msra.mxu0 0.0
      %3657 = vmatprep.subr.mxu0 0.0
      %3658 = vmatpush1.msra.mxu0 0.0
      %3659 = vmatprep.subr.mxu0 0.0
      %3660 = vmatpush1.msra.mxu0 0.0
      %3661 = vmatprep.subr.mxu0 0.0
      %3662 = vmatpush1.msra.mxu0 0.0
      %3663 = vmatprep.subr.mxu0 0.0
      %3664 = vmatpush1.msra.mxu0 0.0
      %3665 = vmatprep.mubr.f32.mxu0 0.0
      %3666 = vmatmul.mubr.f32.gmra.mrb[0].mxu0 %v3528
      %v3667 = vpop.f32.mrb[0].mxu0
      %v3668 = vadd.f32 0.0, %v3667
      %v3669 = vpop.f32.mrb[0].mxu0
      %v3670 = vadd.f32 0.0, %v3669
      %3671 = vdwg.mxu0
      %3672 = vmatprep.subr.mxu0 %v3514
      %3673 = vmatpush1.msra.mxu0 %v3513
      %3674 = vmatprep.subr.mxu0 %v3522
      %3675 = vmatpush1.msra.mxu0 %v3521
      %3676 = vmatprep.subr.mxu0 0.0
      %3677 = vmatpush1.msra.mxu0 0.0
      %3678 = vmatprep.subr.mxu0 0.0
      %3679 = vmatpush1.msra.mxu0 0.0
      %3680 = vmatprep.subr.mxu0 0.0
      %3681 = vmatpush1.msra.mxu0 0.0
      %3682 = vmatprep.subr.mxu0 0.0
      %3683 = vmatpush1.msra.mxu0 0.0
      %3684 = vmatprep.subr.mxu0 0.0
      %3685 = vmatpush1.msra.mxu0 0.0
      %3686 = vmatprep.subr.mxu0 0.0
      %3687 = vmatpush1.msra.mxu0 0.0
      %3688 = vmatprep.subr.mxu0 0.0
      %3689 = vmatpush1.msra.mxu0 0.0
      %3690 = vmatprep.subr.mxu0 0.0
      %3691 = vmatpush1.msra.mxu0 0.0
      %3692 = vmatprep.subr.mxu0 0.0
      %3693 = vmatpush1.msra.mxu0 0.0
      %3694 = vmatprep.subr.mxu0 0.0
      %3695 = vmatpush1.msra.mxu0 0.0
      %3696 = vmatprep.subr.mxu0 0.0
      %3697 = vmatpush1.msra.mxu0 0.0
      %3698 = vmatprep.subr.mxu0 0.0
      %3699 = vmatpush1.msra.mxu0 0.0
      %3700 = vmatprep.subr.mxu0 0.0
      %3701 = vmatpush1.msra.mxu0 0.0
      %3702 = vmatprep.subr.mxu0 0.0
      %3703 = vmatpush1.msra.mxu0 0.0
      %3704 = vmatprep.subr.mxu0 0.0
      %3705 = vmatpush1.msra.mxu0 0.0
      %3706 = vmatprep.subr.mxu0 0.0
      %3707 = vmatpush1.msra.mxu0 0.0
      %3708 = vmatprep.subr.mxu0 0.0
      %3709 = vmatpush1.msra.mxu0 0.0
      %3710 = vmatprep.subr.mxu0 0.0
      %3711 = vmatpush1.msra.mxu0 0.0
      %3712 = vmatprep.subr.mxu0 0.0
      %3713 = vmatpush1.msra.mxu0 0.0
      %3714 = vmatprep.subr.mxu0 0.0
      %3715 = vmatpush1.msra.mxu0 0.0
      %3716 = vmatprep.subr.mxu0 0.0
      %3717 = vmatpush1.msra.mxu0 0.0
      %3718 = vmatprep.subr.mxu0 0.0
      %3719 = vmatpush1.msra.mxu0 0.0
      %3720 = vmatprep.subr.mxu0 0.0
      %3721 = vmatpush1.msra.mxu0 0.0
      %3722 = vmatprep.subr.mxu0 0.0
      %3723 = vmatpush1.msra.mxu0 0.0
      %3724 = vmatprep.subr.mxu0 0.0
      %3725 = vmatpush1.msra.mxu0 0.0
      %3726 = vmatprep.subr.mxu0 0.0
      %3727 = vmatpush1.msra.mxu0 0.0
      %3728 = vmatprep.subr.mxu0 0.0
      %3729 = vmatpush1.msra.mxu0 0.0
      %3730 = vmatprep.subr.mxu0 0.0
      %3731 = vmatpush1.msra.mxu0 0.0
      %3732 = vmatprep.subr.mxu0 0.0
      %3733 = vmatpush1.msra.mxu0 0.0
      %3734 = vmatprep.subr.mxu0 0.0
      %3735 = vmatpush1.msra.mxu0 0.0
      %3736 = vmatprep.mubr.f32.mxu0 0.0
      %3737 = vmatmul.mubr.f32.gmra.mrb[0].mxu0 %v3528
      %v3738 = vpop.f32.mrb[0].mxu0
      %v3739 = vadd.f32 0.0, %v3738
      %v3740 = vpop.f32.mrb[0].mxu0
      %v3741 = vadd.f32 0.0, %v3740
      %3742 = vdwg.mxu0
      %3743 = vmatprep.subr.mxu0 %v3516
      %3744 = vmatpush1.msra.mxu0 %v3515
      %3745 = vmatprep.subr.mxu0 %v3524
      %3746 = vmatpush1.msra.mxu0 %v3523
      %3747 = vmatprep.subr.mxu0 0.0
      %3748 = vmatpush1.msra.mxu0 0.0
      %3749 = vmatprep.subr.mxu0 0.0
      %3750 = vmatpush1.msra.mxu0 0.0
      %3751 = vmatprep.subr.mxu0 0.0
      %3752 = vmatpush1.msra.mxu0 0.0
      %3753 = vmatprep.subr.mxu0 0.0
      %3754 = vmatpush1.msra.mxu0 0.0
      %3755 = vmatprep.subr.mxu0 0.0
      %3756 = vmatpush1.msra.mxu0 0.0
      %3757 = vmatprep.subr.mxu0 0.0
      %3758 = vmatpush1.msra.mxu0 0.0
      %3759 = vmatprep.subr.mxu0 0.0
      %3760 = vmatpush1.msra.mxu0 0.0
      %3761 = vmatprep.subr.mxu0 0.0
      %3762 = vmatpush1.msra.mxu0 0.0
      %3763 = vmatprep.subr.mxu0 0.0
      %3764 = vmatpush1.msra.mxu0 0.0
      %3765 = vmatprep.subr.mxu0 0.0
      %3766 = vmatpush1.msra.mxu0 0.0
      %3767 = vmatprep.subr.mxu0 0.0
      %3768 = vmatpush1.msra.mxu0 0.0
      %3769 = vmatprep.subr.mxu0 0.0
      %3770 = vmatpush1.msra.mxu0 0.0
      %3771 = vmatprep.subr.mxu0 0.0
      %3772 = vmatpush1.msra.mxu0 0.0
      %3773 = vmatprep.subr.mxu0 0.0
      %3774 = vmatpush1.msra.mxu0 0.0
      %3775 = vmatprep.subr.mxu0 0.0
      %3776 = vmatpush1.msra.mxu0 0.0
      %3777 = vmatprep.subr.mxu0 0.0
      %3778 = vmatpush1.msra.mxu0 0.0
      %3779 = vmatprep.subr.mxu0 0.0
      %3780 = vmatpush1.msra.mxu0 0.0
      %3781 = vmatprep.subr.mxu0 0.0
      %3782 = vmatpush1.msra.mxu0 0.0
      %3783 = vmatprep.subr.mxu0 0.0
      %3784 = vmatpush1.msra.mxu0 0.0
      %3785 = vmatprep.subr.mxu0 0.0
      %3786 = vmatpush1.msra.mxu0 0.0
      %3787 = vmatprep.subr.mxu0 0.0
      %3788 = vmatpush1.msra.mxu0 0.0
      %3789 = vmatprep.subr.mxu0 0.0
      %3790 = vmatpush1.msra.mxu0 0.0
      %3791 = vmatprep.subr.mxu0 0.0
      %3792 = vmatpush1.msra.mxu0 0.0
      %3793 = vmatprep.subr.mxu0 0.0
      %3794 = vmatpush1.msra.mxu0 0.0
      %3795 = vmatprep.subr.mxu0 0.0
      %3796 = vmatpush1.msra.mxu0 0.0
      %3797 = vmatprep.subr.mxu0 0.0
      %3798 = vmatpush1.msra.mxu0 0.0
      %3799 = vmatprep.subr.mxu0 0.0
      %3800 = vmatpush1.msra.mxu0 0.0
      %3801 = vmatprep.subr.mxu0 0.0
      %3802 = vmatpush1.msra.mxu0 0.0
      %3803 = vmatprep.subr.mxu0 0.0
      %3804 = vmatpush1.msra.mxu0 0.0
      %3805 = vmatprep.subr.mxu0 0.0
      %3806 = vmatpush1.msra.mxu0 0.0
      %3807 = vmatprep.mubr.f32.mxu0 0.0
      %3808 = vmatmul.mubr.f32.gmra.mrb[0].mxu0 %v3528
      %v3809 = vpop.f32.mrb[0].mxu0
      %v3810 = vadd.f32 0.0, %v3809
      %v3811 = vpop.f32.mrb[0].mxu0
      %v3812 = vadd.f32 0.0, %v3811
      %3813 = vdwg.mxu0
      %v3814 = vadd.f32 %v3437, %v3597
      %v3815 = vadd.f32 %v3438, %v3599
      %v3816 = vadd.f32 %v3439, %v3668
      %v3817 = vadd.f32 %v3440, %v3670
      %v3818 = vadd.f32 %v3441, %v3739
      %v3819 = vadd.f32 %v3442, %v3741
      %v3820 = vadd.f32 %v3443, %v3810
      %v3821 = vadd.f32 %v3444, %v3812
      %s3822 = scalar_lea.vmem %s5, 32
      %v3823 = vld [vmem:[%s3822] sm:$0xff]
      %v3825 = vsel %vm534, %v3823, 0
      %3827 = vmatprep.subr.mxu0 %v1939
      %3828 = vmatpush1.msra.mxu0 %v1937
      %3829 = vmatprep.subr.mxu0 %v1945
      %3830 = vmatpush1.msra.mxu0 %v1943
      %3831 = vmatprep.subr.mxu0 0.0
      %3832 = vmatpush1.msra.mxu0 0.0
      %3833 = vmatprep.subr.mxu0 0.0
      %3834 = vmatpush1.msra.mxu0 0.0
      %3835 = vmatprep.subr.mxu0 0.0
      %3836 = vmatpush1.msra.mxu0 0.0
      %3837 = vmatprep.subr.mxu0 0.0
      %3838 = vmatpush1.msra.mxu0 0.0
      %3839 = vmatprep.subr.mxu0 0.0
      %3840 = vmatpush1.msra.mxu0 0.0
      %3841 = vmatprep.subr.mxu0 0.0
      %3842 = vmatpush1.msra.mxu0 0.0
      %3843 = vmatprep.subr.mxu0 0.0
      %3844 = vmatpush1.msra.mxu0 0.0
      %3845 = vmatprep.subr.mxu0 0.0
      %3846 = vmatpush1.msra.mxu0 0.0
      %3847 = vmatprep.subr.mxu0 0.0
      %3848 = vmatpush1.msra.mxu0 0.0
      %3849 = vmatprep.subr.mxu0 0.0
      %3850 = vmatpush1.msra.mxu0 0.0
      %3851 = vmatprep.subr.mxu0 0.0
      %3852 = vmatpush1.msra.mxu0 0.0
      %3853 = vmatprep.subr.mxu0 0.0
      %3854 = vmatpush1.msra.mxu0 0.0
      %3855 = vmatprep.subr.mxu0 0.0
      %3856 = vmatpush1.msra.mxu0 0.0
      %3857 = vmatprep.subr.mxu0 0.0
      %3858 = vmatpush1.msra.mxu0 0.0
      %3859 = vmatprep.subr.mxu0 0.0
      %3860 = vmatpush1.msra.mxu0 0.0
      %3861 = vmatprep.subr.mxu0 0.0
      %3862 = vmatpush1.msra.mxu0 0.0
      %3863 = vmatprep.subr.mxu0 0.0
      %3864 = vmatpush1.msra.mxu0 0.0
      %3865 = vmatprep.subr.mxu0 0.0
      %3866 = vmatpush1.msra.mxu0 0.0
      %3867 = vmatprep.subr.mxu0 0.0
      %3868 = vmatpush1.msra.mxu0 0.0
      %3869 = vmatprep.subr.mxu0 0.0
      %3870 = vmatpush1.msra.mxu0 0.0
      %3871 = vmatprep.subr.mxu0 0.0
      %3872 = vmatpush1.msra.mxu0 0.0
      %3873 = vmatprep.subr.mxu0 0.0
      %3874 = vmatpush1.msra.mxu0 0.0
      %3875 = vmatprep.subr.mxu0 0.0
      %3876 = vmatpush1.msra.mxu0 0.0
      %3877 = vmatprep.subr.mxu0 0.0
      %3878 = vmatpush1.msra.mxu0 0.0
      %3879 = vmatprep.subr.mxu0 0.0
      %3880 = vmatpush1.msra.mxu0 0.0
      %3881 = vmatprep.subr.mxu0 0.0
      %3882 = vmatpush1.msra.mxu0 0.0
      %3883 = vmatprep.subr.mxu0 0.0
      %3884 = vmatpush1.msra.mxu0 0.0
      %3885 = vmatprep.subr.mxu0 0.0
      %3886 = vmatpush1.msra.mxu0 0.0
      %3887 = vmatprep.subr.mxu0 0.0
      %3888 = vmatpush1.msra.mxu0 0.0
      %3889 = vmatprep.subr.mxu0 0.0
      %3890 = vmatpush1.msra.mxu0 0.0
      %3891 = vmatprep.mubr.f32.mxu0 0.0
      %3892 = vmatmul.mubr.f32.gmra.mrb[0].mxu0 %v3825
      %v3893 = vpop.f32.mrb[0].mxu0
      %v3894 = vadd.f32 0.0, %v3893
      %v3895 = vpop.f32.mrb[0].mxu0
      %v3896 = vadd.f32 0.0, %v3895
      %3897 = vdwg.mxu0
      %3898 = vmatprep.subr.mxu0 %v2016
      %3899 = vmatpush1.msra.mxu0 %v2014
      %3900 = vmatprep.subr.mxu0 %v2022
      %3901 = vmatpush1.msra.mxu0 %v2020
      %3902 = vmatprep.subr.mxu0 0.0
      %3903 = vmatpush1.msra.mxu0 0.0
      %3904 = vmatprep.subr.mxu0 0.0
      %3905 = vmatpush1.msra.mxu0 0.0
      %3906 = vmatprep.subr.mxu0 0.0
      %3907 = vmatpush1.msra.mxu0 0.0
      %3908 = vmatprep.subr.mxu0 0.0
      %3909 = vmatpush1.msra.mxu0 0.0
      %3910 = vmatprep.subr.mxu0 0.0
      %3911 = vmatpush1.msra.mxu0 0.0
      %3912 = vmatprep.subr.mxu0 0.0
      %3913 = vmatpush1.msra.mxu0 0.0
      %3914 = vmatprep.subr.mxu0 0.0
      %3915 = vmatpush1.msra.mxu0 0.0
      %3916 = vmatprep.subr.mxu0 0.0
      %3917 = vmatpush1.msra.mxu0 0.0
      %3918 = vmatprep.subr.mxu0 0.0
      %3919 = vmatpush1.msra.mxu0 0.0
      %3920 = vmatprep.subr.mxu0 0.0
      %3921 = vmatpush1.msra.mxu0 0.0
      %3922 = vmatprep.subr.mxu0 0.0
      %3923 = vmatpush1.msra.mxu0 0.0
      %3924 = vmatprep.subr.mxu0 0.0
      %3925 = vmatpush1.msra.mxu0 0.0
      %3926 = vmatprep.subr.mxu0 0.0
      %3927 = vmatpush1.msra.mxu0 0.0
      %3928 = vmatprep.subr.mxu0 0.0
      %3929 = vmatpush1.msra.mxu0 0.0
      %3930 = vmatprep.subr.mxu0 0.0
      %3931 = vmatpush1.msra.mxu0 0.0
      %3932 = vmatprep.subr.mxu0 0.0
      %3933 = vmatpush1.msra.mxu0 0.0
      %3934 = vmatprep.subr.mxu0 0.0
      %3935 = vmatpush1.msra.mxu0 0.0
      %3936 = vmatprep.subr.mxu0 0.0
      %3937 = vmatpush1.msra.mxu0 0.0
      %3938 = vmatprep.subr.mxu0 0.0
      %3939 = vmatpush1.msra.mxu0 0.0
      %3940 = vmatprep.subr.mxu0 0.0
      %3941 = vmatpush1.msra.mxu0 0.0
      %3942 = vmatprep.subr.mxu0 0.0
      %3943 = vmatpush1.msra.mxu0 0.0
      %3944 = vmatprep.subr.mxu0 0.0
      %3945 = vmatpush1.msra.mxu0 0.0
      %3946 = vmatprep.subr.mxu0 0.0
      %3947 = vmatpush1.msra.mxu0 0.0
      %3948 = vmatprep.subr.mxu0 0.0
      %3949 = vmatpush1.msra.mxu0 0.0
      %3950 = vmatprep.subr.mxu0 0.0
      %3951 = vmatpush1.msra.mxu0 0.0
      %3952 = vmatprep.subr.mxu0 0.0
      %3953 = vmatpush1.msra.mxu0 0.0
      %3954 = vmatprep.subr.mxu0 0.0
      %3955 = vmatpush1.msra.mxu0 0.0
      %3956 = vmatprep.subr.mxu0 0.0
      %3957 = vmatpush1.msra.mxu0 0.0
      %3958 = vmatprep.subr.mxu0 0.0
      %3959 = vmatpush1.msra.mxu0 0.0
      %3960 = vmatprep.subr.mxu0 0.0
      %3961 = vmatpush1.msra.mxu0 0.0
      %3962 = vmatprep.mubr.f32.mxu0 0.0
      %3963 = vmatmul.mubr.f32.gmra.mrb[0].mxu0 %v3825
      %v3964 = vpop.f32.mrb[0].mxu0
      %v3965 = vadd.f32 0.0, %v3964
      %v3966 = vpop.f32.mrb[0].mxu0
      %v3967 = vadd.f32 0.0, %v3966
      %3968 = vdwg.mxu0
      %3969 = vmatprep.subr.mxu0 %v2093
      %3970 = vmatpush1.msra.mxu0 %v2091
      %3971 = vmatprep.subr.mxu0 %v2099
      %3972 = vmatpush1.msra.mxu0 %v2097
      %3973 = vmatprep.subr.mxu0 0.0
      %3974 = vmatpush1.msra.mxu0 0.0
      %3975 = vmatprep.subr.mxu0 0.0
      %3976 = vmatpush1.msra.mxu0 0.0
      %3977 = vmatprep.subr.mxu0 0.0
      %3978 = vmatpush1.msra.mxu0 0.0
      %3979 = vmatprep.subr.mxu0 0.0
      %3980 = vmatpush1.msra.mxu0 0.0
      %3981 = vmatprep.subr.mxu0 0.0
      %3982 = vmatpush1.msra.mxu0 0.0
      %3983 = vmatprep.subr.mxu0 0.0
      %3984 = vmatpush1.msra.mxu0 0.0
      %3985 = vmatprep.subr.mxu0 0.0
      %3986 = vmatpush1.msra.mxu0 0.0
      %3987 = vmatprep.subr.mxu0 0.0
      %3988 = vmatpush1.msra.mxu0 0.0
      %3989 = vmatprep.subr.mxu0 0.0
      %3990 = vmatpush1.msra.mxu0 0.0
      %3991 = vmatprep.subr.mxu0 0.0
      %3992 = vmatpush1.msra.mxu0 0.0
      %3993 = vmatprep.subr.mxu0 0.0
      %3994 = vmatpush1.msra.mxu0 0.0
      %3995 = vmatprep.subr.mxu0 0.0
      %3996 = vmatpush1.msra.mxu0 0.0
      %3997 = vmatprep.subr.mxu0 0.0
      %3998 = vmatpush1.msra.mxu0 0.0
      %3999 = vmatprep.subr.mxu0 0.0
      %4000 = vmatpush1.msra.mxu0 0.0
      %4001 = vmatprep.subr.mxu0 0.0
      %4002 = vmatpush1.msra.mxu0 0.0
      %4003 = vmatprep.subr.mxu0 0.0
      %4004 = vmatpush1.msra.mxu0 0.0
      %4005 = vmatprep.subr.mxu0 0.0
      %4006 = vmatpush1.msra.mxu0 0.0
      %4007 = vmatprep.subr.mxu0 0.0
      %4008 = vmatpush1.msra.mxu0 0.0
      %4009 = vmatprep.subr.mxu0 0.0
      %4010 = vmatpush1.msra.mxu0 0.0
      %4011 = vmatprep.subr.mxu0 0.0
      %4012 = vmatpush1.msra.mxu0 0.0
      %4013 = vmatprep.subr.mxu0 0.0
      %4014 = vmatpush1.msra.mxu0 0.0
      %4015 = vmatprep.subr.mxu0 0.0
      %4016 = vmatpush1.msra.mxu0 0.0
      %4017 = vmatprep.subr.mxu0 0.0
      %4018 = vmatpush1.msra.mxu0 0.0
      %4019 = vmatprep.subr.mxu0 0.0
      %4020 = vmatpush1.msra.mxu0 0.0
      %4021 = vmatprep.subr.mxu0 0.0
      %4022 = vmatpush1.msra.mxu0 0.0
      %4023 = vmatprep.subr.mxu0 0.0
      %4024 = vmatpush1.msra.mxu0 0.0
      %4025 = vmatprep.subr.mxu0 0.0
      %4026 = vmatpush1.msra.mxu0 0.0
      %4027 = vmatprep.subr.mxu0 0.0
      %4028 = vmatpush1.msra.mxu0 0.0
      %4029 = vmatprep.subr.mxu0 0.0
      %4030 = vmatpush1.msra.mxu0 0.0
      %4031 = vmatprep.subr.mxu0 0.0
      %4032 = vmatpush1.msra.mxu0 0.0
      %4033 = vmatprep.mubr.f32.mxu0 0.0
      %4034 = vmatmul.mubr.f32.gmra.mrb[0].mxu0 %v3825
      %v4035 = vpop.f32.mrb[0].mxu0
      %v4036 = vadd.f32 0.0, %v4035
      %v4037 = vpop.f32.mrb[0].mxu0
      %v4038 = vadd.f32 0.0, %v4037
      %4039 = vdwg.mxu0
      %4040 = vmatprep.subr.mxu0 %v2170
      %4041 = vmatpush1.msra.mxu0 %v2168
      %4042 = vmatprep.subr.mxu0 %v2176
      %4043 = vmatpush1.msra.mxu0 %v2174
      %4044 = vmatprep.subr.mxu0 0.0
      %4045 = vmatpush1.msra.mxu0 0.0
      %4046 = vmatprep.subr.mxu0 0.0
      %4047 = vmatpush1.msra.mxu0 0.0
      %4048 = vmatprep.subr.mxu0 0.0
      %4049 = vmatpush1.msra.mxu0 0.0
      %4050 = vmatprep.subr.mxu0 0.0
      %4051 = vmatpush1.msra.mxu0 0.0
      %4052 = vmatprep.subr.mxu0 0.0
      %4053 = vmatpush1.msra.mxu0 0.0
      %4054 = vmatprep.subr.mxu0 0.0
      %4055 = vmatpush1.msra.mxu0 0.0
      %4056 = vmatprep.subr.mxu0 0.0
      %4057 = vmatpush1.msra.mxu0 0.0
      %4058 = vmatprep.subr.mxu0 0.0
      %4059 = vmatpush1.msra.mxu0 0.0
      %4060 = vmatprep.subr.mxu0 0.0
      %4061 = vmatpush1.msra.mxu0 0.0
      %4062 = vmatprep.subr.mxu0 0.0
      %4063 = vmatpush1.msra.mxu0 0.0
      %4064 = vmatprep.subr.mxu0 0.0
      %4065 = vmatpush1.msra.mxu0 0.0
      %4066 = vmatprep.subr.mxu0 0.0
      %4067 = vmatpush1.msra.mxu0 0.0
      %4068 = vmatprep.subr.mxu0 0.0
      %4069 = vmatpush1.msra.mxu0 0.0
      %4070 = vmatprep.subr.mxu0 0.0
      %4071 = vmatpush1.msra.mxu0 0.0
      %4072 = vmatprep.subr.mxu0 0.0
      %4073 = vmatpush1.msra.mxu0 0.0
      %4074 = vmatprep.subr.mxu0 0.0
      %4075 = vmatpush1.msra.mxu0 0.0
      %4076 = vmatprep.subr.mxu0 0.0
      %4077 = vmatpush1.msra.mxu0 0.0
      %4078 = vmatprep.subr.mxu0 0.0
      %4079 = vmatpush1.msra.mxu0 0.0
      %4080 = vmatprep.subr.mxu0 0.0
      %4081 = vmatpush1.msra.mxu0 0.0
      %4082 = vmatprep.subr.mxu0 0.0
      %4083 = vmatpush1.msra.mxu0 0.0
      %4084 = vmatprep.subr.mxu0 0.0
      %4085 = vmatpush1.msra.mxu0 0.0
      %4086 = vmatprep.subr.mxu0 0.0
      %4087 = vmatpush1.msra.mxu0 0.0
      %4088 = vmatprep.subr.mxu0 0.0
      %4089 = vmatpush1.msra.mxu0 0.0
      %4090 = vmatprep.subr.mxu0 0.0
      %4091 = vmatpush1.msra.mxu0 0.0
      %4092 = vmatprep.subr.mxu0 0.0
      %4093 = vmatpush1.msra.mxu0 0.0
      %4094 = vmatprep.subr.mxu0 0.0
      %4095 = vmatpush1.msra.mxu0 0.0
      %4096 = vmatprep.subr.mxu0 0.0
      %4097 = vmatpush1.msra.mxu0 0.0
      %4098 = vmatprep.subr.mxu0 0.0
      %4099 = vmatpush1.msra.mxu0 0.0
      %4100 = vmatprep.subr.mxu0 0.0
      %4101 = vmatpush1.msra.mxu0 0.0
      %4102 = vmatprep.subr.mxu0 0.0
      %4103 = vmatpush1.msra.mxu0 0.0
      %4104 = vmatprep.mubr.f32.mxu0 0.0
      %4105 = vmatmul.mubr.f32.gmra.mrb[0].mxu0 %v3825
      %v4106 = vpop.f32.mrb[0].mxu0
      %v4107 = vadd.f32 0.0, %v4106
      %v4108 = vpop.f32.mrb[0].mxu0
      %v4109 = vadd.f32 0.0, %v4108
      %4110 = vdwg.mxu0
      %v4111 = vadd.f32 %v3814, %v3894
      %v4112 = vadd.f32 %v3815, %v3896
      %v4113 = vadd.f32 %v3816, %v3965
      %v4114 = vadd.f32 %v3817, %v3967
      %v4115 = vadd.f32 %v3818, %v4036
      %v4116 = vadd.f32 %v3819, %v4038
      %v4117 = vadd.f32 %v3820, %v4107
      %v4118 = vadd.f32 %v3821, %v4109
      %4119 = vrot.lane.b32.xlu0 %v1937, 127
      %v4120 = vpop.permute.xlu0 %4119
      %4121 = vrot.lane.b32.xlu0 %v1939, 127
      %v4122 = vpop.permute.xlu0 %4121
      %4123 = vrot.lane.b32.xlu0 %v2014, 127
      %v4124 = vpop.permute.xlu0 %4123
      %4125 = vrot.lane.b32.xlu0 %v2016, 127
      %v4126 = vpop.permute.xlu0 %4125
      %4127 = vrot.lane.b32.xlu0 %v2091, 127
      %v4128 = vpop.permute.xlu0 %4127
      %4129 = vrot.lane.b32.xlu0 %v2093, 127
      %v4130 = vpop.permute.xlu0 %4129
      %4131 = vrot.lane.b32.xlu0 %v2168, 127
      %v4132 = vpop.permute.xlu0 %4131
      %4133 = vrot.lane.b32.xlu0 %v2170, 127
      %v4134 = vpop.permute.xlu0 %4133
      %4135 = vrot.lane.b32.xlu0 %v1943, 127
      %v4136 = vpop.permute.xlu0 %4135
      %4137 = vrot.lane.b32.xlu0 %v1945, 127
      %v4138 = vpop.permute.xlu0 %4137
      %4139 = vrot.lane.b32.xlu0 %v2020, 127
      %v4140 = vpop.permute.xlu0 %4139
      %4141 = vrot.lane.b32.xlu0 %v2022, 127
      %v4142 = vpop.permute.xlu0 %4141
      %4143 = vrot.lane.b32.xlu0 %v2097, 127
      %v4144 = vpop.permute.xlu0 %4143
      %4145 = vrot.lane.b32.xlu0 %v2099, 127
      %v4146 = vpop.permute.xlu0 %4145
      %4147 = vrot.lane.b32.xlu0 %v2174, 127
      %v4148 = vpop.permute.xlu0 %4147
      %4149 = vrot.lane.b32.xlu0 %v2176, 127
      %v4150 = vpop.permute.xlu0 %4149
      %v4151 = vsel %vm1036, %v4120, %v4122
      %v4152 = vsel %vm1036, %v4122, %v4124
      %v4153 = vsel %vm1036, %v4124, %v4126
      %v4154 = vsel %vm1036, %v4126, %v4128
      %v4155 = vsel %vm1036, %v4128, %v4130
      %v4156 = vsel %vm1036, %v4130, %v4132
      %v4157 = vsel %vm1036, %v4132, %v4134
      %v4158 = vsel %vm1036, %v4136, %v4138
      %v4159 = vsel %vm1036, %v4138, %v4140
      %v4160 = vsel %vm1036, %v4140, %v4142
      %v4161 = vsel %vm1036, %v4142, %v4144
      %v4162 = vsel %vm1036, %v4144, %v4146
      %v4163 = vsel %vm1036, %v4146, %v4148
      %v4164 = vsel %vm1036, %v4148, %v4150
      %v4181 = vsel %vm1036, %v4134, 0.0
      %v4182 = vsel %vm1036, %v4150, 0.0
      %v4183 = vsel %vm3124, %v4151, 0.0
      %v4184 = vsel %vm3125, %v4152, 0.0
      %v4185 = vsel %vm3126, %v4153, 0.0
      %v4186 = vsel %vm3127, %v4154, 0.0
      %v4187 = vsel %vm3128, %v4155, 0.0
      %v4188 = vsel %vm3129, %v4156, 0.0
      %v4189 = vsel %vm3130, %v4157, 0.0
      %v4190 = vsel %vm3131, %v4181, 0.0
      %v4191 = vsel %vm3124, %v4158, 0.0
      %v4192 = vsel %vm3125, %v4159, 0.0
      %v4193 = vsel %vm3126, %v4160, 0.0
      %v4194 = vsel %vm3127, %v4161, 0.0
      %v4195 = vsel %vm3128, %v4162, 0.0
      %v4196 = vsel %vm3129, %v4163, 0.0
      %v4197 = vsel %vm3130, %v4164, 0.0
      %v4198 = vsel %vm3131, %v4182, 0.0
      %s4199 = scalar_lea.vmem %s5, 40
      %v4200 = vld [vmem:[%s4199] sm:$0xff]
      %v4202 = vsel %vm534, %v4200, 0
      %4204 = vmatprep.subr.mxu0 %v4184
      %4205 = vmatpush1.msra.mxu0 %v4183
      %4206 = vmatprep.subr.mxu0 %v4192
      %4207 = vmatpush1.msra.mxu0 %v4191
      %4208 = vmatprep.subr.mxu0 0.0
      %4209 = vmatpush1.msra.mxu0 0.0
      %4210 = vmatprep.subr.mxu0 0.0
      %4211 = vmatpush1.msra.mxu0 0.0
      %4212 = vmatprep.subr.mxu0 0.0
      %4213 = vmatpush1.msra.mxu0 0.0
      %4214 = vmatprep.subr.mxu0 0.0
      %4215 = vmatpush1.msra.mxu0 0.0
      %4216 = vmatprep.subr.mxu0 0.0
      %4217 = vmatpush1.msra.mxu0 0.0
      %4218 = vmatprep.subr.mxu0 0.0
      %4219 = vmatpush1.msra.mxu0 0.0
      %4220 = vmatprep.subr.mxu0 0.0
      %4221 = vmatpush1.msra.mxu0 0.0
      %4222 = vmatprep.subr.mxu0 0.0
      %4223 = vmatpush1.msra.mxu0 0.0
      %4224 = vmatprep.subr.mxu0 0.0
      %4225 = vmatpush1.msra.mxu0 0.0
      %4226 = vmatprep.subr.mxu0 0.0
      %4227 = vmatpush1.msra.mxu0 0.0
      %4228 = vmatprep.subr.mxu0 0.0
      %4229 = vmatpush1.msra.mxu0 0.0
      %4230 = vmatprep.subr.mxu0 0.0
      %4231 = vmatpush1.msra.mxu0 0.0
      %4232 = vmatprep.subr.mxu0 0.0
      %4233 = vmatpush1.msra.mxu0 0.0
      %4234 = vmatprep.subr.mxu0 0.0
      %4235 = vmatpush1.msra.mxu0 0.0
      %4236 = vmatprep.subr.mxu0 0.0
      %4237 = vmatpush1.msra.mxu0 0.0
      %4238 = vmatprep.subr.mxu0 0.0
      %4239 = vmatpush1.msra.mxu0 0.0
      %4240 = vmatprep.subr.mxu0 0.0
      %4241 = vmatpush1.msra.mxu0 0.0
      %4242 = vmatprep.subr.mxu0 0.0
      %4243 = vmatpush1.msra.mxu0 0.0
      %4244 = vmatprep.subr.mxu0 0.0
      %4245 = vmatpush1.msra.mxu0 0.0
      %4246 = vmatprep.subr.mxu0 0.0
      %4247 = vmatpush1.msra.mxu0 0.0
      %4248 = vmatprep.subr.mxu0 0.0
      %4249 = vmatpush1.msra.mxu0 0.0
      %4250 = vmatprep.subr.mxu0 0.0
      %4251 = vmatpush1.msra.mxu0 0.0
      %4252 = vmatprep.subr.mxu0 0.0
      %4253 = vmatpush1.msra.mxu0 0.0
      %4254 = vmatprep.subr.mxu0 0.0
      %4255 = vmatpush1.msra.mxu0 0.0
      %4256 = vmatprep.subr.mxu0 0.0
      %4257 = vmatpush1.msra.mxu0 0.0
      %4258 = vmatprep.subr.mxu0 0.0
      %4259 = vmatpush1.msra.mxu0 0.0
      %4260 = vmatprep.subr.mxu0 0.0
      %4261 = vmatpush1.msra.mxu0 0.0
      %4262 = vmatprep.subr.mxu0 0.0
      %4263 = vmatpush1.msra.mxu0 0.0
      %4264 = vmatprep.subr.mxu0 0.0
      %4265 = vmatpush1.msra.mxu0 0.0
      %4266 = vmatprep.subr.mxu0 0.0
      %4267 = vmatpush1.msra.mxu0 0.0
      %4268 = vmatprep.mubr.f32.mxu0 0.0
      %4269 = vmatmul.mubr.f32.gmra.mrb[0].mxu0 %v4202
      %v4270 = vpop.f32.mrb[0].mxu0
      %v4271 = vadd.f32 0.0, %v4270
      %v4272 = vpop.f32.mrb[0].mxu0
      %v4273 = vadd.f32 0.0, %v4272
      %4274 = vdwg.mxu0
      %4275 = vmatprep.subr.mxu0 %v4186
      %4276 = vmatpush1.msra.mxu0 %v4185
      %4277 = vmatprep.subr.mxu0 %v4194
      %4278 = vmatpush1.msra.mxu0 %v4193
      %4279 = vmatprep.subr.mxu0 0.0
      %4280 = vmatpush1.msra.mxu0 0.0
      %4281 = vmatprep.subr.mxu0 0.0
      %4282 = vmatpush1.msra.mxu0 0.0
      %4283 = vmatprep.subr.mxu0 0.0
      %4284 = vmatpush1.msra.mxu0 0.0
      %4285 = vmatprep.subr.mxu0 0.0
      %4286 = vmatpush1.msra.mxu0 0.0
      %4287 = vmatprep.subr.mxu0 0.0
      %4288 = vmatpush1.msra.mxu0 0.0
      %4289 = vmatprep.subr.mxu0 0.0
      %4290 = vmatpush1.msra.mxu0 0.0
      %4291 = vmatprep.subr.mxu0 0.0
      %4292 = vmatpush1.msra.mxu0 0.0
      %4293 = vmatprep.subr.mxu0 0.0
      %4294 = vmatpush1.msra.mxu0 0.0
      %4295 = vmatprep.subr.mxu0 0.0
      %4296 = vmatpush1.msra.mxu0 0.0
      %4297 = vmatprep.subr.mxu0 0.0
      %4298 = vmatpush1.msra.mxu0 0.0
      %4299 = vmatprep.subr.mxu0 0.0
      %4300 = vmatpush1.msra.mxu0 0.0
      %4301 = vmatprep.subr.mxu0 0.0
      %4302 = vmatpush1.msra.mxu0 0.0
      %4303 = vmatprep.subr.mxu0 0.0
      %4304 = vmatpush1.msra.mxu0 0.0
      %4305 = vmatprep.subr.mxu0 0.0
      %4306 = vmatpush1.msra.mxu0 0.0
      %4307 = vmatprep.subr.mxu0 0.0
      %4308 = vmatpush1.msra.mxu0 0.0
      %4309 = vmatprep.subr.mxu0 0.0
      %4310 = vmatpush1.msra.mxu0 0.0
      %4311 = vmatprep.subr.mxu0 0.0
      %4312 = vmatpush1.msra.mxu0 0.0
      %4313 = vmatprep.subr.mxu0 0.0
      %4314 = vmatpush1.msra.mxu0 0.0
      %4315 = vmatprep.subr.mxu0 0.0
      %4316 = vmatpush1.msra.mxu0 0.0
      %4317 = vmatprep.subr.mxu0 0.0
      %4318 = vmatpush1.msra.mxu0 0.0
      %4319 = vmatprep.subr.mxu0 0.0
      %4320 = vmatpush1.msra.mxu0 0.0
      %4321 = vmatprep.subr.mxu0 0.0
      %4322 = vmatpush1.msra.mxu0 0.0
      %4323 = vmatprep.subr.mxu0 0.0
      %4324 = vmatpush1.msra.mxu0 0.0
      %4325 = vmatprep.subr.mxu0 0.0
      %4326 = vmatpush1.msra.mxu0 0.0
      %4327 = vmatprep.subr.mxu0 0.0
      %4328 = vmatpush1.msra.mxu0 0.0
      %4329 = vmatprep.subr.mxu0 0.0
      %4330 = vmatpush1.msra.mxu0 0.0
      %4331 = vmatprep.subr.mxu0 0.0
      %4332 = vmatpush1.msra.mxu0 0.0
      %4333 = vmatprep.subr.mxu0 0.0
      %4334 = vmatpush1.msra.mxu0 0.0
      %4335 = vmatprep.subr.mxu0 0.0
      %4336 = vmatpush1.msra.mxu0 0.0
      %4337 = vmatprep.subr.mxu0 0.0
      %4338 = vmatpush1.msra.mxu0 0.0
      %4339 = vmatprep.mubr.f32.mxu0 0.0
      %4340 = vmatmul.mubr.f32.gmra.mrb[0].mxu0 %v4202
      %v4341 = vpop.f32.mrb[0].mxu0
      %v4342 = vadd.f32 0.0, %v4341
      %v4343 = vpop.f32.mrb[0].mxu0
      %v4344 = vadd.f32 0.0, %v4343
      %4345 = vdwg.mxu0
      %4346 = vmatprep.subr.mxu0 %v4188
      %4347 = vmatpush1.msra.mxu0 %v4187
      %4348 = vmatprep.subr.mxu0 %v4196
      %4349 = vmatpush1.msra.mxu0 %v4195
      %4350 = vmatprep.subr.mxu0 0.0
      %4351 = vmatpush1.msra.mxu0 0.0
      %4352 = vmatprep.subr.mxu0 0.0
      %4353 = vmatpush1.msra.mxu0 0.0
      %4354 = vmatprep.subr.mxu0 0.0
      %4355 = vmatpush1.msra.mxu0 0.0
      %4356 = vmatprep.subr.mxu0 0.0
      %4357 = vmatpush1.msra.mxu0 0.0
      %4358 = vmatprep.subr.mxu0 0.0
      %4359 = vmatpush1.msra.mxu0 0.0
      %4360 = vmatprep.subr.mxu0 0.0
      %4361 = vmatpush1.msra.mxu0 0.0
      %4362 = vmatprep.subr.mxu0 0.0
      %4363 = vmatpush1.msra.mxu0 0.0
      %4364 = vmatprep.subr.mxu0 0.0
      %4365 = vmatpush1.msra.mxu0 0.0
      %4366 = vmatprep.subr.mxu0 0.0
      %4367 = vmatpush1.msra.mxu0 0.0
      %4368 = vmatprep.subr.mxu0 0.0
      %4369 = vmatpush1.msra.mxu0 0.0
      %4370 = vmatprep.subr.mxu0 0.0
      %4371 = vmatpush1.msra.mxu0 0.0
      %4372 = vmatprep.subr.mxu0 0.0
      %4373 = vmatpush1.msra.mxu0 0.0
      %4374 = vmatprep.subr.mxu0 0.0
      %4375 = vmatpush1.msra.mxu0 0.0
      %4376 = vmatprep.subr.mxu0 0.0
      %4377 = vmatpush1.msra.mxu0 0.0
      %4378 = vmatprep.subr.mxu0 0.0
      %4379 = vmatpush1.msra.mxu0 0.0
      %4380 = vmatprep.subr.mxu0 0.0
      %4381 = vmatpush1.msra.mxu0 0.0
      %4382 = vmatprep.subr.mxu0 0.0
      %4383 = vmatpush1.msra.mxu0 0.0
      %4384 = vmatprep.subr.mxu0 0.0
      %4385 = vmatpush1.msra.mxu0 0.0
      %4386 = vmatprep.subr.mxu0 0.0
      %4387 = vmatpush1.msra.mxu0 0.0
      %4388 = vmatprep.subr.mxu0 0.0
      %4389 = vmatpush1.msra.mxu0 0.0
      %4390 = vmatprep.subr.mxu0 0.0
      %4391 = vmatpush1.msra.mxu0 0.0
      %4392 = vmatprep.subr.mxu0 0.0
      %4393 = vmatpush1.msra.mxu0 0.0
      %4394 = vmatprep.subr.mxu0 0.0
      %4395 = vmatpush1.msra.mxu0 0.0
      %4396 = vmatprep.subr.mxu0 0.0
      %4397 = vmatpush1.msra.mxu0 0.0
      %4398 = vmatprep.subr.mxu0 0.0
      %4399 = vmatpush1.msra.mxu0 0.0
      %4400 = vmatprep.subr.mxu0 0.0
      %4401 = vmatpush1.msra.mxu0 0.0
      %4402 = vmatprep.subr.mxu0 0.0
      %4403 = vmatpush1.msra.mxu0 0.0
      %4404 = vmatprep.subr.mxu0 0.0
      %4405 = vmatpush1.msra.mxu0 0.0
      %4406 = vmatprep.subr.mxu0 0.0
      %4407 = vmatpush1.msra.mxu0 0.0
      %4408 = vmatprep.subr.mxu0 0.0
      %4409 = vmatpush1.msra.mxu0 0.0
      %4410 = vmatprep.mubr.f32.mxu0 0.0
      %4411 = vmatmul.mubr.f32.gmra.mrb[0].mxu0 %v4202
      %v4412 = vpop.f32.mrb[0].mxu0
      %v4413 = vadd.f32 0.0, %v4412
      %v4414 = vpop.f32.mrb[0].mxu0
      %v4415 = vadd.f32 0.0, %v4414
      %4416 = vdwg.mxu0
      %4417 = vmatprep.subr.mxu0 %v4190
      %4418 = vmatpush1.msra.mxu0 %v4189
      %4419 = vmatprep.subr.mxu0 %v4198
      %4420 = vmatpush1.msra.mxu0 %v4197
      %4421 = vmatprep.subr.mxu0 0.0
      %4422 = vmatpush1.msra.mxu0 0.0
      %4423 = vmatprep.subr.mxu0 0.0
      %4424 = vmatpush1.msra.mxu0 0.0
      %4425 = vmatprep.subr.mxu0 0.0
      %4426 = vmatpush1.msra.mxu0 0.0
      %4427 = vmatprep.subr.mxu0 0.0
      %4428 = vmatpush1.msra.mxu0 0.0
      %4429 = vmatprep.subr.mxu0 0.0
      %4430 = vmatpush1.msra.mxu0 0.0
      %4431 = vmatprep.subr.mxu0 0.0
      %4432 = vmatpush1.msra.mxu0 0.0
      %4433 = vmatprep.subr.mxu0 0.0
      %4434 = vmatpush1.msra.mxu0 0.0
      %4435 = vmatprep.subr.mxu0 0.0
      %4436 = vmatpush1.msra.mxu0 0.0
      %4437 = vmatprep.subr.mxu0 0.0
      %4438 = vmatpush1.msra.mxu0 0.0
      %4439 = vmatprep.subr.mxu0 0.0
      %4440 = vmatpush1.msra.mxu0 0.0
      %4441 = vmatprep.subr.mxu0 0.0
      %4442 = vmatpush1.msra.mxu0 0.0
      %4443 = vmatprep.subr.mxu0 0.0
      %4444 = vmatpush1.msra.mxu0 0.0
      %4445 = vmatprep.subr.mxu0 0.0
      %4446 = vmatpush1.msra.mxu0 0.0
      %4447 = vmatprep.subr.mxu0 0.0
      %4448 = vmatpush1.msra.mxu0 0.0
      %4449 = vmatprep.subr.mxu0 0.0
      %4450 = vmatpush1.msra.mxu0 0.0
      %4451 = vmatprep.subr.mxu0 0.0
      %4452 = vmatpush1.msra.mxu0 0.0
      %4453 = vmatprep.subr.mxu0 0.0
      %4454 = vmatpush1.msra.mxu0 0.0
      %4455 = vmatprep.subr.mxu0 0.0
      %4456 = vmatpush1.msra.mxu0 0.0
      %4457 = vmatprep.subr.mxu0 0.0
      %4458 = vmatpush1.msra.mxu0 0.0
      %4459 = vmatprep.subr.mxu0 0.0
      %4460 = vmatpush1.msra.mxu0 0.0
      %4461 = vmatprep.subr.mxu0 0.0
      %4462 = vmatpush1.msra.mxu0 0.0
      %4463 = vmatprep.subr.mxu0 0.0
      %4464 = vmatpush1.msra.mxu0 0.0
      %4465 = vmatprep.subr.mxu0 0.0
      %4466 = vmatpush1.msra.mxu0 0.0
      %4467 = vmatprep.subr.mxu0 0.0
      %4468 = vmatpush1.msra.mxu0 0.0
      %4469 = vmatprep.subr.mxu0 0.0
      %4470 = vmatpush1.msra.mxu0 0.0
      %4471 = vmatprep.subr.mxu0 0.0
      %4472 = vmatpush1.msra.mxu0 0.0
      %4473 = vmatprep.subr.mxu0 0.0
      %4474 = vmatpush1.msra.mxu0 0.0
      %4475 = vmatprep.subr.mxu0 0.0
      %4476 = vmatpush1.msra.mxu0 0.0
      %4477 = vmatprep.subr.mxu0 0.0
      %4478 = vmatpush1.msra.mxu0 0.0
      %4479 = vmatprep.subr.mxu0 0.0
      %4480 = vmatpush1.msra.mxu0 0.0
      %4481 = vmatprep.mubr.f32.mxu0 0.0
      %4482 = vmatmul.mubr.f32.gmra.mrb[0].mxu0 %v4202
      %v4483 = vpop.f32.mrb[0].mxu0
      %v4484 = vadd.f32 0.0, %v4483
      %v4485 = vpop.f32.mrb[0].mxu0
      %v4486 = vadd.f32 0.0, %v4485
      %4487 = vdwg.mxu0
      %v4488 = vadd.f32 %v4111, %v4271
      %v4489 = vadd.f32 %v4112, %v4273
      %v4490 = vadd.f32 %v4113, %v4342
      %v4491 = vadd.f32 %v4114, %v4344
      %v4492 = vadd.f32 %v4115, %v4413
      %v4493 = vadd.f32 %v4116, %v4415
      %v4494 = vadd.f32 %v4117, %v4484
      %v4495 = vadd.f32 %v4118, %v4486
      %4496 = vrot.lane.b32.xlu0 %v1937, 97
      %v4497 = vpop.permute.xlu0 %4496
      %4498 = vrot.lane.b32.xlu0 %v1939, 97
      %v4499 = vpop.permute.xlu0 %4498
      %4500 = vrot.lane.b32.xlu0 %v2014, 97
      %v4501 = vpop.permute.xlu0 %4500
      %4502 = vrot.lane.b32.xlu0 %v2016, 97
      %v4503 = vpop.permute.xlu0 %4502
      %4504 = vrot.lane.b32.xlu0 %v2091, 97
      %v4505 = vpop.permute.xlu0 %4504
      %4506 = vrot.lane.b32.xlu0 %v2093, 97
      %v4507 = vpop.permute.xlu0 %4506
      %4508 = vrot.lane.b32.xlu0 %v2168, 97
      %v4509 = vpop.permute.xlu0 %4508
      %4510 = vrot.lane.b32.xlu0 %v2170, 97
      %v4511 = vpop.permute.xlu0 %4510
      %4512 = vrot.lane.b32.xlu0 %v1943, 97
      %v4513 = vpop.permute.xlu0 %4512
      %4514 = vrot.lane.b32.xlu0 %v1945, 97
      %v4515 = vpop.permute.xlu0 %4514
      %4516 = vrot.lane.b32.xlu0 %v2020, 97
      %v4517 = vpop.permute.xlu0 %4516
      %4518 = vrot.lane.b32.xlu0 %v2022, 97
      %v4519 = vpop.permute.xlu0 %4518
      %4520 = vrot.lane.b32.xlu0 %v2097, 97
      %v4521 = vpop.permute.xlu0 %4520
      %4522 = vrot.lane.b32.xlu0 %v2099, 97
      %v4523 = vpop.permute.xlu0 %4522
      %4524 = vrot.lane.b32.xlu0 %v2174, 97
      %v4525 = vpop.permute.xlu0 %4524
      %4526 = vrot.lane.b32.xlu0 %v2176, 97
      %v4527 = vpop.permute.xlu0 %4526
      %vm4528 = vcmask 793600
      %v4529 = vsel %vm4528, %v4497, %v4499
      %v4530 = vsel %vm4528, %v4499, %v4501
      %v4531 = vsel %vm4528, %v4501, %v4503
      %v4532 = vsel %vm4528, %v4503, %v4505
      %v4533 = vsel %vm4528, %v4505, %v4507
      %v4534 = vsel %vm4528, %v4507, %v4509
      %v4535 = vsel %vm4528, %v4509, %v4511
      %v4536 = vsel %vm4528, %v4513, %v4515
      %v4537 = vsel %vm4528, %v4515, %v4517
      %v4538 = vsel %vm4528, %v4517, %v4519
      %v4539 = vsel %vm4528, %v4519, %v4521
      %v4540 = vsel %vm4528, %v4521, %v4523
      %v4541 = vsel %vm4528, %v4523, %v4525
      %v4542 = vsel %vm4528, %v4525, %v4527
      %v4559 = vsel %vm4528, %v4511, 0.0
      %v4560 = vsel %vm4528, %v4527, 0.0
      %v4561 = vsel %vm2385, %v4529, 0.0
      %v4562 = vsel %vm2386, %v4530, 0.0
      %v4563 = vsel %vm2387, %v4531, 0.0
      %v4564 = vsel %vm2388, %v4532, 0.0
      %v4565 = vsel %vm2389, %v4533, 0.0
      %v4566 = vsel %vm2390, %v4534, 0.0
      %v4567 = vsel %vm2391, %v4535, 0.0
      %v4568 = vsel %vm2392, %v4559, 0.0
      %v4569 = vsel %vm2385, %v4536, 0.0
      %v4570 = vsel %vm2386, %v4537, 0.0
      %v4571 = vsel %vm2387, %v4538, 0.0
      %v4572 = vsel %vm2388, %v4539, 0.0
      %v4573 = vsel %vm2389, %v4540, 0.0
      %v4574 = vsel %vm2390, %v4541, 0.0
      %v4575 = vsel %vm2391, %v4542, 0.0
      %v4576 = vsel %vm2392, %v4560, 0.0
      %s4577 = scalar_lea.vmem %s5, 48
      %v4578 = vld [vmem:[%s4577] sm:$0xff]
      %v4580 = vsel %vm534, %v4578, 0
      %4582 = vmatprep.subr.mxu0 %v4562
      %4583 = vmatpush1.msra.mxu0 %v4561
      %4584 = vmatprep.subr.mxu0 %v4570
      %4585 = vmatpush1.msra.mxu0 %v4569
      %4586 = vmatprep.subr.mxu0 0.0
      %4587 = vmatpush1.msra.mxu0 0.0
      %4588 = vmatprep.subr.mxu0 0.0
      %4589 = vmatpush1.msra.mxu0 0.0
      %4590 = vmatprep.subr.mxu0 0.0
      %4591 = vmatpush1.msra.mxu0 0.0
      %4592 = vmatprep.subr.mxu0 0.0
      %4593 = vmatpush1.msra.mxu0 0.0
      %4594 = vmatprep.subr.mxu0 0.0
      %4595 = vmatpush1.msra.mxu0 0.0
      %4596 = vmatprep.subr.mxu0 0.0
      %4597 = vmatpush1.msra.mxu0 0.0
      %4598 = vmatprep.subr.mxu0 0.0
      %4599 = vmatpush1.msra.mxu0 0.0
      %4600 = vmatprep.subr.mxu0 0.0
      %4601 = vmatpush1.msra.mxu0 0.0
      %4602 = vmatprep.subr.mxu0 0.0
      %4603 = vmatpush1.msra.mxu0 0.0
      %4604 = vmatprep.subr.mxu0 0.0
      %4605 = vmatpush1.msra.mxu0 0.0
      %4606 = vmatprep.subr.mxu0 0.0
      %4607 = vmatpush1.msra.mxu0 0.0
      %4608 = vmatprep.subr.mxu0 0.0
      %4609 = vmatpush1.msra.mxu0 0.0
      %4610 = vmatprep.subr.mxu0 0.0
      %4611 = vmatpush1.msra.mxu0 0.0
      %4612 = vmatprep.subr.mxu0 0.0
      %4613 = vmatpush1.msra.mxu0 0.0
      %4614 = vmatprep.subr.mxu0 0.0
      %4615 = vmatpush1.msra.mxu0 0.0
      %4616 = vmatprep.subr.mxu0 0.0
      %4617 = vmatpush1.msra.mxu0 0.0
      %4618 = vmatprep.subr.mxu0 0.0
      %4619 = vmatpush1.msra.mxu0 0.0
      %4620 = vmatprep.subr.mxu0 0.0
      %4621 = vmatpush1.msra.mxu0 0.0
      %4622 = vmatprep.subr.mxu0 0.0
      %4623 = vmatpush1.msra.mxu0 0.0
      %4624 = vmatprep.subr.mxu0 0.0
      %4625 = vmatpush1.msra.mxu0 0.0
      %4626 = vmatprep.subr.mxu0 0.0
      %4627 = vmatpush1.msra.mxu0 0.0
      %4628 = vmatprep.subr.mxu0 0.0
      %4629 = vmatpush1.msra.mxu0 0.0
      %4630 = vmatprep.subr.mxu0 0.0
      %4631 = vmatpush1.msra.mxu0 0.0
      %4632 = vmatprep.subr.mxu0 0.0
      %4633 = vmatpush1.msra.mxu0 0.0
      %4634 = vmatprep.subr.mxu0 0.0
      %4635 = vmatpush1.msra.mxu0 0.0
      %4636 = vmatprep.subr.mxu0 0.0
      %4637 = vmatpush1.msra.mxu0 0.0
      %4638 = vmatprep.subr.mxu0 0.0
      %4639 = vmatpush1.msra.mxu0 0.0
      %4640 = vmatprep.subr.mxu0 0.0
      %4641 = vmatpush1.msra.mxu0 0.0
      %4642 = vmatprep.subr.mxu0 0.0
      %4643 = vmatpush1.msra.mxu0 0.0
      %4644 = vmatprep.subr.mxu0 0.0
      %4645 = vmatpush1.msra.mxu0 0.0
      %4646 = vmatprep.mubr.f32.mxu0 0.0
      %4647 = vmatmul.mubr.f32.gmra.mrb[0].mxu0 %v4580
      %v4648 = vpop.f32.mrb[0].mxu0
      %v4649 = vadd.f32 0.0, %v4648
      %v4650 = vpop.f32.mrb[0].mxu0
      %v4651 = vadd.f32 0.0, %v4650
      %4652 = vdwg.mxu0
      %4653 = vmatprep.subr.mxu0 %v4564
      %4654 = vmatpush1.msra.mxu0 %v4563
      %4655 = vmatprep.subr.mxu0 %v4572
      %4656 = vmatpush1.msra.mxu0 %v4571
      %4657 = vmatprep.subr.mxu0 0.0
      %4658 = vmatpush1.msra.mxu0 0.0
      %4659 = vmatprep.subr.mxu0 0.0
      %4660 = vmatpush1.msra.mxu0 0.0
      %4661 = vmatprep.subr.mxu0 0.0
      %4662 = vmatpush1.msra.mxu0 0.0
      %4663 = vmatprep.subr.mxu0 0.0
      %4664 = vmatpush1.msra.mxu0 0.0
      %4665 = vmatprep.subr.mxu0 0.0
      %4666 = vmatpush1.msra.mxu0 0.0
      %4667 = vmatprep.subr.mxu0 0.0
      %4668 = vmatpush1.msra.mxu0 0.0
      %4669 = vmatprep.subr.mxu0 0.0
      %4670 = vmatpush1.msra.mxu0 0.0
      %4671 = vmatprep.subr.mxu0 0.0
      %4672 = vmatpush1.msra.mxu0 0.0
      %4673 = vmatprep.subr.mxu0 0.0
      %4674 = vmatpush1.msra.mxu0 0.0
      %4675 = vmatprep.subr.mxu0 0.0
      %4676 = vmatpush1.msra.mxu0 0.0
      %4677 = vmatprep.subr.mxu0 0.0
      %4678 = vmatpush1.msra.mxu0 0.0
      %4679 = vmatprep.subr.mxu0 0.0
      %4680 = vmatpush1.msra.mxu0 0.0
      %4681 = vmatprep.subr.mxu0 0.0
      %4682 = vmatpush1.msra.mxu0 0.0
      %4683 = vmatprep.subr.mxu0 0.0
      %4684 = vmatpush1.msra.mxu0 0.0
      %4685 = vmatprep.subr.mxu0 0.0
      %4686 = vmatpush1.msra.mxu0 0.0
      %4687 = vmatprep.subr.mxu0 0.0
      %4688 = vmatpush1.msra.mxu0 0.0
      %4689 = vmatprep.subr.mxu0 0.0
      %4690 = vmatpush1.msra.mxu0 0.0
      %4691 = vmatprep.subr.mxu0 0.0
      %4692 = vmatpush1.msra.mxu0 0.0
      %4693 = vmatprep.subr.mxu0 0.0
      %4694 = vmatpush1.msra.mxu0 0.0
      %4695 = vmatprep.subr.mxu0 0.0
      %4696 = vmatpush1.msra.mxu0 0.0
      %4697 = vmatprep.subr.mxu0 0.0
      %4698 = vmatpush1.msra.mxu0 0.0
      %4699 = vmatprep.subr.mxu0 0.0
      %4700 = vmatpush1.msra.mxu0 0.0
      %4701 = vmatprep.subr.mxu0 0.0
      %4702 = vmatpush1.msra.mxu0 0.0
      %4703 = vmatprep.subr.mxu0 0.0
      %4704 = vmatpush1.msra.mxu0 0.0
      %4705 = vmatprep.subr.mxu0 0.0
      %4706 = vmatpush1.msra.mxu0 0.0
      %4707 = vmatprep.subr.mxu0 0.0
      %4708 = vmatpush1.msra.mxu0 0.0
      %4709 = vmatprep.subr.mxu0 0.0
      %4710 = vmatpush1.msra.mxu0 0.0
      %4711 = vmatprep.subr.mxu0 0.0
      %4712 = vmatpush1.msra.mxu0 0.0
      %4713 = vmatprep.subr.mxu0 0.0
      %4714 = vmatpush1.msra.mxu0 0.0
      %4715 = vmatprep.subr.mxu0 0.0
      %4716 = vmatpush1.msra.mxu0 0.0
      %4717 = vmatprep.mubr.f32.mxu0 0.0
      %4718 = vmatmul.mubr.f32.gmra.mrb[0].mxu0 %v4580
      %v4719 = vpop.f32.mrb[0].mxu0
      %v4720 = vadd.f32 0.0, %v4719
      %v4721 = vpop.f32.mrb[0].mxu0
      %v4722 = vadd.f32 0.0, %v4721
      %4723 = vdwg.mxu0
      %4724 = vmatprep.subr.mxu0 %v4566
      %4725 = vmatpush1.msra.mxu0 %v4565
      %4726 = vmatprep.subr.mxu0 %v4574
      %4727 = vmatpush1.msra.mxu0 %v4573
      %4728 = vmatprep.subr.mxu0 0.0
      %4729 = vmatpush1.msra.mxu0 0.0
      %4730 = vmatprep.subr.mxu0 0.0
      %4731 = vmatpush1.msra.mxu0 0.0
      %4732 = vmatprep.subr.mxu0 0.0
      %4733 = vmatpush1.msra.mxu0 0.0
      %4734 = vmatprep.subr.mxu0 0.0
      %4735 = vmatpush1.msra.mxu0 0.0
      %4736 = vmatprep.subr.mxu0 0.0
      %4737 = vmatpush1.msra.mxu0 0.0
      %4738 = vmatprep.subr.mxu0 0.0
      %4739 = vmatpush1.msra.mxu0 0.0
      %4740 = vmatprep.subr.mxu0 0.0
      %4741 = vmatpush1.msra.mxu0 0.0
      %4742 = vmatprep.subr.mxu0 0.0
      %4743 = vmatpush1.msra.mxu0 0.0
      %4744 = vmatprep.subr.mxu0 0.0
      %4745 = vmatpush1.msra.mxu0 0.0
      %4746 = vmatprep.subr.mxu0 0.0
      %4747 = vmatpush1.msra.mxu0 0.0
      %4748 = vmatprep.subr.mxu0 0.0
      %4749 = vmatpush1.msra.mxu0 0.0
      %4750 = vmatprep.subr.mxu0 0.0
      %4751 = vmatpush1.msra.mxu0 0.0
      %4752 = vmatprep.subr.mxu0 0.0
      %4753 = vmatpush1.msra.mxu0 0.0
      %4754 = vmatprep.subr.mxu0 0.0
      %4755 = vmatpush1.msra.mxu0 0.0
      %4756 = vmatprep.subr.mxu0 0.0
      %4757 = vmatpush1.msra.mxu0 0.0
      %4758 = vmatprep.subr.mxu0 0.0
      %4759 = vmatpush1.msra.mxu0 0.0
      %4760 = vmatprep.subr.mxu0 0.0
      %4761 = vmatpush1.msra.mxu0 0.0
      %4762 = vmatprep.subr.mxu0 0.0
      %4763 = vmatpush1.msra.mxu0 0.0
      %4764 = vmatprep.subr.mxu0 0.0
      %4765 = vmatpush1.msra.mxu0 0.0
      %4766 = vmatprep.subr.mxu0 0.0
      %4767 = vmatpush1.msra.mxu0 0.0
      %4768 = vmatprep.subr.mxu0 0.0
      %4769 = vmatpush1.msra.mxu0 0.0
      %4770 = vmatprep.subr.mxu0 0.0
      %4771 = vmatpush1.msra.mxu0 0.0
      %4772 = vmatprep.subr.mxu0 0.0
      %4773 = vmatpush1.msra.mxu0 0.0
      %4774 = vmatprep.subr.mxu0 0.0
      %4775 = vmatpush1.msra.mxu0 0.0
      %4776 = vmatprep.subr.mxu0 0.0
      %4777 = vmatpush1.msra.mxu0 0.0
      %4778 = vmatprep.subr.mxu0 0.0
      %4779 = vmatpush1.msra.mxu0 0.0
      %4780 = vmatprep.subr.mxu0 0.0
      %4781 = vmatpush1.msra.mxu0 0.0
      %4782 = vmatprep.subr.mxu0 0.0
      %4783 = vmatpush1.msra.mxu0 0.0
      %4784 = vmatprep.subr.mxu0 0.0
      %4785 = vmatpush1.msra.mxu0 0.0
      %4786 = vmatprep.subr.mxu0 0.0
      %4787 = vmatpush1.msra.mxu0 0.0
      %4788 = vmatprep.mubr.f32.mxu0 0.0
      %4789 = vmatmul.mubr.f32.gmra.mrb[0].mxu0 %v4580
      %v4790 = vpop.f32.mrb[0].mxu0
      %v4791 = vadd.f32 0.0, %v4790
      %v4792 = vpop.f32.mrb[0].mxu0
      %v4793 = vadd.f32 0.0, %v4792
      %4794 = vdwg.mxu0
      %4795 = vmatprep.subr.mxu0 %v4568
      %4796 = vmatpush1.msra.mxu0 %v4567
      %4797 = vmatprep.subr.mxu0 %v4576
      %4798 = vmatpush1.msra.mxu0 %v4575
      %4799 = vmatprep.subr.mxu0 0.0
      %4800 = vmatpush1.msra.mxu0 0.0
      %4801 = vmatprep.subr.mxu0 0.0
      %4802 = vmatpush1.msra.mxu0 0.0
      %4803 = vmatprep.subr.mxu0 0.0
      %4804 = vmatpush1.msra.mxu0 0.0
      %4805 = vmatprep.subr.mxu0 0.0
      %4806 = vmatpush1.msra.mxu0 0.0
      %4807 = vmatprep.subr.mxu0 0.0
      %4808 = vmatpush1.msra.mxu0 0.0
      %4809 = vmatprep.subr.mxu0 0.0
      %4810 = vmatpush1.msra.mxu0 0.0
      %4811 = vmatprep.subr.mxu0 0.0
      %4812 = vmatpush1.msra.mxu0 0.0
      %4813 = vmatprep.subr.mxu0 0.0
      %4814 = vmatpush1.msra.mxu0 0.0
      %4815 = vmatprep.subr.mxu0 0.0
      %4816 = vmatpush1.msra.mxu0 0.0
      %4817 = vmatprep.subr.mxu0 0.0
      %4818 = vmatpush1.msra.mxu0 0.0
      %4819 = vmatprep.subr.mxu0 0.0
      %4820 = vmatpush1.msra.mxu0 0.0
      %4821 = vmatprep.subr.mxu0 0.0
      %4822 = vmatpush1.msra.mxu0 0.0
      %4823 = vmatprep.subr.mxu0 0.0
      %4824 = vmatpush1.msra.mxu0 0.0
      %4825 = vmatprep.subr.mxu0 0.0
      %4826 = vmatpush1.msra.mxu0 0.0
      %4827 = vmatprep.subr.mxu0 0.0
      %4828 = vmatpush1.msra.mxu0 0.0
      %4829 = vmatprep.subr.mxu0 0.0
      %4830 = vmatpush1.msra.mxu0 0.0
      %4831 = vmatprep.subr.mxu0 0.0
      %4832 = vmatpush1.msra.mxu0 0.0
      %4833 = vmatprep.subr.mxu0 0.0
      %4834 = vmatpush1.msra.mxu0 0.0
      %4835 = vmatprep.subr.mxu0 0.0
      %4836 = vmatpush1.msra.mxu0 0.0
      %4837 = vmatprep.subr.mxu0 0.0
      %4838 = vmatpush1.msra.mxu0 0.0
      %4839 = vmatprep.subr.mxu0 0.0
      %4840 = vmatpush1.msra.mxu0 0.0
      %4841 = vmatprep.subr.mxu0 0.0
      %4842 = vmatpush1.msra.mxu0 0.0
      %4843 = vmatprep.subr.mxu0 0.0
      %4844 = vmatpush1.msra.mxu0 0.0
      %4845 = vmatprep.subr.mxu0 0.0
      %4846 = vmatpush1.msra.mxu0 0.0
      %4847 = vmatprep.subr.mxu0 0.0
      %4848 = vmatpush1.msra.mxu0 0.0
      %4849 = vmatprep.subr.mxu0 0.0
      %4850 = vmatpush1.msra.mxu0 0.0
      %4851 = vmatprep.subr.mxu0 0.0
      %4852 = vmatpush1.msra.mxu0 0.0
      %4853 = vmatprep.subr.mxu0 0.0
      %4854 = vmatpush1.msra.mxu0 0.0
      %4855 = vmatprep.subr.mxu0 0.0
      %4856 = vmatpush1.msra.mxu0 0.0
      %4857 = vmatprep.subr.mxu0 0.0
      %4858 = vmatpush1.msra.mxu0 0.0
      %4859 = vmatprep.mubr.f32.mxu0 0.0
      %4860 = vmatmul.mubr.f32.gmra.mrb[0].mxu0 %v4580
      %v4861 = vpop.f32.mrb[0].mxu0
      %v4862 = vadd.f32 0.0, %v4861
      %v4863 = vpop.f32.mrb[0].mxu0
      %v4864 = vadd.f32 0.0, %v4863
      %4865 = vdwg.mxu0
      %v4866 = vadd.f32 %v4488, %v4649
      %v4867 = vadd.f32 %v4489, %v4651
      %v4868 = vadd.f32 %v4490, %v4720
      %v4869 = vadd.f32 %v4491, %v4722
      %v4870 = vadd.f32 %v4492, %v4791
      %v4871 = vadd.f32 %v4493, %v4793
      %v4872 = vadd.f32 %v4494, %v4862
      %v4873 = vadd.f32 %v4495, %v4864
      %4874 = vrot.lane.b32.xlu0 %v1937, 96
      %v4875 = vpop.permute.xlu0 %4874
      %4876 = vrot.lane.b32.xlu0 %v1939, 96
      %v4877 = vpop.permute.xlu0 %4876
      %4878 = vrot.lane.b32.xlu0 %v2014, 96
      %v4879 = vpop.permute.xlu0 %4878
      %4880 = vrot.lane.b32.xlu0 %v2016, 96
      %v4881 = vpop.permute.xlu0 %4880
      %4882 = vrot.lane.b32.xlu0 %v2091, 96
      %v4883 = vpop.permute.xlu0 %4882
      %4884 = vrot.lane.b32.xlu0 %v2093, 96
      %v4885 = vpop.permute.xlu0 %4884
      %4886 = vrot.lane.b32.xlu0 %v2168, 96
      %v4887 = vpop.permute.xlu0 %4886
      %4888 = vrot.lane.b32.xlu0 %v2170, 96
      %v4889 = vpop.permute.xlu0 %4888
      %4890 = vrot.lane.b32.xlu0 %v1943, 96
      %v4891 = vpop.permute.xlu0 %4890
      %4892 = vrot.lane.b32.xlu0 %v1945, 96
      %v4893 = vpop.permute.xlu0 %4892
      %4894 = vrot.lane.b32.xlu0 %v2020, 96
      %v4895 = vpop.permute.xlu0 %4894
      %4896 = vrot.lane.b32.xlu0 %v2022, 96
      %v4897 = vpop.permute.xlu0 %4896
      %4898 = vrot.lane.b32.xlu0 %v2097, 96
      %v4899 = vpop.permute.xlu0 %4898
      %4900 = vrot.lane.b32.xlu0 %v2099, 96
      %v4901 = vpop.permute.xlu0 %4900
      %4902 = vrot.lane.b32.xlu0 %v2174, 96
      %v4903 = vpop.permute.xlu0 %4902
      %4904 = vrot.lane.b32.xlu0 %v2176, 96
      %v4905 = vpop.permute.xlu0 %4904
      %vm4906 = vcmask 785408
      %v4907 = vsel %vm4906, %v4875, %v4877
      %v4908 = vsel %vm4906, %v4877, %v4879
      %v4909 = vsel %vm4906, %v4879, %v4881
      %v4910 = vsel %vm4906, %v4881, %v4883
      %v4911 = vsel %vm4906, %v4883, %v4885
      %v4912 = vsel %vm4906, %v4885, %v4887
      %v4913 = vsel %vm4906, %v4887, %v4889
      %v4914 = vsel %vm4906, %v4891, %v4893
      %v4915 = vsel %vm4906, %v4893, %v4895
      %v4916 = vsel %vm4906, %v4895, %v4897
      %v4917 = vsel %vm4906, %v4897, %v4899
      %v4918 = vsel %vm4906, %v4899, %v4901
      %v4919 = vsel %vm4906, %v4901, %v4903
      %v4920 = vsel %vm4906, %v4903, %v4905
      %v4937 = vsel %vm4906, %v4889, 0.0
      %v4938 = vsel %vm4906, %v4905, 0.0
      %s4939 = scalar_lea.vmem %s5, 56
      %v4940 = vld [vmem:[%s4939] sm:$0xff]
      %v4942 = vsel %vm534, %v4940, 0
      %4944 = vmatprep.subr.mxu0 %v4908
      %4945 = vmatpush1.msra.mxu0 %v4907
      %4946 = vmatprep.subr.mxu0 %v4915
      %4947 = vmatpush1.msra.mxu0 %v4914
      %4948 = vmatprep.subr.mxu0 0.0
      %4949 = vmatpush1.msra.mxu0 0.0
      %4950 = vmatprep.subr.mxu0 0.0
      %4951 = vmatpush1.msra.mxu0 0.0
      %4952 = vmatprep.subr.mxu0 0.0
      %4953 = vmatpush1.msra.mxu0 0.0
      %4954 = vmatprep.subr.mxu0 0.0
      %4955 = vmatpush1.msra.mxu0 0.0
      %4956 = vmatprep.subr.mxu0 0.0
      %4957 = vmatpush1.msra.mxu0 0.0
      %4958 = vmatprep.subr.mxu0 0.0
      %4959 = vmatpush1.msra.mxu0 0.0
      %4960 = vmatprep.subr.mxu0 0.0
      %4961 = vmatpush1.msra.mxu0 0.0
      %4962 = vmatprep.subr.mxu0 0.0
      %4963 = vmatpush1.msra.mxu0 0.0
      %4964 = vmatprep.subr.mxu0 0.0
      %4965 = vmatpush1.msra.mxu0 0.0
      %4966 = vmatprep.subr.mxu0 0.0
      %4967 = vmatpush1.msra.mxu0 0.0
      %4968 = vmatprep.subr.mxu0 0.0
      %4969 = vmatpush1.msra.mxu0 0.0
      %4970 = vmatprep.subr.mxu0 0.0
      %4971 = vmatpush1.msra.mxu0 0.0
      %4972 = vmatprep.subr.mxu0 0.0
      %4973 = vmatpush1.msra.mxu0 0.0
      %4974 = vmatprep.subr.mxu0 0.0
      %4975 = vmatpush1.msra.mxu0 0.0
      %4976 = vmatprep.subr.mxu0 0.0
      %4977 = vmatpush1.msra.mxu0 0.0
      %4978 = vmatprep.subr.mxu0 0.0
      %4979 = vmatpush1.msra.mxu0 0.0
      %4980 = vmatprep.subr.mxu0 0.0
      %4981 = vmatpush1.msra.mxu0 0.0
      %4982 = vmatprep.subr.mxu0 0.0
      %4983 = vmatpush1.msra.mxu0 0.0
      %4984 = vmatprep.subr.mxu0 0.0
      %4985 = vmatpush1.msra.mxu0 0.0
      %4986 = vmatprep.subr.mxu0 0.0
      %4987 = vmatpush1.msra.mxu0 0.0
      %4988 = vmatprep.subr.mxu0 0.0
      %4989 = vmatpush1.msra.mxu0 0.0
      %4990 = vmatprep.subr.mxu0 0.0
      %4991 = vmatpush1.msra.mxu0 0.0
      %4992 = vmatprep.subr.mxu0 0.0
      %4993 = vmatpush1.msra.mxu0 0.0
      %4994 = vmatprep.subr.mxu0 0.0
      %4995 = vmatpush1.msra.mxu0 0.0
      %4996 = vmatprep.subr.mxu0 0.0
      %4997 = vmatpush1.msra.mxu0 0.0
      %4998 = vmatprep.subr.mxu0 0.0
      %4999 = vmatpush1.msra.mxu0 0.0
      %5000 = vmatprep.subr.mxu0 0.0
      %5001 = vmatpush1.msra.mxu0 0.0
      %5002 = vmatprep.subr.mxu0 0.0
      %5003 = vmatpush1.msra.mxu0 0.0
      %5004 = vmatprep.subr.mxu0 0.0
      %5005 = vmatpush1.msra.mxu0 0.0
      %5006 = vmatprep.subr.mxu0 0.0
      %5007 = vmatpush1.msra.mxu0 0.0
      %5008 = vmatprep.mubr.f32.mxu0 0.0
      %5009 = vmatmul.mubr.f32.gmra.mrb[0].mxu0 %v4942
      %v5010 = vpop.f32.mrb[0].mxu0
      %v5011 = vadd.f32 0.0, %v5010
      %v5012 = vpop.f32.mrb[0].mxu0
      %v5013 = vadd.f32 0.0, %v5012
      %5014 = vdwg.mxu0
      %5015 = vmatprep.subr.mxu0 %v4910
      %5016 = vmatpush1.msra.mxu0 %v4909
      %5017 = vmatprep.subr.mxu0 %v4917
      %5018 = vmatpush1.msra.mxu0 %v4916
      %5019 = vmatprep.subr.mxu0 0.0
      %5020 = vmatpush1.msra.mxu0 0.0
      %5021 = vmatprep.subr.mxu0 0.0
      %5022 = vmatpush1.msra.mxu0 0.0
      %5023 = vmatprep.subr.mxu0 0.0
      %5024 = vmatpush1.msra.mxu0 0.0
      %5025 = vmatprep.subr.mxu0 0.0
      %5026 = vmatpush1.msra.mxu0 0.0
      %5027 = vmatprep.subr.mxu0 0.0
      %5028 = vmatpush1.msra.mxu0 0.0
      %5029 = vmatprep.subr.mxu0 0.0
      %5030 = vmatpush1.msra.mxu0 0.0
      %5031 = vmatprep.subr.mxu0 0.0
      %5032 = vmatpush1.msra.mxu0 0.0
      %5033 = vmatprep.subr.mxu0 0.0
      %5034 = vmatpush1.msra.mxu0 0.0
      %5035 = vmatprep.subr.mxu0 0.0
      %5036 = vmatpush1.msra.mxu0 0.0
      %5037 = vmatprep.subr.mxu0 0.0
      %5038 = vmatpush1.msra.mxu0 0.0
      %5039 = vmatprep.subr.mxu0 0.0
      %5040 = vmatpush1.msra.mxu0 0.0
      %5041 = vmatprep.subr.mxu0 0.0
      %5042 = vmatpush1.msra.mxu0 0.0
      %5043 = vmatprep.subr.mxu0 0.0
      %5044 = vmatpush1.msra.mxu0 0.0
      %5045 = vmatprep.subr.mxu0 0.0
      %5046 = vmatpush1.msra.mxu0 0.0
      %5047 = vmatprep.subr.mxu0 0.0
      %5048 = vmatpush1.msra.mxu0 0.0
      %5049 = vmatprep.subr.mxu0 0.0
      %5050 = vmatpush1.msra.mxu0 0.0
      %5051 = vmatprep.subr.mxu0 0.0
      %5052 = vmatpush1.msra.mxu0 0.0
      %5053 = vmatprep.subr.mxu0 0.0
      %5054 = vmatpush1.msra.mxu0 0.0
      %5055 = vmatprep.subr.mxu0 0.0
      %5056 = vmatpush1.msra.mxu0 0.0
      %5057 = vmatprep.subr.mxu0 0.0
      %5058 = vmatpush1.msra.mxu0 0.0
      %5059 = vmatprep.subr.mxu0 0.0
      %5060 = vmatpush1.msra.mxu0 0.0
      %5061 = vmatprep.subr.mxu0 0.0
      %5062 = vmatpush1.msra.mxu0 0.0
      %5063 = vmatprep.subr.mxu0 0.0
      %5064 = vmatpush1.msra.mxu0 0.0
      %5065 = vmatprep.subr.mxu0 0.0
      %5066 = vmatpush1.msra.mxu0 0.0
      %5067 = vmatprep.subr.mxu0 0.0
      %5068 = vmatpush1.msra.mxu0 0.0
      %5069 = vmatprep.subr.mxu0 0.0
      %5070 = vmatpush1.msra.mxu0 0.0
      %5071 = vmatprep.subr.mxu0 0.0
      %5072 = vmatpush1.msra.mxu0 0.0
      %5073 = vmatprep.subr.mxu0 0.0
      %5074 = vmatpush1.msra.mxu0 0.0
      %5075 = vmatprep.subr.mxu0 0.0
      %5076 = vmatpush1.msra.mxu0 0.0
      %5077 = vmatprep.subr.mxu0 0.0
      %5078 = vmatpush1.msra.mxu0 0.0
      %5079 = vmatprep.mubr.f32.mxu0 0.0
      %5080 = vmatmul.mubr.f32.gmra.mrb[0].mxu0 %v4942
      %v5081 = vpop.f32.mrb[0].mxu0
      %v5082 = vadd.f32 0.0, %v5081
      %v5083 = vpop.f32.mrb[0].mxu0
      %v5084 = vadd.f32 0.0, %v5083
      %5085 = vdwg.mxu0
      %5086 = vmatprep.subr.mxu0 %v4912
      %5087 = vmatpush1.msra.mxu0 %v4911
      %5088 = vmatprep.subr.mxu0 %v4919
      %5089 = vmatpush1.msra.mxu0 %v4918
      %5090 = vmatprep.subr.mxu0 0.0
      %5091 = vmatpush1.msra.mxu0 0.0
      %5092 = vmatprep.subr.mxu0 0.0
      %5093 = vmatpush1.msra.mxu0 0.0
      %5094 = vmatprep.subr.mxu0 0.0
      %5095 = vmatpush1.msra.mxu0 0.0
      %5096 = vmatprep.subr.mxu0 0.0
      %5097 = vmatpush1.msra.mxu0 0.0
      %5098 = vmatprep.subr.mxu0 0.0
      %5099 = vmatpush1.msra.mxu0 0.0
      %5100 = vmatprep.subr.mxu0 0.0
      %5101 = vmatpush1.msra.mxu0 0.0
      %5102 = vmatprep.subr.mxu0 0.0
      %5103 = vmatpush1.msra.mxu0 0.0
      %5104 = vmatprep.subr.mxu0 0.0
      %5105 = vmatpush1.msra.mxu0 0.0
      %5106 = vmatprep.subr.mxu0 0.0
      %5107 = vmatpush1.msra.mxu0 0.0
      %5108 = vmatprep.subr.mxu0 0.0
      %5109 = vmatpush1.msra.mxu0 0.0
      %5110 = vmatprep.subr.mxu0 0.0
      %5111 = vmatpush1.msra.mxu0 0.0
      %5112 = vmatprep.subr.mxu0 0.0
      %5113 = vmatpush1.msra.mxu0 0.0
      %5114 = vmatprep.subr.mxu0 0.0
      %5115 = vmatpush1.msra.mxu0 0.0
      %5116 = vmatprep.subr.mxu0 0.0
      %5117 = vmatpush1.msra.mxu0 0.0
      %5118 = vmatprep.subr.mxu0 0.0
      %5119 = vmatpush1.msra.mxu0 0.0
      %5120 = vmatprep.subr.mxu0 0.0
      %5121 = vmatpush1.msra.mxu0 0.0
      %5122 = vmatprep.subr.mxu0 0.0
      %5123 = vmatpush1.msra.mxu0 0.0
      %5124 = vmatprep.subr.mxu0 0.0
      %5125 = vmatpush1.msra.mxu0 0.0
      %5126 = vmatprep.subr.mxu0 0.0
      %5127 = vmatpush1.msra.mxu0 0.0
      %5128 = vmatprep.subr.mxu0 0.0
      %5129 = vmatpush1.msra.mxu0 0.0
      %5130 = vmatprep.subr.mxu0 0.0
      %5131 = vmatpush1.msra.mxu0 0.0
      %5132 = vmatprep.subr.mxu0 0.0
      %5133 = vmatpush1.msra.mxu0 0.0
      %5134 = vmatprep.subr.mxu0 0.0
      %5135 = vmatpush1.msra.mxu0 0.0
      %5136 = vmatprep.subr.mxu0 0.0
      %5137 = vmatpush1.msra.mxu0 0.0
      %5138 = vmatprep.subr.mxu0 0.0
      %5139 = vmatpush1.msra.mxu0 0.0
      %5140 = vmatprep.subr.mxu0 0.0
      %5141 = vmatpush1.msra.mxu0 0.0
      %5142 = vmatprep.subr.mxu0 0.0
      %5143 = vmatpush1.msra.mxu0 0.0
      %5144 = vmatprep.subr.mxu0 0.0
      %5145 = vmatpush1.msra.mxu0 0.0
      %5146 = vmatprep.subr.mxu0 0.0
      %5147 = vmatpush1.msra.mxu0 0.0
      %5148 = vmatprep.subr.mxu0 0.0
      %5149 = vmatpush1.msra.mxu0 0.0
      %5150 = vmatprep.mubr.f32.mxu0 0.0
      %5151 = vmatmul.mubr.f32.gmra.mrb[0].mxu0 %v4942
      %v5152 = vpop.f32.mrb[0].mxu0
      %v5153 = vadd.f32 0.0, %v5152
      %v5154 = vpop.f32.mrb[0].mxu0
      %v5155 = vadd.f32 0.0, %v5154
      %5156 = vdwg.mxu0
      %5157 = vmatprep.subr.mxu0 %v4937
      %5158 = vmatpush1.msra.mxu0 %v4913
      %5159 = vmatprep.subr.mxu0 %v4938
      %5160 = vmatpush1.msra.mxu0 %v4920
      %5161 = vmatprep.subr.mxu0 0.0
      %5162 = vmatpush1.msra.mxu0 0.0
      %5163 = vmatprep.subr.mxu0 0.0
      %5164 = vmatpush1.msra.mxu0 0.0
      %5165 = vmatprep.subr.mxu0 0.0
      %5166 = vmatpush1.msra.mxu0 0.0
      %5167 = vmatprep.subr.mxu0 0.0
      %5168 = vmatpush1.msra.mxu0 0.0
      %5169 = vmatprep.subr.mxu0 0.0
      %5170 = vmatpush1.msra.mxu0 0.0
      %5171 = vmatprep.subr.mxu0 0.0
      %5172 = vmatpush1.msra.mxu0 0.0
      %5173 = vmatprep.subr.mxu0 0.0
      %5174 = vmatpush1.msra.mxu0 0.0
      %5175 = vmatprep.subr.mxu0 0.0
      %5176 = vmatpush1.msra.mxu0 0.0
      %5177 = vmatprep.subr.mxu0 0.0
      %5178 = vmatpush1.msra.mxu0 0.0
      %5179 = vmatprep.subr.mxu0 0.0
      %5180 = vmatpush1.msra.mxu0 0.0
      %5181 = vmatprep.subr.mxu0 0.0
      %5182 = vmatpush1.msra.mxu0 0.0
      %5183 = vmatprep.subr.mxu0 0.0
      %5184 = vmatpush1.msra.mxu0 0.0
      %5185 = vmatprep.subr.mxu0 0.0
      %5186 = vmatpush1.msra.mxu0 0.0
      %5187 = vmatprep.subr.mxu0 0.0
      %5188 = vmatpush1.msra.mxu0 0.0
      %5189 = vmatprep.subr.mxu0 0.0
      %5190 = vmatpush1.msra.mxu0 0.0
      %5191 = vmatprep.subr.mxu0 0.0
      %5192 = vmatpush1.msra.mxu0 0.0
      %5193 = vmatprep.subr.mxu0 0.0
      %5194 = vmatpush1.msra.mxu0 0.0
      %5195 = vmatprep.subr.mxu0 0.0
      %5196 = vmatpush1.msra.mxu0 0.0
      %5197 = vmatprep.subr.mxu0 0.0
      %5198 = vmatpush1.msra.mxu0 0.0
      %5199 = vmatprep.subr.mxu0 0.0
      %5200 = vmatpush1.msra.mxu0 0.0
      %5201 = vmatprep.subr.mxu0 0.0
      %5202 = vmatpush1.msra.mxu0 0.0
      %5203 = vmatprep.subr.mxu0 0.0
      %5204 = vmatpush1.msra.mxu0 0.0
      %5205 = vmatprep.subr.mxu0 0.0
      %5206 = vmatpush1.msra.mxu0 0.0
      %5207 = vmatprep.subr.mxu0 0.0
      %5208 = vmatpush1.msra.mxu0 0.0
      %5209 = vmatprep.subr.mxu0 0.0
      %5210 = vmatpush1.msra.mxu0 0.0
      %5211 = vmatprep.subr.mxu0 0.0
      %5212 = vmatpush1.msra.mxu0 0.0
      %5213 = vmatprep.subr.mxu0 0.0
      %5214 = vmatpush1.msra.mxu0 0.0
      %5215 = vmatprep.subr.mxu0 0.0
      %5216 = vmatpush1.msra.mxu0 0.0
      %5217 = vmatprep.subr.mxu0 0.0
      %5218 = vmatpush1.msra.mxu0 0.0
      %5219 = vmatprep.subr.mxu0 0.0
      %5220 = vmatpush1.msra.mxu0 0.0
      %5221 = vmatprep.mubr.f32.mxu0 0.0
      %5222 = vmatmul.mubr.f32.gmra.mrb[0].mxu0 %v4942
      %v5223 = vpop.f32.mrb[0].mxu0
      %v5224 = vadd.f32 0.0, %v5223
      %v5225 = vpop.f32.mrb[0].mxu0
      %v5226 = vadd.f32 0.0, %v5225
      %5227 = vdwg.mxu0
      %v5228 = vadd.f32 %v4866, %v5011
      %v5229 = vadd.f32 %v4867, %v5013
      %v5230 = vadd.f32 %v4868, %v5082
      %v5231 = vadd.f32 %v4869, %v5084
      %v5232 = vadd.f32 %v4870, %v5153
      %v5233 = vadd.f32 %v4871, %v5155
      %v5234 = vadd.f32 %v4872, %v5224
      %v5235 = vadd.f32 %v4873, %v5226
      %5236 = vrot.lane.b32.xlu0 %v1937, 95
      %v5237 = vpop.permute.xlu0 %5236
      %5238 = vrot.lane.b32.xlu0 %v1939, 95
      %v5239 = vpop.permute.xlu0 %5238
      %5240 = vrot.lane.b32.xlu0 %v2014, 95
      %v5241 = vpop.permute.xlu0 %5240
      %5242 = vrot.lane.b32.xlu0 %v2016, 95
      %v5243 = vpop.permute.xlu0 %5242
      %5244 = vrot.lane.b32.xlu0 %v2091, 95
      %v5245 = vpop.permute.xlu0 %5244
      %5246 = vrot.lane.b32.xlu0 %v2093, 95
      %v5247 = vpop.permute.xlu0 %5246
      %5248 = vrot.lane.b32.xlu0 %v2168, 95
      %v5249 = vpop.permute.xlu0 %5248
      %5250 = vrot.lane.b32.xlu0 %v2170, 95
      %v5251 = vpop.permute.xlu0 %5250
      %5252 = vrot.lane.b32.xlu0 %v1943, 95
      %v5253 = vpop.permute.xlu0 %5252
      %5254 = vrot.lane.b32.xlu0 %v1945, 95
      %v5255 = vpop.permute.xlu0 %5254
      %5256 = vrot.lane.b32.xlu0 %v2020, 95
      %v5257 = vpop.permute.xlu0 %5256
      %5258 = vrot.lane.b32.xlu0 %v2022, 95
      %v5259 = vpop.permute.xlu0 %5258
      %5260 = vrot.lane.b32.xlu0 %v2097, 95
      %v5261 = vpop.permute.xlu0 %5260
      %5262 = vrot.lane.b32.xlu0 %v2099, 95
      %v5263 = vpop.permute.xlu0 %5262
      %5264 = vrot.lane.b32.xlu0 %v2174, 95
      %v5265 = vpop.permute.xlu0 %5264
      %5266 = vrot.lane.b32.xlu0 %v2176, 95
      %v5267 = vpop.permute.xlu0 %5266
      %vm5268 = vcmask 777216
      %v5269 = vsel %vm5268, %v5237, %v5239
      %v5270 = vsel %vm5268, %v5239, %v5241
      %v5271 = vsel %vm5268, %v5241, %v5243
      %v5272 = vsel %vm5268, %v5243, %v5245
      %v5273 = vsel %vm5268, %v5245, %v5247
      %v5274 = vsel %vm5268, %v5247, %v5249
      %v5275 = vsel %vm5268, %v5249, %v5251
      %v5276 = vsel %vm5268, %v5253, %v5255
      %v5277 = vsel %vm5268, %v5255, %v5257
      %v5278 = vsel %vm5268, %v5257, %v5259
      %v5279 = vsel %vm5268, %v5259, %v5261
      %v5280 = vsel %vm5268, %v5261, %v5263
      %v5281 = vsel %vm5268, %v5263, %v5265
      %v5282 = vsel %vm5268, %v5265, %v5267
      %v5299 = vsel %vm5268, %v5251, 0.0
      %v5300 = vsel %vm5268, %v5267, 0.0
      %v5301 = vsel %vm3124, %v5269, 0.0
      %v5302 = vsel %vm3125, %v5270, 0.0
      %v5303 = vsel %vm3126, %v5271, 0.0
      %v5304 = vsel %vm3127, %v5272, 0.0
      %v5305 = vsel %vm3128, %v5273, 0.0
      %v5306 = vsel %vm3129, %v5274, 0.0
      %v5307 = vsel %vm3130, %v5275, 0.0
      %v5308 = vsel %vm3131, %v5299, 0.0
      %v5309 = vsel %vm3124, %v5276, 0.0
      %v5310 = vsel %vm3125, %v5277, 0.0
      %v5311 = vsel %vm3126, %v5278, 0.0
      %v5312 = vsel %vm3127, %v5279, 0.0
      %v5313 = vsel %vm3128, %v5280, 0.0
      %v5314 = vsel %vm3129, %v5281, 0.0
      %v5315 = vsel %vm3130, %v5282, 0.0
      %v5316 = vsel %vm3131, %v5300, 0.0
      %s5317 = scalar_lea.vmem %s5, 64
      %v5318 = vld [vmem:[%s5317] sm:$0xff]
      %v5320 = vsel %vm534, %v5318, 0
      %5322 = vmatprep.subr.mxu0 %v5302
      %5323 = vmatpush1.msra.mxu0 %v5301
      %5324 = vmatprep.subr.mxu0 %v5310
      %5325 = vmatpush1.msra.mxu0 %v5309
      %5326 = vmatprep.subr.mxu0 0.0
      %5327 = vmatpush1.msra.mxu0 0.0
      %5328 = vmatprep.subr.mxu0 0.0
      %5329 = vmatpush1.msra.mxu0 0.0
      %5330 = vmatprep.subr.mxu0 0.0
      %5331 = vmatpush1.msra.mxu0 0.0
      %5332 = vmatprep.subr.mxu0 0.0
      %5333 = vmatpush1.msra.mxu0 0.0
      %5334 = vmatprep.subr.mxu0 0.0
      %5335 = vmatpush1.msra.mxu0 0.0
      %5336 = vmatprep.subr.mxu0 0.0
      %5337 = vmatpush1.msra.mxu0 0.0
      %5338 = vmatprep.subr.mxu0 0.0
      %5339 = vmatpush1.msra.mxu0 0.0
      %5340 = vmatprep.subr.mxu0 0.0
      %5341 = vmatpush1.msra.mxu0 0.0
      %5342 = vmatprep.subr.mxu0 0.0
      %5343 = vmatpush1.msra.mxu0 0.0
      %5344 = vmatprep.subr.mxu0 0.0
      %5345 = vmatpush1.msra.mxu0 0.0
      %5346 = vmatprep.subr.mxu0 0.0
      %5347 = vmatpush1.msra.mxu0 0.0
      %5348 = vmatprep.subr.mxu0 0.0
      %5349 = vmatpush1.msra.mxu0 0.0
      %5350 = vmatprep.subr.mxu0 0.0
      %5351 = vmatpush1.msra.mxu0 0.0
      %5352 = vmatprep.subr.mxu0 0.0
      %5353 = vmatpush1.msra.mxu0 0.0
      %5354 = vmatprep.subr.mxu0 0.0
      %5355 = vmatpush1.msra.mxu0 0.0
      %5356 = vmatprep.subr.mxu0 0.0
      %5357 = vmatpush1.msra.mxu0 0.0
      %5358 = vmatprep.subr.mxu0 0.0
      %5359 = vmatpush1.msra.mxu0 0.0
      %5360 = vmatprep.subr.mxu0 0.0
      %5361 = vmatpush1.msra.mxu0 0.0
      %5362 = vmatprep.subr.mxu0 0.0
      %5363 = vmatpush1.msra.mxu0 0.0
      %5364 = vmatprep.subr.mxu0 0.0
      %5365 = vmatpush1.msra.mxu0 0.0
      %5366 = vmatprep.subr.mxu0 0.0
      %5367 = vmatpush1.msra.mxu0 0.0
      %5368 = vmatprep.subr.mxu0 0.0
      %5369 = vmatpush1.msra.mxu0 0.0
      %5370 = vmatprep.subr.mxu0 0.0
      %5371 = vmatpush1.msra.mxu0 0.0
      %5372 = vmatprep.subr.mxu0 0.0
      %5373 = vmatpush1.msra.mxu0 0.0
      %5374 = vmatprep.subr.mxu0 0.0
      %5375 = vmatpush1.msra.mxu0 0.0
      %5376 = vmatprep.subr.mxu0 0.0
      %5377 = vmatpush1.msra.mxu0 0.0
      %5378 = vmatprep.subr.mxu0 0.0
      %5379 = vmatpush1.msra.mxu0 0.0
      %5380 = vmatprep.subr.mxu0 0.0
      %5381 = vmatpush1.msra.mxu0 0.0
      %5382 = vmatprep.subr.mxu0 0.0
      %5383 = vmatpush1.msra.mxu0 0.0
      %5384 = vmatprep.subr.mxu0 0.0
      %5385 = vmatpush1.msra.mxu0 0.0
      %5386 = vmatprep.mubr.f32.mxu0 0.0
      %5387 = vmatmul.mubr.f32.gmra.mrb[0].mxu0 %v5320
      %v5388 = vpop.f32.mrb[0].mxu0
      %v5389 = vadd.f32 0.0, %v5388
      %v5390 = vpop.f32.mrb[0].mxu0
      %v5391 = vadd.f32 0.0, %v5390
      %5392 = vdwg.mxu0
      %5393 = vmatprep.subr.mxu0 %v5304
      %5394 = vmatpush1.msra.mxu0 %v5303
      %5395 = vmatprep.subr.mxu0 %v5312
      %5396 = vmatpush1.msra.mxu0 %v5311
      %5397 = vmatprep.subr.mxu0 0.0
      %5398 = vmatpush1.msra.mxu0 0.0
      %5399 = vmatprep.subr.mxu0 0.0
      %5400 = vmatpush1.msra.mxu0 0.0
      %5401 = vmatprep.subr.mxu0 0.0
      %5402 = vmatpush1.msra.mxu0 0.0
      %5403 = vmatprep.subr.mxu0 0.0
      %5404 = vmatpush1.msra.mxu0 0.0
      %5405 = vmatprep.subr.mxu0 0.0
      %5406 = vmatpush1.msra.mxu0 0.0
      %5407 = vmatprep.subr.mxu0 0.0
      %5408 = vmatpush1.msra.mxu0 0.0
      %5409 = vmatprep.subr.mxu0 0.0
      %5410 = vmatpush1.msra.mxu0 0.0
      %5411 = vmatprep.subr.mxu0 0.0
      %5412 = vmatpush1.msra.mxu0 0.0
      %5413 = vmatprep.subr.mxu0 0.0
      %5414 = vmatpush1.msra.mxu0 0.0
      %5415 = vmatprep.subr.mxu0 0.0
      %5416 = vmatpush1.msra.mxu0 0.0
      %5417 = vmatprep.subr.mxu0 0.0
      %5418 = vmatpush1.msra.mxu0 0.0
      %5419 = vmatprep.subr.mxu0 0.0
      %5420 = vmatpush1.msra.mxu0 0.0
      %5421 = vmatprep.subr.mxu0 0.0
      %5422 = vmatpush1.msra.mxu0 0.0
      %5423 = vmatprep.subr.mxu0 0.0
      %5424 = vmatpush1.msra.mxu0 0.0
      %5425 = vmatprep.subr.mxu0 0.0
      %5426 = vmatpush1.msra.mxu0 0.0
      %5427 = vmatprep.subr.mxu0 0.0
      %5428 = vmatpush1.msra.mxu0 0.0
      %5429 = vmatprep.subr.mxu0 0.0
      %5430 = vmatpush1.msra.mxu0 0.0
      %5431 = vmatprep.subr.mxu0 0.0
      %5432 = vmatpush1.msra.mxu0 0.0
      %5433 = vmatprep.subr.mxu0 0.0
      %5434 = vmatpush1.msra.mxu0 0.0
      %5435 = vmatprep.subr.mxu0 0.0
      %5436 = vmatpush1.msra.mxu0 0.0
      %5437 = vmatprep.subr.mxu0 0.0
      %5438 = vmatpush1.msra.mxu0 0.0
      %5439 = vmatprep.subr.mxu0 0.0
      %5440 = vmatpush1.msra.mxu0 0.0
      %5441 = vmatprep.subr.mxu0 0.0
      %5442 = vmatpush1.msra.mxu0 0.0
      %5443 = vmatprep.subr.mxu0 0.0
      %5444 = vmatpush1.msra.mxu0 0.0
      %5445 = vmatprep.subr.mxu0 0.0
      %5446 = vmatpush1.msra.mxu0 0.0
      %5447 = vmatprep.subr.mxu0 0.0
      %5448 = vmatpush1.msra.mxu0 0.0
      %5449 = vmatprep.subr.mxu0 0.0
      %5450 = vmatpush1.msra.mxu0 0.0
      %5451 = vmatprep.subr.mxu0 0.0
      %5452 = vmatpush1.msra.mxu0 0.0
      %5453 = vmatprep.subr.mxu0 0.0
      %5454 = vmatpush1.msra.mxu0 0.0
      %5455 = vmatprep.subr.mxu0 0.0
      %5456 = vmatpush1.msra.mxu0 0.0
      %5457 = vmatprep.mubr.f32.mxu0 0.0
      %5458 = vmatmul.mubr.f32.gmra.mrb[0].mxu0 %v5320
      %v5459 = vpop.f32.mrb[0].mxu0
      %v5460 = vadd.f32 0.0, %v5459
      %v5461 = vpop.f32.mrb[0].mxu0
      %v5462 = vadd.f32 0.0, %v5461
      %5463 = vdwg.mxu0
      %5464 = vmatprep.subr.mxu0 %v5306
      %5465 = vmatpush1.msra.mxu0 %v5305
      %5466 = vmatprep.subr.mxu0 %v5314
      %5467 = vmatpush1.msra.mxu0 %v5313
      %5468 = vmatprep.subr.mxu0 0.0
      %5469 = vmatpush1.msra.mxu0 0.0
      %5470 = vmatprep.subr.mxu0 0.0
      %5471 = vmatpush1.msra.mxu0 0.0
      %5472 = vmatprep.subr.mxu0 0.0
      %5473 = vmatpush1.msra.mxu0 0.0
      %5474 = vmatprep.subr.mxu0 0.0
      %5475 = vmatpush1.msra.mxu0 0.0
      %5476 = vmatprep.subr.mxu0 0.0
      %5477 = vmatpush1.msra.mxu0 0.0
      %5478 = vmatprep.subr.mxu0 0.0
      %5479 = vmatpush1.msra.mxu0 0.0
      %5480 = vmatprep.subr.mxu0 0.0
      %5481 = vmatpush1.msra.mxu0 0.0
      %5482 = vmatprep.subr.mxu0 0.0
      %5483 = vmatpush1.msra.mxu0 0.0
      %5484 = vmatprep.subr.mxu0 0.0
      %5485 = vmatpush1.msra.mxu0 0.0
      %5486 = vmatprep.subr.mxu0 0.0
      %5487 = vmatpush1.msra.mxu0 0.0
      %5488 = vmatprep.subr.mxu0 0.0
      %5489 = vmatpush1.msra.mxu0 0.0
      %5490 = vmatprep.subr.mxu0 0.0
      %5491 = vmatpush1.msra.mxu0 0.0
      %5492 = vmatprep.subr.mxu0 0.0
      %5493 = vmatpush1.msra.mxu0 0.0
      %5494 = vmatprep.subr.mxu0 0.0
      %5495 = vmatpush1.msra.mxu0 0.0
      %5496 = vmatprep.subr.mxu0 0.0
      %5497 = vmatpush1.msra.mxu0 0.0
      %5498 = vmatprep.subr.mxu0 0.0
      %5499 = vmatpush1.msra.mxu0 0.0
      %5500 = vmatprep.subr.mxu0 0.0
      %5501 = vmatpush1.msra.mxu0 0.0
      %5502 = vmatprep.subr.mxu0 0.0
      %5503 = vmatpush1.msra.mxu0 0.0
      %5504 = vmatprep.subr.mxu0 0.0
      %5505 = vmatpush1.msra.mxu0 0.0
      %5506 = vmatprep.subr.mxu0 0.0
      %5507 = vmatpush1.msra.mxu0 0.0
      %5508 = vmatprep.subr.mxu0 0.0
      %5509 = vmatpush1.msra.mxu0 0.0
      %5510 = vmatprep.subr.mxu0 0.0
      %5511 = vmatpush1.msra.mxu0 0.0
      %5512 = vmatprep.subr.mxu0 0.0
      %5513 = vmatpush1.msra.mxu0 0.0
      %5514 = vmatprep.subr.mxu0 0.0
      %5515 = vmatpush1.msra.mxu0 0.0
      %5516 = vmatprep.subr.mxu0 0.0
      %5517 = vmatpush1.msra.mxu0 0.0
      %5518 = vmatprep.subr.mxu0 0.0
      %5519 = vmatpush1.msra.mxu0 0.0
      %5520 = vmatprep.subr.mxu0 0.0
      %5521 = vmatpush1.msra.mxu0 0.0
      %5522 = vmatprep.subr.mxu0 0.0
      %5523 = vmatpush1.msra.mxu0 0.0
      %5524 = vmatprep.subr.mxu0 0.0
      %5525 = vmatpush1.msra.mxu0 0.0
      %5526 = vmatprep.subr.mxu0 0.0
      %5527 = vmatpush1.msra.mxu0 0.0
      %5528 = vmatprep.mubr.f32.mxu0 0.0
      %5529 = vmatmul.mubr.f32.gmra.mrb[0].mxu0 %v5320
      %v5530 = vpop.f32.mrb[0].mxu0
      %v5531 = vadd.f32 0.0, %v5530
      %v5532 = vpop.f32.mrb[0].mxu0
      %v5533 = vadd.f32 0.0, %v5532
      %5534 = vdwg.mxu0
      %5535 = vmatprep.subr.mxu0 %v5308
      %5536 = vmatpush1.msra.mxu0 %v5307
      %5537 = vmatprep.subr.mxu0 %v5316
      %5538 = vmatpush1.msra.mxu0 %v5315
      %5539 = vmatprep.subr.mxu0 0.0
      %5540 = vmatpush1.msra.mxu0 0.0
      %5541 = vmatprep.subr.mxu0 0.0
      %5542 = vmatpush1.msra.mxu0 0.0
      %5543 = vmatprep.subr.mxu0 0.0
      %5544 = vmatpush1.msra.mxu0 0.0
      %5545 = vmatprep.subr.mxu0 0.0
      %5546 = vmatpush1.msra.mxu0 0.0
      %5547 = vmatprep.subr.mxu0 0.0
      %5548 = vmatpush1.msra.mxu0 0.0
      %5549 = vmatprep.subr.mxu0 0.0
      %5550 = vmatpush1.msra.mxu0 0.0
      %5551 = vmatprep.subr.mxu0 0.0
      %5552 = vmatpush1.msra.mxu0 0.0
      %5553 = vmatprep.subr.mxu0 0.0
      %5554 = vmatpush1.msra.mxu0 0.0
      %5555 = vmatprep.subr.mxu0 0.0
      %5556 = vmatpush1.msra.mxu0 0.0
      %5557 = vmatprep.subr.mxu0 0.0
      %5558 = vmatpush1.msra.mxu0 0.0
      %5559 = vmatprep.subr.mxu0 0.0
      %5560 = vmatpush1.msra.mxu0 0.0
      %5561 = vmatprep.subr.mxu0 0.0
      %5562 = vmatpush1.msra.mxu0 0.0
      %5563 = vmatprep.subr.mxu0 0.0
      %5564 = vmatpush1.msra.mxu0 0.0
      %5565 = vmatprep.subr.mxu0 0.0
      %5566 = vmatpush1.msra.mxu0 0.0
      %5567 = vmatprep.subr.mxu0 0.0
      %5568 = vmatpush1.msra.mxu0 0.0
      %5569 = vmatprep.subr.mxu0 0.0
      %5570 = vmatpush1.msra.mxu0 0.0
      %5571 = vmatprep.subr.mxu0 0.0
      %5572 = vmatpush1.msra.mxu0 0.0
      %5573 = vmatprep.subr.mxu0 0.0
      %5574 = vmatpush1.msra.mxu0 0.0
      %5575 = vmatprep.subr.mxu0 0.0
      %5576 = vmatpush1.msra.mxu0 0.0
      %5577 = vmatprep.subr.mxu0 0.0
      %5578 = vmatpush1.msra.mxu0 0.0
      %5579 = vmatprep.subr.mxu0 0.0
      %5580 = vmatpush1.msra.mxu0 0.0
      %5581 = vmatprep.subr.mxu0 0.0
      %5582 = vmatpush1.msra.mxu0 0.0
      %5583 = vmatprep.subr.mxu0 0.0
      %5584 = vmatpush1.msra.mxu0 0.0
      %5585 = vmatprep.subr.mxu0 0.0
      %5586 = vmatpush1.msra.mxu0 0.0
      %5587 = vmatprep.subr.mxu0 0.0
      %5588 = vmatpush1.msra.mxu0 0.0
      %5589 = vmatprep.subr.mxu0 0.0
      %5590 = vmatpush1.msra.mxu0 0.0
      %5591 = vmatprep.subr.mxu0 0.0
      %5592 = vmatpush1.msra.mxu0 0.0
      %5593 = vmatprep.subr.mxu0 0.0
      %5594 = vmatpush1.msra.mxu0 0.0
      %5595 = vmatprep.subr.mxu0 0.0
      %5596 = vmatpush1.msra.mxu0 0.0
      %5597 = vmatprep.subr.mxu0 0.0
      %5598 = vmatpush1.msra.mxu0 0.0
      %5599 = vmatprep.mubr.f32.mxu0 0.0
      %5600 = vmatmul.mubr.f32.gmra.mrb[0].mxu0 %v5320
      %v5601 = vpop.f32.mrb[0].mxu0
      %v5602 = vadd.f32 0.0, %v5601
      %v5603 = vpop.f32.mrb[0].mxu0
      %v5604 = vadd.f32 0.0, %v5603
      %5605 = vdwg.mxu0
      %v5606 = vadd.f32 %v5228, %v5389
      %v5607 = vadd.f32 %v5229, %v5391
      %v5608 = vadd.f32 %v5230, %v5460
      %v5609 = vadd.f32 %v5231, %v5462
      %v5610 = vadd.f32 %v5232, %v5531
      %v5611 = vadd.f32 %v5233, %v5533
      %v5612 = vadd.f32 %v5234, %v5602
      %v5613 = vadd.f32 %v5235, %v5604
      %5615 = vset.pattern.permute.xlu0 0
      %5616 = vperm.xlu0 %5615, %v462
      %v5617 = vpop.permute.xlu0 %5616
      %v5619 = vadd.f32 %v5606, %v5617
      %v5620 = vadd.f32 %v5607, %v5617
      %v5621 = vadd.f32 %v5608, %v5617
      %v5622 = vadd.f32 %v5609, %v5617
      %v5623 = vadd.f32 %v5610, %v5617
      %v5624 = vadd.f32 %v5611, %v5617
      %v5625 = vadd.f32 %v5612, %v5617
      %v5626 = vadd.f32 %v5613, %v5617
      %v5627 = vmax.f32 %v5619, 0.0
      %v5628 = vmax.f32 %v5620, 0.0
      %v5629 = vmax.f32 %v5621, 0.0
      %v5630 = vmax.f32 %v5622, 0.0
      %v5631 = vmax.f32 %v5623, 0.0
      %v5632 = vmax.f32 %v5624, 0.0
      %v5633 = vmax.f32 %v5625, 0.0
      %v5634 = vmax.f32 %v5626, 0.0
      %v5635 = vld [vmem:[%s6] sm:$0xff]
      %5637 = vset.pattern.permute.xlu0 0
      %5638 = vperm.xlu0 %5637, %v463
      %v5639 = vpop.permute.xlu0 %5638
      %vm5641 = vcmask 64512
      %v5643 = vsel %vm5641, %v5635, 0
      %5645 = vmatprep.subr.mxu0 %v5628
      %5646 = vmatpush1.msra.mxu0 %v5627
      %5647 = vmatprep.subr.mxu0 0.0
      %5648 = vmatpush1.msra.mxu0 0.0
      %5649 = vmatprep.subr.mxu0 0.0
      %5650 = vmatpush1.msra.mxu0 0.0
      %5651 = vmatprep.subr.mxu0 0.0
      %5652 = vmatpush1.msra.mxu0 0.0
      %5653 = vmatprep.subr.mxu0 0.0
      %5654 = vmatpush1.msra.mxu0 0.0
      %5655 = vmatprep.subr.mxu0 0.0
      %5656 = vmatpush1.msra.mxu0 0.0
      %5657 = vmatprep.subr.mxu0 0.0
      %5658 = vmatpush1.msra.mxu0 0.0
      %5659 = vmatprep.subr.mxu0 0.0
      %5660 = vmatpush1.msra.mxu0 0.0
      %5661 = vmatprep.subr.mxu0 0.0
      %5662 = vmatpush1.msra.mxu0 0.0
      %5663 = vmatprep.subr.mxu0 0.0
      %5664 = vmatpush1.msra.mxu0 0.0
      %5665 = vmatprep.subr.mxu0 0.0
      %5666 = vmatpush1.msra.mxu0 0.0
      %5667 = vmatprep.subr.mxu0 0.0
      %5668 = vmatpush1.msra.mxu0 0.0
      %5669 = vmatprep.subr.mxu0 0.0
      %5670 = vmatpush1.msra.mxu0 0.0
      %5671 = vmatprep.subr.mxu0 0.0
      %5672 = vmatpush1.msra.mxu0 0.0
      %5673 = vmatprep.subr.mxu0 0.0
      %5674 = vmatpush1.msra.mxu0 0.0
      %5675 = vmatprep.subr.mxu0 0.0
      %5676 = vmatpush1.msra.mxu0 0.0
      %5677 = vmatprep.subr.mxu0 0.0
      %5678 = vmatpush1.msra.mxu0 0.0
      %5679 = vmatprep.subr.mxu0 0.0
      %5680 = vmatpush1.msra.mxu0 0.0
      %5681 = vmatprep.subr.mxu0 0.0
      %5682 = vmatpush1.msra.mxu0 0.0
      %5683 = vmatprep.subr.mxu0 0.0
      %5684 = vmatpush1.msra.mxu0 0.0
      %5685 = vmatprep.subr.mxu0 0.0
      %5686 = vmatpush1.msra.mxu0 0.0
      %5687 = vmatprep.subr.mxu0 0.0
      %5688 = vmatpush1.msra.mxu0 0.0
      %5689 = vmatprep.subr.mxu0 0.0
      %5690 = vmatpush1.msra.mxu0 0.0
      %5691 = vmatprep.subr.mxu0 0.0
      %5692 = vmatpush1.msra.mxu0 0.0
      %5693 = vmatprep.subr.mxu0 0.0
      %5694 = vmatpush1.msra.mxu0 0.0
      %5695 = vmatprep.subr.mxu0 0.0
      %5696 = vmatpush1.msra.mxu0 0.0
      %5697 = vmatprep.subr.mxu0 0.0
      %5698 = vmatpush1.msra.mxu0 0.0
      %5699 = vmatprep.subr.mxu0 0.0
      %5700 = vmatpush1.msra.mxu0 0.0
      %5701 = vmatprep.subr.mxu0 0.0
      %5702 = vmatpush1.msra.mxu0 0.0
      %5703 = vmatprep.subr.mxu0 0.0
      %5704 = vmatpush1.msra.mxu0 0.0
      %5705 = vmatprep.subr.mxu0 0.0
      %5706 = vmatpush1.msra.mxu0 0.0
      %5707 = vmatprep.subr.mxu0 0.0
      %5708 = vmatpush1.msra.mxu0 0.0
      %5709 = vmatprep.mubr.f32.mxu0 0.0
      %5710 = vmatmul.mubr.f32.gmra.mrb[0].mxu0 %v5643
      %v5711 = vpop.f32.mrb[0].mxu0
      %v5712 = vadd.f32 %v5639, %v5711
      %v5713 = vpop.f32.mrb[0].mxu0
      %v5714 = vadd.f32 %v5639, %v5713
      %5715 = vdwg.mxu0
      %5716 = vmatprep.subr.mxu0 %v5630
      %5717 = vmatpush1.msra.mxu0 %v5629
      %5718 = vmatprep.subr.mxu0 0.0
      %5719 = vmatpush1.msra.mxu0 0.0
      %5720 = vmatprep.subr.mxu0 0.0
      %5721 = vmatpush1.msra.mxu0 0.0
      %5722 = vmatprep.subr.mxu0 0.0
      %5723 = vmatpush1.msra.mxu0 0.0
      %5724 = vmatprep.subr.mxu0 0.0
      %5725 = vmatpush1.msra.mxu0 0.0
      %5726 = vmatprep.subr.mxu0 0.0
      %5727 = vmatpush1.msra.mxu0 0.0
      %5728 = vmatprep.subr.mxu0 0.0
      %5729 = vmatpush1.msra.mxu0 0.0
      %5730 = vmatprep.subr.mxu0 0.0
      %5731 = vmatpush1.msra.mxu0 0.0
      %5732 = vmatprep.subr.mxu0 0.0
      %5733 = vmatpush1.msra.mxu0 0.0
      %5734 = vmatprep.subr.mxu0 0.0
      %5735 = vmatpush1.msra.mxu0 0.0
      %5736 = vmatprep.subr.mxu0 0.0
      %5737 = vmatpush1.msra.mxu0 0.0
      %5738 = vmatprep.subr.mxu0 0.0
      %5739 = vmatpush1.msra.mxu0 0.0
      %5740 = vmatprep.subr.mxu0 0.0
      %5741 = vmatpush1.msra.mxu0 0.0
      %5742 = vmatprep.subr.mxu0 0.0
      %5743 = vmatpush1.msra.mxu0 0.0
      %5744 = vmatprep.subr.mxu0 0.0
      %5745 = vmatpush1.msra.mxu0 0.0
      %5746 = vmatprep.subr.mxu0 0.0
      %5747 = vmatpush1.msra.mxu0 0.0
      %5748 = vmatprep.subr.mxu0 0.0
      %5749 = vmatpush1.msra.mxu0 0.0
      %5750 = vmatprep.subr.mxu0 0.0
      %5751 = vmatpush1.msra.mxu0 0.0
      %5752 = vmatprep.subr.mxu0 0.0
      %5753 = vmatpush1.msra.mxu0 0.0
      %5754 = vmatprep.subr.mxu0 0.0
      %5755 = vmatpush1.msra.mxu0 0.0
      %5756 = vmatprep.subr.mxu0 0.0
      %5757 = vmatpush1.msra.mxu0 0.0
      %5758 = vmatprep.subr.mxu0 0.0
      %5759 = vmatpush1.msra.mxu0 0.0
      %5760 = vmatprep.subr.mxu0 0.0
      %5761 = vmatpush1.msra.mxu0 0.0
      %5762 = vmatprep.subr.mxu0 0.0
      %5763 = vmatpush1.msra.mxu0 0.0
      %5764 = vmatprep.subr.mxu0 0.0
      %5765 = vmatpush1.msra.mxu0 0.0
      %5766 = vmatprep.subr.mxu0 0.0
      %5767 = vmatpush1.msra.mxu0 0.0
      %5768 = vmatprep.subr.mxu0 0.0
      %5769 = vmatpush1.msra.mxu0 0.0
      %5770 = vmatprep.subr.mxu0 0.0
      %5771 = vmatpush1.msra.mxu0 0.0
      %5772 = vmatprep.subr.mxu0 0.0
      %5773 = vmatpush1.msra.mxu0 0.0
      %5774 = vmatprep.subr.mxu0 0.0
      %5775 = vmatpush1.msra.mxu0 0.0
      %5776 = vmatprep.subr.mxu0 0.0
      %5777 = vmatpush1.msra.mxu0 0.0
      %5778 = vmatprep.subr.mxu0 0.0
      %5779 = vmatpush1.msra.mxu0 0.0
      %5780 = vmatprep.mubr.f32.mxu0 0.0
      %5781 = vmatmul.mubr.f32.gmra.mrb[0].mxu0 %v5643
      %v5782 = vpop.f32.mrb[0].mxu0
      %v5783 = vadd.f32 %v5639, %v5782
      %v5784 = vpop.f32.mrb[0].mxu0
      %v5785 = vadd.f32 %v5639, %v5784
      %5786 = vdwg.mxu0
      %5787 = vmatprep.subr.mxu0 %v5632
      %5788 = vmatpush1.msra.mxu0 %v5631
      %5789 = vmatprep.subr.mxu0 0.0
      %5790 = vmatpush1.msra.mxu0 0.0
      %5791 = vmatprep.subr.mxu0 0.0
      %5792 = vmatpush1.msra.mxu0 0.0
      %5793 = vmatprep.subr.mxu0 0.0
      %5794 = vmatpush1.msra.mxu0 0.0
      %5795 = vmatprep.subr.mxu0 0.0
      %5796 = vmatpush1.msra.mxu0 0.0
      %5797 = vmatprep.subr.mxu0 0.0
      %5798 = vmatpush1.msra.mxu0 0.0
      %5799 = vmatprep.subr.mxu0 0.0
      %5800 = vmatpush1.msra.mxu0 0.0
      %5801 = vmatprep.subr.mxu0 0.0
      %5802 = vmatpush1.msra.mxu0 0.0
      %5803 = vmatprep.subr.mxu0 0.0
      %5804 = vmatpush1.msra.mxu0 0.0
      %5805 = vmatprep.subr.mxu0 0.0
      %5806 = vmatpush1.msra.mxu0 0.0
      %5807 = vmatprep.subr.mxu0 0.0
      %5808 = vmatpush1.msra.mxu0 0.0
      %5809 = vmatprep.subr.mxu0 0.0
      %5810 = vmatpush1.msra.mxu0 0.0
      %5811 = vmatprep.subr.mxu0 0.0
      %5812 = vmatpush1.msra.mxu0 0.0
      %5813 = vmatprep.subr.mxu0 0.0
      %5814 = vmatpush1.msra.mxu0 0.0
      %5815 = vmatprep.subr.mxu0 0.0
      %5816 = vmatpush1.msra.mxu0 0.0
      %5817 = vmatprep.subr.mxu0 0.0
      %5818 = vmatpush1.msra.mxu0 0.0
      %5819 = vmatprep.subr.mxu0 0.0
      %5820 = vmatpush1.msra.mxu0 0.0
      %5821 = vmatprep.subr.mxu0 0.0
      %5822 = vmatpush1.msra.mxu0 0.0
      %5823 = vmatprep.subr.mxu0 0.0
      %5824 = vmatpush1.msra.mxu0 0.0
      %5825 = vmatprep.subr.mxu0 0.0
      %5826 = vmatpush1.msra.mxu0 0.0
      %5827 = vmatprep.subr.mxu0 0.0
      %5828 = vmatpush1.msra.mxu0 0.0
      %5829 = vmatprep.subr.mxu0 0.0
      %5830 = vmatpush1.msra.mxu0 0.0
      %5831 = vmatprep.subr.mxu0 0.0
      %5832 = vmatpush1.msra.mxu0 0.0
      %5833 = vmatprep.subr.mxu0 0.0
      %5834 = vmatpush1.msra.mxu0 0.0
      %5835 = vmatprep.subr.mxu0 0.0
      %5836 = vmatpush1.msra.mxu0 0.0
      %5837 = vmatprep.subr.mxu0 0.0
      %5838 = vmatpush1.msra.mxu0 0.0
      %5839 = vmatprep.subr.mxu0 0.0
      %5840 = vmatpush1.msra.mxu0 0.0
      %5841 = vmatprep.subr.mxu0 0.0
      %5842 = vmatpush1.msra.mxu0 0.0
      %5843 = vmatprep.subr.mxu0 0.0
      %5844 = vmatpush1.msra.mxu0 0.0
      %5845 = vmatprep.subr.mxu0 0.0
      %5846 = vmatpush1.msra.mxu0 0.0
      %5847 = vmatprep.subr.mxu0 0.0
      %5848 = vmatpush1.msra.mxu0 0.0
      %5849 = vmatprep.subr.mxu0 0.0
      %5850 = vmatpush1.msra.mxu0 0.0
      %5851 = vmatprep.mubr.f32.mxu0 0.0
      %5852 = vmatmul.mubr.f32.gmra.mrb[0].mxu0 %v5643
      %v5853 = vpop.f32.mrb[0].mxu0
      %v5854 = vadd.f32 %v5639, %v5853
      %v5855 = vpop.f32.mrb[0].mxu0
      %v5856 = vadd.f32 %v5639, %v5855
      %5857 = vdwg.mxu0
      %5858 = vmatprep.subr.mxu0 %v5634
      %5859 = vmatpush1.msra.mxu0 %v5633
      %5860 = vmatprep.subr.mxu0 0.0
      %5861 = vmatpush1.msra.mxu0 0.0
      %5862 = vmatprep.subr.mxu0 0.0
      %5863 = vmatpush1.msra.mxu0 0.0
      %5864 = vmatprep.subr.mxu0 0.0
      %5865 = vmatpush1.msra.mxu0 0.0
      %5866 = vmatprep.subr.mxu0 0.0
      %5867 = vmatpush1.msra.mxu0 0.0
      %5868 = vmatprep.subr.mxu0 0.0
      %5869 = vmatpush1.msra.mxu0 0.0
      %5870 = vmatprep.subr.mxu0 0.0
      %5871 = vmatpush1.msra.mxu0 0.0
      %5872 = vmatprep.subr.mxu0 0.0
      %5873 = vmatpush1.msra.mxu0 0.0
      %5874 = vmatprep.subr.mxu0 0.0
      %5875 = vmatpush1.msra.mxu0 0.0
      %5876 = vmatprep.subr.mxu0 0.0
      %5877 = vmatpush1.msra.mxu0 0.0
      %5878 = vmatprep.subr.mxu0 0.0
      %5879 = vmatpush1.msra.mxu0 0.0
      %5880 = vmatprep.subr.mxu0 0.0
      %5881 = vmatpush1.msra.mxu0 0.0
      %5882 = vmatprep.subr.mxu0 0.0
      %5883 = vmatpush1.msra.mxu0 0.0
      %5884 = vmatprep.subr.mxu0 0.0
      %5885 = vmatpush1.msra.mxu0 0.0
      %5886 = vmatprep.subr.mxu0 0.0
      %5887 = vmatpush1.msra.mxu0 0.0
      %5888 = vmatprep.subr.mxu0 0.0
      %5889 = vmatpush1.msra.mxu0 0.0
      %5890 = vmatprep.subr.mxu0 0.0
      %5891 = vmatpush1.msra.mxu0 0.0
      %5892 = vmatprep.subr.mxu0 0.0
      %5893 = vmatpush1.msra.mxu0 0.0
      %5894 = vmatprep.subr.mxu0 0.0
      %5895 = vmatpush1.msra.mxu0 0.0
      %5896 = vmatprep.subr.mxu0 0.0
      %5897 = vmatpush1.msra.mxu0 0.0
      %5898 = vmatprep.subr.mxu0 0.0
      %5899 = vmatpush1.msra.mxu0 0.0
      %5900 = vmatprep.subr.mxu0 0.0
      %5901 = vmatpush1.msra.mxu0 0.0
      %5902 = vmatprep.subr.mxu0 0.0
      %5903 = vmatpush1.msra.mxu0 0.0
      %5904 = vmatprep.subr.mxu0 0.0
      %5905 = vmatpush1.msra.mxu0 0.0
      %5906 = vmatprep.subr.mxu0 0.0
      %5907 = vmatpush1.msra.mxu0 0.0
      %5908 = vmatprep.subr.mxu0 0.0
      %5909 = vmatpush1.msra.mxu0 0.0
      %5910 = vmatprep.subr.mxu0 0.0
      %5911 = vmatpush1.msra.mxu0 0.0
      %5912 = vmatprep.subr.mxu0 0.0
      %5913 = vmatpush1.msra.mxu0 0.0
      %5914 = vmatprep.subr.mxu0 0.0
      %5915 = vmatpush1.msra.mxu0 0.0
      %5916 = vmatprep.subr.mxu0 0.0
      %5917 = vmatpush1.msra.mxu0 0.0
      %5918 = vmatprep.subr.mxu0 0.0
      %5919 = vmatpush1.msra.mxu0 0.0
      %5920 = vmatprep.subr.mxu0 0.0
      %5921 = vmatpush1.msra.mxu0 0.0
      %5922 = vmatprep.mubr.f32.mxu0 0.0
      %5923 = vmatmul.mubr.f32.gmra.mrb[0].mxu0 %v5643
      %v5924 = vpop.f32.mrb[0].mxu0
      %v5925 = vadd.f32 %v5639, %v5924
      %v5926 = vpop.f32.mrb[0].mxu0
      %v5927 = vadd.f32 %v5639, %v5926
      %5928 = vdwg.mxu0
      %v5929 = vld [vmem:[%s344] sm:$0xf]
      %v5930 = vld [vmem:[%s8] sm:$0xff]
      %v5931 = vld [vmem:[%s8 + $0x8] sm:$0xff]
      %v5932 = vld [vmem:[%s8 + $0x10] sm:$0xff]
      %v5933 = vld [vmem:[%s8 + $0x18] sm:$0xff]
      %v5934 = vld [vmem:[%s8 + $0x20] sm:$0x1]
      %v5936 = vsel %vm2344, %v5929, 0
      %vm5938 = vcmask 1040384
      %v5940 = vsel %vm5938, %v5934, 0
      %5942 = vmatprep.subr.mxu0 0.0
      %5943 = vmatpush1.msra.mxu0 %v5930
      %5944 = vmatprep.subr.mxu0 0.0
      %5945 = vmatpush1.msra.mxu0 %v5931
      %5946 = vmatprep.subr.mxu0 0.0
      %5947 = vmatpush1.msra.mxu0 %v5932
      %5948 = vmatprep.subr.mxu0 0.0
      %5949 = vmatpush1.msra.mxu0 %v5933
      %5950 = vmatprep.subr.mxu0 0.0
      %5951 = vmatpush1.msra.mxu0 %v5940
      %5952 = vmatprep.subr.mxu0 0.0
      %5953 = vmatpush1.msra.mxu0 0.0
      %5954 = vmatprep.subr.mxu0 0.0
      %5955 = vmatpush1.msra.mxu0 0.0
      %5956 = vmatprep.subr.mxu0 0.0
      %5957 = vmatpush1.msra.mxu0 0.0
      %5958 = vmatprep.subr.mxu0 0.0
      %5959 = vmatpush1.msra.mxu0 0.0
      %5960 = vmatprep.subr.mxu0 0.0
      %5961 = vmatpush1.msra.mxu0 0.0
      %5962 = vmatprep.subr.mxu0 0.0
      %5963 = vmatpush1.msra.mxu0 0.0
      %5964 = vmatprep.subr.mxu0 0.0
      %5965 = vmatpush1.msra.mxu0 0.0
      %5966 = vmatprep.subr.mxu0 0.0
      %5967 = vmatpush1.msra.mxu0 0.0
      %5968 = vmatprep.subr.mxu0 0.0
      %5969 = vmatpush1.msra.mxu0 0.0
      %5970 = vmatprep.subr.mxu0 0.0
      %5971 = vmatpush1.msra.mxu0 0.0
      %5972 = vmatprep.subr.mxu0 0.0
      %5973 = vmatpush1.msra.mxu0 0.0
      %5974 = vmatprep.subr.mxu0 0.0
      %5975 = vmatpush1.msra.mxu0 0.0
      %5976 = vmatprep.subr.mxu0 0.0
      %5977 = vmatpush1.msra.mxu0 0.0
      %5978 = vmatprep.subr.mxu0 0.0
      %5979 = vmatpush1.msra.mxu0 0.0
      %5980 = vmatprep.subr.mxu0 0.0
      %5981 = vmatpush1.msra.mxu0 0.0
      %5982 = vmatprep.subr.mxu0 0.0
      %5983 = vmatpush1.msra.mxu0 0.0
      %5984 = vmatprep.subr.mxu0 0.0
      %5985 = vmatpush1.msra.mxu0 0.0
      %5986 = vmatprep.subr.mxu0 0.0
      %5987 = vmatpush1.msra.mxu0 0.0
      %5988 = vmatprep.subr.mxu0 0.0
      %5989 = vmatpush1.msra.mxu0 0.0
      %5990 = vmatprep.subr.mxu0 0.0
      %5991 = vmatpush1.msra.mxu0 0.0
      %5992 = vmatprep.subr.mxu0 0.0
      %5993 = vmatpush1.msra.mxu0 0.0
      %5994 = vmatprep.subr.mxu0 0.0
      %5995 = vmatpush1.msra.mxu0 0.0
      %5996 = vmatprep.subr.mxu0 0.0
      %5997 = vmatpush1.msra.mxu0 0.0
      %5998 = vmatprep.subr.mxu0 0.0
      %5999 = vmatpush1.msra.mxu0 0.0
      %6000 = vmatprep.subr.mxu0 0.0
      %6001 = vmatpush1.msra.mxu0 0.0
      %6002 = vmatprep.subr.mxu0 0.0
      %6003 = vmatpush1.msra.mxu0 0.0
      %6004 = vmatprep.subr.mxu0 0.0
      %6005 = vmatpush1.msra.mxu0 0.0
      %6006 = vmatprep.mubr.f32.mxu0 0.0
      %6007 = vmatmul.mubr.f32.gmra.mrb[0].mxu0 %v5936
      %v6008 = vpop.f32.mrb[0].mxu0
      %v6009 = vadd.f32 0.0, %v6008
      %v6010 = vpop.f32.mrb[0].mxu0
      %6011 = vdwg.mxu0
      %6020 = vrot.lane.b32.xlu0 %v5712, 33
      %v6021 = vpop.permute.xlu0 %6020
      %6022 = vrot.lane.b32.xlu0 %v5714, 33
      %v6023 = vpop.permute.xlu0 %6022
      %6024 = vrot.lane.b32.xlu0 %v5783, 33
      %v6025 = vpop.permute.xlu0 %6024
      %6026 = vrot.lane.b32.xlu0 %v5785, 33
      %v6027 = vpop.permute.xlu0 %6026
      %6028 = vrot.lane.b32.xlu0 %v5854, 33
      %v6029 = vpop.permute.xlu0 %6028
      %6030 = vrot.lane.b32.xlu0 %v5856, 33
      %v6031 = vpop.permute.xlu0 %6030
      %6032 = vrot.lane.b32.xlu0 %v5925, 33
      %v6033 = vpop.permute.xlu0 %6032
      %6034 = vrot.lane.b32.xlu0 %v5927, 33
      %v6035 = vpop.permute.xlu0 %6034
      %v6036 = vsel %vm2344, %v6021, %v6023
      %v6037 = vsel %vm2344, %v6023, %v6025
      %v6038 = vsel %vm2344, %v6025, %v6027
      %v6039 = vsel %vm2344, %v6027, %v6029
      %v6040 = vsel %vm2344, %v6029, %v6031
      %v6041 = vsel %vm2344, %v6031, %v6033
      %v6042 = vsel %vm2344, %v6033, %v6035
      %v6051 = vsel %vm2344, 0.0, %v6021
      %v6052 = vsel %vm2385, %v6051, 0.0
      %v6053 = vsel %vm2386, %v6036, 0.0
      %v6054 = vsel %vm2387, %v6037, 0.0
      %v6055 = vsel %vm2388, %v6038, 0.0
      %v6056 = vsel %vm2389, %v6039, 0.0
      %v6057 = vsel %vm2390, %v6040, 0.0
      %v6058 = vsel %vm2391, %v6041, 0.0
      %v6059 = vsel %vm2392, %v6042, 0.0
      %6060 = vrot.lane.b32.xlu0 %v5712, 32
      %v6061 = vpop.permute.xlu0 %6060
      %6062 = vrot.lane.b32.xlu0 %v5714, 32
      %v6063 = vpop.permute.xlu0 %6062
      %6064 = vrot.lane.b32.xlu0 %v5783, 32
      %v6065 = vpop.permute.xlu0 %6064
      %6066 = vrot.lane.b32.xlu0 %v5785, 32
      %v6067 = vpop.permute.xlu0 %6066
      %6068 = vrot.lane.b32.xlu0 %v5854, 32
      %v6069 = vpop.permute.xlu0 %6068
      %6070 = vrot.lane.b32.xlu0 %v5856, 32
      %v6071 = vpop.permute.xlu0 %6070
      %6072 = vrot.lane.b32.xlu0 %v5925, 32
      %v6073 = vpop.permute.xlu0 %6072
      %6074 = vrot.lane.b32.xlu0 %v5927, 32
      %v6075 = vpop.permute.xlu0 %6074
      %v6076 = vsel %vm2442, %v6061, %v6063
      %v6077 = vsel %vm2442, %v6063, %v6065
      %v6078 = vsel %vm2442, %v6065, %v6067
      %v6079 = vsel %vm2442, %v6067, %v6069
      %v6080 = vsel %vm2442, %v6069, %v6071
      %v6081 = vsel %vm2442, %v6071, %v6073
      %v6082 = vsel %vm2442, %v6073, %v6075
      %v6091 = vsel %vm2442, 0.0, %v6061
      %6092 = vrot.lane.b32.xlu0 %v5712, 31
      %v6093 = vpop.permute.xlu0 %6092
      %6094 = vrot.lane.b32.xlu0 %v5714, 31
      %v6095 = vpop.permute.xlu0 %6094
      %6096 = vrot.lane.b32.xlu0 %v5783, 31
      %v6097 = vpop.permute.xlu0 %6096
      %6098 = vrot.lane.b32.xlu0 %v5785, 31
      %v6099 = vpop.permute.xlu0 %6098
      %6100 = vrot.lane.b32.xlu0 %v5854, 31
      %v6101 = vpop.permute.xlu0 %6100
      %6102 = vrot.lane.b32.xlu0 %v5856, 31
      %v6103 = vpop.permute.xlu0 %6102
      %6104 = vrot.lane.b32.xlu0 %v5925, 31
      %v6105 = vpop.permute.xlu0 %6104
      %6106 = vrot.lane.b32.xlu0 %v5927, 31
      %v6107 = vpop.permute.xlu0 %6106
      %v6108 = vsel %vm3083, %v6093, %v6095
      %v6109 = vsel %vm3083, %v6095, %v6097
      %v6110 = vsel %vm3083, %v6097, %v6099
      %v6111 = vsel %vm3083, %v6099, %v6101
      %v6112 = vsel %vm3083, %v6101, %v6103
      %v6113 = vsel %vm3083, %v6103, %v6105
      %v6114 = vsel %vm3083, %v6105, %v6107
      %v6123 = vsel %vm3083, 0.0, %v6093
      %v6124 = vsel %vm3124, %v6123, 0.0
      %v6125 = vsel %vm3125, %v6108, 0.0
      %v6126 = vsel %vm3126, %v6109, 0.0
      %v6127 = vsel %vm3127, %v6110, 0.0
      %v6128 = vsel %vm3128, %v6111, 0.0
      %v6129 = vsel %vm3129, %v6112, 0.0
      %v6130 = vsel %vm3130, %v6113, 0.0
      %v6131 = vsel %vm3131, %v6114, 0.0
      %6132 = vrot.lane.b32.xlu0 %v5712, 1
      %v6133 = vpop.permute.xlu0 %6132
      %6134 = vrot.lane.b32.xlu0 %v5714, 1
      %v6135 = vpop.permute.xlu0 %6134
      %6136 = vrot.lane.b32.xlu0 %v5783, 1
      %v6137 = vpop.permute.xlu0 %6136
      %6138 = vrot.lane.b32.xlu0 %v5785, 1
      %v6139 = vpop.permute.xlu0 %6138
      %6140 = vrot.lane.b32.xlu0 %v5854, 1
      %v6141 = vpop.permute.xlu0 %6140
      %6142 = vrot.lane.b32.xlu0 %v5856, 1
      %v6143 = vpop.permute.xlu0 %6142
      %6144 = vrot.lane.b32.xlu0 %v5925, 1
      %v6145 = vpop.permute.xlu0 %6144
      %6146 = vrot.lane.b32.xlu0 %v5927, 1
      %v6147 = vpop.permute.xlu0 %6146
      %v6148 = vsel %vm835, %v6133, %v6135
      %v6149 = vsel %vm835, %v6135, %v6137
      %v6150 = vsel %vm835, %v6137, %v6139
      %v6151 = vsel %vm835, %v6139, %v6141
      %v6152 = vsel %vm835, %v6141, %v6143
      %v6153 = vsel %vm835, %v6143, %v6145
      %v6154 = vsel %vm835, %v6145, %v6147
      %v6163 = vsel %vm835, 0.0, %v6133
      %v6164 = vsel %vm2385, %v6163, 0.0
      %v6165 = vsel %vm2386, %v6148, 0.0
      %v6166 = vsel %vm2387, %v6149, 0.0
      %v6167 = vsel %vm2388, %v6150, 0.0
      %v6168 = vsel %vm2389, %v6151, 0.0
      %v6169 = vsel %vm2390, %v6152, 0.0
      %v6170 = vsel %vm2391, %v6153, 0.0
      %v6171 = vsel %vm2392, %v6154, 0.0
      %6172 = vrot.lane.b32.xlu0 %v5712, 127
      %v6173 = vpop.permute.xlu0 %6172
      %6174 = vrot.lane.b32.xlu0 %v5714, 127
      %v6175 = vpop.permute.xlu0 %6174
      %6176 = vrot.lane.b32.xlu0 %v5783, 127
      %v6177 = vpop.permute.xlu0 %6176
      %6178 = vrot.lane.b32.xlu0 %v5785, 127
      %v6179 = vpop.permute.xlu0 %6178
      %6180 = vrot.lane.b32.xlu0 %v5854, 127
      %v6181 = vpop.permute.xlu0 %6180
      %6182 = vrot.lane.b32.xlu0 %v5856, 127
      %v6183 = vpop.permute.xlu0 %6182
      %6184 = vrot.lane.b32.xlu0 %v5925, 127
      %v6185 = vpop.permute.xlu0 %6184
      %6186 = vrot.lane.b32.xlu0 %v5927, 127
      %v6187 = vpop.permute.xlu0 %6186
      %v6188 = vsel %vm1036, %v6173, %v6175
      %v6189 = vsel %vm1036, %v6175, %v6177
      %v6190 = vsel %vm1036, %v6177, %v6179
      %v6191 = vsel %vm1036, %v6179, %v6181
      %v6192 = vsel %vm1036, %v6181, %v6183
      %v6193 = vsel %vm1036, %v6183, %v6185
      %v6194 = vsel %vm1036, %v6185, %v6187
      %v6203 = vsel %vm1036, %v6187, 0.0
      %v6204 = vsel %vm3124, %v6188, 0.0
      %v6205 = vsel %vm3125, %v6189, 0.0
      %v6206 = vsel %vm3126, %v6190, 0.0
      %v6207 = vsel %vm3127, %v6191, 0.0
      %v6208 = vsel %vm3128, %v6192, 0.0
      %v6209 = vsel %vm3129, %v6193, 0.0
      %v6210 = vsel %vm3130, %v6194, 0.0
      %v6211 = vsel %vm3131, %v6203, 0.0
      %6212 = vrot.lane.b32.xlu0 %v5712, 97
      %v6213 = vpop.permute.xlu0 %6212
      %6214 = vrot.lane.b32.xlu0 %v5714, 97
      %v6215 = vpop.permute.xlu0 %6214
      %6216 = vrot.lane.b32.xlu0 %v5783, 97
      %v6217 = vpop.permute.xlu0 %6216
      %6218 = vrot.lane.b32.xlu0 %v5785, 97
      %v6219 = vpop.permute.xlu0 %6218
      %6220 = vrot.lane.b32.xlu0 %v5854, 97
      %v6221 = vpop.permute.xlu0 %6220
      %6222 = vrot.lane.b32.xlu0 %v5856, 97
      %v6223 = vpop.permute.xlu0 %6222
      %6224 = vrot.lane.b32.xlu0 %v5925, 97
      %v6225 = vpop.permute.xlu0 %6224
      %6226 = vrot.lane.b32.xlu0 %v5927, 97
      %v6227 = vpop.permute.xlu0 %6226
      %v6228 = vsel %vm4528, %v6213, %v6215
      %v6229 = vsel %vm4528, %v6215, %v6217
      %v6230 = vsel %vm4528, %v6217, %v6219
      %v6231 = vsel %vm4528, %v6219, %v6221
      %v6232 = vsel %vm4528, %v6221, %v6223
      %v6233 = vsel %vm4528, %v6223, %v6225
      %v6234 = vsel %vm4528, %v6225, %v6227
      %v6243 = vsel %vm4528, %v6227, 0.0
      %v6244 = vsel %vm2385, %v6228, 0.0
      %v6245 = vsel %vm2386, %v6229, 0.0
      %v6246 = vsel %vm2387, %v6230, 0.0
      %v6247 = vsel %vm2388, %v6231, 0.0
      %v6248 = vsel %vm2389, %v6232, 0.0
      %v6249 = vsel %vm2390, %v6233, 0.0
      %v6250 = vsel %vm2391, %v6234, 0.0
      %v6251 = vsel %vm2392, %v6243, 0.0
      %6252 = vrot.lane.b32.xlu0 %v5712, 96
      %v6253 = vpop.permute.xlu0 %6252
      %6254 = vrot.lane.b32.xlu0 %v5714, 96
      %v6255 = vpop.permute.xlu0 %6254
      %6256 = vrot.lane.b32.xlu0 %v5783, 96
      %v6257 = vpop.permute.xlu0 %6256
      %6258 = vrot.lane.b32.xlu0 %v5785, 96
      %v6259 = vpop.permute.xlu0 %6258
      %6260 = vrot.lane.b32.xlu0 %v5854, 96
      %v6261 = vpop.permute.xlu0 %6260
      %6262 = vrot.lane.b32.xlu0 %v5856, 96
      %v6263 = vpop.permute.xlu0 %6262
      %6264 = vrot.lane.b32.xlu0 %v5925, 96
      %v6265 = vpop.permute.xlu0 %6264
      %6266 = vrot.lane.b32.xlu0 %v5927, 96
      %v6267 = vpop.permute.xlu0 %6266
      %v6268 = vsel %vm4906, %v6253, %v6255
      %v6269 = vsel %vm4906, %v6255, %v6257
      %v6270 = vsel %vm4906, %v6257, %v6259
      %v6271 = vsel %vm4906, %v6259, %v6261
      %v6272 = vsel %vm4906, %v6261, %v6263
      %v6273 = vsel %vm4906, %v6263, %v6265
      %v6274 = vsel %vm4906, %v6265, %v6267
      %v6283 = vsel %vm4906, %v6267, 0.0
      %6284 = vrot.lane.b32.xlu0 %v5712, 95
      %v6285 = vpop.permute.xlu0 %6284
      %6286 = vrot.lane.b32.xlu0 %v5714, 95
      %v6287 = vpop.permute.xlu0 %6286
      %6288 = vrot.lane.b32.xlu0 %v5783, 95
      %v6289 = vpop.permute.xlu0 %6288
      %6290 = vrot.lane.b32.xlu0 %v5785, 95
      %v6291 = vpop.permute.xlu0 %6290
      %6292 = vrot.lane.b32.xlu0 %v5854, 95
      %v6293 = vpop.permute.xlu0 %6292
      %6294 = vrot.lane.b32.xlu0 %v5856, 95
      %v6295 = vpop.permute.xlu0 %6294
      %6296 = vrot.lane.b32.xlu0 %v5925, 95
      %v6297 = vpop.permute.xlu0 %6296
      %6298 = vrot.lane.b32.xlu0 %v5927, 95
      %v6299 = vpop.permute.xlu0 %6298
      %v6300 = vsel %vm5268, %v6285, %v6287
      %v6301 = vsel %vm5268, %v6287, %v6289
      %v6302 = vsel %vm5268, %v6289, %v6291
      %v6303 = vsel %vm5268, %v6291, %v6293
      %v6304 = vsel %vm5268, %v6293, %v6295
      %v6305 = vsel %vm5268, %v6295, %v6297
      %v6306 = vsel %vm5268, %v6297, %v6299
      %v6315 = vsel %vm5268, %v6299, 0.0
      %v6316 = vsel %vm3124, %v6300, 0.0
      %v6317 = vsel %vm3125, %v6301, 0.0
      %v6318 = vsel %vm3126, %v6302, 0.0
      %v6319 = vsel %vm3127, %v6303, 0.0
      %v6320 = vsel %vm3128, %v6304, 0.0
      %v6321 = vsel %vm3129, %v6305, 0.0
      %v6322 = vsel %vm3130, %v6306, 0.0
      %v6323 = vsel %vm3131, %v6315, 0.0
      %6325 = vset.pattern.permute.xlu0 72
      %6326 = vperm.xlu0 %6325, %v6009
      %v6327 = vpop.permute.xlu0 %6326
      %vm6329 = vcmask 588800
      %v6330 = vsel %vm6329, %v6009, 0
      %6332 = vmatprep.subr.mxu0 %v6053
      %6333 = vmatpush1.msra.mxu0 %v6052
      %6334 = vmatprep.subr.mxu0 %v6076
      %6335 = vmatpush1.msra.mxu0 %v6091
      %6336 = vmatprep.subr.mxu0 %v6125
      %6337 = vmatpush1.msra.mxu0 %v6124
      %6338 = vmatprep.subr.mxu0 %v6165
      %6339 = vmatpush1.msra.mxu0 %v6164
      %6340 = vmatprep.subr.mxu0 %v5714
      %6341 = vmatpush1.msra.mxu0 %v5712
      %6342 = vmatprep.subr.mxu0 %v6205
      %6343 = vmatpush1.msra.mxu0 %v6204
      %6344 = vmatprep.subr.mxu0 %v6245
      %6345 = vmatpush1.msra.mxu0 %v6244
      %6346 = vmatprep.subr.mxu0 %v6269
      %6347 = vmatpush1.msra.mxu0 %v6268
      %6348 = vmatprep.subr.mxu0 %v6317
      %6349 = vmatpush1.msra.mxu0 %v6316
      %6350 = vmatprep.subr.mxu0 0.0
      %6351 = vmatpush1.msra.mxu0 0.0
      %6352 = vmatprep.subr.mxu0 0.0
      %6353 = vmatpush1.msra.mxu0 0.0
      %6354 = vmatprep.subr.mxu0 0.0
      %6355 = vmatpush1.msra.mxu0 0.0
      %6356 = vmatprep.subr.mxu0 0.0
      %6357 = vmatpush1.msra.mxu0 0.0
      %6358 = vmatprep.subr.mxu0 0.0
      %6359 = vmatpush1.msra.mxu0 0.0
      %6360 = vmatprep.subr.mxu0 0.0
      %6361 = vmatpush1.msra.mxu0 0.0
      %6362 = vmatprep.subr.mxu0 0.0
      %6363 = vmatpush1.msra.mxu0 0.0
      %6364 = vmatprep.subr.mxu0 0.0
      %6365 = vmatpush1.msra.mxu0 0.0
      %6366 = vmatprep.subr.mxu0 0.0
      %6367 = vmatpush1.msra.mxu0 0.0
      %6368 = vmatprep.subr.mxu0 0.0
      %6369 = vmatpush1.msra.mxu0 0.0
      %6370 = vmatprep.subr.mxu0 0.0
      %6371 = vmatpush1.msra.mxu0 0.0
      %6372 = vmatprep.subr.mxu0 0.0
      %6373 = vmatpush1.msra.mxu0 0.0
      %6374 = vmatprep.subr.mxu0 0.0
      %6375 = vmatpush1.msra.mxu0 0.0
      %6376 = vmatprep.subr.mxu0 0.0
      %6377 = vmatpush1.msra.mxu0 0.0
      %6378 = vmatprep.subr.mxu0 0.0
      %6379 = vmatpush1.msra.mxu0 0.0
      %6380 = vmatprep.subr.mxu0 0.0
      %6381 = vmatpush1.msra.mxu0 0.0
      %6382 = vmatprep.subr.mxu0 0.0
      %6383 = vmatpush1.msra.mxu0 0.0
      %6384 = vmatprep.subr.mxu0 0.0
      %6385 = vmatpush1.msra.mxu0 0.0
      %6386 = vmatprep.subr.mxu0 0.0
      %6387 = vmatpush1.msra.mxu0 0.0
      %6388 = vmatprep.subr.mxu0 0.0
      %6389 = vmatpush1.msra.mxu0 0.0
      %6390 = vmatprep.subr.mxu0 0.0
      %6391 = vmatpush1.msra.mxu0 0.0
      %6392 = vmatprep.subr.mxu0 0.0
      %6393 = vmatpush1.msra.mxu0 0.0
      %6394 = vmatprep.subr.mxu0 0.0
      %6395 = vmatpush1.msra.mxu0 0.0
      %6396 = vmatprep.mubr.f32.mxu0 0.0
      %6397 = vmatmul.mubr.f32.gmra.mrb[0].mxu0 %v6330
      %v6398 = vpop.f32.mrb[0].mxu0
      %v6399 = vadd.f32 %v6327, %v6398
      %v6400 = vpop.f32.mrb[0].mxu0
      %v6401 = vadd.f32 %v6327, %v6400
      %6402 = vdwg.mxu0
      %6403 = vmatprep.subr.mxu0 %v6055
      %6404 = vmatpush1.msra.mxu0 %v6054
      %6405 = vmatprep.subr.mxu0 %v6078
      %6406 = vmatpush1.msra.mxu0 %v6077
      %6407 = vmatprep.subr.mxu0 %v6127
      %6408 = vmatpush1.msra.mxu0 %v6126
      %6409 = vmatprep.subr.mxu0 %v6167
      %6410 = vmatpush1.msra.mxu0 %v6166
      %6411 = vmatprep.subr.mxu0 %v5785
      %6412 = vmatpush1.msra.mxu0 %v5783
      %6413 = vmatprep.subr.mxu0 %v6207
      %6414 = vmatpush1.msra.mxu0 %v6206
      %6415 = vmatprep.subr.mxu0 %v6247
      %6416 = vmatpush1.msra.mxu0 %v6246
      %6417 = vmatprep.subr.mxu0 %v6271
      %6418 = vmatpush1.msra.mxu0 %v6270
      %6419 = vmatprep.subr.mxu0 %v6319
      %6420 = vmatpush1.msra.mxu0 %v6318
      %6421 = vmatprep.subr.mxu0 0.0
      %6422 = vmatpush1.msra.mxu0 0.0
      %6423 = vmatprep.subr.mxu0 0.0
      %6424 = vmatpush1.msra.mxu0 0.0
      %6425 = vmatprep.subr.mxu0 0.0
      %6426 = vmatpush1.msra.mxu0 0.0
      %6427 = vmatprep.subr.mxu0 0.0
      %6428 = vmatpush1.msra.mxu0 0.0
      %6429 = vmatprep.subr.mxu0 0.0
      %6430 = vmatpush1.msra.mxu0 0.0
      %6431 = vmatprep.subr.mxu0 0.0
      %6432 = vmatpush1.msra.mxu0 0.0
      %6433 = vmatprep.subr.mxu0 0.0
      %6434 = vmatpush1.msra.mxu0 0.0
      %6435 = vmatprep.subr.mxu0 0.0
      %6436 = vmatpush1.msra.mxu0 0.0
      %6437 = vmatprep.subr.mxu0 0.0
      %6438 = vmatpush1.msra.mxu0 0.0
      %6439 = vmatprep.subr.mxu0 0.0
      %6440 = vmatpush1.msra.mxu0 0.0
      %6441 = vmatprep.subr.mxu0 0.0
      %6442 = vmatpush1.msra.mxu0 0.0
      %6443 = vmatprep.subr.mxu0 0.0
      %6444 = vmatpush1.msra.mxu0 0.0
      %6445 = vmatprep.subr.mxu0 0.0
      %6446 = vmatpush1.msra.mxu0 0.0
      %6447 = vmatprep.subr.mxu0 0.0
      %6448 = vmatpush1.msra.mxu0 0.0
      %6449 = vmatprep.subr.mxu0 0.0
      %6450 = vmatpush1.msra.mxu0 0.0
      %6451 = vmatprep.subr.mxu0 0.0
      %6452 = vmatpush1.msra.mxu0 0.0
      %6453 = vmatprep.subr.mxu0 0.0
      %6454 = vmatpush1.msra.mxu0 0.0
      %6455 = vmatprep.subr.mxu0 0.0
      %6456 = vmatpush1.msra.mxu0 0.0
      %6457 = vmatprep.subr.mxu0 0.0
      %6458 = vmatpush1.msra.mxu0 0.0
      %6459 = vmatprep.subr.mxu0 0.0
      %6460 = vmatpush1.msra.mxu0 0.0
      %6461 = vmatprep.subr.mxu0 0.0
      %6462 = vmatpush1.msra.mxu0 0.0
      %6463 = vmatprep.subr.mxu0 0.0
      %6464 = vmatpush1.msra.mxu0 0.0
      %6465 = vmatprep.subr.mxu0 0.0
      %6466 = vmatpush1.msra.mxu0 0.0
      %6467 = vmatprep.mubr.f32.mxu0 0.0
      %6468 = vmatmul.mubr.f32.gmra.mrb[0].mxu0 %v6330
      %v6469 = vpop.f32.mrb[0].mxu0
      %v6470 = vadd.f32 %v6327, %v6469
      %v6471 = vpop.f32.mrb[0].mxu0
      %v6472 = vadd.f32 %v6327, %v6471
      %6473 = vdwg.mxu0
      %6474 = vmatprep.subr.mxu0 %v6057
      %6475 = vmatpush1.msra.mxu0 %v6056
      %6476 = vmatprep.subr.mxu0 %v6080
      %6477 = vmatpush1.msra.mxu0 %v6079
      %6478 = vmatprep.subr.mxu0 %v6129
      %6479 = vmatpush1.msra.mxu0 %v6128
      %6480 = vmatprep.subr.mxu0 %v6169
      %6481 = vmatpush1.msra.mxu0 %v6168
      %6482 = vmatprep.subr.mxu0 %v5856
      %6483 = vmatpush1.msra.mxu0 %v5854
      %6484 = vmatprep.subr.mxu0 %v6209
      %6485 = vmatpush1.msra.mxu0 %v6208
      %6486 = vmatprep.subr.mxu0 %v6249
      %6487 = vmatpush1.msra.mxu0 %v6248
      %6488 = vmatprep.subr.mxu0 %v6273
      %6489 = vmatpush1.msra.mxu0 %v6272
      %6490 = vmatprep.subr.mxu0 %v6321
      %6491 = vmatpush1.msra.mxu0 %v6320
      %6492 = vmatprep.subr.mxu0 0.0
      %6493 = vmatpush1.msra.mxu0 0.0
      %6494 = vmatprep.subr.mxu0 0.0
      %6495 = vmatpush1.msra.mxu0 0.0
      %6496 = vmatprep.subr.mxu0 0.0
      %6497 = vmatpush1.msra.mxu0 0.0
      %6498 = vmatprep.subr.mxu0 0.0
      %6499 = vmatpush1.msra.mxu0 0.0
      %6500 = vmatprep.subr.mxu0 0.0
      %6501 = vmatpush1.msra.mxu0 0.0
      %6502 = vmatprep.subr.mxu0 0.0
      %6503 = vmatpush1.msra.mxu0 0.0
      %6504 = vmatprep.subr.mxu0 0.0
      %6505 = vmatpush1.msra.mxu0 0.0
      %6506 = vmatprep.subr.mxu0 0.0
      %6507 = vmatpush1.msra.mxu0 0.0
      %6508 = vmatprep.subr.mxu0 0.0
      %6509 = vmatpush1.msra.mxu0 0.0
      %6510 = vmatprep.subr.mxu0 0.0
      %6511 = vmatpush1.msra.mxu0 0.0
      %6512 = vmatprep.subr.mxu0 0.0
      %6513 = vmatpush1.msra.mxu0 0.0
      %6514 = vmatprep.subr.mxu0 0.0
      %6515 = vmatpush1.msra.mxu0 0.0
      %6516 = vmatprep.subr.mxu0 0.0
      %6517 = vmatpush1.msra.mxu0 0.0
      %6518 = vmatprep.subr.mxu0 0.0
      %6519 = vmatpush1.msra.mxu0 0.0
      %6520 = vmatprep.subr.mxu0 0.0
      %6521 = vmatpush1.msra.mxu0 0.0
      %6522 = vmatprep.subr.mxu0 0.0
      %6523 = vmatpush1.msra.mxu0 0.0
      %6524 = vmatprep.subr.mxu0 0.0
      %6525 = vmatpush1.msra.mxu0 0.0
      %6526 = vmatprep.subr.mxu0 0.0
      %6527 = vmatpush1.msra.mxu0 0.0
      %6528 = vmatprep.subr.mxu0 0.0
      %6529 = vmatpush1.msra.mxu0 0.0
      %6530 = vmatprep.subr.mxu0 0.0
      %6531 = vmatpush1.msra.mxu0 0.0
      %6532 = vmatprep.subr.mxu0 0.0
      %6533 = vmatpush1.msra.mxu0 0.0
      %6534 = vmatprep.subr.mxu0 0.0
      %6535 = vmatpush1.msra.mxu0 0.0
      %6536 = vmatprep.subr.mxu0 0.0
      %6537 = vmatpush1.msra.mxu0 0.0
      %6538 = vmatprep.mubr.f32.mxu0 0.0
      %6539 = vmatmul.mubr.f32.gmra.mrb[0].mxu0 %v6330
      %v6540 = vpop.f32.mrb[0].mxu0
      %v6541 = vadd.f32 %v6327, %v6540
      %v6542 = vpop.f32.mrb[0].mxu0
      %v6543 = vadd.f32 %v6327, %v6542
      %6544 = vdwg.mxu0
      %6545 = vmatprep.subr.mxu0 %v6059
      %6546 = vmatpush1.msra.mxu0 %v6058
      %6547 = vmatprep.subr.mxu0 %v6082
      %6548 = vmatpush1.msra.mxu0 %v6081
      %6549 = vmatprep.subr.mxu0 %v6131
      %6550 = vmatpush1.msra.mxu0 %v6130
      %6551 = vmatprep.subr.mxu0 %v6171
      %6552 = vmatpush1.msra.mxu0 %v6170
      %6553 = vmatprep.subr.mxu0 %v5927
      %6554 = vmatpush1.msra.mxu0 %v5925
      %6555 = vmatprep.subr.mxu0 %v6211
      %6556 = vmatpush1.msra.mxu0 %v6210
      %6557 = vmatprep.subr.mxu0 %v6251
      %6558 = vmatpush1.msra.mxu0 %v6250
      %6559 = vmatprep.subr.mxu0 %v6283
      %6560 = vmatpush1.msra.mxu0 %v6274
      %6561 = vmatprep.subr.mxu0 %v6323
      %6562 = vmatpush1.msra.mxu0 %v6322
      %6563 = vmatprep.subr.mxu0 0.0
      %6564 = vmatpush1.msra.mxu0 0.0
      %6565 = vmatprep.subr.mxu0 0.0
      %6566 = vmatpush1.msra.mxu0 0.0
      %6567 = vmatprep.subr.mxu0 0.0
      %6568 = vmatpush1.msra.mxu0 0.0
      %6569 = vmatprep.subr.mxu0 0.0
      %6570 = vmatpush1.msra.mxu0 0.0
      %6571 = vmatprep.subr.mxu0 0.0
      %6572 = vmatpush1.msra.mxu0 0.0
      %6573 = vmatprep.subr.mxu0 0.0
      %6574 = vmatpush1.msra.mxu0 0.0
      %6575 = vmatprep.subr.mxu0 0.0
      %6576 = vmatpush1.msra.mxu0 0.0
      %6577 = vmatprep.subr.mxu0 0.0
      %6578 = vmatpush1.msra.mxu0 0.0
      %6579 = vmatprep.subr.mxu0 0.0
      %6580 = vmatpush1.msra.mxu0 0.0
      %6581 = vmatprep.subr.mxu0 0.0
      %6582 = vmatpush1.msra.mxu0 0.0
      %6583 = vmatprep.subr.mxu0 0.0
      %6584 = vmatpush1.msra.mxu0 0.0
      %6585 = vmatprep.subr.mxu0 0.0
      %6586 = vmatpush1.msra.mxu0 0.0
      %6587 = vmatprep.subr.mxu0 0.0
      %6588 = vmatpush1.msra.mxu0 0.0
      %6589 = vmatprep.subr.mxu0 0.0
      %6590 = vmatpush1.msra.mxu0 0.0
      %6591 = vmatprep.subr.mxu0 0.0
      %6592 = vmatpush1.msra.mxu0 0.0
      %6593 = vmatprep.subr.mxu0 0.0
      %6594 = vmatpush1.msra.mxu0 0.0
      %6595 = vmatprep.subr.mxu0 0.0
      %6596 = vmatpush1.msra.mxu0 0.0
      %6597 = vmatprep.subr.mxu0 0.0
      %6598 = vmatpush1.msra.mxu0 0.0
      %6599 = vmatprep.subr.mxu0 0.0
      %6600 = vmatpush1.msra.mxu0 0.0
      %6601 = vmatprep.subr.mxu0 0.0
      %6602 = vmatpush1.msra.mxu0 0.0
      %6603 = vmatprep.subr.mxu0 0.0
      %6604 = vmatpush1.msra.mxu0 0.0
      %6605 = vmatprep.subr.mxu0 0.0
      %6606 = vmatpush1.msra.mxu0 0.0
      %6607 = vmatprep.subr.mxu0 0.0
      %6608 = vmatpush1.msra.mxu0 0.0
      %6609 = vmatprep.mubr.f32.mxu0 0.0
      %6610 = vmatmul.mubr.f32.gmra.mrb[0].mxu0 %v6330
      %v6611 = vpop.f32.mrb[0].mxu0
      %v6612 = vadd.f32 %v6327, %v6611
      %v6613 = vpop.f32.mrb[0].mxu0
      %v6614 = vadd.f32 %v6327, %v6613
      %6615 = vdwg.mxu0
      %v6624 = vcombine.low %v6399, %v6401
      %v6625 = vcombine.low %v6470, %v6472
      %v6626 = vcombine.low %v6541, %v6543
      %v6627 = vcombine.low %v6612, %v6614
      %6632 = vst [vmem:[%s349] sm:$0xff] %v6624
      %6633 = vst [vmem:[%s349 + $0x8] sm:$0xff] %v6625
      %6634 = vst [vmem:[%s349 + $0x10] sm:$0xff] %v6626
      %6635 = vst [vmem:[%s349 + $0x18] sm:$0xff] %v6627
      %p6636 = scmp.lt.s32.totalorder %s20, 1
      %s6637 = scalar_select %p6636, %s20, 1
      %s6638 = smul.addr %s6637, 8
      %s6639 = smul.addr %s6638, 4
      %s6640 = scalar_lea.vmem %s9, %s6639
      // Predicated region
      $region57: #{projector_forward.1} parent=55 // pred_check
        %p6641 = pneg %p237
      $region58: #{projector_forward.1} parent=55 // pred_check_branch
        %6643 = sbr.rel (%p6641) target = $region60
      $region59: #{projector_forward.1} parent=55 // pred_region
        _
      $region60: #{projector_forward.1} parent=55 // pred_fallthru
        _
    $region56: #{projector_forward.1} parent=5 // pred_fallthru
      _
    %p6644 = scmp.le.s32.totalorder 2, %s15
    // Predicated region
    $region61: #{projector_forward.1} parent=5 // pred_check
      %p6645 = pneg %p6644
    $region62: #{projector_forward.1} parent=5 // pred_check_branch
      %6647 = sbr.rel (%p6645) target = $region64
    $region63: #{projector_forward.1} parent=5 // pred_region
      %s6648 = ssub.s32 %s15, 2
      // Predicated region
      $region65: #{projector_forward.1} parent=63 // pred_check
        %p6649 = pneg %p243
      $region66: #{projector_forward.1} parent=63 // pred_check_branch
        %6651 = sbr.rel (%p6649) target = $region68
      $region67: #{projector_forward.1} parent=63 // pred_region
        %p6652 = scmp.lt.s32.totalorder %s21, 1
        %s6653 = scalar_select %p6652, %s21, 1
        %s6654 = smul.addr %s6653, 8
        %s6655 = smul.addr %s6654, 4
        %s6656 = scalar_lea.vmem %s9, %s6655
      $region68: #{projector_forward.1} parent=63 // pred_fallthru
        _
    $region64: #{projector_forward.1} parent=5 // pred_fallthru
      _
  $region6: #{projector_forward.1} parent=0 // loop_footer
    %s19 = sadd.s32 1, %s15
  $region7: #{projector_forward.1} parent=0 // loop_footer_branch
    %14 = sbr.rel target = $region3
  $region8: #{projector_forward.1} parent=0 // loop_exit
    _

</llo_original>
